<compile_context>
chip_gen: v6e
topology: v6e:2x2x1
jax: 0.10.0
libtpu: 0.0.40
codegen_flags: <defaults>
</compile_context>

<pallas_src>
import jax
import jax.numpy as jnp
from jax import lax
from jax.experimental import pallas as pl
from jax.experimental.pallas import tpu as pltpu


# ----------------------------------------------------------------------------
# Kernel. Grid = (2, num_vocab_tiles): axis 0 is the pass (0: GRU/attention +
# logits tiles + online softmax stats, 1: emit pvocab/copy/output tiles),
# axis 1 tiles the (padded) vocabulary.
# ----------------------------------------------------------------------------
def _decoder_kernel(
    ids_ref, tflag_ref,                             # scalar prefetch (SMEM)
    pre_h_ref, enc_ref, src_ref, cov_ref, emb_hbm_ref,
    wih0_ref, whh0_ref, bih0_ref, bhh0_ref,
    wih1_ref, whh1_ref, bih1_ref, bhh1_ref,
    w_att_enc_ref, w_att_h_ref, k_cov_ref, c0_ref,
    w1h_ref, w1c_ref, b1_ref,
    wfc2_ref, bfc2_ref,
    wgc_ref, wgh_ref, wge_ref, bgen_ref,
    out_ref, hid_ref, attn_ref, copy_ref, newcov_ref, covloss_ref,
    emb_s, hmid_s, gen_s, m_s, l_s, logits_s, dma_sem,
):
    f32 = jnp.float32
    p = pl.program_id(0)                 # pass: 0 = stats, 1 = emit
    v = pl.program_id(1)                 # vocab tile index
    B, T, G = enc_ref.shape              # B is the sublane-padded batch
    V_TILE = wfc2_ref.shape[1]

    # ------------------------------------------------------------------
    # Pass 0, first vocab tile: embedding gather (overlapped with the
    # independent attention terms), GRU step, attention, coverage,
    # context, FC1, gen gate, stats init.  Runs exactly once.
    # ------------------------------------------------------------------
    @pl.when(jnp.logical_and(p == 0, v == 0))
    def _setup():
        # Kick off the B embedding-row DMAs (ids already clamped in wrapper).
        copies = []
        for b in range(B):
            cp = pltpu.make_async_copy(
                emb_hbm_ref.at[pl.ds(ids_ref[b], 1), :],
                emb_s.at[pl.ds(b, 1), :],
                dma_sem.at[b])
            cp.start()
            copies.append(cp)

        # Independent attention terms computed while the gather is in flight:
        #   score = tanh( enc·w_e + h1n·w_h + cov * k_cov + c0 )
        enc = enc_ref[...]                                        # [B, T, G]
        cov_t = cov_ref[...]                                      # [B, T]
        enc_term = jnp.sum(enc * w_att_enc_ref[...][None, :, :], axis=2)
        cov_term = cov_t * k_cov_ref[...] + c0_ref[...]           # [B, T]

        # Now wait for the embeddings and run the 2-layer GRU (r, z, n order).
        for cp in copies:
            cp.wait()
        emb = emb_s[...]                                          # [B, E]

        def gru_cell(x, h, wih, whh, bih, bhh):
            gi = jnp.dot(x, wih, preferred_element_type=f32) + bih
            gh = jnp.dot(h, whh, preferred_element_type=f32) + bhh
            r = jax.nn.sigmoid(gi[:, 0:G] + gh[:, 0:G])
            z = jax.nn.sigmoid(gi[:, G:2 * G] + gh[:, G:2 * G])
            n = jnp.tanh(gi[:, 2 * G:3 * G] + r * gh[:, 2 * G:3 * G])
            return (1.0 - z) * n + z * h

        h0n = gru_cell(emb, pre_h_ref[0], wih0_ref[...], whh0_ref[...],
                       bih0_ref[...], bhh0_ref[...])
        h1n = gru_cell(h0n, pre_h_ref[1], wih1_ref[...], whh1_ref[...],
                       bih1_ref[...], bhh1_ref[...])
        hid_ref[0] = h0n
        hid_ref[1] = h1n

        h_term = jnp.sum(h1n * w_att_h_ref[...], axis=1, keepdims=True)
        score = jnp.tanh(enc_term + h_term + cov_term)            # [B, T]

        # Softmax over time (kept exact: attn feeds coverage outputs).
        m = jnp.max(score, axis=1, keepdims=True)
        e = jnp.exp(score - m)
        attn = e / jnp.sum(e, axis=1, keepdims=True)              # [B, T]
        attn_ref[...] = attn

        # Coverage loss + coverage update (padded rows have cov == 0, so they
        # contribute min(attn, 0) == 0 and never perturb the loss).
        cl = jnp.sum(jnp.minimum(attn, cov_t), axis=1, keepdims=True)
        covloss_ref[...] = jnp.sum(cl, axis=0, keepdims=True)     # [1, 1]
        newcov_ref[...] = cov_t + attn

        # context = bmm(attn[B,1,T], enc[B,T,G]) on the MXU.
        context = lax.dot_general(
            attn[:, None, :], enc,
            dimension_numbers=(((2,), (1,)), ((0,), (0,))),
            preferred_element_type=f32)[:, 0, :]                  # [B, G]

        # FullConnection1 with the concat split into two matmuls.
        hmid_s[...] = jnp.tanh(
            jnp.dot(h1n, w1h_ref[...], preferred_element_type=f32)
            + jnp.dot(context, w1c_ref[...], preferred_element_type=f32)
            + b1_ref[...])                                        # [B, 2G]

        # Generation gate via split dot-products (no concat, no N=1 matmul).
        gen_s[...] = jax.nn.sigmoid(
            jnp.sum(context * wgc_ref[...], axis=1, keepdims=True)
            + jnp.sum(h1n * wgh_ref[...], axis=1, keepdims=True)
            + jnp.sum(emb * wge_ref[...], axis=1, keepdims=True)
            + bgen_ref[...])                                      # [B, 1]

        # Online-softmax stats for the vocab distribution.
        m_s[...] = jnp.full(m_s.shape, -jnp.inf, m_s.dtype)
        l_s[...] = jnp.zeros(l_s.shape, l_s.dtype)

    # ------------------------------------------------------------------
    # Pass 0, every vocab tile: logits tile (bf16 weight stream, f32 acc),
    # cache it, and accumulate the logit max / sum-exp.  No output stores.
    # ------------------------------------------------------------------
    @pl.when(p == 0)
    def _stats():
        logits = (jnp.dot(hmid_s[...].astype(wfc2_ref.dtype), wfc2_ref[...],
                          preferred_element_type=f32)
                  + bfc2_ref[...])                                # [B, V_TILE]
        logits_s[v] = logits                                      # cache tile
        m_prev = m_s[...]
        m_new = jnp.maximum(m_prev, jnp.max(logits, axis=1, keepdims=True))
        l_s[...] = (l_s[...] * jnp.exp(m_prev - m_new)
                    + jnp.sum(jnp.exp(logits - m_new), axis=1, keepdims=True))
        m_s[...] = m_new

    # ------------------------------------------------------------------
    # Pass 1, every vocab tile: pvocab / copy / final mixture (lane-dense).
    # Reads the cached logits — no second w_fc2 stream, no second matmul.
    # ------------------------------------------------------------------
    @pl.when(p == 1)
    def _emit():
        logits = logits_s[v]                                      # [B, V_TILE]
        inv_l = 1.0 / l_s[...]                                    # exact norm
        pvocab = jnp.exp(logits - m_s[...]) * inv_l               # [B, V_TILE]
        gen = gen_s[...]                                          # [B, 1]

        # Copy scatter only on tiles that actually contain a source id.
        @pl.when(tflag_ref[v] > 0)
        def _copy_tile():
            attn = attn_ref[...]                                  # [B, T]
            col = (lax.broadcasted_iota(jnp.int32, (B, T, V_TILE), 2)
                   + v * V_TILE)
            onehot = (src_ref[...][:, :, None] == col).astype(f32)
            copy_tile = lax.dot_general(
                attn[:, None, :], onehot,
                dimension_numbers=(((2,), (1,)), ((0,), (0,))),
                preferred_element_type=f32)[:, 0, :]              # [B, V_TILE]
            copy_ref[...] = copy_tile
            out_ref[...] = pvocab * gen + copy_tile * (1.0 - gen)

        @pl.when(tflag_ref[v] == 0)
        def _empty_tile():
            copy_ref[...] = jnp.zeros(copy_ref.shape, copy_ref.dtype)
            out_ref[...] = pvocab * gen


# ----------------------------------------------------------------------------
# Wrapper: weight pre-folding / splitting, batch & vocab padding, pallas_call,
# PyTorch-shaped outputs.
# ----------------------------------------------------------------------------
def decoder_forward(params, input_ids, pre_hidden, enc_out, src_ids, coverage,
                    v_tile=512):
    B, T, G = enc_out.shape
    V, E = params["emb_table"].shape
    f32 = jnp.float32

    # --- vocab padding to a multiple of the tile (padded bias = -1e9) -------
    nv = -(-V // v_tile)
    Vp = nv * v_tile
    w_fc2 = params["w_fc2"]
    b_fc2 = params["b_fc2"]
    if Vp != V:
        w_fc2 = jnp.pad(w_fc2, ((0, 0), (0, Vp - V)))
        b_fc2 = jnp.pad(b_fc2, ((0, 0), (0, Vp - V)), constant_values=-1e9)
    w_fc2 = w_fc2.astype(jnp.bfloat16)   # bf16 weight stream, f32 accumulation

    # --- per-vocab-tile "has a source id" flags (skip empty copy scatters) --
    src_flat = jnp.clip(src_ids.reshape(-1).astype(jnp.int32), 0, V - 1)
    tflags = jnp.zeros((nv,), jnp.int32).at[src_flat // v_tile].add(1)
    tflags = (tflags > 0).astype(jnp.int32)

    # --- batch padding to a multiple of 8 sublanes ---------------------------
    Bp = -(-B // 8) * 8
    pad_b = Bp - B
    ids = jnp.clip(input_ids.reshape(B).astype(jnp.int32), 0, V - 1)
    if pad_b:
        ids = jnp.pad(ids, (0, pad_b))
        pre_hidden = jnp.pad(pre_hidden, ((0, 0), (0, pad_b), (0, 0)))
        enc_out = jnp.pad(enc_out, ((0, pad_b), (0, 0), (0, 0)))
        src_ids = jnp.pad(src_ids, ((0, pad_b), (0, 0)))
        coverage = jnp.pad(coverage, ((0, pad_b), (0, 0), (0, 0)))

    # --- fold alignment/coverage linears into per-term weights + scalars ----
    w_att = params["w_align"]                         # [3G, 1]
    w_att_c = w_att[2 * G:3 * G, :]                   # [G, 1]
    w_att_enc = w_att[0:G, :].reshape(1, G)
    w_att_h = w_att[G:2 * G, :].reshape(1, G)
    k_cov = params["w_cov"] @ w_att_c                 # [1, 1]
    c0 = params["b_cov"] @ w_att_c + params["b_align"]  # [1, 1]

    # --- split FC1 / gen weights so the kernel never concatenates ----------
    w1 = params["w_fc1"]
    w1_h, w1_c = w1[0:G, :], w1[G:2 * G, :]
    wg = params["w_gen"]
    wg_c = wg[0:G, :].reshape(1, G)
    wg_h = wg[G:2 * G, :].reshape(1, G)
    wg_e = wg[2 * G:, :].reshape(1, E)

    inputs = (
        ids, tflags,                                  # scalar-prefetch operands
        pre_hidden.astype(f32),
        enc_out.astype(f32),
        src_ids.astype(jnp.int32),
        coverage.reshape(Bp, T).astype(f32),
        params["emb_table"].astype(f32),
        params["w_ih0"], params["w_hh0"], params["b_ih0"], params["b_hh0"],
        params["w_ih1"], params["w_hh1"], params["b_ih1"], params["b_hh1"],
        w_att_enc, w_att_h, k_cov, c0,
        w1_h, w1_c, params["b_fc1"],
        w_fc2, b_fc2,
        wg_c, wg_h, wg_e, params["b_gen"],
    )

    def rep(shape):
        zeros = (0,) * len(shape)
        return pl.BlockSpec(shape, lambda p, v, ids, fl, _z=zeros: _z)

    # w_fc2/b_fc2: stream tile v on the stats pass, pin a constant block on
    # the emit pass so nothing is re-DMA'd there.
    def wfc2_idx(p, v, ids, fl):
        return (0, v * (1 - p) + (nv - 1) * p)

    # out/copy: fixed (never-written) block during pass 0, tile v on pass 1.
    def ov_idx(p, v, ids, fl):
        return (0, v * p)

    in_specs = [
        rep((2, Bp, G)),                        # pre_hidden
        rep((Bp, T, G)),                        # encoder outputs
        rep((Bp, T)),                           # source ids
        rep((Bp, T)),                           # coverage
        pl.BlockSpec(memory_space=pl.ANY),      # embedding table stays in HBM
        rep((E, 3 * G)), rep((G, 3 * G)), rep((1, 3 * G)), rep((1, 3 * G)),
        rep((G, 3 * G)), rep((G, 3 * G)), rep((1, 3 * G)), rep((1, 3 * G)),
        rep((1, G)), rep((1, G)), rep((1, 1)), rep((1, 1)),
        rep((G, 2 * G)), rep((G, 2 * G)), rep((1, 2 * G)),
        pl.BlockSpec((2 * G, v_tile), wfc2_idx),   # w_fc2 tile (bf16)
        pl.BlockSpec((1, v_tile), wfc2_idx),       # b_fc2 tile
        rep((1, G)), rep((1, G)), rep((1, E)), rep((1, 1)),
    ]

    out_shape = (
        jax.ShapeDtypeStruct((Bp, Vp), f32),     # output distribution
        jax.ShapeDtypeStruct((2, Bp, G), f32),   # current hidden
        jax.ShapeDtypeStruct((Bp, T), f32),      # attention weights (flat)
        jax.ShapeDtypeStruct((Bp, Vp), f32),     # copy distribution
        jax.ShapeDtypeStruct((Bp, T), f32),      # updated coverage (flat)
        jax.ShapeDtypeStruct((1, 1), f32),       # coverage loss
    )
    out_specs = (
        pl.BlockSpec((Bp, v_tile), ov_idx),
        rep((2, Bp, G)),
        rep((Bp, T)),
        pl.BlockSpec((Bp, v_tile), ov_idx),
        rep((Bp, T)),
        rep((1, 1)),
    )

    scratch_shapes = [
        pltpu.VMEM((Bp, E), f32),             # gathered embedding rows
        pltpu.VMEM((Bp, 2 * G), f32),         # FC1 activations
        pltpu.VMEM((Bp, 1), f32),             # generation gate
        pltpu.VMEM((Bp, 1), f32),             # running logit max
        pltpu.VMEM((Bp, 1), f32),             # running sum-exp
        pltpu.VMEM((nv, Bp, v_tile), f32),    # cached logits (B*Vp*4 bytes)
        pltpu.SemaphoreType.DMA((Bp,)),       # embedding-gather semaphores
    ]

    grid_spec = pltpu.PrefetchScalarGridSpec(
        num_scalar_prefetch=2,
        grid=(2, nv),                         # (pass, vocab tile)
        in_specs=in_specs,
        out_specs=out_specs,
        scratch_shapes=scratch_shapes,
    )

    # Both axes carry cross-iteration state through scratch, so "arbitrary".
    compiler_params = pltpu.CompilerParams(
        dimension_semantics=("arbitrary", "arbitrary"),
        vmem_limit_bytes=32 * 1024 * 1024,
    )

    out, hid, attn, copy, newcov, covloss = pl.pallas_call(
        _decoder_kernel,
        out_shape=out_shape,
        grid_spec=grid_spec,
        compiler_params=compiler_params,
    )(*inputs)

    # Slice away batch / vocab padding; restore PyTorch output shapes.
    return (
        out[:B, :V],                     # [B, V]
        hid[:, :B, :],                   # [2, B, 2H]
        attn[:B].reshape(B, 1, T),       # [B, 1, T]
        copy[:B, :V],                    # [B, V]
        newcov[:B].reshape(B, 1, T),     # [B, 1, T]
        covloss[0, 0],                   # scalar
    )


# ----------------------------------------------------------------------------
# Deterministic parameter init (shapes implied by the PyTorch __init__).
# Linear / GRU weights are stored pre-transposed: [in_features, out_features].
# ----------------------------------------------------------------------------
def init_params(key, embedding_size, hidden_size, output_size):
    E, H, V = embedding_size, hidden_size, output_size
    G = 2 * H
    ks = jax.random.split(key, 19)

    def u(k, shape):
        return jax.random.uniform(k, shape, jnp.float32, -0.1, 0.1)

    return {
        "emb_table": u(ks[0], (V, E)),
        "w_ih0": u(ks[1], (E, 3 * G)), "w_hh0": u(ks[2], (G, 3 * G)),
        "b_ih0": u(ks[3], (1, 3 * G)), "b_hh0": u(ks[4], (1, 3 * G)),
        "w_ih1": u(ks[5], (G, 3 * G)), "w_hh1": u(ks[6], (G, 3 * G)),
        "b_ih1": u(ks[7], (1, 3 * G)), "b_hh1": u(ks[8], (1, 3 * G)),
        "w_cov": u(ks[9], (1, G)), "b_cov": u(ks[10], (1, G)),
        "w_align": u(ks[11], (3 * G, 1)), "b_align": u(ks[12], (1, 1)),
        "w_fc1": u(ks[13], (2 * G, 2 * G)), "b_fc1": u(ks[14], (1, 2 * G)),
        "w_fc2": u(ks[15], (2 * G, V)), "b_fc2": u(ks[16], (1, V)),
        "w_gen": u(ks[17], (2 * G + E, 1)), "b_gen": u(ks[18], (1, 1)),
    }


# ----------------------------------------------------------------------------
# Pure-JAX reference (mirrors the PyTorch forward, flag=False path).
# ----------------------------------------------------------------------------
def reference_forward(p, ids, pre_h, enc, src, cov):
    B, T, G = enc.shape
    V, E = p["emb_table"].shape
    emb = p["emb_table"][ids[:, 0]]                               # [B, E]

    def cell(x, h, wih, whh, bih, bhh):
        gi = x @ wih + bih
        gh = h @ whh + bhh
        r = jax.nn.sigmoid(gi[:, :G] + gh[:, :G])
        z = jax.nn.sigmoid(gi[:, G:2 * G] + gh[:, G:2 * G])
        n = jnp.tanh(gi[:, 2 * G:] + r * gh[:, 2 * G:])
        return (1.0 - z) * n + z * h

    h0 = cell(emb, pre_h[0], p["w_ih0"], p["w_hh0"], p["b_ih0"], p["b_hh0"])
    h1 = cell(h0, pre_h[1], p["w_ih1"], p["w_hh1"], p["b_ih1"], p["b_hh1"])
    hid = jnp.stack([h0, h1], axis=0)

    cov_t = cov[:, 0, :]
    temp_cov = cov_t[:, :, None] * p["w_cov"][None, :, :] + p["b_cov"][None, :, :]
    comb = jnp.concatenate(
        [enc, jnp.broadcast_to(h1[:, None, :], (B, T, G)), temp_cov], axis=2)
    score = jnp.tanh(comb.reshape(B * T, 3 * G) @ p["w_align"]
                     + p["b_align"]).reshape(B, T)
    attn = jax.nn.softmax(score, axis=1)

    covloss = jnp.sum(jnp.minimum(attn, cov_t))
    newcov = cov + attn[:, None, :]
    ctx = jnp.sum(attn[:, :, None] * enc, axis=1)

    x = jnp.tanh(jnp.concatenate([h1, ctx], axis=1) @ p["w_fc1"] + p["b_fc1"])
    logits = x @ p["w_fc2"] + p["b_fc2"]
    pvocab = jax.nn.softmax(logits, axis=1)

    onehot = (src[:, :, None] == jnp.arange(V)[None, None, :]).astype(jnp.float32)
    copy = jnp.sum(attn[:, :, None] * onehot, axis=1)

    gen = jax.nn.sigmoid(jnp.concatenate([ctx, h1, emb], axis=1) @ p["w_gen"]
                         + p["b_gen"])
    out = pvocab * gen + copy * (1.0 - gen)
    return out, hid, attn[:, None, :], copy, newcov, covloss


if __name__ == "__main__":
    # Small shapes consistent with the module.  V=1000 with a 512-wide vocab
    # tile exercises vocab padding (Vp=1024, nv=2); src ids restricted to
    # [0, 300) so the second vocab tile exercises the empty-copy-tile skip.
    B, T, H, E, V = 2, 8, 16, 32, 1000
    G = 2 * H

    key = jax.random.PRNGKey(0)
    kp, kd = jax.random.split(key)
    params = init_params(kp, embedding_size=E, hidden_size=H, output_size=V)

    k1, k2, k3, k4, k5 = jax.random.split(kd, 5)
    input_ids = jax.random.randint(k1, (B, 1), 0, V, dtype=jnp.int32)
    pre_hidden = jax.random.uniform(k2, (2, B, G), jnp.float32, -0.5, 0.5)
    enc_out = jax.random.uniform(k3, (B, T, G), jnp.float32, -0.5, 0.5)
    src_ids = jax.random.randint(k4, (B, T), 0, 300, dtype=jnp.int32)
    coverage = jax.random.uniform(k5, (B, 1, T), jnp.float32, 0.0, 0.2)

    outs = decoder_forward(params, input_ids, pre_hidden, enc_out, src_ids,
                           coverage, v_tile=512)
    outs = jax.block_until_ready(outs)

    refs = reference_forward(params, input_ids, pre_hidden, enc_out, src_ids,
                             coverage)
    names = ["output", "hidden", "attention", "copy_prob", "coverage",
             "coverage_loss"]
    # "output" depends on the bf16 w_fc2 logits matmul; everything else is f32.
    tols = {"output": 1e-3}
    for name, a, b in zip(names, outs, refs):
        t = tols.get(name, 1e-4)
        assert jnp.allclose(a, b, atol=t, rtol=t), f"mismatch in {name}"

    print("KERNEL_OK")
</pallas_src>

<mosaic_0001>
module attributes {stable_mosaic.version = 11 : i64} {
  func.func @_decoder_kernel(%arg0: i32, %arg1: i32, %arg2: memref<8xi32, #tpu.memory_space<smem>>, %arg3: memref<2xi32, #tpu.memory_space<smem>>, %arg4: memref<2x8x32xf32, #tpu.memory_space<vmem>>, %arg5: memref<8x8x32xf32, #tpu.memory_space<vmem>>, %arg6: memref<8x8xi32, #tpu.memory_space<vmem>>, %arg7: memref<8x8xf32, #tpu.memory_space<vmem>>, %arg8: memref<1000x32xf32, #tpu.memory_space<any>>, %arg9: memref<32x96xf32, #tpu.memory_space<vmem>>, %arg10: memref<32x96xf32, #tpu.memory_space<vmem>>, %arg11: memref<1x96xf32, #tpu.memory_space<vmem>>, %arg12: memref<1x96xf32, #tpu.memory_space<vmem>>, %arg13: memref<32x96xf32, #tpu.memory_space<vmem>>, %arg14: memref<32x96xf32, #tpu.memory_space<vmem>>, %arg15: memref<1x96xf32, #tpu.memory_space<vmem>>, %arg16: memref<1x96xf32, #tpu.memory_space<vmem>>, %arg17: memref<1x32xf32, #tpu.memory_space<vmem>>, %arg18: memref<1x32xf32, #tpu.memory_space<vmem>>, %arg19: memref<1x1xf32, #tpu.memory_space<vmem>>, %arg20: memref<1x1xf32, #tpu.memory_space<vmem>>, %arg21: memref<32x64xf32, #tpu.memory_space<vmem>>, %arg22: memref<32x64xf32, #tpu.memory_space<vmem>>, %arg23: memref<1x64xf32, #tpu.memory_space<vmem>>, %arg24: memref<64x512xbf16, #tpu.memory_space<vmem>>, %arg25: memref<1x512xf32, #tpu.memory_space<vmem>>, %arg26: memref<1x32xf32, #tpu.memory_space<vmem>>, %arg27: memref<1x32xf32, #tpu.memory_space<vmem>>, %arg28: memref<1x32xf32, #tpu.memory_space<vmem>>, %arg29: memref<1x1xf32, #tpu.memory_space<vmem>>, %arg30: memref<8x512xf32, #tpu.memory_space<vmem>>, %arg31: memref<2x8x32xf32, #tpu.memory_space<vmem>>, %arg32: memref<8x8xf32, #tpu.memory_space<vmem>>, %arg33: memref<8x512xf32, #tpu.memory_space<vmem>>, %arg34: memref<8x8xf32, #tpu.memory_space<vmem>>, %arg35: memref<1x1xf32, #tpu.memory_space<vmem>>, %arg36: memref<8x32xf32, #tpu.memory_space<vmem>>, %arg37: memref<8x64xf32, #tpu.memory_space<vmem>>, %arg38: memref<8x1xf32, #tpu.memory_space<vmem>>, %arg39: memref<8x1xf32, #tpu.memory_space<vmem>>, %arg40: memref<8x1xf32, #tpu.memory_space<vmem>>, %arg41: memref<2x8x512xf32, #tpu.memory_space<vmem>>, %arg42: memref<8x!tpu.dma_semaphore, #tpu.memory_space<semaphore_mem>>) attributes {dimension_semantics = [#tpu.dimension_semantics<arbitrary>, #tpu.dimension_semantics<arbitrary>], iteration_bounds = array<i64: 2, 2>, scalar_prefetch = 2 : i64, scratch_operands = 7 : i64, tpu.core_type = #tpu.core_type<tc>, window_params = [{pipeline_mode = #tpu.pipeline_mode<synchronous>, transform_indices = @transform_0, window_bounds = array<i64: 2, 8, 32>}, {pipeline_mode = #tpu.pipeline_mode<synchronous>, transform_indices = @transform_1, window_bounds = array<i64: 8, 8, 32>}, {pipeline_mode = #tpu.pipeline_mode<synchronous>, transform_indices = @transform_2, window_bounds = array<i64: 8, 8>}, {pipeline_mode = #tpu.pipeline_mode<synchronous>, transform_indices = @transform_3, window_bounds = array<i64: 8, 8>}, {}, {pipeline_mode = #tpu.pipeline_mode<synchronous>, transform_indices = @transform_5, window_bounds = array<i64: 32, 96>}, {pipeline_mode = #tpu.pipeline_mode<synchronous>, transform_indices = @transform_6, window_bounds = array<i64: 32, 96>}, {pipeline_mode = #tpu.pipeline_mode<synchronous>, transform_indices = @transform_7, window_bounds = array<i64: 1, 96>}, {pipeline_mode = #tpu.pipeline_mode<synchronous>, transform_indices = @transform_8, window_bounds = array<i64: 1, 96>}, {pipeline_mode = #tpu.pipeline_mode<synchronous>, transform_indices = @transform_9, window_bounds = array<i64: 32, 96>}, {pipeline_mode = #tpu.pipeline_mode<synchronous>, transform_indices = @transform_10, window_bounds = array<i64: 32, 96>}, {pipeline_mode = #tpu.pipeline_mode<synchronous>, transform_indices = @transform_11, window_bounds = array<i64: 1, 96>}, {pipeline_mode = #tpu.pipeline_mode<synchronous>, transform_indices = @transform_12, window_bounds = array<i64: 1, 96>}, {pipeline_mode = #tpu.pipeline_mode<synchronous>, transform_indices = @transform_13, window_bounds = array<i64: 1, 32>}, {pipeline_mode = #tpu.pipeline_mode<synchronous>, transform_indices = @transform_14, window_bounds = array<i64: 1, 32>}, {pipeline_mode = #tpu.pipeline_mode<synchronous>, transform_indices = @transform_15, window_bounds = array<i64: 1, 1>}, {pipeline_mode = #tpu.pipeline_mode<synchronous>, transform_indices = @transform_16, window_bounds = array<i64: 1, 1>}, {pipeline_mode = #tpu.pipeline_mode<synchronous>, transform_indices = @transform_17, window_bounds = array<i64: 32, 64>}, {pipeline_mode = #tpu.pipeline_mode<synchronous>, transform_indices = @transform_18, window_bounds = array<i64: 32, 64>}, {pipeline_mode = #tpu.pipeline_mode<synchronous>, transform_indices = @transform_19, window_bounds = array<i64: 1, 64>}, {transform_indices = @transform_20, window_bounds = array<i64: 64, 512>}, {transform_indices = @transform_21, window_bounds = array<i64: 1, 512>}, {pipeline_mode = #tpu.pipeline_mode<synchronous>, transform_indices = @transform_22, window_bounds = array<i64: 1, 32>}, {pipeline_mode = #tpu.pipeline_mode<synchronous>, transform_indices = @transform_23, window_bounds = array<i64: 1, 32>}, {pipeline_mode = #tpu.pipeline_mode<synchronous>, transform_indices = @transform_24, window_bounds = array<i64: 1, 32>}, {pipeline_mode = #tpu.pipeline_mode<synchronous>, transform_indices = @transform_25, window_bounds = array<i64: 1, 1>}, {transform_indices = @transform_26, window_bounds = array<i64: 8, 512>}, {pipeline_mode = #tpu.pipeline_mode<synchronous>, transform_indices = @transform_27, window_bounds = array<i64: 2, 8, 32>}, {pipeline_mode = #tpu.pipeline_mode<synchronous>, transform_indices = @transform_28, window_bounds = array<i64: 8, 8>}, {transform_indices = @transform_29, window_bounds = array<i64: 8, 512>}, {pipeline_mode = #tpu.pipeline_mode<synchronous>, transform_indices = @transform_30, window_bounds = array<i64: 8, 8>}, {pipeline_mode = #tpu.pipeline_mode<synchronous>, transform_indices = @transform_31, window_bounds = array<i64: 1, 1>}]} {
    %c0_i32 = arith.constant 0 : i32
    %0 = arith.cmpi eq, %arg0, %c0_i32 : i32
    %c0_i32_0 = arith.constant 0 : i32
    %1 = arith.cmpi eq, %arg1, %c0_i32_0 : i32
    %2 = arith.andi %0, %1 : i1
    %3 = arith.extui %2 : i1 to i32
    %c0_i32_1 = arith.constant 0 : i32
    %4 = arith.cmpi ne, %3, %c0_i32_1 : i32
    scf.if %4 {
      %c0 = arith.constant 0 : index
      %11 = memref.load %arg2[%c0] : memref<8xi32, #tpu.memory_space<smem>>
      %c0_i32_5 = arith.constant 0 : i32
      %c0_i32_6 = arith.constant 0 : i32
      %12 = tpu.memref_slice %arg8[%11, %c0_i32_6] : memref<1000x32xf32, #tpu.memory_space<any>> -> memref<1x32xf32, #tpu.memory_space<any>>
      %c0_i32_7 = arith.constant 0 : i32
      %c0_i32_8 = arith.constant 0 : i32
      %13 = tpu.memref_slice %arg36[%c0_i32_7, %c0_i32_8] : memref<8x32xf32, #tpu.memory_space<vmem>> -> memref<1x32xf32, #tpu.memory_space<vmem>>
      %14 = tpu.memref_slice %arg42[%c0_i32_5] : memref<8x!tpu.dma_semaphore, #tpu.memory_space<semaphore_mem>> -> memref<1x!tpu.dma_semaphore, #tpu.memory_space<semaphore_mem>>
      %15 = tpu.memref_squeeze %14 : memref<1x!tpu.dma_semaphore, #tpu.memory_space<semaphore_mem>> -> memref<!tpu.dma_semaphore, #tpu.memory_space<semaphore_mem>>
      tpu.enqueue_dma source(%12 : memref<1x32xf32, #tpu.memory_space<any>>) target(%13 : memref<1x32xf32, #tpu.memory_space<vmem>>) target_semaphore(%15 : memref<!tpu.dma_semaphore, #tpu.memory_space<semaphore_mem>>)
      %c1 = arith.constant 1 : index
      %16 = memref.load %arg2[%c1] : memref<8xi32, #tpu.memory_space<smem>>
      %c1_i32_9 = arith.constant 1 : i32
      %c0_i32_10 = arith.constant 0 : i32
      %17 = tpu.memref_slice %arg8[%16, %c0_i32_10] : memref<1000x32xf32, #tpu.memory_space<any>> -> memref<1x32xf32, #tpu.memory_space<any>>
      %c1_i32_11 = arith.constant 1 : i32
      %c0_i32_12 = arith.constant 0 : i32
      %18 = tpu.memref_slice %arg36[%c1_i32_11, %c0_i32_12] : memref<8x32xf32, #tpu.memory_space<vmem>> -> memref<1x32xf32, #tpu.memory_space<vmem>>
      %19 = tpu.memref_slice %arg42[%c1_i32_9] : memref<8x!tpu.dma_semaphore, #tpu.memory_space<semaphore_mem>> -> memref<1x!tpu.dma_semaphore, #tpu.memory_space<semaphore_mem>>
      %20 = tpu.memref_squeeze %19 : memref<1x!tpu.dma_semaphore, #tpu.memory_space<semaphore_mem>> -> memref<!tpu.dma_semaphore, #tpu.memory_space<semaphore_mem>>
      tpu.enqueue_dma source(%17 : memref<1x32xf32, #tpu.memory_space<any>>) target(%18 : memref<1x32xf32, #tpu.memory_space<vmem>>) target_semaphore(%20 : memref<!tpu.dma_semaphore, #tpu.memory_space<semaphore_mem>>)
      %c2 = arith.constant 2 : index
      %21 = memref.load %arg2[%c2] : memref<8xi32, #tpu.memory_space<smem>>
      %c2_i32 = arith.constant 2 : i32
      %c0_i32_13 = arith.constant 0 : i32
      %22 = tpu.memref_slice %arg8[%21, %c0_i32_13] : memref<1000x32xf32, #tpu.memory_space<any>> -> memref<1x32xf32, #tpu.memory_space<any>>
      %c2_i32_14 = arith.constant 2 : i32
      %c0_i32_15 = arith.constant 0 : i32
      %23 = tpu.memref_slice %arg36[%c2_i32_14, %c0_i32_15] : memref<8x32xf32, #tpu.memory_space<vmem>> -> memref<1x32xf32, #tpu.memory_space<vmem>>
      %24 = tpu.memref_slice %arg42[%c2_i32] : memref<8x!tpu.dma_semaphore, #tpu.memory_space<semaphore_mem>> -> memref<1x!tpu.dma_semaphore, #tpu.memory_space<semaphore_mem>>
      %25 = tpu.memref_squeeze %24 : memref<1x!tpu.dma_semaphore, #tpu.memory_space<semaphore_mem>> -> memref<!tpu.dma_semaphore, #tpu.memory_space<semaphore_mem>>
      tpu.enqueue_dma source(%22 : memref<1x32xf32, #tpu.memory_space<any>>) target(%23 : memref<1x32xf32, #tpu.memory_space<vmem>>) target_semaphore(%25 : memref<!tpu.dma_semaphore, #tpu.memory_space<semaphore_mem>>)
      %c3 = arith.constant 3 : index
      %26 = memref.load %arg2[%c3] : memref<8xi32, #tpu.memory_space<smem>>
      %c3_i32 = arith.constant 3 : i32
      %c0_i32_16 = arith.constant 0 : i32
      %27 = tpu.memref_slice %arg8[%26, %c0_i32_16] : memref<1000x32xf32, #tpu.memory_space<any>> -> memref<1x32xf32, #tpu.memory_space<any>>
      %c3_i32_17 = arith.constant 3 : i32
      %c0_i32_18 = arith.constant 0 : i32
      %28 = tpu.memref_slice %arg36[%c3_i32_17, %c0_i32_18] : memref<8x32xf32, #tpu.memory_space<vmem>> -> memref<1x32xf32, #tpu.memory_space<vmem>>
      %29 = tpu.memref_slice %arg42[%c3_i32] : memref<8x!tpu.dma_semaphore, #tpu.memory_space<semaphore_mem>> -> memref<1x!tpu.dma_semaphore, #tpu.memory_space<semaphore_mem>>
      %30 = tpu.memref_squeeze %29 : memref<1x!tpu.dma_semaphore, #tpu.memory_space<semaphore_mem>> -> memref<!tpu.dma_semaphore, #tpu.memory_space<semaphore_mem>>
      tpu.enqueue_dma source(%27 : memref<1x32xf32, #tpu.memory_space<any>>) target(%28 : memref<1x32xf32, #tpu.memory_space<vmem>>) target_semaphore(%30 : memref<!tpu.dma_semaphore, #tpu.memory_space<semaphore_mem>>)
      %c4 = arith.constant 4 : index
      %31 = memref.load %arg2[%c4] : memref<8xi32, #tpu.memory_space<smem>>
      %c4_i32 = arith.constant 4 : i32
      %c0_i32_19 = arith.constant 0 : i32
      %32 = tpu.memref_slice %arg8[%31, %c0_i32_19] : memref<1000x32xf32, #tpu.memory_space<any>> -> memref<1x32xf32, #tpu.memory_space<any>>
      %c4_i32_20 = arith.constant 4 : i32
      %c0_i32_21 = arith.constant 0 : i32
      %33 = tpu.memref_slice %arg36[%c4_i32_20, %c0_i32_21] : memref<8x32xf32, #tpu.memory_space<vmem>> -> memref<1x32xf32, #tpu.memory_space<vmem>>
      %34 = tpu.memref_slice %arg42[%c4_i32] : memref<8x!tpu.dma_semaphore, #tpu.memory_space<semaphore_mem>> -> memref<1x!tpu.dma_semaphore, #tpu.memory_space<semaphore_mem>>
      %35 = tpu.memref_squeeze %34 : memref<1x!tpu.dma_semaphore, #tpu.memory_space<semaphore_mem>> -> memref<!tpu.dma_semaphore, #tpu.memory_space<semaphore_mem>>
      tpu.enqueue_dma source(%32 : memref<1x32xf32, #tpu.memory_space<any>>) target(%33 : memref<1x32xf32, #tpu.memory_space<vmem>>) target_semaphore(%35 : memref<!tpu.dma_semaphore, #tpu.memory_space<semaphore_mem>>)
      %c5 = arith.constant 5 : index
      %36 = memref.load %arg2[%c5] : memref<8xi32, #tpu.memory_space<smem>>
      %c5_i32 = arith.constant 5 : i32
      %c0_i32_22 = arith.constant 0 : i32
      %37 = tpu.memref_slice %arg8[%36, %c0_i32_22] : memref<1000x32xf32, #tpu.memory_space<any>> -> memref<1x32xf32, #tpu.memory_space<any>>
      %c5_i32_23 = arith.constant 5 : i32
      %c0_i32_24 = arith.constant 0 : i32
      %38 = tpu.memref_slice %arg36[%c5_i32_23, %c0_i32_24] : memref<8x32xf32, #tpu.memory_space<vmem>> -> memref<1x32xf32, #tpu.memory_space<vmem>>
      %39 = tpu.memref_slice %arg42[%c5_i32] : memref<8x!tpu.dma_semaphore, #tpu.memory_space<semaphore_mem>> -> memref<1x!tpu.dma_semaphore, #tpu.memory_space<semaphore_mem>>
      %40 = tpu.memref_squeeze %39 : memref<1x!tpu.dma_semaphore, #tpu.memory_space<semaphore_mem>> -> memref<!tpu.dma_semaphore, #tpu.memory_space<semaphore_mem>>
      tpu.enqueue_dma source(%37 : memref<1x32xf32, #tpu.memory_space<any>>) target(%38 : memref<1x32xf32, #tpu.memory_space<vmem>>) target_semaphore(%40 : memref<!tpu.dma_semaphore, #tpu.memory_space<semaphore_mem>>)
      %c6 = arith.constant 6 : index
      %41 = memref.load %arg2[%c6] : memref<8xi32, #tpu.memory_space<smem>>
      %c6_i32 = arith.constant 6 : i32
      %c0_i32_25 = arith.constant 0 : i32
      %42 = tpu.memref_slice %arg8[%41, %c0_i32_25] : memref<1000x32xf32, #tpu.memory_space<any>> -> memref<1x32xf32, #tpu.memory_space<any>>
      %c6_i32_26 = arith.constant 6 : i32
      %c0_i32_27 = arith.constant 0 : i32
      %43 = tpu.memref_slice %arg36[%c6_i32_26, %c0_i32_27] : memref<8x32xf32, #tpu.memory_space<vmem>> -> memref<1x32xf32, #tpu.memory_space<vmem>>
      %44 = tpu.memref_slice %arg42[%c6_i32] : memref<8x!tpu.dma_semaphore, #tpu.memory_space<semaphore_mem>> -> memref<1x!tpu.dma_semaphore, #tpu.memory_space<semaphore_mem>>
      %45 = tpu.memref_squeeze %44 : memref<1x!tpu.dma_semaphore, #tpu.memory_space<semaphore_mem>> -> memref<!tpu.dma_semaphore, #tpu.memory_space<semaphore_mem>>
      tpu.enqueue_dma source(%42 : memref<1x32xf32, #tpu.memory_space<any>>) target(%43 : memref<1x32xf32, #tpu.memory_space<vmem>>) target_semaphore(%45 : memref<!tpu.dma_semaphore, #tpu.memory_space<semaphore_mem>>)
      %c7 = arith.constant 7 : index
      %46 = memref.load %arg2[%c7] : memref<8xi32, #tpu.memory_space<smem>>
      %c7_i32 = arith.constant 7 : i32
      %c0_i32_28 = arith.constant 0 : i32
      %47 = tpu.memref_slice %arg8[%46, %c0_i32_28] : memref<1000x32xf32, #tpu.memory_space<any>> -> memref<1x32xf32, #tpu.memory_space<any>>
      %c7_i32_29 = arith.constant 7 : i32
      %c0_i32_30 = arith.constant 0 : i32
      %48 = tpu.memref_slice %arg36[%c7_i32_29, %c0_i32_30] : memref<8x32xf32, #tpu.memory_space<vmem>> -> memref<1x32xf32, #tpu.memory_space<vmem>>
      %49 = tpu.memref_slice %arg42[%c7_i32] : memref<8x!tpu.dma_semaphore, #tpu.memory_space<semaphore_mem>> -> memref<1x!tpu.dma_semaphore, #tpu.memory_space<semaphore_mem>>
      %50 = tpu.memref_squeeze %49 : memref<1x!tpu.dma_semaphore, #tpu.memory_space<semaphore_mem>> -> memref<!tpu.dma_semaphore, #tpu.memory_space<semaphore_mem>>
      tpu.enqueue_dma source(%47 : memref<1x32xf32, #tpu.memory_space<any>>) target(%48 : memref<1x32xf32, #tpu.memory_space<vmem>>) target_semaphore(%50 : memref<!tpu.dma_semaphore, #tpu.memory_space<semaphore_mem>>)
      %c0_31 = arith.constant 0 : index
      %c0_32 = arith.constant 0 : index
      %c0_33 = arith.constant 0 : index
      %51 = vector.load %arg5[%c0_31, %c0_32, %c0_33] : memref<8x8x32xf32, #tpu.memory_space<vmem>>, vector<8x8x32xf32>
      %c0_34 = arith.constant 0 : index
      %c0_35 = arith.constant 0 : index
      %52 = vector.load %arg7[%c0_34, %c0_35] : memref<8x8xf32, #tpu.memory_space<vmem>>, vector<8x8xf32>
      %c0_36 = arith.constant 0 : index
      %c0_37 = arith.constant 0 : index
      %53 = vector.load %arg17[%c0_36, %c0_37] : memref<1x32xf32, #tpu.memory_space<vmem>>, vector<1x32xf32>
      %54 = vector.shape_cast %53 : vector<1x32xf32> to vector<1x1x32xf32>
      %55 = vector.broadcast %54 : vector<1x1x32xf32> to vector<8x8x32xf32>
      %56 = arith.mulf %51, %55 : vector<8x8x32xf32>
      %cst = arith.constant dense<0.000000e+00> : vector<8x8xf32>
      %57 = vector.multi_reduction <add>, %56, %cst [2] : vector<8x8x32xf32> to vector<8x8xf32>
      %c0_38 = arith.constant 0 : index
      %c0_39 = arith.constant 0 : index
      %58 = vector.load %arg19[%c0_38, %c0_39] : memref<1x1xf32, #tpu.memory_space<vmem>>, vector<1x1xf32>
      %59 = vector.broadcast %58 : vector<1x1xf32> to vector<8x8xf32>
      %60 = arith.mulf %52, %59 : vector<8x8xf32>
      %c0_40 = arith.constant 0 : index
      %c0_41 = arith.constant 0 : index
      %61 = vector.load %arg20[%c0_40, %c0_41] : memref<1x1xf32, #tpu.memory_space<vmem>>, vector<1x1xf32>
      %62 = vector.broadcast %61 : vector<1x1xf32> to vector<8x8xf32>
      %63 = arith.addf %60, %62 : vector<8x8xf32>
      %c0_i32_42 = arith.constant 0 : i32
      %c0_i32_43 = arith.constant 0 : i32
      %64 = tpu.memref_slice %arg8[%11, %c0_i32_43] : memref<1000x32xf32, #tpu.memory_space<any>> -> memref<1x32xf32, #tpu.memory_space<any>>
      %c0_i32_44 = arith.constant 0 : i32
      %c0_i32_45 = arith.constant 0 : i32
      %65 = tpu.memref_slice %arg36[%c0_i32_44, %c0_i32_45] : memref<8x32xf32, #tpu.memory_space<vmem>> -> memref<1x32xf32, #tpu.memory_space<vmem>>
      %66 = tpu.memref_slice %arg42[%c0_i32_42] : memref<8x!tpu.dma_semaphore, #tpu.memory_space<semaphore_mem>> -> memref<1x!tpu.dma_semaphore, #tpu.memory_space<semaphore_mem>>
      %67 = tpu.memref_squeeze %66 : memref<1x!tpu.dma_semaphore, #tpu.memory_space<semaphore_mem>> -> memref<!tpu.dma_semaphore, #tpu.memory_space<semaphore_mem>>
      tpu.wait_dma2 semaphore(%67 : memref<!tpu.dma_semaphore, #tpu.memory_space<semaphore_mem>>) src(%64 : memref<1x32xf32, #tpu.memory_space<any>>) dst(%65 : memref<1x32xf32, #tpu.memory_space<vmem>>)
      %c1_i32_46 = arith.constant 1 : i32
      %c0_i32_47 = arith.constant 0 : i32
      %68 = tpu.memref_slice %arg8[%16, %c0_i32_47] : memref<1000x32xf32, #tpu.memory_space<any>> -> memref<1x32xf32, #tpu.memory_space<any>>
      %c1_i32_48 = arith.constant 1 : i32
      %c0_i32_49 = arith.constant 0 : i32
      %69 = tpu.memref_slice %arg36[%c1_i32_48, %c0_i32_49] : memref<8x32xf32, #tpu.memory_space<vmem>> -> memref<1x32xf32, #tpu.memory_space<vmem>>
      %70 = tpu.memref_slice %arg42[%c1_i32_46] : memref<8x!tpu.dma_semaphore, #tpu.memory_space<semaphore_mem>> -> memref<1x!tpu.dma_semaphore, #tpu.memory_space<semaphore_mem>>
      %71 = tpu.memref_squeeze %70 : memref<1x!tpu.dma_semaphore, #tpu.memory_space<semaphore_mem>> -> memref<!tpu.dma_semaphore, #tpu.memory_space<semaphore_mem>>
      tpu.wait_dma2 semaphore(%71 : memref<!tpu.dma_semaphore, #tpu.memory_space<semaphore_mem>>) src(%68 : memref<1x32xf32, #tpu.memory_space<any>>) dst(%69 : memref<1x32xf32, #tpu.memory_space<vmem>>)
      %c2_i32_50 = arith.constant 2 : i32
      %c0_i32_51 = arith.constant 0 : i32
      %72 = tpu.memref_slice %arg8[%21, %c0_i32_51] : memref<1000x32xf32, #tpu.memory_space<any>> -> memref<1x32xf32, #tpu.memory_space<any>>
      %c2_i32_52 = arith.constant 2 : i32
      %c0_i32_53 = arith.constant 0 : i32
      %73 = tpu.memref_slice %arg36[%c2_i32_52, %c0_i32_53] : memref<8x32xf32, #tpu.memory_space<vmem>> -> memref<1x32xf32, #tpu.memory_space<vmem>>
      %74 = tpu.memref_slice %arg42[%c2_i32_50] : memref<8x!tpu.dma_semaphore, #tpu.memory_space<semaphore_mem>> -> memref<1x!tpu.dma_semaphore, #tpu.memory_space<semaphore_mem>>
      %75 = tpu.memref_squeeze %74 : memref<1x!tpu.dma_semaphore, #tpu.memory_space<semaphore_mem>> -> memref<!tpu.dma_semaphore, #tpu.memory_space<semaphore_mem>>
      tpu.wait_dma2 semaphore(%75 : memref<!tpu.dma_semaphore, #tpu.memory_space<semaphore_mem>>) src(%72 : memref<1x32xf32, #tpu.memory_space<any>>) dst(%73 : memref<1x32xf32, #tpu.memory_space<vmem>>)
      %c3_i32_54 = arith.constant 3 : i32
      %c0_i32_55 = arith.constant 0 : i32
      %76 = tpu.memref_slice %arg8[%26, %c0_i32_55] : memref<1000x32xf32, #tpu.memory_space<any>> -> memref<1x32xf32, #tpu.memory_space<any>>
      %c3_i32_56 = arith.constant 3 : i32
      %c0_i32_57 = arith.constant 0 : i32
      %77 = tpu.memref_slice %arg36[%c3_i32_56, %c0_i32_57] : memref<8x32xf32, #tpu.memory_space<vmem>> -> memref<1x32xf32, #tpu.memory_space<vmem>>
      %78 = tpu.memref_slice %arg42[%c3_i32_54] : memref<8x!tpu.dma_semaphore, #tpu.memory_space<semaphore_mem>> -> memref<1x!tpu.dma_semaphore, #tpu.memory_space<semaphore_mem>>
      %79 = tpu.memref_squeeze %78 : memref<1x!tpu.dma_semaphore, #tpu.memory_space<semaphore_mem>> -> memref<!tpu.dma_semaphore, #tpu.memory_space<semaphore_mem>>
      tpu.wait_dma2 semaphore(%79 : memref<!tpu.dma_semaphore, #tpu.memory_space<semaphore_mem>>) src(%76 : memref<1x32xf32, #tpu.memory_space<any>>) dst(%77 : memref<1x32xf32, #tpu.memory_space<vmem>>)
      %c4_i32_58 = arith.constant 4 : i32
      %c0_i32_59 = arith.constant 0 : i32
      %80 = tpu.memref_slice %arg8[%31, %c0_i32_59] : memref<1000x32xf32, #tpu.memory_space<any>> -> memref<1x32xf32, #tpu.memory_space<any>>
      %c4_i32_60 = arith.constant 4 : i32
      %c0_i32_61 = arith.constant 0 : i32
      %81 = tpu.memref_slice %arg36[%c4_i32_60, %c0_i32_61] : memref<8x32xf32, #tpu.memory_space<vmem>> -> memref<1x32xf32, #tpu.memory_space<vmem>>
      %82 = tpu.memref_slice %arg42[%c4_i32_58] : memref<8x!tpu.dma_semaphore, #tpu.memory_space<semaphore_mem>> -> memref<1x!tpu.dma_semaphore, #tpu.memory_space<semaphore_mem>>
      %83 = tpu.memref_squeeze %82 : memref<1x!tpu.dma_semaphore, #tpu.memory_space<semaphore_mem>> -> memref<!tpu.dma_semaphore, #tpu.memory_space<semaphore_mem>>
      tpu.wait_dma2 semaphore(%83 : memref<!tpu.dma_semaphore, #tpu.memory_space<semaphore_mem>>) src(%80 : memref<1x32xf32, #tpu.memory_space<any>>) dst(%81 : memref<1x32xf32, #tpu.memory_space<vmem>>)
      %c5_i32_62 = arith.constant 5 : i32
      %c0_i32_63 = arith.constant 0 : i32
      %84 = tpu.memref_slice %arg8[%36, %c0_i32_63] : memref<1000x32xf32, #tpu.memory_space<any>> -> memref<1x32xf32, #tpu.memory_space<any>>
      %c5_i32_64 = arith.constant 5 : i32
      %c0_i32_65 = arith.constant 0 : i32
      %85 = tpu.memref_slice %arg36[%c5_i32_64, %c0_i32_65] : memref<8x32xf32, #tpu.memory_space<vmem>> -> memref<1x32xf32, #tpu.memory_space<vmem>>
      %86 = tpu.memref_slice %arg42[%c5_i32_62] : memref<8x!tpu.dma_semaphore, #tpu.memory_space<semaphore_mem>> -> memref<1x!tpu.dma_semaphore, #tpu.memory_space<semaphore_mem>>
      %87 = tpu.memref_squeeze %86 : memref<1x!tpu.dma_semaphore, #tpu.memory_space<semaphore_mem>> -> memref<!tpu.dma_semaphore, #tpu.memory_space<semaphore_mem>>
      tpu.wait_dma2 semaphore(%87 : memref<!tpu.dma_semaphore, #tpu.memory_space<semaphore_mem>>) src(%84 : memref<1x32xf32, #tpu.memory_space<any>>) dst(%85 : memref<1x32xf32, #tpu.memory_space<vmem>>)
      %c6_i32_66 = arith.constant 6 : i32
      %c0_i32_67 = arith.constant 0 : i32
      %88 = tpu.memref_slice %arg8[%41, %c0_i32_67] : memref<1000x32xf32, #tpu.memory_space<any>> -> memref<1x32xf32, #tpu.memory_space<any>>
      %c6_i32_68 = arith.constant 6 : i32
      %c0_i32_69 = arith.constant 0 : i32
      %89 = tpu.memref_slice %arg36[%c6_i32_68, %c0_i32_69] : memref<8x32xf32, #tpu.memory_space<vmem>> -> memref<1x32xf32, #tpu.memory_space<vmem>>
      %90 = tpu.memref_slice %arg42[%c6_i32_66] : memref<8x!tpu.dma_semaphore, #tpu.memory_space<semaphore_mem>> -> memref<1x!tpu.dma_semaphore, #tpu.memory_space<semaphore_mem>>
      %91 = tpu.memref_squeeze %90 : memref<1x!tpu.dma_semaphore, #tpu.memory_space<semaphore_mem>> -> memref<!tpu.dma_semaphore, #tpu.memory_space<semaphore_mem>>
      tpu.wait_dma2 semaphore(%91 : memref<!tpu.dma_semaphore, #tpu.memory_space<semaphore_mem>>) src(%88 : memref<1x32xf32, #tpu.memory_space<any>>) dst(%89 : memref<1x32xf32, #tpu.memory_space<vmem>>)
      %c7_i32_70 = arith.constant 7 : i32
      %c0_i32_71 = arith.constant 0 : i32
      %92 = tpu.memref_slice %arg8[%46, %c0_i32_71] : memref<1000x32xf32, #tpu.memory_space<any>> -> memref<1x32xf32, #tpu.memory_space<any>>
      %c7_i32_72 = arith.constant 7 : i32
      %c0_i32_73 = arith.constant 0 : i32
      %93 = tpu.memref_slice %arg36[%c7_i32_72, %c0_i32_73] : memref<8x32xf32, #tpu.memory_space<vmem>> -> memref<1x32xf32, #tpu.memory_space<vmem>>
      %94 = tpu.memref_slice %arg42[%c7_i32_70] : memref<8x!tpu.dma_semaphore, #tpu.memory_space<semaphore_mem>> -> memref<1x!tpu.dma_semaphore, #tpu.memory_space<semaphore_mem>>
      %95 = tpu.memref_squeeze %94 : memref<1x!tpu.dma_semaphore, #tpu.memory_space<semaphore_mem>> -> memref<!tpu.dma_semaphore, #tpu.memory_space<semaphore_mem>>
      tpu.wait_dma2 semaphore(%95 : memref<!tpu.dma_semaphore, #tpu.memory_space<semaphore_mem>>) src(%92 : memref<1x32xf32, #tpu.memory_space<any>>) dst(%93 : memref<1x32xf32, #tpu.memory_space<vmem>>)
      %c0_74 = arith.constant 0 : index
      %c0_75 = arith.constant 0 : index
      %96 = vector.load %arg36[%c0_74, %c0_75] : memref<8x32xf32, #tpu.memory_space<vmem>>, vector<8x32xf32>
      %c0_76 = arith.constant 0 : index
      %c0_77 = arith.constant 0 : index
      %c0_78 = arith.constant 0 : index
      %97 = vector.load %arg4[%c0_76, %c0_77, %c0_78] : memref<2x8x32xf32, #tpu.memory_space<vmem>>, vector<1x8x32xf32>
      %98 = vector.shape_cast %97 : vector<1x8x32xf32> to vector<8x32xf32>
      %c0_79 = arith.constant 0 : index
      %c0_80 = arith.constant 0 : index
      %99 = vector.load %arg9[%c0_79, %c0_80] : memref<32x96xf32, #tpu.memory_space<vmem>>, vector<32x96xf32>
      %c0_81 = arith.constant 0 : index
      %c0_82 = arith.constant 0 : index
      %100 = vector.load %arg10[%c0_81, %c0_82] : memref<32x96xf32, #tpu.memory_space<vmem>>, vector<32x96xf32>
      %c0_83 = arith.constant 0 : index
      %c0_84 = arith.constant 0 : index
      %101 = vector.load %arg11[%c0_83, %c0_84] : memref<1x96xf32, #tpu.memory_space<vmem>>, vector<1x96xf32>
      %c0_85 = arith.constant 0 : index
      %c0_86 = arith.constant 0 : index
      %102 = vector.load %arg12[%c0_85, %c0_86] : memref<1x96xf32, #tpu.memory_space<vmem>>, vector<1x96xf32>
      %cst_87 = arith.constant dense<0.000000e+00> : vector<8x96xf32>
      %103 = tpu.matmul %96, %99, %cst_87 {dimension_numbers = #tpu.dot_dimension_numbers<[1], [0], [0], [1], [0, 0, 1, 1], [], []>} : vector<8x32xf32>, vector<32x96xf32>, vector<8x96xf32> -> vector<8x96xf32>
      %104 = vector.broadcast %101 : vector<1x96xf32> to vector<8x96xf32>
      %105 = arith.addf %103, %104 : vector<8x96xf32>
      %cst_88 = arith.constant dense<0.000000e+00> : vector<8x96xf32>
      %106 = tpu.matmul %98, %100, %cst_88 {dimension_numbers = #tpu.dot_dimension_numbers<[1], [0], [0], [1], [0, 0, 1, 1], [], []>} : vector<8x32xf32>, vector<32x96xf32>, vector<8x96xf32> -> vector<8x96xf32>
      %107 = vector.broadcast %102 : vector<1x96xf32> to vector<8x96xf32>
      %108 = arith.addf %106, %107 : vector<8x96xf32>
      %109 = vector.extract_strided_slice %105 {offsets = [0, 0], sizes = [8, 32], strides = [1, 1]} : vector<8x96xf32> to vector<8x32xf32>
      %110 = vector.extract_strided_slice %108 {offsets = [0, 0], sizes = [8, 32], strides = [1, 1]} : vector<8x96xf32> to vector<8x32xf32>
      %111 = arith.addf %109, %110 : vector<8x32xf32>
      %112 = arith.negf %111 : vector<8x32xf32>
      %113 = math.exp %112 : vector<8x32xf32>
      %cst_89 = arith.constant 1.000000e+00 : f32
      %114 = vector.broadcast %cst_89 : f32 to vector<8x32xf32>
      %115 = arith.addf %114, %113 : vector<8x32xf32>
      %116 = arith.divf %114, %115 : vector<8x32xf32>
      %117 = vector.extract_strided_slice %105 {offsets = [0, 32], sizes = [8, 32], strides = [1, 1]} : vector<8x96xf32> to vector<8x32xf32>
      %118 = vector.extract_strided_slice %108 {offsets = [0, 32], sizes = [8, 32], strides = [1, 1]} : vector<8x96xf32> to vector<8x32xf32>
      %119 = arith.addf %117, %118 : vector<8x32xf32>
      %120 = arith.negf %119 : vector<8x32xf32>
      %121 = math.exp %120 : vector<8x32xf32>
      %cst_90 = arith.constant 1.000000e+00 : f32
      %122 = vector.broadcast %cst_90 : f32 to vector<8x32xf32>
      %123 = arith.addf %122, %121 : vector<8x32xf32>
      %124 = arith.divf %122, %123 : vector<8x32xf32>
      %125 = vector.extract_strided_slice %105 {offsets = [0, 64], sizes = [8, 32], strides = [1, 1]} : vector<8x96xf32> to vector<8x32xf32>
      %126 = vector.extract_strided_slice %108 {offsets = [0, 64], sizes = [8, 32], strides = [1, 1]} : vector<8x96xf32> to vector<8x32xf32>
      %127 = arith.mulf %116, %126 : vector<8x32xf32>
      %128 = arith.addf %125, %127 : vector<8x32xf32>
      %129 = math.tanh %128 : vector<8x32xf32>
      %cst_91 = arith.constant 1.000000e+00 : f32
      %130 = vector.broadcast %cst_91 : f32 to vector<8x32xf32>
      %131 = arith.subf %130, %124 : vector<8x32xf32>
      %132 = arith.mulf %131, %129 : vector<8x32xf32>
      %133 = arith.mulf %124, %98 : vector<8x32xf32>
      %134 = arith.addf %132, %133 : vector<8x32xf32>
      %c1_92 = arith.constant 1 : index
      %c0_93 = arith.constant 0 : index
      %c0_94 = arith.constant 0 : index
      %135 = vector.load %arg4[%c1_92, %c0_93, %c0_94] : memref<2x8x32xf32, #tpu.memory_space<vmem>>, vector<1x8x32xf32>
      %136 = vector.shape_cast %135 : vector<1x8x32xf32> to vector<8x32xf32>
      %c0_95 = arith.constant 0 : index
      %c0_96 = arith.constant 0 : index
      %137 = vector.load %arg13[%c0_95, %c0_96] : memref<32x96xf32, #tpu.memory_space<vmem>>, vector<32x96xf32>
      %c0_97 = arith.constant 0 : index
      %c0_98 = arith.constant 0 : index
      %138 = vector.load %arg14[%c0_97, %c0_98] : memref<32x96xf32, #tpu.memory_space<vmem>>, vector<32x96xf32>
      %c0_99 = arith.constant 0 : index
      %c0_100 = arith.constant 0 : index
      %139 = vector.load %arg15[%c0_99, %c0_100] : memref<1x96xf32, #tpu.memory_space<vmem>>, vector<1x96xf32>
      %c0_101 = arith.constant 0 : index
      %c0_102 = arith.constant 0 : index
      %140 = vector.load %arg16[%c0_101, %c0_102] : memref<1x96xf32, #tpu.memory_space<vmem>>, vector<1x96xf32>
      %cst_103 = arith.constant dense<0.000000e+00> : vector<8x96xf32>
      %141 = tpu.matmul %134, %137, %cst_103 {dimension_numbers = #tpu.dot_dimension_numbers<[1], [0], [0], [1], [0, 0, 1, 1], [], []>} : vector<8x32xf32>, vector<32x96xf32>, vector<8x96xf32> -> vector<8x96xf32>
      %142 = vector.broadcast %139 : vector<1x96xf32> to vector<8x96xf32>
      %143 = arith.addf %141, %142 : vector<8x96xf32>
      %cst_104 = arith.constant dense<0.000000e+00> : vector<8x96xf32>
      %144 = tpu.matmul %136, %138, %cst_104 {dimension_numbers = #tpu.dot_dimension_numbers<[1], [0], [0], [1], [0, 0, 1, 1], [], []>} : vector<8x32xf32>, vector<32x96xf32>, vector<8x96xf32> -> vector<8x96xf32>
      %145 = vector.broadcast %140 : vector<1x96xf32> to vector<8x96xf32>
      %146 = arith.addf %144, %145 : vector<8x96xf32>
      %147 = vector.extract_strided_slice %143 {offsets = [0, 0], sizes = [8, 32], strides = [1, 1]} : vector<8x96xf32> to vector<8x32xf32>
      %148 = vector.extract_strided_slice %146 {offsets = [0, 0], sizes = [8, 32], strides = [1, 1]} : vector<8x96xf32> to vector<8x32xf32>
      %149 = arith.addf %147, %148 : vector<8x32xf32>
      %150 = arith.negf %149 : vector<8x32xf32>
      %151 = math.exp %150 : vector<8x32xf32>
      %cst_105 = arith.constant 1.000000e+00 : f32
      %152 = vector.broadcast %cst_105 : f32 to vector<8x32xf32>
      %153 = arith.addf %152, %151 : vector<8x32xf32>
      %154 = arith.divf %152, %153 : vector<8x32xf32>
      %155 = vector.extract_strided_slice %143 {offsets = [0, 32], sizes = [8, 32], strides = [1, 1]} : vector<8x96xf32> to vector<8x32xf32>
      %156 = vector.extract_strided_slice %146 {offsets = [0, 32], sizes = [8, 32], strides = [1, 1]} : vector<8x96xf32> to vector<8x32xf32>
      %157 = arith.addf %155, %156 : vector<8x32xf32>
      %158 = arith.negf %157 : vector<8x32xf32>
      %159 = math.exp %158 : vector<8x32xf32>
      %cst_106 = arith.constant 1.000000e+00 : f32
      %160 = vector.broadcast %cst_106 : f32 to vector<8x32xf32>
      %161 = arith.addf %160, %159 : vector<8x32xf32>
      %162 = arith.divf %160, %161 : vector<8x32xf32>
      %163 = vector.extract_strided_slice %143 {offsets = [0, 64], sizes = [8, 32], strides = [1, 1]} : vector<8x96xf32> to vector<8x32xf32>
      %164 = vector.extract_strided_slice %146 {offsets = [0, 64], sizes = [8, 32], strides = [1, 1]} : vector<8x96xf32> to vector<8x32xf32>
      %165 = arith.mulf %154, %164 : vector<8x32xf32>
      %166 = arith.addf %163, %165 : vector<8x32xf32>
      %167 = math.tanh %166 : vector<8x32xf32>
      %cst_107 = arith.constant 1.000000e+00 : f32
      %168 = vector.broadcast %cst_107 : f32 to vector<8x32xf32>
      %169 = arith.subf %168, %162 : vector<8x32xf32>
      %170 = arith.mulf %169, %167 : vector<8x32xf32>
      %171 = arith.mulf %162, %136 : vector<8x32xf32>
      %172 = arith.addf %170, %171 : vector<8x32xf32>
      %c0_108 = arith.constant 0 : index
      %c0_109 = arith.constant 0 : index
      %c0_110 = arith.constant 0 : index
      %173 = vector.load %arg31[%c0_108, %c0_109, %c0_110] : memref<2x8x32xf32, #tpu.memory_space<vmem>>, vector<1x8x32xf32>
      %174 = vector.shape_cast %173 : vector<1x8x32xf32> to vector<8x32xf32>
      %175 = vector.shape_cast %134 : vector<8x32xf32> to vector<1x8x32xf32>
      tpu.vector_store %arg31[%c0_108, %c0_109, %c0_110], %175 {strides = array<i32>} : memref<2x8x32xf32, #tpu.memory_space<vmem>>, vector<1x8x32xf32>,
      %c1_111 = arith.constant 1 : index
      %c0_112 = arith.constant 0 : index
      %c0_113 = arith.constant 0 : index
      %176 = vector.load %arg31[%c1_111, %c0_112, %c0_113] : memref<2x8x32xf32, #tpu.memory_space<vmem>>, vector<1x8x32xf32>
      %177 = vector.shape_cast %176 : vector<1x8x32xf32> to vector<8x32xf32>
      %178 = vector.shape_cast %172 : vector<8x32xf32> to vector<1x8x32xf32>
      tpu.vector_store %arg31[%c1_111, %c0_112, %c0_113], %178 {strides = array<i32>} : memref<2x8x32xf32, #tpu.memory_space<vmem>>, vector<1x8x32xf32>,
      %c0_114 = arith.constant 0 : index
      %c0_115 = arith.constant 0 : index
      %179 = vector.load %arg18[%c0_114, %c0_115] : memref<1x32xf32, #tpu.memory_space<vmem>>, vector<1x32xf32>
      %180 = vector.broadcast %179 : vector<1x32xf32> to vector<8x32xf32>
      %181 = arith.mulf %172, %180 : vector<8x32xf32>
      %cst_116 = arith.constant dense<0.000000e+00> : vector<8xf32>
      %182 = vector.multi_reduction <add>, %181, %cst_116 [1] : vector<8x32xf32> to vector<8xf32>
      %183 = vector.shape_cast %182 : vector<8xf32> to vector<8x1xf32>
      %184 = vector.broadcast %183 : vector<8x1xf32> to vector<8x8xf32>
      %185 = arith.addf %57, %184 : vector<8x8xf32>
      %186 = arith.addf %185, %63 : vector<8x8xf32>
      %187 = math.tanh %186 : vector<8x8xf32>
      %cst_117 = arith.constant dense<0xFF800000> : vector<8xf32>
      %188 = vector.multi_reduction <maximumf>, %187, %cst_117 [1] : vector<8x8xf32> to vector<8xf32>
      %189 = vector.shape_cast %188 : vector<8xf32> to vector<8x1xf32>
      %190 = vector.broadcast %189 : vector<8x1xf32> to vector<8x8xf32>
      %191 = arith.subf %187, %190 : vector<8x8xf32>
      %192 = math.exp %191 : vector<8x8xf32>
      %cst_118 = arith.constant dense<0.000000e+00> : vector<8xf32>
      %193 = vector.multi_reduction <add>, %192, %cst_118 [1] : vector<8x8xf32> to vector<8xf32>
      %194 = vector.shape_cast %193 : vector<8xf32> to vector<8x1xf32>
      %195 = vector.broadcast %194 : vector<8x1xf32> to vector<8x8xf32>
      %196 = arith.divf %192, %195 : vector<8x8xf32>
      %c0_119 = arith.constant 0 : index
      %c0_120 = arith.constant 0 : index
      %197 = vector.load %arg32[%c0_119, %c0_120] : memref<8x8xf32, #tpu.memory_space<vmem>>, vector<8x8xf32>
      tpu.vector_store %arg32[%c0_119, %c0_120], %196 {strides = array<i32>} : memref<8x8xf32, #tpu.memory_space<vmem>>, vector<8x8xf32>,
      %198 = arith.minimumf %196, %52 : vector<8x8xf32>
      %cst_121 = arith.constant dense<0.000000e+00> : vector<8xf32>
      %199 = vector.multi_reduction <add>, %198, %cst_121 [1] : vector<8x8xf32> to vector<8xf32>
      %200 = vector.shape_cast %199 : vector<8xf32> to vector<8x1xf32>
      %cst_122 = arith.constant dense<0.000000e+00> : vector<1xf32>
      %201 = vector.multi_reduction <add>, %200, %cst_122 [0] : vector<8x1xf32> to vector<1xf32>
      %202 = vector.shape_cast %201 : vector<1xf32> to vector<1x1xf32>
      %c0_123 = arith.constant 0 : index
      %c0_124 = arith.constant 0 : index
      %203 = vector.load %arg35[%c0_123, %c0_124] : memref<1x1xf32, #tpu.memory_space<vmem>>, vector<1x1xf32>
      tpu.vector_store %arg35[%c0_123, %c0_124], %202 {strides = array<i32>} : memref<1x1xf32, #tpu.memory_space<vmem>>, vector<1x1xf32>,
      %204 = arith.addf %52, %196 : vector<8x8xf32>
      %c0_125 = arith.constant 0 : index
      %c0_126 = arith.constant 0 : index
      %205 = vector.load %arg34[%c0_125, %c0_126] : memref<8x8xf32, #tpu.memory_space<vmem>>, vector<8x8xf32>
      tpu.vector_store %arg34[%c0_125, %c0_126], %204 {strides = array<i32>} : memref<8x8xf32, #tpu.memory_space<vmem>>, vector<8x8xf32>,
      %206 = vector.shape_cast %196 : vector<8x8xf32> to vector<8x1x8xf32>
      %cst_127 = arith.constant dense<0.000000e+00> : vector<8x1x32xf32>
      %207 = tpu.matmul %206, %51, %cst_127 {dimension_numbers = #tpu.dot_dimension_numbers<[2], [1], [1], [2], [0, 0, 0, 1, 1, 2], [0], [0]>} : vector<8x1x8xf32>, vector<8x8x32xf32>, vector<8x1x32xf32> -> vector<8x1x32xf32>
      %208 = vector.shape_cast %207 : vector<8x1x32xf32> to vector<8x32xf32>
      %c0_128 = arith.constant 0 : index
      %c0_129 = arith.constant 0 : index
      %209 = vector.load %arg21[%c0_128, %c0_129] : memref<32x64xf32, #tpu.memory_space<vmem>>, vector<32x64xf32>
      %cst_130 = arith.constant dense<0.000000e+00> : vector<8x64xf32>
      %210 = tpu.matmul %172, %209, %cst_130 {dimension_numbers = #tpu.dot_dimension_numbers<[1], [0], [0], [1], [0, 0, 1, 1], [], []>} : vector<8x32xf32>, vector<32x64xf32>, vector<8x64xf32> -> vector<8x64xf32>
      %c0_131 = arith.constant 0 : index
      %c0_132 = arith.constant 0 : index
      %211 = vector.load %arg22[%c0_131, %c0_132] : memref<32x64xf32, #tpu.memory_space<vmem>>, vector<32x64xf32>
      %cst_133 = arith.constant dense<0.000000e+00> : vector<8x64xf32>
      %212 = tpu.matmul %208, %211, %cst_133 {dimension_numbers = #tpu.dot_dimension_numbers<[1], [0], [0], [1], [0, 0, 1, 1], [], []>} : vector<8x32xf32>, vector<32x64xf32>, vector<8x64xf32> -> vector<8x64xf32>
      %213 = arith.addf %210, %212 : vector<8x64xf32>
      %c0_134 = arith.constant 0 : index
      %c0_135 = arith.constant 0 : index
      %214 = vector.load %arg23[%c0_134, %c0_135] : memref<1x64xf32, #tpu.memory_space<vmem>>, vector<1x64xf32>
      %215 = vector.broadcast %214 : vector<1x64xf32> to vector<8x64xf32>
      %216 = arith.addf %213, %215 : vector<8x64xf32>
      %217 = math.tanh %216 : vector<8x64xf32>
      %c0_136 = arith.constant 0 : index
      %c0_137 = arith.constant 0 : index
      %218 = vector.load %arg37[%c0_136, %c0_137] : memref<8x64xf32, #tpu.memory_space<vmem>>, vector<8x64xf32>
      tpu.vector_store %arg37[%c0_136, %c0_137], %217 {strides = array<i32>} : memref<8x64xf32, #tpu.memory_space<vmem>>, vector<8x64xf32>,
      %c0_138 = arith.constant 0 : index
      %c0_139 = arith.constant 0 : index
      %219 = vector.load %arg26[%c0_138, %c0_139] : memref<1x32xf32, #tpu.memory_space<vmem>>, vector<1x32xf32>
      %220 = vector.broadcast %219 : vector<1x32xf32> to vector<8x32xf32>
      %221 = arith.mulf %208, %220 : vector<8x32xf32>
      %cst_140 = arith.constant dense<0.000000e+00> : vector<8xf32>
      %222 = vector.multi_reduction <add>, %221, %cst_140 [1] : vector<8x32xf32> to vector<8xf32>
      %223 = vector.shape_cast %222 : vector<8xf32> to vector<8x1xf32>
      %c0_141 = arith.constant 0 : index
      %c0_142 = arith.constant 0 : index
      %224 = vector.load %arg27[%c0_141, %c0_142] : memref<1x32xf32, #tpu.memory_space<vmem>>, vector<1x32xf32>
      %225 = vector.broadcast %224 : vector<1x32xf32> to vector<8x32xf32>
      %226 = arith.mulf %172, %225 : vector<8x32xf32>
      %cst_143 = arith.constant dense<0.000000e+00> : vector<8xf32>
      %227 = vector.multi_reduction <add>, %226, %cst_143 [1] : vector<8x32xf32> to vector<8xf32>
      %228 = vector.shape_cast %227 : vector<8xf32> to vector<8x1xf32>
      %229 = arith.addf %223, %228 : vector<8x1xf32>
      %c0_144 = arith.constant 0 : index
      %c0_145 = arith.constant 0 : index
      %230 = vector.load %arg28[%c0_144, %c0_145] : memref<1x32xf32, #tpu.memory_space<vmem>>, vector<1x32xf32>
      %231 = vector.broadcast %230 : vector<1x32xf32> to vector<8x32xf32>
      %232 = arith.mulf %96, %231 : vector<8x32xf32>
      %cst_146 = arith.constant dense<0.000000e+00> : vector<8xf32>
      %233 = vector.multi_reduction <add>, %232, %cst_146 [1] : vector<8x32xf32> to vector<8xf32>
      %234 = vector.shape_cast %233 : vector<8xf32> to vector<8x1xf32>
      %235 = arith.addf %229, %234 : vector<8x1xf32>
      %c0_147 = arith.constant 0 : index
      %c0_148 = arith.constant 0 : index
      %236 = vector.load %arg29[%c0_147, %c0_148] : memref<1x1xf32, #tpu.memory_space<vmem>>, vector<1x1xf32>
      %237 = vector.broadcast %236 : vector<1x1xf32> to vector<8x1xf32>
      %238 = arith.addf %235, %237 : vector<8x1xf32>
      %239 = arith.negf %238 : vector<8x1xf32>
      %240 = math.exp %239 : vector<8x1xf32>
      %cst_149 = arith.constant 1.000000e+00 : f32
      %241 = vector.broadcast %cst_149 : f32 to vector<8x1xf32>
      %242 = arith.addf %241, %240 : vector<8x1xf32>
      %243 = arith.divf %241, %242 : vector<8x1xf32>
      %c0_150 = arith.constant 0 : index
      %c0_151 = arith.constant 0 : index
      %244 = vector.load %arg38[%c0_150, %c0_151] : memref<8x1xf32, #tpu.memory_space<vmem>>, vector<8x1xf32>
      tpu.vector_store %arg38[%c0_150, %c0_151], %243 {strides = array<i32>} : memref<8x1xf32, #tpu.memory_space<vmem>>, vector<8x1xf32>,
      %cst_152 = arith.constant 0xFF800000 : f32
      %245 = vector.broadcast %cst_152 : f32 to vector<8x1xf32>
      %c0_153 = arith.constant 0 : index
      %c0_154 = arith.constant 0 : index
      %246 = vector.load %arg39[%c0_153, %c0_154] : memref<8x1xf32, #tpu.memory_space<vmem>>, vector<8x1xf32>
      tpu.vector_store %arg39[%c0_153, %c0_154], %245 {strides = array<i32>} : memref<8x1xf32, #tpu.memory_space<vmem>>, vector<8x1xf32>,
      %cst_155 = arith.constant 0.000000e+00 : f32
      %247 = vector.broadcast %cst_155 : f32 to vector<8x1xf32>
      %c0_156 = arith.constant 0 : index
      %c0_157 = arith.constant 0 : index
      %248 = vector.load %arg40[%c0_156, %c0_157] : memref<8x1xf32, #tpu.memory_space<vmem>>, vector<8x1xf32>
      tpu.vector_store %arg40[%c0_156, %c0_157], %247 {strides = array<i32>} : memref<8x1xf32, #tpu.memory_space<vmem>>, vector<8x1xf32>,
    } else {
    }
    %c0_i32_2 = arith.constant 0 : i32
    %5 = arith.cmpi eq, %arg0, %c0_i32_2 : i32
    %6 = arith.extui %5 : i1 to i32
    %c0_i32_3 = arith.constant 0 : i32
    %7 = arith.cmpi ne, %6, %c0_i32_3 : i32
    scf.if %7 {
      %c0 = arith.constant 0 : index
      %c0_5 = arith.constant 0 : index
      %11 = vector.load %arg37[%c0, %c0_5] : memref<8x64xf32, #tpu.memory_space<vmem>>, vector<8x64xf32>
      %12 = arith.truncf %11 : vector<8x64xf32> to vector<8x64xbf16>
      %c0_6 = arith.constant 0 : index
      %c0_7 = arith.constant 0 : index
      %13 = vector.load %arg24[%c0_6, %c0_7] : memref<64x512xbf16, #tpu.memory_space<vmem>>, vector<64x512xbf16>
      %cst = arith.constant dense<0.000000e+00> : vector<8x512xf32>
      %14 = tpu.matmul %12, %13, %cst {dimension_numbers = #tpu.dot_dimension_numbers<[1], [0], [0], [1], [0, 0, 1, 1], [], []>} : vector<8x64xbf16>, vector<64x512xbf16>, vector<8x512xf32> -> vector<8x512xf32>
      %c0_8 = arith.constant 0 : index
      %c0_9 = arith.constant 0 : index
      %15 = vector.load %arg25[%c0_8, %c0_9] : memref<1x512xf32, #tpu.memory_space<vmem>>, vector<1x512xf32>
      %16 = vector.broadcast %15 : vector<1x512xf32> to vector<8x512xf32>
      %17 = arith.addf %14, %16 : vector<8x512xf32>
      %18 = arith.index_cast %arg1 : i32 to index
      %c0_10 = arith.constant 0 : index
      %c0_11 = arith.constant 0 : index
      %19 = vector.load %arg41[%18, %c0_10, %c0_11] : memref<2x8x512xf32, #tpu.memory_space<vmem>>, vector<1x8x512xf32>
      %20 = vector.shape_cast %19 : vector<1x8x512xf32> to vector<8x512xf32>
      %21 = vector.shape_cast %17 : vector<8x512xf32> to vector<1x8x512xf32>
      tpu.vector_store %arg41[%18, %c0_10, %c0_11], %21 {strides = array<i32>} : memref<2x8x512xf32, #tpu.memory_space<vmem>>, vector<1x8x512xf32>,
      %c0_12 = arith.constant 0 : index
      %c0_13 = arith.constant 0 : index
      %22 = vector.load %arg39[%c0_12, %c0_13] : memref<8x1xf32, #tpu.memory_space<vmem>>, vector<8x1xf32>
      %cst_14 = arith.constant dense<0xFF800000> : vector<8xf32>
      %23 = vector.multi_reduction <maximumf>, %17, %cst_14 [1] : vector<8x512xf32> to vector<8xf32>
      %24 = vector.shape_cast %23 : vector<8xf32> to vector<8x1xf32>
      %25 = arith.maximumf %22, %24 : vector<8x1xf32>
      %c0_15 = arith.constant 0 : index
      %c0_16 = arith.constant 0 : index
      %26 = vector.load %arg40[%c0_15, %c0_16] : memref<8x1xf32, #tpu.memory_space<vmem>>, vector<8x1xf32>
      %27 = arith.subf %22, %25 : vector<8x1xf32>
      %28 = math.exp %27 : vector<8x1xf32>
      %29 = arith.mulf %26, %28 : vector<8x1xf32>
      %30 = vector.broadcast %25 : vector<8x1xf32> to vector<8x512xf32>
      %31 = arith.subf %17, %30 : vector<8x512xf32>
      %32 = math.exp %31 : vector<8x512xf32>
      %cst_17 = arith.constant dense<0.000000e+00> : vector<8xf32>
      %33 = vector.multi_reduction <add>, %32, %cst_17 [1] : vector<8x512xf32> to vector<8xf32>
      %34 = vector.shape_cast %33 : vector<8xf32> to vector<8x1xf32>
      %35 = arith.addf %29, %34 : vector<8x1xf32>
      %c0_18 = arith.constant 0 : index
      %c0_19 = arith.constant 0 : index
      %36 = vector.load %arg40[%c0_18, %c0_19] : memref<8x1xf32, #tpu.memory_space<vmem>>, vector<8x1xf32>
      tpu.vector_store %arg40[%c0_18, %c0_19], %35 {strides = array<i32>} : memref<8x1xf32, #tpu.memory_space<vmem>>, vector<8x1xf32>,
      %c0_20 = arith.constant 0 : index
      %c0_21 = arith.constant 0 : index
      %37 = vector.load %arg39[%c0_20, %c0_21] : memref<8x1xf32, #tpu.memory_space<vmem>>, vector<8x1xf32>
      tpu.vector_store %arg39[%c0_20, %c0_21], %25 {strides = array<i32>} : memref<8x1xf32, #tpu.memory_space<vmem>>, vector<8x1xf32>,
    } else {
    }
    %c1_i32 = arith.constant 1 : i32
    %8 = arith.cmpi eq, %arg0, %c1_i32 : i32
    %9 = arith.extui %8 : i1 to i32
    %c0_i32_4 = arith.constant 0 : i32
    %10 = arith.cmpi ne, %9, %c0_i32_4 : i32
    scf.if %10 {
      %11 = arith.index_cast %arg1 : i32 to index
      %c0 = arith.constant 0 : index
      %c0_5 = arith.constant 0 : index
      %12 = vector.load %arg41[%11, %c0, %c0_5] : memref<2x8x512xf32, #tpu.memory_space<vmem>>, vector<1x8x512xf32>
      %13 = vector.shape_cast %12 : vector<1x8x512xf32> to vector<8x512xf32>
      %c0_6 = arith.constant 0 : index
      %c0_7 = arith.constant 0 : index
      %14 = vector.load %arg40[%c0_6, %c0_7] : memref<8x1xf32, #tpu.memory_space<vmem>>, vector<8x1xf32>
      %cst = arith.constant 1.000000e+00 : f32
      %15 = vector.broadcast %cst : f32 to vector<8x1xf32>
      %16 = arith.divf %15, %14 : vector<8x1xf32>
      %c0_8 = arith.constant 0 : index
      %c0_9 = arith.constant 0 : index
      %17 = vector.load %arg39[%c0_8, %c0_9] : memref<8x1xf32, #tpu.memory_space<vmem>>, vector<8x1xf32>
      %18 = vector.broadcast %17 : vector<8x1xf32> to vector<8x512xf32>
      %19 = arith.subf %13, %18 : vector<8x512xf32>
      %20 = math.exp %19 : vector<8x512xf32>
      %21 = vector.broadcast %16 : vector<8x1xf32> to vector<8x512xf32>
      %22 = arith.mulf %20, %21 : vector<8x512xf32>
      %c0_10 = arith.constant 0 : index
      %c0_11 = arith.constant 0 : index
      %23 = vector.load %arg38[%c0_10, %c0_11] : memref<8x1xf32, #tpu.memory_space<vmem>>, vector<8x1xf32>
      %24 = arith.index_cast %arg1 : i32 to index
      %25 = memref.load %arg3[%24] : memref<2xi32, #tpu.memory_space<smem>>
      %c0_i32_12 = arith.constant 0 : i32
      %26 = arith.cmpi sgt, %25, %c0_i32_12 : i32
      %27 = arith.extui %26 : i1 to i32
      %c0_i32_13 = arith.constant 0 : i32
      %28 = arith.cmpi ne, %27, %c0_i32_13 : i32
      scf.if %28 {
        %c0_16 = arith.constant 0 : index
        %c0_17 = arith.constant 0 : index
        %34 = vector.load %arg32[%c0_16, %c0_17] : memref<8x8xf32, #tpu.memory_space<vmem>>, vector<8x8xf32>
        %35 = tpu.iota {dimensions = array<i32: 2>} : vector<8x8x512xi32>
        %c512_i32 = arith.constant 512 : i32
        %36 = arith.muli %arg1, %c512_i32 : i32
        %37 = vector.broadcast %36 : i32 to vector<8x8x512xi32>
        %38 = arith.addi %35, %37 : vector<8x8x512xi32>
        %c0_18 = arith.constant 0 : index
        %c0_19 = arith.constant 0 : index
        %39 = vector.load %arg6[%c0_18, %c0_19] : memref<8x8xi32, #tpu.memory_space<vmem>>, vector<8x8xi32>
        %40 = vector.shape_cast %39 : vector<8x8xi32> to vector<8x8x1xi32>
        %41 = vector.broadcast %40 : vector<8x8x1xi32> to vector<8x8x512xi32>
        %42 = arith.cmpi eq, %41, %38 : vector<8x8x512xi32>
        %43 = arith.extui %42 : vector<8x8x512xi1> to vector<8x8x512xi32>
        %44 = arith.sitofp %43 : vector<8x8x512xi32> to vector<8x8x512xf32>
        %45 = vector.shape_cast %34 : vector<8x8xf32> to vector<8x1x8xf32>
        %cst_20 = arith.constant dense<0.000000e+00> : vector<8x1x512xf32>
        %46 = tpu.matmul %45, %44, %cst_20 {dimension_numbers = #tpu.dot_dimension_numbers<[2], [1], [1], [2], [0, 0, 0, 1, 1, 2], [0], [0]>} : vector<8x1x8xf32>, vector<8x8x512xf32>, vector<8x1x512xf32> -> vector<8x1x512xf32>
        %47 = vector.shape_cast %46 : vector<8x1x512xf32> to vector<8x512xf32>
        %c0_21 = arith.constant 0 : index
        %c0_22 = arith.constant 0 : index
        %48 = vector.load %arg33[%c0_21, %c0_22] : memref<8x512xf32, #tpu.memory_space<vmem>>, vector<8x512xf32>
        tpu.vector_store %arg33[%c0_21, %c0_22], %47 {strides = array<i32>} : memref<8x512xf32, #tpu.memory_space<vmem>>, vector<8x512xf32>,
        %49 = vector.broadcast %23 : vector<8x1xf32> to vector<8x512xf32>
        %50 = arith.mulf %22, %49 : vector<8x512xf32>
        %cst_23 = arith.constant 1.000000e+00 : f32
        %51 = vector.broadcast %cst_23 : f32 to vector<8x1xf32>
        %52 = arith.subf %51, %23 : vector<8x1xf32>
        %53 = vector.broadcast %52 : vector<8x1xf32> to vector<8x512xf32>
        %54 = arith.mulf %47, %53 : vector<8x512xf32>
        %55 = arith.addf %50, %54 : vector<8x512xf32>
        %c0_24 = arith.constant 0 : index
        %c0_25 = arith.constant 0 : index
        %56 = vector.load %arg30[%c0_24, %c0_25] : memref<8x512xf32, #tpu.memory_space<vmem>>, vector<8x512xf32>
        tpu.vector_store %arg30[%c0_24, %c0_25], %55 {strides = array<i32>} : memref<8x512xf32, #tpu.memory_space<vmem>>, vector<8x512xf32>,
      } else {
      }
      %29 = arith.index_cast %arg1 : i32 to index
      %30 = memref.load %arg3[%29] : memref<2xi32, #tpu.memory_space<smem>>
      %c0_i32_14 = arith.constant 0 : i32
      %31 = arith.cmpi eq, %30, %c0_i32_14 : i32
      %32 = arith.extui %31 : i1 to i32
      %c0_i32_15 = arith.constant 0 : i32
      %33 = arith.cmpi ne, %32, %c0_i32_15 : i32
      scf.if %33 {
        %cst_16 = arith.constant 0.000000e+00 : f32
        %34 = vector.broadcast %cst_16 : f32 to vector<8x512xf32>
        %c0_17 = arith.constant 0 : index
        %c0_18 = arith.constant 0 : index
        %35 = vector.load %arg33[%c0_17, %c0_18] : memref<8x512xf32, #tpu.memory_space<vmem>>, vector<8x512xf32>
        tpu.vector_store %arg33[%c0_17, %c0_18], %34 {strides = array<i32>} : memref<8x512xf32, #tpu.memory_space<vmem>>, vector<8x512xf32>,
        %36 = vector.broadcast %23 : vector<8x1xf32> to vector<8x512xf32>
        %37 = arith.mulf %22, %36 : vector<8x512xf32>
        %c0_19 = arith.constant 0 : index
        %c0_20 = arith.constant 0 : index
        %38 = vector.load %arg30[%c0_19, %c0_20] : memref<8x512xf32, #tpu.memory_space<vmem>>, vector<8x512xf32>
        tpu.vector_store %arg30[%c0_19, %c0_20], %37 {strides = array<i32>} : memref<8x512xf32, #tpu.memory_space<vmem>>, vector<8x512xf32>,
      } else {
      }
    } else {
    }
    return
  }
  func.func @transform_0(%arg0: i32, %arg1: i32, %arg2: memref<8xi32, #tpu.memory_space<smem>>, %arg3: memref<2xi32, #tpu.memory_space<smem>>) -> (i32, i32, i32) {
    %c0_i32 = arith.constant 0 : i32
    %c0_i32_0 = arith.constant 0 : i32
    %c0_i32_1 = arith.constant 0 : i32
    %c0_i32_2 = arith.constant 0 : i32
    return %c0_i32, %c0_i32_0, %c0_i32_1 : i32, i32, i32
  }
  func.func @transform_1(%arg0: i32, %arg1: i32, %arg2: memref<8xi32, #tpu.memory_space<smem>>, %arg3: memref<2xi32, #tpu.memory_space<smem>>) -> (i32, i32, i32) {
    %c0_i32 = arith.constant 0 : i32
    %c0_i32_0 = arith.constant 0 : i32
    %c0_i32_1 = arith.constant 0 : i32
    %c0_i32_2 = arith.constant 0 : i32
    return %c0_i32, %c0_i32_0, %c0_i32_1 : i32, i32, i32
  }
  func.func @transform_2(%arg0: i32, %arg1: i32, %arg2: memref<8xi32, #tpu.memory_space<smem>>, %arg3: memref<2xi32, #tpu.memory_space<smem>>) -> (i32, i32) {
    %c0_i32 = arith.constant 0 : i32
    %c0_i32_0 = arith.constant 0 : i32
    %c0_i32_1 = arith.constant 0 : i32
    return %c0_i32, %c0_i32_0 : i32, i32
  }
  func.func @transform_3(%arg0: i32, %arg1: i32, %arg2: memref<8xi32, #tpu.memory_space<smem>>, %arg3: memref<2xi32, #tpu.memory_space<smem>>) -> (i32, i32) {
    %c0_i32 = arith.constant 0 : i32
    %c0_i32_0 = arith.constant 0 : i32
    %c0_i32_1 = arith.constant 0 : i32
    return %c0_i32, %c0_i32_0 : i32, i32
  }
  func.func @transform_5(%arg0: i32, %arg1: i32, %arg2: memref<8xi32, #tpu.memory_space<smem>>, %arg3: memref<2xi32, #tpu.memory_space<smem>>) -> (i32, i32) {
    %c0_i32 = arith.constant 0 : i32
    %c0_i32_0 = arith.constant 0 : i32
    %c0_i32_1 = arith.constant 0 : i32
    return %c0_i32, %c0_i32_0 : i32, i32
  }
  func.func @transform_6(%arg0: i32, %arg1: i32, %arg2: memref<8xi32, #tpu.memory_space<smem>>, %arg3: memref<2xi32, #tpu.memory_space<smem>>) -> (i32, i32) {
    %c0_i32 = arith.constant 0 : i32
    %c0_i32_0 = arith.constant 0 : i32
    %c0_i32_1 = arith.constant 0 : i32
    return %c0_i32, %c0_i32_0 : i32, i32
  }
  func.func @transform_7(%arg0: i32, %arg1: i32, %arg2: memref<8xi32, #tpu.memory_space<smem>>, %arg3: memref<2xi32, #tpu.memory_space<smem>>) -> (i32, i32) {
    %c0_i32 = arith.constant 0 : i32
    %c0_i32_0 = arith.constant 0 : i32
    %c0_i32_1 = arith.constant 0 : i32
    return %c0_i32, %c0_i32_0 : i32, i32
  }
  func.func @transform_8(%arg0: i32, %arg1: i32, %arg2: memref<8xi32, #tpu.memory_space<smem>>, %arg3: memref<2xi32, #tpu.memory_space<smem>>) -> (i32, i32) {
    %c0_i32 = arith.constant 0 : i32
    %c0_i32_0 = arith.constant 0 : i32
    %c0_i32_1 = arith.constant 0 : i32
    return %c0_i32, %c0_i32_0 : i32, i32
  }
  func.func @transform_9(%arg0: i32, %arg1: i32, %arg2: memref<8xi32, #tpu.memory_space<smem>>, %arg3: memref<2xi32, #tpu.memory_space<smem>>) -> (i32, i32) {
    %c0_i32 = arith.constant 0 : i32
    %c0_i32_0 = arith.constant 0 : i32
    %c0_i32_1 = arith.constant 0 : i32
    return %c0_i32, %c0_i32_0 : i32, i32
  }
  func.func @transform_10(%arg0: i32, %arg1: i32, %arg2: memref<8xi32, #tpu.memory_space<smem>>, %arg3: memref<2xi32, #tpu.memory_space<smem>>) -> (i32, i32) {
    %c0_i32 = arith.constant 0 : i32
    %c0_i32_0 = arith.constant 0 : i32
    %c0_i32_1 = arith.constant 0 : i32
    return %c0_i32, %c0_i32_0 : i32, i32
  }
  func.func @transform_11(%arg0: i32, %arg1: i32, %arg2: memref<8xi32, #tpu.memory_space<smem>>, %arg3: memref<2xi32, #tpu.memory_space<smem>>) -> (i32, i32) {
    %c0_i32 = arith.constant 0 : i32
    %c0_i32_0 = arith.constant 0 : i32
    %c0_i32_1 = arith.constant 0 : i32
    return %c0_i32, %c0_i32_0 : i32, i32
  }
  func.func @transform_12(%arg0: i32, %arg1: i32, %arg2: memref<8xi32, #tpu.memory_space<smem>>, %arg3: memref<2xi32, #tpu.memory_space<smem>>) -> (i32, i32) {
    %c0_i32 = arith.constant 0 : i32
    %c0_i32_0 = arith.constant 0 : i32
    %c0_i32_1 = arith.constant 0 : i32
    return %c0_i32, %c0_i32_0 : i32, i32
  }
  func.func @transform_13(%arg0: i32, %arg1: i32, %arg2: memref<8xi32, #tpu.memory_space<smem>>, %arg3: memref<2xi32, #tpu.memory_space<smem>>) -> (i32, i32) {
    %c0_i32 = arith.constant 0 : i32
    %c0_i32_0 = arith.constant 0 : i32
    %c0_i32_1 = arith.constant 0 : i32
    return %c0_i32, %c0_i32_0 : i32, i32
  }
  func.func @transform_14(%arg0: i32, %arg1: i32, %arg2: memref<8xi32, #tpu.memory_space<smem>>, %arg3: memref<2xi32, #tpu.memory_space<smem>>) -> (i32, i32) {
    %c0_i32 = arith.constant 0 : i32
    %c0_i32_0 = arith.constant 0 : i32
    %c0_i32_1 = arith.constant 0 : i32
    return %c0_i32, %c0_i32_0 : i32, i32
  }
  func.func @transform_15(%arg0: i32, %arg1: i32, %arg2: memref<8xi32, #tpu.memory_space<smem>>, %arg3: memref<2xi32, #tpu.memory_space<smem>>) -> (i32, i32) {
    %c0_i32 = arith.constant 0 : i32
    %c0_i32_0 = arith.constant 0 : i32
    %c0_i32_1 = arith.constant 0 : i32
    return %c0_i32, %c0_i32_0 : i32, i32
  }
  func.func @transform_16(%arg0: i32, %arg1: i32, %arg2: memref<8xi32, #tpu.memory_space<smem>>, %arg3: memref<2xi32, #tpu.memory_space<smem>>) -> (i32, i32) {
    %c0_i32 = arith.constant 0 : i32
    %c0_i32_0 = arith.constant 0 : i32
    %c0_i32_1 = arith.constant 0 : i32
    return %c0_i32, %c0_i32_0 : i32, i32
  }
  func.func @transform_17(%arg0: i32, %arg1: i32, %arg2: memref<8xi32, #tpu.memory_space<smem>>, %arg3: memref<2xi32, #tpu.memory_space<smem>>) -> (i32, i32) {
    %c0_i32 = arith.constant 0 : i32
    %c0_i32_0 = arith.constant 0 : i32
    %c0_i32_1 = arith.constant 0 : i32
    return %c0_i32, %c0_i32_0 : i32, i32
  }
  func.func @transform_18(%arg0: i32, %arg1: i32, %arg2: memref<8xi32, #tpu.memory_space<smem>>, %arg3: memref<2xi32, #tpu.memory_space<smem>>) -> (i32, i32) {
    %c0_i32 = arith.constant 0 : i32
    %c0_i32_0 = arith.constant 0 : i32
    %c0_i32_1 = arith.constant 0 : i32
    return %c0_i32, %c0_i32_0 : i32, i32
  }
  func.func @transform_19(%arg0: i32, %arg1: i32, %arg2: memref<8xi32, #tpu.memory_space<smem>>, %arg3: memref<2xi32, #tpu.memory_space<smem>>) -> (i32, i32) {
    %c0_i32 = arith.constant 0 : i32
    %c0_i32_0 = arith.constant 0 : i32
    %c0_i32_1 = arith.constant 0 : i32
    return %c0_i32, %c0_i32_0 : i32, i32
  }
  func.func @transform_20(%arg0: i32, %arg1: i32, %arg2: memref<8xi32, #tpu.memory_space<smem>>, %arg3: memref<2xi32, #tpu.memory_space<smem>>) -> (i32, i32) {
    %c1_i32 = arith.constant 1 : i32
    %0 = arith.subi %c1_i32, %arg0 : i32
    %1 = arith.muli %arg1, %0 : i32
    %c1_i32_0 = arith.constant 1 : i32
    %2 = arith.muli %c1_i32_0, %arg0 : i32
    %3 = arith.addi %1, %2 : i32
    %c0_i32 = arith.constant 0 : i32
    %c0_i32_1 = arith.constant 0 : i32
    return %c0_i32, %3 : i32, i32
  }
  func.func @transform_21(%arg0: i32, %arg1: i32, %arg2: memref<8xi32, #tpu.memory_space<smem>>, %arg3: memref<2xi32, #tpu.memory_space<smem>>) -> (i32, i32) {
    %c1_i32 = arith.constant 1 : i32
    %0 = arith.subi %c1_i32, %arg0 : i32
    %1 = arith.muli %arg1, %0 : i32
    %c1_i32_0 = arith.constant 1 : i32
    %2 = arith.muli %c1_i32_0, %arg0 : i32
    %3 = arith.addi %1, %2 : i32
    %c0_i32 = arith.constant 0 : i32
    %c0_i32_1 = arith.constant 0 : i32
    return %c0_i32, %3 : i32, i32
  }
  func.func @transform_22(%arg0: i32, %arg1: i32, %arg2: memref<8xi32, #tpu.memory_space<smem>>, %arg3: memref<2xi32, #tpu.memory_space<smem>>) -> (i32, i32) {
    %c0_i32 = arith.constant 0 : i32
    %c0_i32_0 = arith.constant 0 : i32
    %c0_i32_1 = arith.constant 0 : i32
    return %c0_i32, %c0_i32_0 : i32, i32
  }
  func.func @transform_23(%arg0: i32, %arg1: i32, %arg2: memref<8xi32, #tpu.memory_space<smem>>, %arg3: memref<2xi32, #tpu.memory_space<smem>>) -> (i32, i32) {
    %c0_i32 = arith.constant 0 : i32
    %c0_i32_0 = arith.constant 0 : i32
    %c0_i32_1 = arith.constant 0 : i32
    return %c0_i32, %c0_i32_0 : i32, i32
  }
  func.func @transform_24(%arg0: i32, %arg1: i32, %arg2: memref<8xi32, #tpu.memory_space<smem>>, %arg3: memref<2xi32, #tpu.memory_space<smem>>) -> (i32, i32) {
    %c0_i32 = arith.constant 0 : i32
    %c0_i32_0 = arith.constant 0 : i32
    %c0_i32_1 = arith.constant 0 : i32
    return %c0_i32, %c0_i32_0 : i32, i32
  }
  func.func @transform_25(%arg0: i32, %arg1: i32, %arg2: memref<8xi32, #tpu.memory_space<smem>>, %arg3: memref<2xi32, #tpu.memory_space<smem>>) -> (i32, i32) {
    %c0_i32 = arith.constant 0 : i32
    %c0_i32_0 = arith.constant 0 : i32
    %c0_i32_1 = arith.constant 0 : i32
    return %c0_i32, %c0_i32_0 : i32, i32
  }
  func.func @transform_26(%arg0: i32, %arg1: i32, %arg2: memref<8xi32, #tpu.memory_space<smem>>, %arg3: memref<2xi32, #tpu.memory_space<smem>>) -> (i32, i32) {
    %0 = arith.muli %arg1, %arg0 : i32
    %c0_i32 = arith.constant 0 : i32
    %c0_i32_0 = arith.constant 0 : i32
    return %c0_i32, %0 : i32, i32
  }
  func.func @transform_27(%arg0: i32, %arg1: i32, %arg2: memref<8xi32, #tpu.memory_space<smem>>, %arg3: memref<2xi32, #tpu.memory_space<smem>>) -> (i32, i32, i32) {
    %c0_i32 = arith.constant 0 : i32
    %c0_i32_0 = arith.constant 0 : i32
    %c0_i32_1 = arith.constant 0 : i32
    %c0_i32_2 = arith.constant 0 : i32
    return %c0_i32, %c0_i32_0, %c0_i32_1 : i32, i32, i32
  }
  func.func @transform_28(%arg0: i32, %arg1: i32, %arg2: memref<8xi32, #tpu.memory_space<smem>>, %arg3: memref<2xi32, #tpu.memory_space<smem>>) -> (i32, i32) {
    %c0_i32 = arith.constant 0 : i32
    %c0_i32_0 = arith.constant 0 : i32
    %c0_i32_1 = arith.constant 0 : i32
    return %c0_i32, %c0_i32_0 : i32, i32
  }
  func.func @transform_29(%arg0: i32, %arg1: i32, %arg2: memref<8xi32, #tpu.memory_space<smem>>, %arg3: memref<2xi32, #tpu.memory_space<smem>>) -> (i32, i32) {
    %0 = arith.muli %arg1, %arg0 : i32
    %c0_i32 = arith.constant 0 : i32
    %c0_i32_0 = arith.constant 0 : i32
    return %c0_i32, %0 : i32, i32
  }
  func.func @transform_30(%arg0: i32, %arg1: i32, %arg2: memref<8xi32, #tpu.memory_space<smem>>, %arg3: memref<2xi32, #tpu.memory_space<smem>>) -> (i32, i32) {
    %c0_i32 = arith.constant 0 : i32
    %c0_i32_0 = arith.constant 0 : i32
    %c0_i32_1 = arith.constant 0 : i32
    return %c0_i32, %c0_i32_0 : i32, i32
  }
  func.func @transform_31(%arg0: i32, %arg1: i32, %arg2: memref<8xi32, #tpu.memory_space<smem>>, %arg3: memref<2xi32, #tpu.memory_space<smem>>) -> (i32, i32) {
    %c0_i32 = arith.constant 0 : i32
    %c0_i32_0 = arith.constant 0 : i32
    %c0_i32_1 = arith.constant 0 : i32
    return %c0_i32, %c0_i32_0 : i32, i32
  }
}

</mosaic_0001>

<llo_original>
// kernel: tpu_custom_call.1
$region0: #{tpu_custom_call.1}
  #allocation0 [shape = 'u32[]', space=smem, size = 0x4, offset = 0x4, fixed_abs, tag = 'smem constant byte address 0x4 - core index']
  #allocation1 [shape = 'u32[144,128]{1,0:T(1,128)}', space=vmem, size = 0x12000, scoped, tag = 'internal scratch']
  #allocation2 [shape = 'f32[8,32]{1,0:T(8,128)}', space=vmem, size = 0x1000, scoped, tag = 'scratch operand']
  #allocation3 [shape = 'f32[8,64]{1,0:T(8,128)}', space=vmem, size = 0x1000, scoped, tag = 'scratch operand']
  #allocation4 [shape = 'f32[8,1]{1,0:T(8,128)}', space=vmem, size = 0x1000, scoped, tag = 'scratch operand']
  #allocation5 [shape = 'f32[8,1]{1,0:T(8,128)}', space=vmem, size = 0x1000, scoped, tag = 'scratch operand']
  #allocation6 [shape = 'f32[8,1]{1,0:T(8,128)}', space=vmem, size = 0x1000, scoped, tag = 'scratch operand']
  #allocation7 [shape = 'f32[2,8,512]{2,1,0:T(8,128)}', space=vmem, size = 0x8000, scoped, tag = 'scratch operand']
  #allocation8 [shape = 's32[8]{0}', space=sflag, size = 0x20, scoped, tag = 'scratch operand']
  #allocation9 [shape = 's32[1]{0}', space=sflag, size = 0x4, scoped, tag = 'scoped memory for tpu_custom_call.1']
  #allocation10 [shape = 'u8[512]{0}', space=smem, size = 0x200, scoped, tag = 'prefetched SMEM operand 0']
  #allocation11 [shape = 'u8[512]{0}', space=smem, size = 0x200, scoped, tag = 'prefetched SMEM operand 1']
  #allocation12 [shape = 'f32[1,1]{1,0:T(1,128)S(1)}', space=vmem, size = 0x200, scoped, tag = 'scoped memory for tpu_custom_call.1']
  #allocation13 [shape = 'f32[1,1]{1,0:T(1,128)S(1)}', space=vmem, size = 0x200, scoped, tag = 'scoped memory for tpu_custom_call.1']
  #allocation14 [shape = 'f32[1,1]{1,0:T(1,128)S(1)}', space=vmem, size = 0x200, scoped, tag = 'scoped memory for tpu_custom_call.1']
  #allocation26 [shape = 's32[]', space=sflag, size = 0x4, offset = 0, fixed_abs, tag = 'sflag constant byte address 0x0 - dummy sync flag']
  #allocation27 [shape = 's32[]', space=sflag, size = 0x4, offset = 0, fixed_abs, tag = 'sflag constant byte address 0x0 - dummy sync flag']
  #allocation28 [shape = 's32[]', space=sflag, size = 0x4, offset = 0, fixed_abs, tag = 'sflag constant byte address 0x0 - dummy sync flag']
  #allocation29 [shape = 's32[]', space=sflag, size = 0x4, offset = 0, fixed_abs, tag = 'sflag constant byte address 0x0 - dummy sync flag']
  #allocation30 [shape = 's32[]', space=sflag, size = 0x4, offset = 0, fixed_abs, tag = 'sflag constant byte address 0x0 - dummy sync flag']
  #allocation31 [shape = 's32[]', space=sflag, size = 0x4, offset = 0, fixed_abs, tag = 'sflag constant byte address 0x0 - dummy sync flag']
  #allocation32 [shape = 's32[]', space=sflag, size = 0x4, offset = 0, fixed_abs, tag = 'sflag constant byte address 0x0 - dummy sync flag']
  #allocation33 [shape = 's32[]', space=sflag, size = 0x4, offset = 0, fixed_abs, tag = 'sflag constant byte address 0x0 - dummy sync flag']
  %s0 = inlined_call_operand.smem [shape: u32[34], index: -1, kind: input, shape index: {}]
  %s1 = sld [smem:[%s0]]
  %s2 = scalar_lea.smem %s0, 1
  %s3 = sld [smem:[%s2]]
  %s4 = scalar_lea.smem %s0, 2
  %s5 = sld [smem:[%s4]]
  %s6 = scalar_lea.smem %s0, 3
  %s7 = sld [smem:[%s6]]
  %s8 = scalar_lea.smem %s0, 4
  %s9 = sld [smem:[%s8]]
  %s10 = scalar_lea.smem %s0, 5
  %s11 = sld [smem:[%s10]]
  %s12 = scalar_lea.smem %s0, 6
  %s13 = sld [smem:[%s12]]
  %s14 = scalar_lea.smem %s0, 7
  %s15 = sld [smem:[%s14]]
  %s16 = scalar_lea.smem %s0, 8
  %s17 = sld [smem:[%s16]]
  %s18 = scalar_lea.smem %s0, 9
  %s19 = sld [smem:[%s18]]
  %s20 = scalar_lea.smem %s0, 10
  %s21 = sld [smem:[%s20]]
  %s22 = scalar_lea.smem %s0, 11
  %s23 = sld [smem:[%s22]]
  %s24 = scalar_lea.smem %s0, 12
  %s25 = sld [smem:[%s24]]
  %s26 = scalar_lea.smem %s0, 13
  %s27 = sld [smem:[%s26]]
  %s28 = scalar_lea.smem %s0, 14
  %s29 = sld [smem:[%s28]]
  %s30 = scalar_lea.smem %s0, 15
  %s31 = sld [smem:[%s30]]
  %s32 = scalar_lea.smem %s0, 16
  %s33 = sld [smem:[%s32]]
  %s34 = scalar_lea.smem %s0, 17
  %s35 = sld [smem:[%s34]]
  %s36 = scalar_lea.smem %s0, 18
  %s37 = sld [smem:[%s36]]
  %s38 = scalar_lea.smem %s0, 19
  %s39 = sld [smem:[%s38]]
  %s40 = scalar_lea.smem %s0, 20
  %s41 = sld [smem:[%s40]]
  %s42 = scalar_lea.smem %s0, 21
  %s43 = sld [smem:[%s42]]
  %s44 = scalar_lea.smem %s0, 22
  %s45 = sld [smem:[%s44]]
  %s46 = scalar_lea.smem %s0, 23
  %s47 = sld [smem:[%s46]]
  %s48 = scalar_lea.smem %s0, 24
  %s49 = sld [smem:[%s48]]
  %s50 = scalar_lea.smem %s0, 25
  %s51 = sld [smem:[%s50]]
  %s52 = scalar_lea.smem %s0, 26
  %s53 = sld [smem:[%s52]]
  %s54 = scalar_lea.smem %s0, 27
  %s55 = sld [smem:[%s54]]
  %s56 = scalar_lea.smem %s0, 28
  %s57 = sld [smem:[%s56]]
  %s58 = scalar_lea.smem %s0, 29
  %s59 = sld [smem:[%s58]]
  %s60 = scalar_lea.smem %s0, 30
  %s61 = sld [smem:[%s60]]
  %s62 = scalar_lea.smem %s0, 31
  %s63 = sld [smem:[%s62]]
  %s64 = scalar_lea.smem %s0, 32
  %s65 = sld [smem:[%s64]]
  %s66 = scalar_lea.smem %s0, 33
  %s67 = sld [smem:[%s66]]
  %68 = xla_tuple %s57, %s59, %s61, %s63, %s65, %s67
  %s69 = sld [smem:[#allocation0]]
  $region456: #{tpu_custom_call.1} parent=0
    _
  %s71 = ssub.s32 1, %s69
  %s72 = scalar_select 0, %s71, %s69
  %s73 = sshll.u32 %s1, 4
  %s74 = int_to_ptr.vmem [resolvable:$true] %s73
  %76 = dma.vmem_to_smem %s74, 16, [#allocation10], [#allocation9]
  %s77 = sshll.u32 %s3, 4
  %s78 = int_to_ptr.vmem [resolvable:$true] %s77
  %80 = dma.vmem_to_smem %s78, 16, [#allocation11], [#allocation9]
  %v81 = vstv %s35
  %82 = vst [vmem:[#allocation12] sm:$0x1] %v81
  %v83 = vstv %s37
  %84 = vst [vmem:[#allocation13] sm:$0x1] %v83
  %v85 = vstv %s55
  %86 = vst [vmem:[#allocation14] sm:$0x1] %v85
  %87 = dma.done [#allocation9], 32
  %88 = sfence
  $region1: #{tpu_custom_call.1} parent=0
    #allocation15 [shape = 'u8[131072]{0}', space=vmem, size = 0x20000, scoped, tag = 'input window, operand 22']
    #allocation16 [shape = 'u8[32768]{0}', space=vmem, size = 0x8000, scoped, tag = 'output window, operand 0']
    #allocation17 [shape = 's32[2]{0}', space=sflag, size = 0x8, scoped, tag = 'scoped memory for tpu_custom_call.1']
    #allocation18 [shape = 'u8[8192]{0}', space=vmem, size = 0x2000, scoped, tag = 'output window, operand 1, single buffered']
    #allocation19 [shape = 's32[1]{0}', space=sflag, size = 0x4, scoped, tag = 'scoped memory for tpu_custom_call.1']
    #allocation20 [shape = 'u8[4096]{0}', space=vmem, size = 0x1000, scoped, tag = 'output window, operand 2, single buffered']
    #allocation21 [shape = 'u8[32768]{0}', space=vmem, size = 0x8000, scoped, tag = 'output window, operand 3']
    #allocation22 [shape = 's32[2]{0}', space=sflag, size = 0x8, scoped, tag = 'scoped memory for tpu_custom_call.1']
    #allocation23 [shape = 'u8[4096]{0}', space=vmem, size = 0x1000, scoped, tag = 'output window, operand 4, single buffered']
    #allocation24 [shape = 'u8[512]{0}', space=vmem, size = 0x400, scoped, tag = 'output window, operand 5, single buffered']
    #allocation25 [shape = 's32[1]{0}', space=sflag, size = 0x4, scoped, tag = 'scoped memory for tpu_custom_call.1']
    %89 = vsyncpa [#allocation17], 0
    %s90 = scalar_lea.sflag [#allocation17], 1
    %91 = vsyncpa %s90, 0
    %92 = vsyncpa [#allocation19], 0
    %93 = vsyncpa [#allocation22], 0
    %s94 = scalar_lea.sflag [#allocation22], 1
    %95 = vsyncpa %s94, 0
    %96 = vsyncpa [#allocation25], 0
    loop: start=0, step=1, limit=6
    $region2: #{tpu_custom_call.1} parent=1 // loop_pre_header
      _
    $region3: #{tpu_custom_call.1} parent=1 // loop_header
      %s98 = sphi 0, %s102
      %p99 = scmp.ge.s32.totalorder %s98, 6
      %s105 = sphi 0, %s117
      %s106 = sphi 0, %s113
      %s107 = sphi 0, %s105
      %s108 = sphi 0, %s106
      %s109 = sphi 0, %s107
      %s110 = sphi 0, %s108
      %s118 = sphi 0, %s118
      %s120 = sphi 0, %s118
      %s121 = sphi 0, %s120
      %s135 = sphi 0, %s121
      %s139 = sphi 0, %s139
      %s141 = sphi 0, %s139
      %s142 = sphi 0, %s141
      %s156 = sphi 0, %s142
      %s160 = sphi 0, %s160
      %s162 = sphi 0, %s160
      %s163 = sphi 0, %s162
      %s177 = sphi 0, %s163
      %s181 = sphi 0, %s181
      %s183 = sphi 0, %s181
      %s184 = sphi 0, %s183
      %s198 = sphi 0, %s184
      %s202 = sphi 0, %s202
      %s204 = sphi 0, %s202
      %s205 = sphi 0, %s204
      %s219 = sphi 0, %s205
      %s223 = sphi 0, %s223
      %s225 = sphi 0, %s223
      %s226 = sphi 0, %s225
      %s240 = sphi 0, %s226
      %s244 = sphi 0, %s244
      %s246 = sphi 0, %s244
      %s247 = sphi 0, %s246
      %s261 = sphi 0, %s247
      %s265 = sphi 0, %s265
      %s267 = sphi 0, %s265
      %s268 = sphi 0, %s267
      %s282 = sphi 0, %s268
      %s286 = sphi 0, %s286
      %s288 = sphi 0, %s286
      %s289 = sphi 0, %s288
      %s303 = sphi 0, %s289
      %s307 = sphi 0, %s307
      %s309 = sphi 0, %s307
      %s310 = sphi 0, %s309
      %s324 = sphi 0, %s310
      %s328 = sphi 0, %s328
      %s330 = sphi 0, %s328
      %s331 = sphi 0, %s330
      %s345 = sphi 0, %s331
      %s349 = sphi 0, %s349
      %s351 = sphi 0, %s349
      %s352 = sphi 0, %s351
      %s366 = sphi 0, %s352
      %s370 = sphi 0, %s370
      %s372 = sphi 0, %s370
      %s373 = sphi 0, %s372
      %s387 = sphi 0, %s373
      %s391 = sphi 0, %s391
      %s393 = sphi 0, %s391
      %s394 = sphi 0, %s393
      %s408 = sphi 0, %s394
      %s412 = sphi 0, %s412
      %s414 = sphi 0, %s412
      %s415 = sphi 0, %s414
      %s429 = sphi 0, %s415
      %s433 = sphi 0, %s433
      %s435 = sphi 0, %s433
      %s436 = sphi 0, %s435
      %s450 = sphi 0, %s436
      %s454 = sphi 0, %s454
      %s456 = sphi 0, %s454
      %s457 = sphi 0, %s456
      %s471 = sphi 0, %s457
      %s475 = sphi 0, %s475
      %s477 = sphi 0, %s475
      %s478 = sphi 0, %s477
      %s492 = sphi 0, %s478
      %s496 = sphi 0, %s496
      %s498 = sphi 0, %s496
      %s499 = sphi 0, %s498
      %s513 = sphi 0, %s499
      %s525 = sphi 0, %s527
      %s528 = sphi 0, %s525
      %s529 = sphi 0, %s528
      %s545 = sphi 0, %s529
      %s557 = sphi 0, %s559
      %s560 = sphi 0, %s557
      %s561 = sphi 0, %s560
      %s577 = sphi 0, %s561
      %s581 = sphi 0, %s581
      %s583 = sphi 0, %s581
      %s584 = sphi 0, %s583
      %s598 = sphi 0, %s584
      %s602 = sphi 0, %s602
      %s604 = sphi 0, %s602
      %s605 = sphi 0, %s604
      %s619 = sphi 0, %s605
      %s623 = sphi 0, %s623
      %s625 = sphi 0, %s623
      %s626 = sphi 0, %s625
      %s640 = sphi 0, %s626
      %s644 = sphi 0, %s644
      %s646 = sphi 0, %s644
      %s647 = sphi 0, %s646
      %s661 = sphi 0, %s647
      %s669 = sphi 0, %s671
      %s672 = sphi 0, %s669
      %s673 = sphi 0, %s672
      %s689 = sphi 0, %s673
      %s693 = sphi 0, %s693
      %s695 = sphi 0, %s693
      %s696 = sphi 0, %s695
      %s710 = sphi 0, %s696
      %s714 = sphi 0, %s714
      %s716 = sphi 0, %s714
      %s717 = sphi 0, %s716
      %s731 = sphi 0, %s717
      %s739 = sphi 0, %s741
      %s742 = sphi 0, %s739
      %s743 = sphi 0, %s742
      %s759 = sphi 0, %s743
      %s763 = sphi 0, %s763
      %s765 = sphi 0, %s763
      %s766 = sphi 0, %s765
      %s780 = sphi 0, %s766
      %s784 = sphi 0, %s784
      %s786 = sphi 0, %s784
      %s787 = sphi 0, %s786
      %s801 = sphi 0, %s787
    $region4: #{tpu_custom_call.1} parent=1 // loop_header_branch
      %101 = sbr.rel (%p99) target = $region8
    $region5: #{tpu_custom_call.1} parent=1 // loop_body
      %s103 = ssub.s32 %s98, 1
      %s104 = ssub.s32 %s98, 2
      %s111 = sadd.s32 1, %s106
      %p112 = scmp.ge.s32.totalorder %s111, 2
      %s113 = scalar_select %p112, 0, %s111
      %s114 = sadd.s32 1, %s105
      %s115 = scalar_select %p112, %s114, %s105
      %p116 = scmp.ge.s32.totalorder %s115, 2
      %s117 = scalar_select %p116, 0, %s115
      %s119 = sadd.s32 %s118, 1
      %p122 = scmp.eq.s32.totalorder %s98, 3
      %p123 = scmp.ne.s32.totalorder %s118, %s120
      %p124 = scmp.eq.s32.totalorder %s98, 0
      %p125 = por %p123, %p124
      %p126 = scmp.ne.s32.totalorder %s118, %s120
      %p127 = scmp.eq.s32.totalorder %s103, 3
      %p128 = por %p126, %p127
      %p129 = scmp.ne.s32.totalorder %s120, %s121
      %p130 = scmp.eq.s32.totalorder %s103, 0
      %p131 = por %p129, %p130
      %p132 = scmp.ne.s32.totalorder %s120, %s121
      %p133 = scmp.eq.s32.totalorder %s104, 3
      %p134 = por %p132, %p133
      %p136 = scmp.ne.s32.totalorder %s121, %s135
      %p137 = scmp.eq.s32.totalorder %s104, 0
      %p138 = por %p136, %p137
      %s140 = sadd.s32 %s139, 1
      %p143 = scmp.eq.s32.totalorder %s98, 3
      %p144 = scmp.ne.s32.totalorder %s139, %s141
      %p145 = scmp.eq.s32.totalorder %s98, 0
      %p146 = por %p144, %p145
      %p147 = scmp.ne.s32.totalorder %s139, %s141
      %p148 = scmp.eq.s32.totalorder %s103, 3
      %p149 = por %p147, %p148
      %p150 = scmp.ne.s32.totalorder %s141, %s142
      %p151 = scmp.eq.s32.totalorder %s103, 0
      %p152 = por %p150, %p151
      %p153 = scmp.ne.s32.totalorder %s141, %s142
      %p154 = scmp.eq.s32.totalorder %s104, 3
      %p155 = por %p153, %p154
      %p157 = scmp.ne.s32.totalorder %s142, %s156
      %p158 = scmp.eq.s32.totalorder %s104, 0
      %p159 = por %p157, %p158
      %s161 = sadd.s32 %s160, 1
      %p164 = scmp.eq.s32.totalorder %s98, 3
      %p165 = scmp.ne.s32.totalorder %s160, %s162
      %p166 = scmp.eq.s32.totalorder %s98, 0
      %p167 = por %p165, %p166
      %p168 = scmp.ne.s32.totalorder %s160, %s162
      %p169 = scmp.eq.s32.totalorder %s103, 3
      %p170 = por %p168, %p169
      %p171 = scmp.ne.s32.totalorder %s162, %s163
      %p172 = scmp.eq.s32.totalorder %s103, 0
      %p173 = por %p171, %p172
      %p174 = scmp.ne.s32.totalorder %s162, %s163
      %p175 = scmp.eq.s32.totalorder %s104, 3
      %p176 = por %p174, %p175
      %p178 = scmp.ne.s32.totalorder %s163, %s177
      %p179 = scmp.eq.s32.totalorder %s104, 0
      %p180 = por %p178, %p179
      %s182 = sadd.s32 %s181, 1
      %p185 = scmp.eq.s32.totalorder %s98, 3
      %p186 = scmp.ne.s32.totalorder %s181, %s183
      %p187 = scmp.eq.s32.totalorder %s98, 0
      %p188 = por %p186, %p187
      %p189 = scmp.ne.s32.totalorder %s181, %s183
      %p190 = scmp.eq.s32.totalorder %s103, 3
      %p191 = por %p189, %p190
      %p192 = scmp.ne.s32.totalorder %s183, %s184
      %p193 = scmp.eq.s32.totalorder %s103, 0
      %p194 = por %p192, %p193
      %p195 = scmp.ne.s32.totalorder %s183, %s184
      %p196 = scmp.eq.s32.totalorder %s104, 3
      %p197 = por %p195, %p196
      %p199 = scmp.ne.s32.totalorder %s184, %s198
      %p200 = scmp.eq.s32.totalorder %s104, 0
      %p201 = por %p199, %p200
      %s203 = sadd.s32 %s202, 1
      %p206 = scmp.eq.s32.totalorder %s98, 3
      %p207 = scmp.ne.s32.totalorder %s202, %s204
      %p208 = scmp.eq.s32.totalorder %s98, 0
      %p209 = por %p207, %p208
      %p210 = scmp.ne.s32.totalorder %s202, %s204
      %p211 = scmp.eq.s32.totalorder %s103, 3
      %p212 = por %p210, %p211
      %p213 = scmp.ne.s32.totalorder %s204, %s205
      %p214 = scmp.eq.s32.totalorder %s103, 0
      %p215 = por %p213, %p214
      %p216 = scmp.ne.s32.totalorder %s204, %s205
      %p217 = scmp.eq.s32.totalorder %s104, 3
      %p218 = por %p216, %p217
      %p220 = scmp.ne.s32.totalorder %s205, %s219
      %p221 = scmp.eq.s32.totalorder %s104, 0
      %p222 = por %p220, %p221
      %s224 = sadd.s32 %s223, 1
      %p227 = scmp.eq.s32.totalorder %s98, 3
      %p228 = scmp.ne.s32.totalorder %s223, %s225
      %p229 = scmp.eq.s32.totalorder %s98, 0
      %p230 = por %p228, %p229
      %p231 = scmp.ne.s32.totalorder %s223, %s225
      %p232 = scmp.eq.s32.totalorder %s103, 3
      %p233 = por %p231, %p232
      %p234 = scmp.ne.s32.totalorder %s225, %s226
      %p235 = scmp.eq.s32.totalorder %s103, 0
      %p236 = por %p234, %p235
      %p237 = scmp.ne.s32.totalorder %s225, %s226
      %p238 = scmp.eq.s32.totalorder %s104, 3
      %p239 = por %p237, %p238
      %p241 = scmp.ne.s32.totalorder %s226, %s240
      %p242 = scmp.eq.s32.totalorder %s104, 0
      %p243 = por %p241, %p242
      %s245 = sadd.s32 %s244, 1
      %p248 = scmp.eq.s32.totalorder %s98, 3
      %p249 = scmp.ne.s32.totalorder %s244, %s246
      %p250 = scmp.eq.s32.totalorder %s98, 0
      %p251 = por %p249, %p250
      %p252 = scmp.ne.s32.totalorder %s244, %s246
      %p253 = scmp.eq.s32.totalorder %s103, 3
      %p254 = por %p252, %p253
      %p255 = scmp.ne.s32.totalorder %s246, %s247
      %p256 = scmp.eq.s32.totalorder %s103, 0
      %p257 = por %p255, %p256
      %p258 = scmp.ne.s32.totalorder %s246, %s247
      %p259 = scmp.eq.s32.totalorder %s104, 3
      %p260 = por %p258, %p259
      %p262 = scmp.ne.s32.totalorder %s247, %s261
      %p263 = scmp.eq.s32.totalorder %s104, 0
      %p264 = por %p262, %p263
      %s266 = sadd.s32 %s265, 1
      %p269 = scmp.eq.s32.totalorder %s98, 3
      %p270 = scmp.ne.s32.totalorder %s265, %s267
      %p271 = scmp.eq.s32.totalorder %s98, 0
      %p272 = por %p270, %p271
      %p273 = scmp.ne.s32.totalorder %s265, %s267
      %p274 = scmp.eq.s32.totalorder %s103, 3
      %p275 = por %p273, %p274
      %p276 = scmp.ne.s32.totalorder %s267, %s268
      %p277 = scmp.eq.s32.totalorder %s103, 0
      %p278 = por %p276, %p277
      %p279 = scmp.ne.s32.totalorder %s267, %s268
      %p280 = scmp.eq.s32.totalorder %s104, 3
      %p281 = por %p279, %p280
      %p283 = scmp.ne.s32.totalorder %s268, %s282
      %p284 = scmp.eq.s32.totalorder %s104, 0
      %p285 = por %p283, %p284
      %s287 = sadd.s32 %s286, 1
      %p290 = scmp.eq.s32.totalorder %s98, 3
      %p291 = scmp.ne.s32.totalorder %s286, %s288
      %p292 = scmp.eq.s32.totalorder %s98, 0
      %p293 = por %p291, %p292
      %p294 = scmp.ne.s32.totalorder %s286, %s288
      %p295 = scmp.eq.s32.totalorder %s103, 3
      %p296 = por %p294, %p295
      %p297 = scmp.ne.s32.totalorder %s288, %s289
      %p298 = scmp.eq.s32.totalorder %s103, 0
      %p299 = por %p297, %p298
      %p300 = scmp.ne.s32.totalorder %s288, %s289
      %p301 = scmp.eq.s32.totalorder %s104, 3
      %p302 = por %p300, %p301
      %p304 = scmp.ne.s32.totalorder %s289, %s303
      %p305 = scmp.eq.s32.totalorder %s104, 0
      %p306 = por %p304, %p305
      %s308 = sadd.s32 %s307, 1
      %p311 = scmp.eq.s32.totalorder %s98, 3
      %p312 = scmp.ne.s32.totalorder %s307, %s309
      %p313 = scmp.eq.s32.totalorder %s98, 0
      %p314 = por %p312, %p313
      %p315 = scmp.ne.s32.totalorder %s307, %s309
      %p316 = scmp.eq.s32.totalorder %s103, 3
      %p317 = por %p315, %p316
      %p318 = scmp.ne.s32.totalorder %s309, %s310
      %p319 = scmp.eq.s32.totalorder %s103, 0
      %p320 = por %p318, %p319
      %p321 = scmp.ne.s32.totalorder %s309, %s310
      %p322 = scmp.eq.s32.totalorder %s104, 3
      %p323 = por %p321, %p322
      %p325 = scmp.ne.s32.totalorder %s310, %s324
      %p326 = scmp.eq.s32.totalorder %s104, 0
      %p327 = por %p325, %p326
      %s329 = sadd.s32 %s328, 1
      %p332 = scmp.eq.s32.totalorder %s98, 3
      %p333 = scmp.ne.s32.totalorder %s328, %s330
      %p334 = scmp.eq.s32.totalorder %s98, 0
      %p335 = por %p333, %p334
      %p336 = scmp.ne.s32.totalorder %s328, %s330
      %p337 = scmp.eq.s32.totalorder %s103, 3
      %p338 = por %p336, %p337
      %p339 = scmp.ne.s32.totalorder %s330, %s331
      %p340 = scmp.eq.s32.totalorder %s103, 0
      %p341 = por %p339, %p340
      %p342 = scmp.ne.s32.totalorder %s330, %s331
      %p343 = scmp.eq.s32.totalorder %s104, 3
      %p344 = por %p342, %p343
      %p346 = scmp.ne.s32.totalorder %s331, %s345
      %p347 = scmp.eq.s32.totalorder %s104, 0
      %p348 = por %p346, %p347
      %s350 = sadd.s32 %s349, 1
      %p353 = scmp.eq.s32.totalorder %s98, 3
      %p354 = scmp.ne.s32.totalorder %s349, %s351
      %p355 = scmp.eq.s32.totalorder %s98, 0
      %p356 = por %p354, %p355
      %p357 = scmp.ne.s32.totalorder %s349, %s351
      %p358 = scmp.eq.s32.totalorder %s103, 3
      %p359 = por %p357, %p358
      %p360 = scmp.ne.s32.totalorder %s351, %s352
      %p361 = scmp.eq.s32.totalorder %s103, 0
      %p362 = por %p360, %p361
      %p363 = scmp.ne.s32.totalorder %s351, %s352
      %p364 = scmp.eq.s32.totalorder %s104, 3
      %p365 = por %p363, %p364
      %p367 = scmp.ne.s32.totalorder %s352, %s366
      %p368 = scmp.eq.s32.totalorder %s104, 0
      %p369 = por %p367, %p368
      %s371 = sadd.s32 %s370, 1
      %p374 = scmp.eq.s32.totalorder %s98, 3
      %p375 = scmp.ne.s32.totalorder %s370, %s372
      %p376 = scmp.eq.s32.totalorder %s98, 0
      %p377 = por %p375, %p376
      %p378 = scmp.ne.s32.totalorder %s370, %s372
      %p379 = scmp.eq.s32.totalorder %s103, 3
      %p380 = por %p378, %p379
      %p381 = scmp.ne.s32.totalorder %s372, %s373
      %p382 = scmp.eq.s32.totalorder %s103, 0
      %p383 = por %p381, %p382
      %p384 = scmp.ne.s32.totalorder %s372, %s373
      %p385 = scmp.eq.s32.totalorder %s104, 3
      %p386 = por %p384, %p385
      %p388 = scmp.ne.s32.totalorder %s373, %s387
      %p389 = scmp.eq.s32.totalorder %s104, 0
      %p390 = por %p388, %p389
      %s392 = sadd.s32 %s391, 1
      %p395 = scmp.eq.s32.totalorder %s98, 3
      %p396 = scmp.ne.s32.totalorder %s391, %s393
      %p397 = scmp.eq.s32.totalorder %s98, 0
      %p398 = por %p396, %p397
      %p399 = scmp.ne.s32.totalorder %s391, %s393
      %p400 = scmp.eq.s32.totalorder %s103, 3
      %p401 = por %p399, %p400
      %p402 = scmp.ne.s32.totalorder %s393, %s394
      %p403 = scmp.eq.s32.totalorder %s103, 0
      %p404 = por %p402, %p403
      %p405 = scmp.ne.s32.totalorder %s393, %s394
      %p406 = scmp.eq.s32.totalorder %s104, 3
      %p407 = por %p405, %p406
      %p409 = scmp.ne.s32.totalorder %s394, %s408
      %p410 = scmp.eq.s32.totalorder %s104, 0
      %p411 = por %p409, %p410
      %s413 = sadd.s32 %s412, 1
      %p416 = scmp.eq.s32.totalorder %s98, 3
      %p417 = scmp.ne.s32.totalorder %s412, %s414
      %p418 = scmp.eq.s32.totalorder %s98, 0
      %p419 = por %p417, %p418
      %p420 = scmp.ne.s32.totalorder %s412, %s414
      %p421 = scmp.eq.s32.totalorder %s103, 3
      %p422 = por %p420, %p421
      %p423 = scmp.ne.s32.totalorder %s414, %s415
      %p424 = scmp.eq.s32.totalorder %s103, 0
      %p425 = por %p423, %p424
      %p426 = scmp.ne.s32.totalorder %s414, %s415
      %p427 = scmp.eq.s32.totalorder %s104, 3
      %p428 = por %p426, %p427
      %p430 = scmp.ne.s32.totalorder %s415, %s429
      %p431 = scmp.eq.s32.totalorder %s104, 0
      %p432 = por %p430, %p431
      %s434 = sadd.s32 %s433, 1
      %p437 = scmp.eq.s32.totalorder %s98, 3
      %p438 = scmp.ne.s32.totalorder %s433, %s435
      %p439 = scmp.eq.s32.totalorder %s98, 0
      %p440 = por %p438, %p439
      %p441 = scmp.ne.s32.totalorder %s433, %s435
      %p442 = scmp.eq.s32.totalorder %s103, 3
      %p443 = por %p441, %p442
      %p444 = scmp.ne.s32.totalorder %s435, %s436
      %p445 = scmp.eq.s32.totalorder %s103, 0
      %p446 = por %p444, %p445
      %p447 = scmp.ne.s32.totalorder %s435, %s436
      %p448 = scmp.eq.s32.totalorder %s104, 3
      %p449 = por %p447, %p448
      %p451 = scmp.ne.s32.totalorder %s436, %s450
      %p452 = scmp.eq.s32.totalorder %s104, 0
      %p453 = por %p451, %p452
      %s455 = sadd.s32 %s454, 1
      %p458 = scmp.eq.s32.totalorder %s98, 3
      %p459 = scmp.ne.s32.totalorder %s454, %s456
      %p460 = scmp.eq.s32.totalorder %s98, 0
      %p461 = por %p459, %p460
      %p462 = scmp.ne.s32.totalorder %s454, %s456
      %p463 = scmp.eq.s32.totalorder %s103, 3
      %p464 = por %p462, %p463
      %p465 = scmp.ne.s32.totalorder %s456, %s457
      %p466 = scmp.eq.s32.totalorder %s103, 0
      %p467 = por %p465, %p466
      %p468 = scmp.ne.s32.totalorder %s456, %s457
      %p469 = scmp.eq.s32.totalorder %s104, 3
      %p470 = por %p468, %p469
      %p472 = scmp.ne.s32.totalorder %s457, %s471
      %p473 = scmp.eq.s32.totalorder %s104, 0
      %p474 = por %p472, %p473
      %s476 = sadd.s32 %s475, 1
      %p479 = scmp.eq.s32.totalorder %s98, 3
      %p480 = scmp.ne.s32.totalorder %s475, %s477
      %p481 = scmp.eq.s32.totalorder %s98, 0
      %p482 = por %p480, %p481
      %p483 = scmp.ne.s32.totalorder %s475, %s477
      %p484 = scmp.eq.s32.totalorder %s103, 3
      %p485 = por %p483, %p484
      %p486 = scmp.ne.s32.totalorder %s477, %s478
      %p487 = scmp.eq.s32.totalorder %s103, 0
      %p488 = por %p486, %p487
      %p489 = scmp.ne.s32.totalorder %s477, %s478
      %p490 = scmp.eq.s32.totalorder %s104, 3
      %p491 = por %p489, %p490
      %p493 = scmp.ne.s32.totalorder %s478, %s492
      %p494 = scmp.eq.s32.totalorder %s104, 0
      %p495 = por %p493, %p494
      %s497 = sadd.s32 %s496, 1
      %p500 = scmp.eq.s32.totalorder %s98, 3
      %p501 = scmp.ne.s32.totalorder %s496, %s498
      %p502 = scmp.eq.s32.totalorder %s98, 0
      %p503 = por %p501, %p502
      %p504 = scmp.ne.s32.totalorder %s496, %s498
      %p505 = scmp.eq.s32.totalorder %s103, 3
      %p506 = por %p504, %p505
      %p507 = scmp.ne.s32.totalorder %s498, %s499
      %p508 = scmp.eq.s32.totalorder %s103, 0
      %p509 = por %p507, %p508
      %p510 = scmp.ne.s32.totalorder %s498, %s499
      %p511 = scmp.eq.s32.totalorder %s104, 3
      %p512 = por %p510, %p511
      %p514 = scmp.ne.s32.totalorder %s499, %s513
      %p515 = scmp.eq.s32.totalorder %s104, 0
      %p516 = por %p514, %p515
      %s517 = ssub.s32 1, %s105
      %s518 = smul.u32 %s106, %s517
      %s519 = sadd.s32 %s518, %s105
      %s520 = ssub.s32 1, %s117
      %s521 = smul.u32 %s113, %s520
      %s522 = sadd.s32 %s521, %s117
      %s523 = ssub.s32 %s519, %s522
      %p524 = scmp.eq.s32.totalorder %s523, 0
      %s526 = sadd.s32 %s525, 1
      %s527 = scalar_select %p524, %s525, %s526
      %p530 = pneg %p524
      %p531 = scmp.eq.s32.totalorder %s98, 3
      %p532 = por %p530, %p531
      %p533 = scmp.ne.s32.totalorder %s525, %s528
      %p534 = scmp.eq.s32.totalorder %s98, 0
      %p535 = por %p533, %p534
      %p536 = scmp.ne.s32.totalorder %s525, %s528
      %p537 = scmp.eq.s32.totalorder %s103, 3
      %p538 = por %p536, %p537
      %p539 = scmp.ne.s32.totalorder %s528, %s529
      %p540 = scmp.eq.s32.totalorder %s103, 0
      %p541 = por %p539, %p540
      %p542 = scmp.ne.s32.totalorder %s528, %s529
      %p543 = scmp.eq.s32.totalorder %s104, 3
      %p544 = por %p542, %p543
      %p546 = scmp.ne.s32.totalorder %s529, %s545
      %p547 = scmp.eq.s32.totalorder %s104, 0
      %p548 = por %p546, %p547
      %s549 = ssub.s32 1, %s105
      %s550 = smul.u32 %s106, %s549
      %s551 = sadd.s32 %s550, %s105
      %s552 = ssub.s32 1, %s117
      %s553 = smul.u32 %s113, %s552
      %s554 = sadd.s32 %s553, %s117
      %s555 = ssub.s32 %s551, %s554
      %p556 = scmp.eq.s32.totalorder %s555, 0
      %s558 = sadd.s32 %s557, 1
      %s559 = scalar_select %p556, %s557, %s558
      %p562 = pneg %p556
      %p563 = scmp.eq.s32.totalorder %s98, 3
      %p564 = por %p562, %p563
      %p565 = scmp.ne.s32.totalorder %s557, %s560
      %p566 = scmp.eq.s32.totalorder %s98, 0
      %p567 = por %p565, %p566
      %p568 = scmp.ne.s32.totalorder %s557, %s560
      %p569 = scmp.eq.s32.totalorder %s103, 3
      %p570 = por %p568, %p569
      %p571 = scmp.ne.s32.totalorder %s560, %s561
      %p572 = scmp.eq.s32.totalorder %s103, 0
      %p573 = por %p571, %p572
      %p574 = scmp.ne.s32.totalorder %s560, %s561
      %p575 = scmp.eq.s32.totalorder %s104, 3
      %p576 = por %p574, %p575
      %p578 = scmp.ne.s32.totalorder %s561, %s577
      %p579 = scmp.eq.s32.totalorder %s104, 0
      %p580 = por %p578, %p579
      %s582 = sadd.s32 %s581, 1
      %p585 = scmp.eq.s32.totalorder %s98, 3
      %p586 = scmp.ne.s32.totalorder %s581, %s583
      %p587 = scmp.eq.s32.totalorder %s98, 0
      %p588 = por %p586, %p587
      %p589 = scmp.ne.s32.totalorder %s581, %s583
      %p590 = scmp.eq.s32.totalorder %s103, 3
      %p591 = por %p589, %p590
      %p592 = scmp.ne.s32.totalorder %s583, %s584
      %p593 = scmp.eq.s32.totalorder %s103, 0
      %p594 = por %p592, %p593
      %p595 = scmp.ne.s32.totalorder %s583, %s584
      %p596 = scmp.eq.s32.totalorder %s104, 3
      %p597 = por %p595, %p596
      %p599 = scmp.ne.s32.totalorder %s584, %s598
      %p600 = scmp.eq.s32.totalorder %s104, 0
      %p601 = por %p599, %p600
      %s603 = sadd.s32 %s602, 1
      %p606 = scmp.eq.s32.totalorder %s98, 3
      %p607 = scmp.ne.s32.totalorder %s602, %s604
      %p608 = scmp.eq.s32.totalorder %s98, 0
      %p609 = por %p607, %p608
      %p610 = scmp.ne.s32.totalorder %s602, %s604
      %p611 = scmp.eq.s32.totalorder %s103, 3
      %p612 = por %p610, %p611
      %p613 = scmp.ne.s32.totalorder %s604, %s605
      %p614 = scmp.eq.s32.totalorder %s103, 0
      %p615 = por %p613, %p614
      %p616 = scmp.ne.s32.totalorder %s604, %s605
      %p617 = scmp.eq.s32.totalorder %s104, 3
      %p618 = por %p616, %p617
      %p620 = scmp.ne.s32.totalorder %s605, %s619
      %p621 = scmp.eq.s32.totalorder %s104, 0
      %p622 = por %p620, %p621
      %s624 = sadd.s32 %s623, 1
      %p627 = scmp.eq.s32.totalorder %s98, 3
      %p628 = scmp.ne.s32.totalorder %s623, %s625
      %p629 = scmp.eq.s32.totalorder %s98, 0
      %p630 = por %p628, %p629
      %p631 = scmp.ne.s32.totalorder %s623, %s625
      %p632 = scmp.eq.s32.totalorder %s103, 3
      %p633 = por %p631, %p632
      %p634 = scmp.ne.s32.totalorder %s625, %s626
      %p635 = scmp.eq.s32.totalorder %s103, 0
      %p636 = por %p634, %p635
      %p637 = scmp.ne.s32.totalorder %s625, %s626
      %p638 = scmp.eq.s32.totalorder %s104, 3
      %p639 = por %p637, %p638
      %p641 = scmp.ne.s32.totalorder %s626, %s640
      %p642 = scmp.eq.s32.totalorder %s104, 0
      %p643 = por %p641, %p642
      %s645 = sadd.s32 %s644, 1
      %p648 = scmp.eq.s32.totalorder %s98, 3
      %p649 = scmp.ne.s32.totalorder %s644, %s646
      %p650 = scmp.eq.s32.totalorder %s98, 0
      %p651 = por %p649, %p650
      %p652 = scmp.ne.s32.totalorder %s644, %s646
      %p653 = scmp.eq.s32.totalorder %s103, 3
      %p654 = por %p652, %p653
      %p655 = scmp.ne.s32.totalorder %s646, %s647
      %p656 = scmp.eq.s32.totalorder %s103, 0
      %p657 = por %p655, %p656
      %p658 = scmp.ne.s32.totalorder %s646, %s647
      %p659 = scmp.eq.s32.totalorder %s104, 3
      %p660 = por %p658, %p659
      %p662 = scmp.ne.s32.totalorder %s647, %s661
      %p663 = scmp.eq.s32.totalorder %s104, 0
      %p664 = por %p662, %p663
      %s665 = smul.u32 %s106, %s105
      %s666 = smul.u32 %s113, %s117
      %s667 = ssub.s32 %s665, %s666
      %p668 = scmp.eq.s32.totalorder %s667, 0
      %s670 = sadd.s32 %s669, 1
      %s671 = scalar_select %p668, %s669, %s670
      %p674 = pneg %p668
      %p675 = scmp.eq.s32.totalorder %s98, 3
      %p676 = por %p674, %p675
      %p677 = scmp.ne.s32.totalorder %s669, %s672
      %p678 = scmp.eq.s32.totalorder %s98, 0
      %p679 = por %p677, %p678
      %p680 = scmp.ne.s32.totalorder %s669, %s672
      %p681 = scmp.eq.s32.totalorder %s103, 3
      %p682 = por %p680, %p681
      %p683 = scmp.ne.s32.totalorder %s672, %s673
      %p684 = scmp.eq.s32.totalorder %s103, 0
      %p685 = por %p683, %p684
      %p686 = scmp.ne.s32.totalorder %s672, %s673
      %p687 = scmp.eq.s32.totalorder %s104, 3
      %p688 = por %p686, %p687
      %p690 = scmp.ne.s32.totalorder %s673, %s689
      %p691 = scmp.eq.s32.totalorder %s104, 0
      %p692 = por %p690, %p691
      %s694 = sadd.s32 %s693, 1
      %p697 = scmp.eq.s32.totalorder %s98, 3
      %p698 = scmp.ne.s32.totalorder %s693, %s695
      %p699 = scmp.eq.s32.totalorder %s98, 0
      %p700 = por %p698, %p699
      %p701 = scmp.ne.s32.totalorder %s693, %s695
      %p702 = scmp.eq.s32.totalorder %s103, 3
      %p703 = por %p701, %p702
      %p704 = scmp.ne.s32.totalorder %s695, %s696
      %p705 = scmp.eq.s32.totalorder %s103, 0
      %p706 = por %p704, %p705
      %p707 = scmp.ne.s32.totalorder %s695, %s696
      %p708 = scmp.eq.s32.totalorder %s104, 3
      %p709 = por %p707, %p708
      %p711 = scmp.ne.s32.totalorder %s696, %s710
      %p712 = scmp.eq.s32.totalorder %s104, 0
      %p713 = por %p711, %p712
      %s715 = sadd.s32 %s714, 1
      %p718 = scmp.eq.s32.totalorder %s98, 3
      %p719 = scmp.ne.s32.totalorder %s714, %s716
      %p720 = scmp.eq.s32.totalorder %s98, 0
      %p721 = por %p719, %p720
      %p722 = scmp.ne.s32.totalorder %s714, %s716
      %p723 = scmp.eq.s32.totalorder %s103, 3
      %p724 = por %p722, %p723
      %p725 = scmp.ne.s32.totalorder %s716, %s717
      %p726 = scmp.eq.s32.totalorder %s103, 0
      %p727 = por %p725, %p726
      %p728 = scmp.ne.s32.totalorder %s716, %s717
      %p729 = scmp.eq.s32.totalorder %s104, 3
      %p730 = por %p728, %p729
      %p732 = scmp.ne.s32.totalorder %s717, %s731
      %p733 = scmp.eq.s32.totalorder %s104, 0
      %p734 = por %p732, %p733
      %s735 = smul.u32 %s106, %s105
      %s736 = smul.u32 %s113, %s117
      %s737 = ssub.s32 %s735, %s736
      %p738 = scmp.eq.s32.totalorder %s737, 0
      %s740 = sadd.s32 %s739, 1
      %s741 = scalar_select %p738, %s739, %s740
      %p744 = pneg %p738
      %p745 = scmp.eq.s32.totalorder %s98, 3
      %p746 = por %p744, %p745
      %p747 = scmp.ne.s32.totalorder %s739, %s742
      %p748 = scmp.eq.s32.totalorder %s98, 0
      %p749 = por %p747, %p748
      %p750 = scmp.ne.s32.totalorder %s739, %s742
      %p751 = scmp.eq.s32.totalorder %s103, 3
      %p752 = por %p750, %p751
      %p753 = scmp.ne.s32.totalorder %s742, %s743
      %p754 = scmp.eq.s32.totalorder %s103, 0
      %p755 = por %p753, %p754
      %p756 = scmp.ne.s32.totalorder %s742, %s743
      %p757 = scmp.eq.s32.totalorder %s104, 3
      %p758 = por %p756, %p757
      %p760 = scmp.ne.s32.totalorder %s743, %s759
      %p761 = scmp.eq.s32.totalorder %s104, 0
      %p762 = por %p760, %p761
      %s764 = sadd.s32 %s763, 1
      %p767 = scmp.eq.s32.totalorder %s98, 3
      %p768 = scmp.ne.s32.totalorder %s763, %s765
      %p769 = scmp.eq.s32.totalorder %s98, 0
      %p770 = por %p768, %p769
      %p771 = scmp.ne.s32.totalorder %s763, %s765
      %p772 = scmp.eq.s32.totalorder %s103, 3
      %p773 = por %p771, %p772
      %p774 = scmp.ne.s32.totalorder %s765, %s766
      %p775 = scmp.eq.s32.totalorder %s103, 0
      %p776 = por %p774, %p775
      %p777 = scmp.ne.s32.totalorder %s765, %s766
      %p778 = scmp.eq.s32.totalorder %s104, 3
      %p779 = por %p777, %p778
      %p781 = scmp.ne.s32.totalorder %s766, %s780
      %p782 = scmp.eq.s32.totalorder %s104, 0
      %p783 = por %p781, %p782
      %s785 = sadd.s32 %s784, 1
      %p788 = scmp.eq.s32.totalorder %s98, 3
      %p789 = scmp.ne.s32.totalorder %s784, %s786
      %p790 = scmp.eq.s32.totalorder %s98, 0
      %p791 = por %p789, %p790
      %p792 = scmp.ne.s32.totalorder %s784, %s786
      %p793 = scmp.eq.s32.totalorder %s103, 3
      %p794 = por %p792, %p793
      %p795 = scmp.ne.s32.totalorder %s786, %s787
      %p796 = scmp.eq.s32.totalorder %s103, 0
      %p797 = por %p795, %p796
      %p798 = scmp.ne.s32.totalorder %s786, %s787
      %p799 = scmp.eq.s32.totalorder %s104, 3
      %p800 = por %p798, %p799
      %p802 = scmp.ne.s32.totalorder %s787, %s801
      %p803 = scmp.eq.s32.totalorder %s104, 0
      %p804 = por %p802, %p803
      %p805 = scmp.le.s32.totalorder 1, %s98
      %p806 = scmp.lt.s32.totalorder %s98, 5
      %p807 = pnand %p805, %p806
      %p808 = pneg %p807
      // Predicated region
      $region9: #{tpu_custom_call.1} parent=5 // pred_check
        _
      $region10: #{tpu_custom_call.1} parent=5 // pred_check_branch
        %810 = sbr.rel (%p807) target = $region12
      $region11: #{tpu_custom_call.1} parent=5 // pred_region
        %s811 = ssub.s32 %s98, 1
        // Predicated region
        $region13: #{tpu_custom_call.1} parent=11 // pred_check
          %p812 = pneg %p131
        $region14: #{tpu_custom_call.1} parent=11 // pred_check_branch
          %814 = sbr.rel (%p812) target = $region16
        $region15: #{tpu_custom_call.1} parent=11 // pred_region
          _
        $region16: #{tpu_custom_call.1} parent=11 // pred_fallthru
          _
        // Predicated region
        $region17: #{tpu_custom_call.1} parent=11 // pred_check
          %p815 = pneg %p152
        $region18: #{tpu_custom_call.1} parent=11 // pred_check_branch
          %817 = sbr.rel (%p815) target = $region20
        $region19: #{tpu_custom_call.1} parent=11 // pred_region
          _
        $region20: #{tpu_custom_call.1} parent=11 // pred_fallthru
          _
        // Predicated region
        $region21: #{tpu_custom_call.1} parent=11 // pred_check
          %p818 = pneg %p173
        $region22: #{tpu_custom_call.1} parent=11 // pred_check_branch
          %820 = sbr.rel (%p818) target = $region24
        $region23: #{tpu_custom_call.1} parent=11 // pred_region
          _
        $region24: #{tpu_custom_call.1} parent=11 // pred_fallthru
          _
        // Predicated region
        $region25: #{tpu_custom_call.1} parent=11 // pred_check
          %p821 = pneg %p194
        $region26: #{tpu_custom_call.1} parent=11 // pred_check_branch
          %823 = sbr.rel (%p821) target = $region28
        $region27: #{tpu_custom_call.1} parent=11 // pred_region
          _
        $region28: #{tpu_custom_call.1} parent=11 // pred_fallthru
          _
        // Predicated region
        $region29: #{tpu_custom_call.1} parent=11 // pred_check
          %p824 = pneg %p215
        $region30: #{tpu_custom_call.1} parent=11 // pred_check_branch
          %826 = sbr.rel (%p824) target = $region32
        $region31: #{tpu_custom_call.1} parent=11 // pred_region
          _
        $region32: #{tpu_custom_call.1} parent=11 // pred_fallthru
          _
        // Predicated region
        $region33: #{tpu_custom_call.1} parent=11 // pred_check
          %p827 = pneg %p236
        $region34: #{tpu_custom_call.1} parent=11 // pred_check_branch
          %829 = sbr.rel (%p827) target = $region36
        $region35: #{tpu_custom_call.1} parent=11 // pred_region
          _
        $region36: #{tpu_custom_call.1} parent=11 // pred_fallthru
          _
        // Predicated region
        $region37: #{tpu_custom_call.1} parent=11 // pred_check
          %p830 = pneg %p257
        $region38: #{tpu_custom_call.1} parent=11 // pred_check_branch
          %832 = sbr.rel (%p830) target = $region40
        $region39: #{tpu_custom_call.1} parent=11 // pred_region
          _
        $region40: #{tpu_custom_call.1} parent=11 // pred_fallthru
          _
        // Predicated region
        $region41: #{tpu_custom_call.1} parent=11 // pred_check
          %p833 = pneg %p278
        $region42: #{tpu_custom_call.1} parent=11 // pred_check_branch
          %835 = sbr.rel (%p833) target = $region44
        $region43: #{tpu_custom_call.1} parent=11 // pred_region
          _
        $region44: #{tpu_custom_call.1} parent=11 // pred_fallthru
          _
        // Predicated region
        $region45: #{tpu_custom_call.1} parent=11 // pred_check
          %p836 = pneg %p299
        $region46: #{tpu_custom_call.1} parent=11 // pred_check_branch
          %838 = sbr.rel (%p836) target = $region48
        $region47: #{tpu_custom_call.1} parent=11 // pred_region
          _
        $region48: #{tpu_custom_call.1} parent=11 // pred_fallthru
          _
        // Predicated region
        $region49: #{tpu_custom_call.1} parent=11 // pred_check
          %p839 = pneg %p320
        $region50: #{tpu_custom_call.1} parent=11 // pred_check_branch
          %841 = sbr.rel (%p839) target = $region52
        $region51: #{tpu_custom_call.1} parent=11 // pred_region
          _
        $region52: #{tpu_custom_call.1} parent=11 // pred_fallthru
          _
        // Predicated region
        $region53: #{tpu_custom_call.1} parent=11 // pred_check
          %p842 = pneg %p341
        $region54: #{tpu_custom_call.1} parent=11 // pred_check_branch
          %844 = sbr.rel (%p842) target = $region56
        $region55: #{tpu_custom_call.1} parent=11 // pred_region
          _
        $region56: #{tpu_custom_call.1} parent=11 // pred_fallthru
          _
        // Predicated region
        $region57: #{tpu_custom_call.1} parent=11 // pred_check
          %p845 = pneg %p362
        $region58: #{tpu_custom_call.1} parent=11 // pred_check_branch
          %847 = sbr.rel (%p845) target = $region60
        $region59: #{tpu_custom_call.1} parent=11 // pred_region
          _
        $region60: #{tpu_custom_call.1} parent=11 // pred_fallthru
          _
        // Predicated region
        $region61: #{tpu_custom_call.1} parent=11 // pred_check
          %p848 = pneg %p383
        $region62: #{tpu_custom_call.1} parent=11 // pred_check_branch
          %850 = sbr.rel (%p848) target = $region64
        $region63: #{tpu_custom_call.1} parent=11 // pred_region
          _
        $region64: #{tpu_custom_call.1} parent=11 // pred_fallthru
          _
        // Predicated region
        $region65: #{tpu_custom_call.1} parent=11 // pred_check
          %p851 = pneg %p404
        $region66: #{tpu_custom_call.1} parent=11 // pred_check_branch
          %853 = sbr.rel (%p851) target = $region68
        $region67: #{tpu_custom_call.1} parent=11 // pred_region
          _
        $region68: #{tpu_custom_call.1} parent=11 // pred_fallthru
          _
        // Predicated region
        $region69: #{tpu_custom_call.1} parent=11 // pred_check
          %p854 = pneg %p425
        $region70: #{tpu_custom_call.1} parent=11 // pred_check_branch
          %856 = sbr.rel (%p854) target = $region72
        $region71: #{tpu_custom_call.1} parent=11 // pred_region
          _
        $region72: #{tpu_custom_call.1} parent=11 // pred_fallthru
          _
        // Predicated region
        $region73: #{tpu_custom_call.1} parent=11 // pred_check
          %p857 = pneg %p446
        $region74: #{tpu_custom_call.1} parent=11 // pred_check_branch
          %859 = sbr.rel (%p857) target = $region76
        $region75: #{tpu_custom_call.1} parent=11 // pred_region
          _
        $region76: #{tpu_custom_call.1} parent=11 // pred_fallthru
          _
        // Predicated region
        $region77: #{tpu_custom_call.1} parent=11 // pred_check
          %p860 = pneg %p467
        $region78: #{tpu_custom_call.1} parent=11 // pred_check_branch
          %862 = sbr.rel (%p860) target = $region80
        $region79: #{tpu_custom_call.1} parent=11 // pred_region
          _
        $region80: #{tpu_custom_call.1} parent=11 // pred_fallthru
          _
        // Predicated region
        $region81: #{tpu_custom_call.1} parent=11 // pred_check
          %p863 = pneg %p488
        $region82: #{tpu_custom_call.1} parent=11 // pred_check_branch
          %865 = sbr.rel (%p863) target = $region84
        $region83: #{tpu_custom_call.1} parent=11 // pred_region
          _
        $region84: #{tpu_custom_call.1} parent=11 // pred_fallthru
          _
        // Predicated region
        $region85: #{tpu_custom_call.1} parent=11 // pred_check
          %p866 = pneg %p509
        $region86: #{tpu_custom_call.1} parent=11 // pred_check_branch
          %868 = sbr.rel (%p866) target = $region88
        $region87: #{tpu_custom_call.1} parent=11 // pred_region
          _
        $region88: #{tpu_custom_call.1} parent=11 // pred_fallthru
          _
        // Predicated region
        $region89: #{tpu_custom_call.1} parent=11 // pred_check
          %p869 = pneg %p594
        $region90: #{tpu_custom_call.1} parent=11 // pred_check_branch
          %871 = sbr.rel (%p869) target = $region92
        $region91: #{tpu_custom_call.1} parent=11 // pred_region
          _
        $region92: #{tpu_custom_call.1} parent=11 // pred_fallthru
          _
        // Predicated region
        $region93: #{tpu_custom_call.1} parent=11 // pred_check
          %p872 = pneg %p615
        $region94: #{tpu_custom_call.1} parent=11 // pred_check_branch
          %874 = sbr.rel (%p872) target = $region96
        $region95: #{tpu_custom_call.1} parent=11 // pred_region
          _
        $region96: #{tpu_custom_call.1} parent=11 // pred_fallthru
          _
        // Predicated region
        $region97: #{tpu_custom_call.1} parent=11 // pred_check
          %p875 = pneg %p636
        $region98: #{tpu_custom_call.1} parent=11 // pred_check_branch
          %877 = sbr.rel (%p875) target = $region100
        $region99: #{tpu_custom_call.1} parent=11 // pred_region
          _
        $region100: #{tpu_custom_call.1} parent=11 // pred_fallthru
          _
        // Predicated region
        $region101: #{tpu_custom_call.1} parent=11 // pred_check
          %p878 = pneg %p657
        $region102: #{tpu_custom_call.1} parent=11 // pred_check_branch
          %880 = sbr.rel (%p878) target = $region104
        $region103: #{tpu_custom_call.1} parent=11 // pred_region
          _
        $region104: #{tpu_custom_call.1} parent=11 // pred_fallthru
          _
      $region12: #{tpu_custom_call.1} parent=5 // pred_fallthru
        _
      %p881 = scmp.lt.s32.totalorder %s98, 4
      // Predicated region
      $region105: #{tpu_custom_call.1} parent=5 // pred_check
        %p882 = pneg %p881
      $region106: #{tpu_custom_call.1} parent=5 // pred_check_branch
        %884 = sbr.rel (%p882) target = $region108
      $region107: #{tpu_custom_call.1} parent=5 // pred_region
        // Predicated region
        $region109: #{tpu_custom_call.1} parent=107 // pred_check
          %p885 = pneg %p535
        $region110: #{tpu_custom_call.1} parent=107 // pred_check_branch
          %887 = sbr.rel (%p885) target = $region112
        $region111: #{tpu_custom_call.1} parent=107 // pred_region
          %s888 = sand.u32 %s525, 1
          %s889 = sand.u32 %s525, 1
          %s890 = smul.addr %s889, 128
          %s891 = scalar_lea.vmem [#allocation15], %s890
          %s892 = ssub.s32 1, %s105
          %s893 = smul.u32 %s106, %s892
          %s894 = sadd.s32 %s893, %s105
          %s895 = smul.u32 4, %s894
          %s896 = smul.addr %s895, 4
          %s897 = scalar_lea.vmem %s45, %s896
          // Predicated region
          $region113: #{tpu_custom_call.1} parent=111 // pred_check
            _
          $region114: #{tpu_custom_call.1} parent=111 // pred_check_branch
            %899 = sbr.rel (0) target = $region116
          $region115: #{tpu_custom_call.1} parent=111 // pred_region
            // Predicated region
            $region117: #{tpu_custom_call.1} parent=115 // pred_check
              _
            $region118: #{tpu_custom_call.1} parent=115 // pred_check_branch
              %901 = sbr.rel (0) target = $region120
            $region119: #{tpu_custom_call.1} parent=115 // pred_region
              loop: start=0, step=1, limit=1
              $region121: #{tpu_custom_call.1} parent=119 // loop_pre_header
                _
              $region122: #{tpu_custom_call.1} parent=119 // loop_header
                %s903 = sphi 0, %s907
                %p904 = scmp.ge.s32.totalorder %s903, 1
                %s908 = sphi %s897, %s897
                %s909 = sphi %s891, %s891
              $region123: #{tpu_custom_call.1} parent=119 // loop_header_branch
                %906 = sbr.rel (%p904) target = $region127
              $region124: #{tpu_custom_call.1} parent=119 // loop_body
                %v910 = vld [vmem:[%s908] sm:$0xff]
                %911 = vst [vmem:[%s909] sm:$0xff] %v910
                %v912 = vld [vmem:[%s908 + $0x8] sm:$0xff]
                %913 = vst [vmem:[%s909 + $0x8] sm:$0xff] %v912
                %v914 = vld [vmem:[%s908 + $0x20] sm:$0xff]
                %915 = vst [vmem:[%s909 + $0x10] sm:$0xff] %v914
                %v916 = vld [vmem:[%s908 + $0x28] sm:$0xff]
                %917 = vst [vmem:[%s909 + $0x18] sm:$0xff] %v916
                %v918 = vld [vmem:[%s908 + $0x40] sm:$0xff]
                %919 = vst [vmem:[%s909 + $0x20] sm:$0xff] %v918
                %v920 = vld [vmem:[%s908 + $0x48] sm:$0xff]
                %921 = vst [vmem:[%s909 + $0x28] sm:$0xff] %v920
                %v922 = vld [vmem:[%s908 + $0x60] sm:$0xff]
                %923 = vst [vmem:[%s909 + $0x30] sm:$0xff] %v922
                %v924 = vld [vmem:[%s908 + $0x68] sm:$0xff]
                %925 = vst [vmem:[%s909 + $0x38] sm:$0xff] %v924
                %v926 = vld [vmem:[%s908 + $0x80] sm:$0xff]
                %927 = vst [vmem:[%s909 + $0x40] sm:$0xff] %v926
                %v928 = vld [vmem:[%s908 + $0x88] sm:$0xff]
                %929 = vst [vmem:[%s909 + $0x48] sm:$0xff] %v928
                %v930 = vld [vmem:[%s908 + $0xa0] sm:$0xff]
                %931 = vst [vmem:[%s909 + $0x50] sm:$0xff] %v930
                %v932 = vld [vmem:[%s908 + $0xa8] sm:$0xff]
                %933 = vst [vmem:[%s909 + $0x58] sm:$0xff] %v932
                %v934 = vld [vmem:[%s908 + $0xc0] sm:$0xff]
                %935 = vst [vmem:[%s909 + $0x60] sm:$0xff] %v934
                %v936 = vld [vmem:[%s908 + $0xc8] sm:$0xff]
                %937 = vst [vmem:[%s909 + $0x68] sm:$0xff] %v936
                %v938 = vld [vmem:[%s908 + $0xe0] sm:$0xff]
                %939 = vst [vmem:[%s909 + $0x70] sm:$0xff] %v938
                %v940 = vld [vmem:[%s908 + $0xe8] sm:$0xff]
                %941 = vst [vmem:[%s909 + $0x78] sm:$0xff] %v940
              $region125: #{tpu_custom_call.1} parent=119 // loop_footer
                %s907 = sadd.s32 1, %s903
              $region126: #{tpu_custom_call.1} parent=119 // loop_footer_branch
                %902 = sbr.rel target = $region122
              $region127: #{tpu_custom_call.1} parent=119 // loop_exit
                _
            $region120: #{tpu_custom_call.1} parent=115 // pred_fallthru
              _
            // Predicated region
            $region128: #{tpu_custom_call.1} parent=115 // pred_check
              _
            $region129: #{tpu_custom_call.1} parent=115 // pred_check_branch
              %943 = sbr.rel target = $region131
            $region130: #{tpu_custom_call.1} parent=115 // pred_region
              _
            $region131: #{tpu_custom_call.1} parent=115 // pred_fallthru
              _
          $region116: #{tpu_custom_call.1} parent=111 // pred_fallthru
            _
          %944 = vnop
        $region112: #{tpu_custom_call.1} parent=107 // pred_fallthru
          _
        // Predicated region
        $region132: #{tpu_custom_call.1} parent=107 // pred_check
          %p945 = pneg %p567
        $region133: #{tpu_custom_call.1} parent=107 // pred_check_branch
          %947 = sbr.rel (%p945) target = $region135
        $region134: #{tpu_custom_call.1} parent=107 // pred_region
          %s948 = ssub.s32 1, %s105
          %s949 = smul.u32 %s106, %s948
          %s950 = sadd.s32 %s949, %s105
          %s951 = smul.u32 4, %s950
          %p952 = scmp.lt.s32.totalorder %s951, 7
          %s953 = scalar_select %p952, %s951, 7
          %s954 = scalar_lea.vmem %s47, %s953
          %s955 = ssub.s32 1, %s105
          %s956 = smul.u32 %s106, %s955
          %s957 = sadd.s32 %s956, %s105
          %s958 = smul.u32 4, %s957
        $region135: #{tpu_custom_call.1} parent=107 // pred_fallthru
          _
      $region108: #{tpu_custom_call.1} parent=5 // pred_fallthru
        _
      %p959 = scmp.le.s32.totalorder 1, %s98
      %p960 = scmp.lt.s32.totalorder %s98, 5
      %p961 = pnand %p959, %p960
      %p962 = pneg %p961
      // Predicated region
      $region136: #{tpu_custom_call.1} parent=5 // pred_check
        _
      $region137: #{tpu_custom_call.1} parent=5 // pred_check_branch
        %964 = sbr.rel (%p961) target = $region139
      $region138: #{tpu_custom_call.1} parent=5 // pred_region
        %s965 = ssub.s32 %s98, 1
        %s966 = sand.u32 %s528, 1
        %s967 = sand.u32 %s528, 1
        %s968 = smul.addr %s967, 128
        %s969 = scalar_lea.vmem [#allocation15], %s968
        // Predicated region
        $region140: #{tpu_custom_call.1} parent=138 // pred_check
          %p970 = pneg %p541
        $region141: #{tpu_custom_call.1} parent=138 // pred_check_branch
          %972 = sbr.rel (%p970) target = $region143
        $region142: #{tpu_custom_call.1} parent=138 // pred_region
          _
        $region143: #{tpu_custom_call.1} parent=138 // pred_fallthru
          _
        %p973 = pneg %p131
        %p974 = pneg %p128
        %p975 = pneg %p152
        %p976 = pneg %p149
        %p977 = pneg %p173
        %p978 = pneg %p170
        %p979 = pneg %p194
        %p980 = pneg %p191
        %p981 = pneg %p215
        %p982 = pneg %p212
        %p983 = pneg %p236
        %p984 = pneg %p233
        %p985 = pneg %p257
        %p986 = pneg %p254
        %p987 = pneg %p278
        %p988 = pneg %p275
        %p989 = pneg %p299
        %p990 = pneg %p296
        %p991 = pneg %p320
        %p992 = pneg %p317
        %p993 = pneg %p341
        %p994 = pneg %p338
        %p995 = pneg %p362
        %p996 = pneg %p359
        %p997 = pneg %p383
        %p998 = pneg %p380
        %p999 = pneg %p404
        %p1000 = pneg %p401
        %p1001 = pneg %p425
        %p1002 = pneg %p422
        %p1003 = pneg %p446
        %p1004 = pneg %p443
        %p1005 = pneg %p467
        %p1006 = pneg %p464
        %p1007 = pneg %p488
        %p1008 = pneg %p485
        %p1009 = pneg %p509
        %p1010 = pneg %p506
        %s1011 = sand.u32 %s528, 1
        %s1012 = sand.u32 %s528, 1
        %s1013 = smul.addr %s1012, 128
        %s1014 = scalar_lea.vmem [#allocation15], %s1013
        %p1015 = pneg %p541
        %p1016 = pneg %p538
        %s1017 = ssub.s32 1, %s107
        %s1018 = smul.u32 %s108, %s1017
        %s1019 = sadd.s32 %s1018, %s107
        %s1020 = smul.u32 4, %s1019
        %p1021 = scmp.lt.s32.totalorder %s1020, 7
        %s1022 = scalar_select %p1021, %s1020, 7
        %s1023 = scalar_lea.vmem %s47, %s1022
        %p1024 = pneg %p573
        %p1025 = pneg %p570
        %p1026 = pneg %p594
        %p1027 = pneg %p591
        %p1028 = pneg %p615
        %p1029 = pneg %p612
        %p1030 = pneg %p636
        %p1031 = pneg %p633
        %p1032 = pneg %p657
        %p1033 = pneg %p654
        %p1034 = pneg %p685
        %p1035 = pneg %p682
        %s1036 = sand.u32 %s672, 1
        %s1037 = scalar_lea.sflag [#allocation17], %s1036
        %s1038 = sand.u32 %s672, 1
        %s1039 = smul.addr %s1038, 32
        %s1040 = scalar_lea.vmem [#allocation16], %s1039
        %p1041 = pneg %p706
        %p1042 = pneg %p703
        %p1043 = pneg %p727
        %p1044 = pneg %p724
        %p1045 = pneg %p755
        %p1046 = pneg %p752
        %s1047 = sand.u32 %s103, 1
        %s1048 = scalar_lea.sflag [#allocation22], %s1047
        %s1049 = sand.u32 %s742, 1
        %s1050 = smul.addr %s1049, 32
        %s1051 = scalar_lea.vmem [#allocation21], %s1050
        %p1052 = pneg %p776
        %p1053 = pneg %p773
        %p1054 = pneg %p797
        %p1055 = pneg %p794
        %s1056 = ssub.s32 1, %s107
        %s1057 = smul.u32 %s108, %s1056
        %s1058 = sadd.s32 %s1057, %s107
        %s1059 = smul.u32 4, %s1058
        %s1060 = ssub.s32 1, %s107
        %s1061 = smul.u32 %s108, %s1060
        %s1062 = sadd.s32 %s1061, %s107
        %s1063 = smul.u32 4, %s1062
        %p1064 = scmp.lt.s32.totalorder %s1063, 7
        %s1065 = scalar_select %p1064, %s1063, 7
        %s1066 = scalar_lea.vmem %s47, %s1065
        %s1067 = ssub.s32 1, %s107
        %s1068 = smul.u32 %s108, %s1067
        %s1069 = sadd.s32 %s1068, %s107
        %s1070 = smul.u32 4, %s1069
        %s1071 = smul.u32 %s108, %s107
        %s1072 = smul.u32 4, %s1071
        %s1073 = smul.u32 %s108, %s107
        %s1074 = smul.u32 4, %s1073
        %p1076 = scmp.eq.s32.totalorder %s107, 0
        %p1077 = scmp.eq.s32.totalorder %s108, 0
        %p1078 = pnand %p1076, %p1077
        %p1079 = pneg %p1078
        // Predicated region
        $region144: #{tpu_custom_call.1} parent=138 // pred_check
          _
        $region145: #{tpu_custom_call.1} parent=138 // pred_check_branch
          %1081 = sbr.rel (%p1078) target = $region147
        $region146: #{tpu_custom_call.1} parent=138 // pred_region
          %s1082 = sld [smem:[#allocation10]]
          %s1083 = scalar_lea.vmem %s13, %s1082
          %p1085 = scmp.lt.u32.totalorder 1, 8
          %p1086 = pneg %p1085
          // Predicated region
          $region148: #{tpu_custom_call.1} parent=146 // pred_check
            _
          $region149: #{tpu_custom_call.1} parent=146 // pred_check_branch
            %1088 = sbr.rel (%p1085) target = $region151
          $region150: #{tpu_custom_call.1} parent=146 // pred_region
            %s1104 = sand.u32 1, 7
            %p1105 = scmp.eq.s32.totalorder %s1104, 0
            %p1106 = pneg %p1105
            // Predicated region
            $region163: #{tpu_custom_call.1} parent=150 // pred_check
              _
            $region164: #{tpu_custom_call.1} parent=150 // pred_check_branch
              %1108 = sbr.rel (%p1105) target = $region166
            $region165: #{tpu_custom_call.1} parent=150 // pred_region
              %s1109 = sand.u32 1, 7
              %s1110 = ssub.s32 1, %s1109
              %s1111 = scalar_lea.vmem %s1083, %s1110
              %s1112 = ssub.s32 1, %s1109
              %s1113 = scalar_lea.vmem [#allocation2], %s1112
              %s1114 = sshll.u32 1, %s1109
              %s1115 = ssub.s32 %s1114, 1
              loop: start=0, step=1, limit=1
              $region167: #{tpu_custom_call.1} parent=165 // loop_pre_header
                _
              $region168: #{tpu_custom_call.1} parent=165 // loop_header
                %s1117 = sphi 0, %s1121
                %p1118 = scmp.ge.s32.totalorder %s1117, 1
                %s1122 = sphi %s1111, %s1111
                %s1123 = sphi %s1113, %s1113
              $region169: #{tpu_custom_call.1} parent=165 // loop_header_branch
                %1120 = sbr.rel (%p1118) target = $region173
              $region170: #{tpu_custom_call.1} parent=165 // loop_body
                %v1124 = vld [vmem:[%s1122] sm:%s1115]
                %1125 = vst [vmem:[%s1123] sm:%s1115] %v1124
              $region171: #{tpu_custom_call.1} parent=165 // loop_footer
                %s1121 = sadd.s32 1, %s1117
              $region172: #{tpu_custom_call.1} parent=165 // loop_footer_branch
                %1116 = sbr.rel target = $region168
              $region173: #{tpu_custom_call.1} parent=165 // loop_exit
                _
            $region166: #{tpu_custom_call.1} parent=150 // pred_fallthru
              _
          $region151: #{tpu_custom_call.1} parent=146 // pred_fallthru
            _
          // Predicated region
          $region152: #{tpu_custom_call.1} parent=146 // pred_check
            %p1089 = pneg %p1085
          $region153: #{tpu_custom_call.1} parent=146 // pred_check_branch
            %1091 = sbr.rel (%p1089) target = $region155
          $region154: #{tpu_custom_call.1} parent=146 // pred_region
            %s1092 = sshll.u32 1, 1
            %s1093 = ssub.s32 %s1092, 1
            loop: start=0, step=1, limit=1
            $region156: #{tpu_custom_call.1} parent=154 // loop_pre_header
              _
            $region157: #{tpu_custom_call.1} parent=154 // loop_header
              %s1095 = sphi 0, %s1099
              %p1096 = scmp.ge.s32.totalorder %s1095, 1
              %s1100 = sphi %s1083, %s1083
              %s1101 = sphi [#allocation2], [#allocation2]
            $region158: #{tpu_custom_call.1} parent=154 // loop_header_branch
              %1098 = sbr.rel (%p1096) target = $region162
            $region159: #{tpu_custom_call.1} parent=154 // loop_body
              %v1102 = vld [vmem:[%s1100] sm:%s1093]
              %1103 = vst [vmem:[%s1101] sm:%s1093] %v1102
            $region160: #{tpu_custom_call.1} parent=154 // loop_footer
              %s1099 = sadd.s32 1, %s1095
            $region161: #{tpu_custom_call.1} parent=154 // loop_footer_branch
              %1094 = sbr.rel target = $region157
            $region162: #{tpu_custom_call.1} parent=154 // loop_exit
              _
          $region155: #{tpu_custom_call.1} parent=146 // pred_fallthru
            _
          // Predicated region
          $region174: #{tpu_custom_call.1} parent=146 // pred_check
            _
          $region175: #{tpu_custom_call.1} parent=146 // pred_check_branch
            %1128 = sbr.rel (0) target = $region177
          $region176: #{tpu_custom_call.1} parent=146 // pred_region
            %1129 = vsyncadd [#allocation8], 16
          $region177: #{tpu_custom_call.1} parent=146 // pred_fallthru
            _
          %s1130 = sld [smem:[#allocation10 + $0x1]]
          %s1131 = scalar_lea.vmem %s13, %s1130
          %s1132 = scalar_lea.vmem [#allocation2], 1
          %s1133 = scalar_lea.sflag [#allocation8], 1
          %p1135 = scmp.lt.u32.totalorder 1, 8
          %p1136 = pneg %p1135
          // Predicated region
          $region178: #{tpu_custom_call.1} parent=146 // pred_check
            _
          $region179: #{tpu_custom_call.1} parent=146 // pred_check_branch
            %1138 = sbr.rel (%p1135) target = $region181
          $region180: #{tpu_custom_call.1} parent=146 // pred_region
            %s1154 = sand.u32 1, 7
            %p1155 = scmp.eq.s32.totalorder %s1154, 0
            %p1156 = pneg %p1155
            // Predicated region
            $region193: #{tpu_custom_call.1} parent=180 // pred_check
              _
            $region194: #{tpu_custom_call.1} parent=180 // pred_check_branch
              %1158 = sbr.rel (%p1155) target = $region196
            $region195: #{tpu_custom_call.1} parent=180 // pred_region
              %s1159 = sand.u32 1, 7
              %s1160 = ssub.s32 1, %s1159
              %s1161 = scalar_lea.vmem %s1131, %s1160
              %s1162 = ssub.s32 1, %s1159
              %s1163 = scalar_lea.vmem %s1132, %s1162 [#allocation2]
              %s1164 = sshll.u32 1, %s1159
              %s1165 = ssub.s32 %s1164, 1
              loop: start=0, step=1, limit=1
              $region197: #{tpu_custom_call.1} parent=195 // loop_pre_header
                _
              $region198: #{tpu_custom_call.1} parent=195 // loop_header
                %s1167 = sphi 0, %s1171
                %p1168 = scmp.ge.s32.totalorder %s1167, 1
                %s1172 = sphi %s1161, %s1161
                %s1173 = sphi %s1163, %s1163
              $region199: #{tpu_custom_call.1} parent=195 // loop_header_branch
                %1170 = sbr.rel (%p1168) target = $region203
              $region200: #{tpu_custom_call.1} parent=195 // loop_body
                %v1174 = vld [vmem:[%s1172] sm:%s1165]
                %1175 = vst [vmem:[%s1173] sm:%s1165] %v1174
              $region201: #{tpu_custom_call.1} parent=195 // loop_footer
                %s1171 = sadd.s32 1, %s1167
              $region202: #{tpu_custom_call.1} parent=195 // loop_footer_branch
                %1166 = sbr.rel target = $region198
              $region203: #{tpu_custom_call.1} parent=195 // loop_exit
                _
            $region196: #{tpu_custom_call.1} parent=180 // pred_fallthru
              _
          $region181: #{tpu_custom_call.1} parent=146 // pred_fallthru
            _
          // Predicated region
          $region182: #{tpu_custom_call.1} parent=146 // pred_check
            %p1139 = pneg %p1135
          $region183: #{tpu_custom_call.1} parent=146 // pred_check_branch
            %1141 = sbr.rel (%p1139) target = $region185
          $region184: #{tpu_custom_call.1} parent=146 // pred_region
            %s1142 = sshll.u32 1, 1
            %s1143 = ssub.s32 %s1142, 1
            loop: start=0, step=1, limit=1
            $region186: #{tpu_custom_call.1} parent=184 // loop_pre_header
              _
            $region187: #{tpu_custom_call.1} parent=184 // loop_header
              %s1145 = sphi 0, %s1149
              %p1146 = scmp.ge.s32.totalorder %s1145, 1
              %s1150 = sphi %s1131, %s1131
              %s1151 = sphi %s1132, %s1132
            $region188: #{tpu_custom_call.1} parent=184 // loop_header_branch
              %1148 = sbr.rel (%p1146) target = $region192
            $region189: #{tpu_custom_call.1} parent=184 // loop_body
              %v1152 = vld [vmem:[%s1150] sm:%s1143]
              %1153 = vst [vmem:[%s1151] sm:%s1143] %v1152
            $region190: #{tpu_custom_call.1} parent=184 // loop_footer
              %s1149 = sadd.s32 1, %s1145
            $region191: #{tpu_custom_call.1} parent=184 // loop_footer_branch
              %1144 = sbr.rel target = $region187
            $region192: #{tpu_custom_call.1} parent=184 // loop_exit
              _
          $region185: #{tpu_custom_call.1} parent=146 // pred_fallthru
            _
          // Predicated region
          $region204: #{tpu_custom_call.1} parent=146 // pred_check
            _
          $region205: #{tpu_custom_call.1} parent=146 // pred_check_branch
            %1178 = sbr.rel (0) target = $region207
          $region206: #{tpu_custom_call.1} parent=146 // pred_region
            %1179 = vsyncadd %s1133, 16
          $region207: #{tpu_custom_call.1} parent=146 // pred_fallthru
            _
          %s1180 = sld [smem:[#allocation10 + $0x2]]
          %s1181 = scalar_lea.vmem %s13, %s1180
          %s1182 = scalar_lea.vmem [#allocation2], 2
          %s1183 = scalar_lea.sflag [#allocation8], 2
          %p1185 = scmp.lt.u32.totalorder 1, 8
          %p1186 = pneg %p1185
          // Predicated region
          $region208: #{tpu_custom_call.1} parent=146 // pred_check
            _
          $region209: #{tpu_custom_call.1} parent=146 // pred_check_branch
            %1188 = sbr.rel (%p1185) target = $region211
          $region210: #{tpu_custom_call.1} parent=146 // pred_region
            %s1204 = sand.u32 1, 7
            %p1205 = scmp.eq.s32.totalorder %s1204, 0
            %p1206 = pneg %p1205
            // Predicated region
            $region223: #{tpu_custom_call.1} parent=210 // pred_check
              _
            $region224: #{tpu_custom_call.1} parent=210 // pred_check_branch
              %1208 = sbr.rel (%p1205) target = $region226
            $region225: #{tpu_custom_call.1} parent=210 // pred_region
              %s1209 = sand.u32 1, 7
              %s1210 = ssub.s32 1, %s1209
              %s1211 = scalar_lea.vmem %s1181, %s1210
              %s1212 = ssub.s32 1, %s1209
              %s1213 = scalar_lea.vmem %s1182, %s1212 [#allocation2]
              %s1214 = sshll.u32 1, %s1209
              %s1215 = ssub.s32 %s1214, 1
              loop: start=0, step=1, limit=1
              $region227: #{tpu_custom_call.1} parent=225 // loop_pre_header
                _
              $region228: #{tpu_custom_call.1} parent=225 // loop_header
                %s1217 = sphi 0, %s1221
                %p1218 = scmp.ge.s32.totalorder %s1217, 1
                %s1222 = sphi %s1211, %s1211
                %s1223 = sphi %s1213, %s1213
              $region229: #{tpu_custom_call.1} parent=225 // loop_header_branch
                %1220 = sbr.rel (%p1218) target = $region233
              $region230: #{tpu_custom_call.1} parent=225 // loop_body
                %v1224 = vld [vmem:[%s1222] sm:%s1215]
                %1225 = vst [vmem:[%s1223] sm:%s1215] %v1224
              $region231: #{tpu_custom_call.1} parent=225 // loop_footer
                %s1221 = sadd.s32 1, %s1217
              $region232: #{tpu_custom_call.1} parent=225 // loop_footer_branch
                %1216 = sbr.rel target = $region228
              $region233: #{tpu_custom_call.1} parent=225 // loop_exit
                _
            $region226: #{tpu_custom_call.1} parent=210 // pred_fallthru
              _
          $region211: #{tpu_custom_call.1} parent=146 // pred_fallthru
            _
          // Predicated region
          $region212: #{tpu_custom_call.1} parent=146 // pred_check
            %p1189 = pneg %p1185
          $region213: #{tpu_custom_call.1} parent=146 // pred_check_branch
            %1191 = sbr.rel (%p1189) target = $region215
          $region214: #{tpu_custom_call.1} parent=146 // pred_region
            %s1192 = sshll.u32 1, 1
            %s1193 = ssub.s32 %s1192, 1
            loop: start=0, step=1, limit=1
            $region216: #{tpu_custom_call.1} parent=214 // loop_pre_header
              _
            $region217: #{tpu_custom_call.1} parent=214 // loop_header
              %s1195 = sphi 0, %s1199
              %p1196 = scmp.ge.s32.totalorder %s1195, 1
              %s1200 = sphi %s1181, %s1181
              %s1201 = sphi %s1182, %s1182
            $region218: #{tpu_custom_call.1} parent=214 // loop_header_branch
              %1198 = sbr.rel (%p1196) target = $region222
            $region219: #{tpu_custom_call.1} parent=214 // loop_body
              %v1202 = vld [vmem:[%s1200] sm:%s1193]
              %1203 = vst [vmem:[%s1201] sm:%s1193] %v1202
            $region220: #{tpu_custom_call.1} parent=214 // loop_footer
              %s1199 = sadd.s32 1, %s1195
            $region221: #{tpu_custom_call.1} parent=214 // loop_footer_branch
              %1194 = sbr.rel target = $region217
            $region222: #{tpu_custom_call.1} parent=214 // loop_exit
              _
          $region215: #{tpu_custom_call.1} parent=146 // pred_fallthru
            _
          // Predicated region
          $region234: #{tpu_custom_call.1} parent=146 // pred_check
            _
          $region235: #{tpu_custom_call.1} parent=146 // pred_check_branch
            %1228 = sbr.rel (0) target = $region237
          $region236: #{tpu_custom_call.1} parent=146 // pred_region
            %1229 = vsyncadd %s1183, 16
          $region237: #{tpu_custom_call.1} parent=146 // pred_fallthru
            _
          %s1230 = sld [smem:[#allocation10 + $0x3]]
          %s1231 = scalar_lea.vmem %s13, %s1230
          %s1232 = scalar_lea.vmem [#allocation2], 3
          %s1233 = scalar_lea.sflag [#allocation8], 3
          %p1235 = scmp.lt.u32.totalorder 1, 8
          %p1236 = pneg %p1235
          // Predicated region
          $region238: #{tpu_custom_call.1} parent=146 // pred_check
            _
          $region239: #{tpu_custom_call.1} parent=146 // pred_check_branch
            %1238 = sbr.rel (%p1235) target = $region241
          $region240: #{tpu_custom_call.1} parent=146 // pred_region
            %s1254 = sand.u32 1, 7
            %p1255 = scmp.eq.s32.totalorder %s1254, 0
            %p1256 = pneg %p1255
            // Predicated region
            $region253: #{tpu_custom_call.1} parent=240 // pred_check
              _
            $region254: #{tpu_custom_call.1} parent=240 // pred_check_branch
              %1258 = sbr.rel (%p1255) target = $region256
            $region255: #{tpu_custom_call.1} parent=240 // pred_region
              %s1259 = sand.u32 1, 7
              %s1260 = ssub.s32 1, %s1259
              %s1261 = scalar_lea.vmem %s1231, %s1260
              %s1262 = ssub.s32 1, %s1259
              %s1263 = scalar_lea.vmem %s1232, %s1262 [#allocation2]
              %s1264 = sshll.u32 1, %s1259
              %s1265 = ssub.s32 %s1264, 1
              loop: start=0, step=1, limit=1
              $region257: #{tpu_custom_call.1} parent=255 // loop_pre_header
                _
              $region258: #{tpu_custom_call.1} parent=255 // loop_header
                %s1267 = sphi 0, %s1271
                %p1268 = scmp.ge.s32.totalorder %s1267, 1
                %s1272 = sphi %s1261, %s1261
                %s1273 = sphi %s1263, %s1263
              $region259: #{tpu_custom_call.1} parent=255 // loop_header_branch
                %1270 = sbr.rel (%p1268) target = $region263
              $region260: #{tpu_custom_call.1} parent=255 // loop_body
                %v1274 = vld [vmem:[%s1272] sm:%s1265]
                %1275 = vst [vmem:[%s1273] sm:%s1265] %v1274
              $region261: #{tpu_custom_call.1} parent=255 // loop_footer
                %s1271 = sadd.s32 1, %s1267
              $region262: #{tpu_custom_call.1} parent=255 // loop_footer_branch
                %1266 = sbr.rel target = $region258
              $region263: #{tpu_custom_call.1} parent=255 // loop_exit
                _
            $region256: #{tpu_custom_call.1} parent=240 // pred_fallthru
              _
          $region241: #{tpu_custom_call.1} parent=146 // pred_fallthru
            _
          // Predicated region
          $region242: #{tpu_custom_call.1} parent=146 // pred_check
            %p1239 = pneg %p1235
          $region243: #{tpu_custom_call.1} parent=146 // pred_check_branch
            %1241 = sbr.rel (%p1239) target = $region245
          $region244: #{tpu_custom_call.1} parent=146 // pred_region
            %s1242 = sshll.u32 1, 1
            %s1243 = ssub.s32 %s1242, 1
            loop: start=0, step=1, limit=1
            $region246: #{tpu_custom_call.1} parent=244 // loop_pre_header
              _
            $region247: #{tpu_custom_call.1} parent=244 // loop_header
              %s1245 = sphi 0, %s1249
              %p1246 = scmp.ge.s32.totalorder %s1245, 1
              %s1250 = sphi %s1231, %s1231
              %s1251 = sphi %s1232, %s1232
            $region248: #{tpu_custom_call.1} parent=244 // loop_header_branch
              %1248 = sbr.rel (%p1246) target = $region252
            $region249: #{tpu_custom_call.1} parent=244 // loop_body
              %v1252 = vld [vmem:[%s1250] sm:%s1243]
              %1253 = vst [vmem:[%s1251] sm:%s1243] %v1252
            $region250: #{tpu_custom_call.1} parent=244 // loop_footer
              %s1249 = sadd.s32 1, %s1245
            $region251: #{tpu_custom_call.1} parent=244 // loop_footer_branch
              %1244 = sbr.rel target = $region247
            $region252: #{tpu_custom_call.1} parent=244 // loop_exit
              _
          $region245: #{tpu_custom_call.1} parent=146 // pred_fallthru
            _
          // Predicated region
          $region264: #{tpu_custom_call.1} parent=146 // pred_check
            _
          $region265: #{tpu_custom_call.1} parent=146 // pred_check_branch
            %1278 = sbr.rel (0) target = $region267
          $region266: #{tpu_custom_call.1} parent=146 // pred_region
            %1279 = vsyncadd %s1233, 16
          $region267: #{tpu_custom_call.1} parent=146 // pred_fallthru
            _
          %s1280 = sld [smem:[#allocation10 + $0x4]]
          %s1281 = scalar_lea.vmem %s13, %s1280
          %s1282 = scalar_lea.vmem [#allocation2], 4
          %s1283 = scalar_lea.sflag [#allocation8], 4
          %p1285 = scmp.lt.u32.totalorder 1, 8
          %p1286 = pneg %p1285
          // Predicated region
          $region268: #{tpu_custom_call.1} parent=146 // pred_check
            _
          $region269: #{tpu_custom_call.1} parent=146 // pred_check_branch
            %1288 = sbr.rel (%p1285) target = $region271
          $region270: #{tpu_custom_call.1} parent=146 // pred_region
            %s1304 = sand.u32 1, 7
            %p1305 = scmp.eq.s32.totalorder %s1304, 0
            %p1306 = pneg %p1305
            // Predicated region
            $region283: #{tpu_custom_call.1} parent=270 // pred_check
              _
            $region284: #{tpu_custom_call.1} parent=270 // pred_check_branch
              %1308 = sbr.rel (%p1305) target = $region286
            $region285: #{tpu_custom_call.1} parent=270 // pred_region
              %s1309 = sand.u32 1, 7
              %s1310 = ssub.s32 1, %s1309
              %s1311 = scalar_lea.vmem %s1281, %s1310
              %s1312 = ssub.s32 1, %s1309
              %s1313 = scalar_lea.vmem %s1282, %s1312 [#allocation2]
              %s1314 = sshll.u32 1, %s1309
              %s1315 = ssub.s32 %s1314, 1
              loop: start=0, step=1, limit=1
              $region287: #{tpu_custom_call.1} parent=285 // loop_pre_header
                _
              $region288: #{tpu_custom_call.1} parent=285 // loop_header
                %s1317 = sphi 0, %s1321
                %p1318 = scmp.ge.s32.totalorder %s1317, 1
                %s1322 = sphi %s1311, %s1311
                %s1323 = sphi %s1313, %s1313
              $region289: #{tpu_custom_call.1} parent=285 // loop_header_branch
                %1320 = sbr.rel (%p1318) target = $region293
              $region290: #{tpu_custom_call.1} parent=285 // loop_body
                %v1324 = vld [vmem:[%s1322] sm:%s1315]
                %1325 = vst [vmem:[%s1323] sm:%s1315] %v1324
              $region291: #{tpu_custom_call.1} parent=285 // loop_footer
                %s1321 = sadd.s32 1, %s1317
              $region292: #{tpu_custom_call.1} parent=285 // loop_footer_branch
                %1316 = sbr.rel target = $region288
              $region293: #{tpu_custom_call.1} parent=285 // loop_exit
                _
            $region286: #{tpu_custom_call.1} parent=270 // pred_fallthru
              _
          $region271: #{tpu_custom_call.1} parent=146 // pred_fallthru
            _
          // Predicated region
          $region272: #{tpu_custom_call.1} parent=146 // pred_check
            %p1289 = pneg %p1285
          $region273: #{tpu_custom_call.1} parent=146 // pred_check_branch
            %1291 = sbr.rel (%p1289) target = $region275
          $region274: #{tpu_custom_call.1} parent=146 // pred_region
            %s1292 = sshll.u32 1, 1
            %s1293 = ssub.s32 %s1292, 1
            loop: start=0, step=1, limit=1
            $region276: #{tpu_custom_call.1} parent=274 // loop_pre_header
              _
            $region277: #{tpu_custom_call.1} parent=274 // loop_header
              %s1295 = sphi 0, %s1299
              %p1296 = scmp.ge.s32.totalorder %s1295, 1
              %s1300 = sphi %s1281, %s1281
              %s1301 = sphi %s1282, %s1282
            $region278: #{tpu_custom_call.1} parent=274 // loop_header_branch
              %1298 = sbr.rel (%p1296) target = $region282
            $region279: #{tpu_custom_call.1} parent=274 // loop_body
              %v1302 = vld [vmem:[%s1300] sm:%s1293]
              %1303 = vst [vmem:[%s1301] sm:%s1293] %v1302
            $region280: #{tpu_custom_call.1} parent=274 // loop_footer
              %s1299 = sadd.s32 1, %s1295
            $region281: #{tpu_custom_call.1} parent=274 // loop_footer_branch
              %1294 = sbr.rel target = $region277
            $region282: #{tpu_custom_call.1} parent=274 // loop_exit
              _
          $region275: #{tpu_custom_call.1} parent=146 // pred_fallthru
            _
          // Predicated region
          $region294: #{tpu_custom_call.1} parent=146 // pred_check
            _
          $region295: #{tpu_custom_call.1} parent=146 // pred_check_branch
            %1328 = sbr.rel (0) target = $region297
          $region296: #{tpu_custom_call.1} parent=146 // pred_region
            %1329 = vsyncadd %s1283, 16
          $region297: #{tpu_custom_call.1} parent=146 // pred_fallthru
            _
          %s1330 = sld [smem:[#allocation10 + $0x5]]
          %s1331 = scalar_lea.vmem %s13, %s1330
          %s1332 = scalar_lea.vmem [#allocation2], 5
          %s1333 = scalar_lea.sflag [#allocation8], 5
          %p1335 = scmp.lt.u32.totalorder 1, 8
          %p1336 = pneg %p1335
          // Predicated region
          $region298: #{tpu_custom_call.1} parent=146 // pred_check
            _
          $region299: #{tpu_custom_call.1} parent=146 // pred_check_branch
            %1338 = sbr.rel (%p1335) target = $region301
          $region300: #{tpu_custom_call.1} parent=146 // pred_region
            %s1354 = sand.u32 1, 7
            %p1355 = scmp.eq.s32.totalorder %s1354, 0
            %p1356 = pneg %p1355
            // Predicated region
            $region313: #{tpu_custom_call.1} parent=300 // pred_check
              _
            $region314: #{tpu_custom_call.1} parent=300 // pred_check_branch
              %1358 = sbr.rel (%p1355) target = $region316
            $region315: #{tpu_custom_call.1} parent=300 // pred_region
              %s1359 = sand.u32 1, 7
              %s1360 = ssub.s32 1, %s1359
              %s1361 = scalar_lea.vmem %s1331, %s1360
              %s1362 = ssub.s32 1, %s1359
              %s1363 = scalar_lea.vmem %s1332, %s1362 [#allocation2]
              %s1364 = sshll.u32 1, %s1359
              %s1365 = ssub.s32 %s1364, 1
              loop: start=0, step=1, limit=1
              $region317: #{tpu_custom_call.1} parent=315 // loop_pre_header
                _
              $region318: #{tpu_custom_call.1} parent=315 // loop_header
                %s1367 = sphi 0, %s1371
                %p1368 = scmp.ge.s32.totalorder %s1367, 1
                %s1372 = sphi %s1361, %s1361
                %s1373 = sphi %s1363, %s1363
              $region319: #{tpu_custom_call.1} parent=315 // loop_header_branch
                %1370 = sbr.rel (%p1368) target = $region323
              $region320: #{tpu_custom_call.1} parent=315 // loop_body
                %v1374 = vld [vmem:[%s1372] sm:%s1365]
                %1375 = vst [vmem:[%s1373] sm:%s1365] %v1374
              $region321: #{tpu_custom_call.1} parent=315 // loop_footer
                %s1371 = sadd.s32 1, %s1367
              $region322: #{tpu_custom_call.1} parent=315 // loop_footer_branch
                %1366 = sbr.rel target = $region318
              $region323: #{tpu_custom_call.1} parent=315 // loop_exit
                _
            $region316: #{tpu_custom_call.1} parent=300 // pred_fallthru
              _
          $region301: #{tpu_custom_call.1} parent=146 // pred_fallthru
            _
          // Predicated region
          $region302: #{tpu_custom_call.1} parent=146 // pred_check
            %p1339 = pneg %p1335
          $region303: #{tpu_custom_call.1} parent=146 // pred_check_branch
            %1341 = sbr.rel (%p1339) target = $region305
          $region304: #{tpu_custom_call.1} parent=146 // pred_region
            %s1342 = sshll.u32 1, 1
            %s1343 = ssub.s32 %s1342, 1
            loop: start=0, step=1, limit=1
            $region306: #{tpu_custom_call.1} parent=304 // loop_pre_header
              _
            $region307: #{tpu_custom_call.1} parent=304 // loop_header
              %s1345 = sphi 0, %s1349
              %p1346 = scmp.ge.s32.totalorder %s1345, 1
              %s1350 = sphi %s1331, %s1331
              %s1351 = sphi %s1332, %s1332
            $region308: #{tpu_custom_call.1} parent=304 // loop_header_branch
              %1348 = sbr.rel (%p1346) target = $region312
            $region309: #{tpu_custom_call.1} parent=304 // loop_body
              %v1352 = vld [vmem:[%s1350] sm:%s1343]
              %1353 = vst [vmem:[%s1351] sm:%s1343] %v1352
            $region310: #{tpu_custom_call.1} parent=304 // loop_footer
              %s1349 = sadd.s32 1, %s1345
            $region311: #{tpu_custom_call.1} parent=304 // loop_footer_branch
              %1344 = sbr.rel target = $region307
            $region312: #{tpu_custom_call.1} parent=304 // loop_exit
              _
          $region305: #{tpu_custom_call.1} parent=146 // pred_fallthru
            _
          // Predicated region
          $region324: #{tpu_custom_call.1} parent=146 // pred_check
            _
          $region325: #{tpu_custom_call.1} parent=146 // pred_check_branch
            %1378 = sbr.rel (0) target = $region327
          $region326: #{tpu_custom_call.1} parent=146 // pred_region
            %1379 = vsyncadd %s1333, 16
          $region327: #{tpu_custom_call.1} parent=146 // pred_fallthru
            _
          %s1380 = sld [smem:[#allocation10 + $0x6]]
          %s1381 = scalar_lea.vmem %s13, %s1380
          %s1382 = scalar_lea.vmem [#allocation2], 6
          %s1383 = scalar_lea.sflag [#allocation8], 6
          %p1385 = scmp.lt.u32.totalorder 1, 8
          %p1386 = pneg %p1385
          // Predicated region
          $region328: #{tpu_custom_call.1} parent=146 // pred_check
            _
          $region329: #{tpu_custom_call.1} parent=146 // pred_check_branch
            %1388 = sbr.rel (%p1385) target = $region331
          $region330: #{tpu_custom_call.1} parent=146 // pred_region
            %s1404 = sand.u32 1, 7
            %p1405 = scmp.eq.s32.totalorder %s1404, 0
            %p1406 = pneg %p1405
            // Predicated region
            $region343: #{tpu_custom_call.1} parent=330 // pred_check
              _
            $region344: #{tpu_custom_call.1} parent=330 // pred_check_branch
              %1408 = sbr.rel (%p1405) target = $region346
            $region345: #{tpu_custom_call.1} parent=330 // pred_region
              %s1409 = sand.u32 1, 7
              %s1410 = ssub.s32 1, %s1409
              %s1411 = scalar_lea.vmem %s1381, %s1410
              %s1412 = ssub.s32 1, %s1409
              %s1413 = scalar_lea.vmem %s1382, %s1412 [#allocation2]
              %s1414 = sshll.u32 1, %s1409
              %s1415 = ssub.s32 %s1414, 1
              loop: start=0, step=1, limit=1
              $region347: #{tpu_custom_call.1} parent=345 // loop_pre_header
                _
              $region348: #{tpu_custom_call.1} parent=345 // loop_header
                %s1417 = sphi 0, %s1421
                %p1418 = scmp.ge.s32.totalorder %s1417, 1
                %s1422 = sphi %s1411, %s1411
                %s1423 = sphi %s1413, %s1413
              $region349: #{tpu_custom_call.1} parent=345 // loop_header_branch
                %1420 = sbr.rel (%p1418) target = $region353
              $region350: #{tpu_custom_call.1} parent=345 // loop_body
                %v1424 = vld [vmem:[%s1422] sm:%s1415]
                %1425 = vst [vmem:[%s1423] sm:%s1415] %v1424
              $region351: #{tpu_custom_call.1} parent=345 // loop_footer
                %s1421 = sadd.s32 1, %s1417
              $region352: #{tpu_custom_call.1} parent=345 // loop_footer_branch
                %1416 = sbr.rel target = $region348
              $region353: #{tpu_custom_call.1} parent=345 // loop_exit
                _
            $region346: #{tpu_custom_call.1} parent=330 // pred_fallthru
              _
          $region331: #{tpu_custom_call.1} parent=146 // pred_fallthru
            _
          // Predicated region
          $region332: #{tpu_custom_call.1} parent=146 // pred_check
            %p1389 = pneg %p1385
          $region333: #{tpu_custom_call.1} parent=146 // pred_check_branch
            %1391 = sbr.rel (%p1389) target = $region335
          $region334: #{tpu_custom_call.1} parent=146 // pred_region
            %s1392 = sshll.u32 1, 1
            %s1393 = ssub.s32 %s1392, 1
            loop: start=0, step=1, limit=1
            $region336: #{tpu_custom_call.1} parent=334 // loop_pre_header
              _
            $region337: #{tpu_custom_call.1} parent=334 // loop_header
              %s1395 = sphi 0, %s1399
              %p1396 = scmp.ge.s32.totalorder %s1395, 1
              %s1400 = sphi %s1381, %s1381
              %s1401 = sphi %s1382, %s1382
            $region338: #{tpu_custom_call.1} parent=334 // loop_header_branch
              %1398 = sbr.rel (%p1396) target = $region342
            $region339: #{tpu_custom_call.1} parent=334 // loop_body
              %v1402 = vld [vmem:[%s1400] sm:%s1393]
              %1403 = vst [vmem:[%s1401] sm:%s1393] %v1402
            $region340: #{tpu_custom_call.1} parent=334 // loop_footer
              %s1399 = sadd.s32 1, %s1395
            $region341: #{tpu_custom_call.1} parent=334 // loop_footer_branch
              %1394 = sbr.rel target = $region337
            $region342: #{tpu_custom_call.1} parent=334 // loop_exit
              _
          $region335: #{tpu_custom_call.1} parent=146 // pred_fallthru
            _
          // Predicated region
          $region354: #{tpu_custom_call.1} parent=146 // pred_check
            _
          $region355: #{tpu_custom_call.1} parent=146 // pred_check_branch
            %1428 = sbr.rel (0) target = $region357
          $region356: #{tpu_custom_call.1} parent=146 // pred_region
            %1429 = vsyncadd %s1383, 16
          $region357: #{tpu_custom_call.1} parent=146 // pred_fallthru
            _
          %s1430 = sld [smem:[#allocation10 + $0x7]]
          %s1431 = scalar_lea.vmem %s13, %s1430
          %s1432 = scalar_lea.vmem [#allocation2], 7
          %s1433 = scalar_lea.sflag [#allocation8], 7
          %p1435 = scmp.lt.u32.totalorder 1, 8
          %p1436 = pneg %p1435
          // Predicated region
          $region358: #{tpu_custom_call.1} parent=146 // pred_check
            _
          $region359: #{tpu_custom_call.1} parent=146 // pred_check_branch
            %1438 = sbr.rel (%p1435) target = $region361
          $region360: #{tpu_custom_call.1} parent=146 // pred_region
            %s1454 = sand.u32 1, 7
            %p1455 = scmp.eq.s32.totalorder %s1454, 0
            %p1456 = pneg %p1455
            // Predicated region
            $region373: #{tpu_custom_call.1} parent=360 // pred_check
              _
            $region374: #{tpu_custom_call.1} parent=360 // pred_check_branch
              %1458 = sbr.rel (%p1455) target = $region376
            $region375: #{tpu_custom_call.1} parent=360 // pred_region
              %s1459 = sand.u32 1, 7
              %s1460 = ssub.s32 1, %s1459
              %s1461 = scalar_lea.vmem %s1431, %s1460
              %s1462 = ssub.s32 1, %s1459
              %s1463 = scalar_lea.vmem %s1432, %s1462 [#allocation2]
              %s1464 = sshll.u32 1, %s1459
              %s1465 = ssub.s32 %s1464, 1
              loop: start=0, step=1, limit=1
              $region377: #{tpu_custom_call.1} parent=375 // loop_pre_header
                _
              $region378: #{tpu_custom_call.1} parent=375 // loop_header
                %s1467 = sphi 0, %s1471
                %p1468 = scmp.ge.s32.totalorder %s1467, 1
                %s1472 = sphi %s1461, %s1461
                %s1473 = sphi %s1463, %s1463
              $region379: #{tpu_custom_call.1} parent=375 // loop_header_branch
                %1470 = sbr.rel (%p1468) target = $region383
              $region380: #{tpu_custom_call.1} parent=375 // loop_body
                %v1474 = vld [vmem:[%s1472] sm:%s1465]
                %1475 = vst [vmem:[%s1473] sm:%s1465] %v1474
              $region381: #{tpu_custom_call.1} parent=375 // loop_footer
                %s1471 = sadd.s32 1, %s1467
              $region382: #{tpu_custom_call.1} parent=375 // loop_footer_branch
                %1466 = sbr.rel target = $region378
              $region383: #{tpu_custom_call.1} parent=375 // loop_exit
                _
            $region376: #{tpu_custom_call.1} parent=360 // pred_fallthru
              _
          $region361: #{tpu_custom_call.1} parent=146 // pred_fallthru
            _
          // Predicated region
          $region362: #{tpu_custom_call.1} parent=146 // pred_check
            %p1439 = pneg %p1435
          $region363: #{tpu_custom_call.1} parent=146 // pred_check_branch
            %1441 = sbr.rel (%p1439) target = $region365
          $region364: #{tpu_custom_call.1} parent=146 // pred_region
            %s1442 = sshll.u32 1, 1
            %s1443 = ssub.s32 %s1442, 1
            loop: start=0, step=1, limit=1
            $region366: #{tpu_custom_call.1} parent=364 // loop_pre_header
              _
            $region367: #{tpu_custom_call.1} parent=364 // loop_header
              %s1445 = sphi 0, %s1449
              %p1446 = scmp.ge.s32.totalorder %s1445, 1
              %s1450 = sphi %s1431, %s1431
              %s1451 = sphi %s1432, %s1432
            $region368: #{tpu_custom_call.1} parent=364 // loop_header_branch
              %1448 = sbr.rel (%p1446) target = $region372
            $region369: #{tpu_custom_call.1} parent=364 // loop_body
              %v1452 = vld [vmem:[%s1450] sm:%s1443]
              %1453 = vst [vmem:[%s1451] sm:%s1443] %v1452
            $region370: #{tpu_custom_call.1} parent=364 // loop_footer
              %s1449 = sadd.s32 1, %s1445
            $region371: #{tpu_custom_call.1} parent=364 // loop_footer_branch
              %1444 = sbr.rel target = $region367
            $region372: #{tpu_custom_call.1} parent=364 // loop_exit
              _
          $region365: #{tpu_custom_call.1} parent=146 // pred_fallthru
            _
          // Predicated region
          $region384: #{tpu_custom_call.1} parent=146 // pred_check
            _
          $region385: #{tpu_custom_call.1} parent=146 // pred_check_branch
            %1478 = sbr.rel (0) target = $region387
          $region386: #{tpu_custom_call.1} parent=146 // pred_region
            %1479 = vsyncadd %s1433, 16
          $region387: #{tpu_custom_call.1} parent=146 // pred_fallthru
            _
          %v1480 = vld [vmem:[%s7] sm:$0xff]
          %v1481 = vld [vmem:[%s7 + $0x8] sm:$0xff]
          %v1482 = vld [vmem:[%s7 + $0x10] sm:$0xff]
          %v1483 = vld [vmem:[%s7 + $0x18] sm:$0xff]
          %v1484 = vld [vmem:[%s7 + $0x20] sm:$0xff]
          %v1485 = vld [vmem:[%s7 + $0x28] sm:$0xff]
          %v1486 = vld [vmem:[%s7 + $0x30] sm:$0xff]
          %v1487 = vld [vmem:[%s7 + $0x38] sm:$0xff]
          %v1488 = vld [vmem:[%s11] sm:$0xff]
          %v1489 = vld [vmem:[%s31] sm:$0x1]
          %v1491 = vlaneseq
          %v1492 = vshrl.u32 %v1491, 7
          %v1493 = vsub.s32 0, %v1492
          %v1494 = vrot.slane %v1489, %v1493
          %v1496 = vmul.f32 %v1480, %v1494
          %v1497 = vmul.f32 %v1481, %v1494
          %v1498 = vmul.f32 %v1482, %v1494
          %v1499 = vmul.f32 %v1483, %v1494
          %v1500 = vmul.f32 %v1484, %v1494
          %v1501 = vmul.f32 %v1485, %v1494
          %v1502 = vmul.f32 %v1486, %v1494
          %v1503 = vmul.f32 %v1487, %v1494
          %vm1504 = vcmask 261120
          %v1505 = vsel %vm1504, %v1496, 0.0
          %1506 = vadd.xlane.f32.xlu0 %v1505
          %v1507 = vpop.xlane.xlu0 %1506
          %v1508 = vsel %vm1504, %v1497, 0.0
          %1509 = vadd.xlane.f32.xlu0 %v1508
          %v1510 = vpop.xlane.xlu0 %1509
          %v1511 = vsel %vm1504, %v1498, 0.0
          %1512 = vadd.xlane.f32.xlu0 %v1511
          %v1513 = vpop.xlane.xlu0 %1512
          %v1514 = vsel %vm1504, %v1499, 0.0
          %1515 = vadd.xlane.f32.xlu0 %v1514
          %v1516 = vpop.xlane.xlu0 %1515
          %v1517 = vsel %vm1504, %v1500, 0.0
          %1518 = vadd.xlane.f32.xlu0 %v1517
          %v1519 = vpop.xlane.xlu0 %1518
          %v1520 = vsel %vm1504, %v1501, 0.0
          %1521 = vadd.xlane.f32.xlu0 %v1520
          %v1522 = vpop.xlane.xlu0 %1521
          %v1523 = vsel %vm1504, %v1502, 0.0
          %1524 = vadd.xlane.f32.xlu0 %v1523
          %v1525 = vpop.xlane.xlu0 %1524
          %v1526 = vsel %vm1504, %v1503, 0.0
          %1527 = vadd.xlane.f32.xlu0 %v1526
          %v1528 = vpop.xlane.xlu0 %1527
          %v1529 = vld [vmem:[#allocation12] sm:$0x1]
          %v1531 = vlaneseq
          %v1532 = vshrl.u32 %v1531, 7
          %v1533 = vsub.s32 0, %v1532
          %v1534 = vrot.slane %v1529, %v1533
          %1535 = vset.pattern.permute.xlu0 0
          %1536 = vperm.xlu0 %1535, %v1534
          %v1537 = vpop.permute.xlu0 %1536
          %v1539 = vmul.f32 %v1488, %v1537
          %v1540 = vld [vmem:[#allocation13] sm:$0x1]
          %v1542 = vlaneseq
          %v1543 = vshrl.u32 %v1542, 7
          %v1544 = vsub.s32 0, %v1543
          %v1545 = vrot.slane %v1540, %v1544
          %1546 = vset.pattern.permute.xlu0 0
          %1547 = vperm.xlu0 %1546, %v1545
          %v1548 = vpop.permute.xlu0 %1547
          %v1550 = vadd.f32 %v1539, %v1548
          %s1551 = smul.u32 1, 1
          %s1552 = sshll.u32 %s1551, 4
          %1553 = dma.done [#allocation8], %s1552
          %s1554 = sshll.u32 %s1551, 4
          %1555 = dma.done %s1133, %s1554
          %s1556 = sshll.u32 %s1551, 4
          %1557 = dma.done %s1183, %s1556
          %s1558 = sshll.u32 %s1551, 4
          %1559 = dma.done %s1233, %s1558
          %s1560 = sshll.u32 %s1551, 4
          %1561 = dma.done %s1283, %s1560
          %s1562 = sshll.u32 %s1551, 4
          %1563 = dma.done %s1333, %s1562
          %s1564 = sshll.u32 %s1551, 4
          %1565 = dma.done %s1383, %s1564
          %s1566 = sshll.u32 %s1551, 4
          %1567 = dma.done %s1433, %s1566
          %v1568 = vld [vmem:[#allocation2] sm:$0xff]
          %v1569 = vld [vmem:[%s5] sm:$0xff]
          %v1570 = vld [vmem:[%s15] sm:$0xff]
          %v1571 = vld [vmem:[%s15 + $0x8] sm:$0xff]
          %v1572 = vld [vmem:[%s15 + $0x10] sm:$0xff]
          %v1573 = vld [vmem:[%s15 + $0x18] sm:$0xff]
          %v1574 = vld [vmem:[%s17] sm:$0xff]
          %v1575 = vld [vmem:[%s17 + $0x8] sm:$0xff]
          %v1576 = vld [vmem:[%s17 + $0x10] sm:$0xff]
          %v1577 = vld [vmem:[%s17 + $0x18] sm:$0xff]
          %v1578 = vld [vmem:[%s19] sm:$0x1]
          %v1579 = vld [vmem:[%s21] sm:$0x1]
          %v1581 = vlaneseq
          %v1582 = vshrl.u32 %v1581, 7
          %v1583 = vsub.s32 0, %v1582
          %v1584 = vrot.slane %v1578, %v1583
          %v1587 = vsel %vm1504, %v1568, 0
          %1589 = vmatprep.subr.mxu0 0.0
          %1590 = vmatpush1.msra.mxu0 0.0
          %1591 = vmatprep.subr.mxu0 0.0
          %1592 = vmatpush1.msra.mxu0 0.0
          %1593 = vmatprep.subr.mxu0 0.0
          %1594 = vmatpush1.msra.mxu0 0.0
          %1595 = vmatprep.subr.mxu0 0.0
          %1596 = vmatpush1.msra.mxu0 0.0
          %1597 = vmatprep.subr.mxu0 0.0
          %1598 = vmatpush1.msra.mxu0 0.0
          %1599 = vmatprep.subr.mxu0 0.0
          %1600 = vmatpush1.msra.mxu0 0.0
          %1601 = vmatprep.subr.mxu0 0.0
          %1602 = vmatpush1.msra.mxu0 0.0
          %1603 = vmatprep.subr.mxu0 0.0
          %1604 = vmatpush1.msra.mxu0 0.0
          %1605 = vmatprep.subr.mxu0 0.0
          %1606 = vmatpush1.msra.mxu0 0.0
          %1607 = vmatprep.subr.mxu0 0.0
          %1608 = vmatpush1.msra.mxu0 0.0
          %1609 = vmatprep.subr.mxu0 0.0
          %1610 = vmatpush1.msra.mxu0 0.0
          %1611 = vmatprep.subr.mxu0 0.0
          %1612 = vmatpush1.msra.mxu0 0.0
          %1613 = vmatprep.subr.mxu0 0.0
          %1614 = vmatpush1.msra.mxu0 %v1573
          %1615 = vmatprep.subr.mxu0 0.0
          %1616 = vmatpush1.msra.mxu0 %v1572
          %1617 = vmatprep.subr.mxu0 0.0
          %1618 = vmatpush1.msra.mxu0 %v1571
          %1619 = vmatprep.subr.mxu0 0.0
          %1620 = vmatpush1.msra.mxu0 %v1570
          %1621 = vmatprep.subr.mxu0 0.0
          %1622 = vmatpush2.msra.mxu0 0.0
          %1623 = vmatprep.subr.mxu0 0.0
          %1624 = vmatpush2.msra.mxu0 0.0
          %1625 = vmatprep.subr.mxu0 0.0
          %1626 = vmatpush2.msra.mxu0 0.0
          %1627 = vmatprep.subr.mxu0 0.0
          %1628 = vmatpush2.msra.mxu0 0.0
          %1629 = vmatprep.subr.mxu0 0.0
          %1630 = vmatpush2.msra.mxu0 0.0
          %1631 = vmatprep.subr.mxu0 0.0
          %1632 = vmatpush2.msra.mxu0 0.0
          %1633 = vmatprep.subr.mxu0 0.0
          %1634 = vmatpush2.msra.mxu0 0.0
          %1635 = vmatprep.subr.mxu0 0.0
          %1636 = vmatpush2.msra.mxu0 0.0
          %1637 = vmatprep.subr.mxu0 0.0
          %1638 = vmatpush2.msra.mxu0 0.0
          %1639 = vmatprep.subr.mxu0 0.0
          %1640 = vmatpush2.msra.mxu0 0.0
          %1641 = vmatprep.subr.mxu0 0.0
          %1642 = vmatpush2.msra.mxu0 0.0
          %1643 = vmatprep.subr.mxu0 0.0
          %1644 = vmatpush2.msra.mxu0 0.0
          %1645 = vmatprep.subr.mxu0 0.0
          %1646 = vmatpush2.msra.mxu0 0.0
          %1647 = vmatprep.subr.mxu0 0.0
          %1648 = vmatpush2.msra.mxu0 0.0
          %1649 = vmatprep.subr.mxu0 0.0
          %1650 = vmatpush2.msra.mxu0 0.0
          %1651 = vmatprep.subr.mxu0 0.0
          %1652 = vmatpush2.msra.mxu0 0.0
          %1653 = vmatprep.mubr.f32.mxu0 0.0
          %1654 = vmatmul.mubr.f32.gmra.mxu0 %v1587
          %v1655 = vpop.f32.mrf.mxu0
          %v1656 = vadd.f32 %v1584, %v1655
          %v1657 = vpop.f32.mrf.mxu0
          %1658 = vdwg.mxu0
          %v1660 = vlaneseq
          %v1661 = vshrl.u32 %v1660, 7
          %v1662 = vsub.s32 0, %v1661
          %v1663 = vrot.slane %v1579, %v1662
          %v1666 = vsel %vm1504, %v1569, 0
          %1668 = vmatprep.subr.mxu0 0.0
          %1669 = vmatpush1.msra.mxu0 0.0
          %1670 = vmatprep.subr.mxu0 0.0
          %1671 = vmatpush1.msra.mxu0 0.0
          %1672 = vmatprep.subr.mxu0 0.0
          %1673 = vmatpush1.msra.mxu0 0.0
          %1674 = vmatprep.subr.mxu0 0.0
          %1675 = vmatpush1.msra.mxu0 0.0
          %1676 = vmatprep.subr.mxu0 0.0
          %1677 = vmatpush1.msra.mxu0 0.0
          %1678 = vmatprep.subr.mxu0 0.0
          %1679 = vmatpush1.msra.mxu0 0.0
          %1680 = vmatprep.subr.mxu0 0.0
          %1681 = vmatpush1.msra.mxu0 0.0
          %1682 = vmatprep.subr.mxu0 0.0
          %1683 = vmatpush1.msra.mxu0 0.0
          %1684 = vmatprep.subr.mxu0 0.0
          %1685 = vmatpush1.msra.mxu0 0.0
          %1686 = vmatprep.subr.mxu0 0.0
          %1687 = vmatpush1.msra.mxu0 0.0
          %1688 = vmatprep.subr.mxu0 0.0
          %1689 = vmatpush1.msra.mxu0 0.0
          %1690 = vmatprep.subr.mxu0 0.0
          %1691 = vmatpush1.msra.mxu0 0.0
          %1692 = vmatprep.subr.mxu0 0.0
          %1693 = vmatpush1.msra.mxu0 %v1577
          %1694 = vmatprep.subr.mxu0 0.0
          %1695 = vmatpush1.msra.mxu0 %v1576
          %1696 = vmatprep.subr.mxu0 0.0
          %1697 = vmatpush1.msra.mxu0 %v1575
          %1698 = vmatprep.subr.mxu0 0.0
          %1699 = vmatpush1.msra.mxu0 %v1574
          %1700 = vmatprep.subr.mxu0 0.0
          %1701 = vmatpush2.msra.mxu0 0.0
          %1702 = vmatprep.subr.mxu0 0.0
          %1703 = vmatpush2.msra.mxu0 0.0
          %1704 = vmatprep.subr.mxu0 0.0
          %1705 = vmatpush2.msra.mxu0 0.0
          %1706 = vmatprep.subr.mxu0 0.0
          %1707 = vmatpush2.msra.mxu0 0.0
          %1708 = vmatprep.subr.mxu0 0.0
          %1709 = vmatpush2.msra.mxu0 0.0
          %1710 = vmatprep.subr.mxu0 0.0
          %1711 = vmatpush2.msra.mxu0 0.0
          %1712 = vmatprep.subr.mxu0 0.0
          %1713 = vmatpush2.msra.mxu0 0.0
          %1714 = vmatprep.subr.mxu0 0.0
          %1715 = vmatpush2.msra.mxu0 0.0
          %1716 = vmatprep.subr.mxu0 0.0
          %1717 = vmatpush2.msra.mxu0 0.0
          %1718 = vmatprep.subr.mxu0 0.0
          %1719 = vmatpush2.msra.mxu0 0.0
          %1720 = vmatprep.subr.mxu0 0.0
          %1721 = vmatpush2.msra.mxu0 0.0
          %1722 = vmatprep.subr.mxu0 0.0
          %1723 = vmatpush2.msra.mxu0 0.0
          %1724 = vmatprep.subr.mxu0 0.0
          %1725 = vmatpush2.msra.mxu0 0.0
          %1726 = vmatprep.subr.mxu0 0.0
          %1727 = vmatpush2.msra.mxu0 0.0
          %1728 = vmatprep.subr.mxu0 0.0
          %1729 = vmatpush2.msra.mxu0 0.0
          %1730 = vmatprep.subr.mxu0 0.0
          %1731 = vmatpush2.msra.mxu0 0.0
          %1732 = vmatprep.mubr.f32.mxu0 0.0
          %1733 = vmatmul.mubr.f32.gmra.mxu0 %v1666
          %v1734 = vpop.f32.mrf.mxu0
          %v1735 = vadd.f32 %v1663, %v1734
          %v1736 = vpop.f32.mrf.mxu0
          %1737 = vdwg.mxu0
          %v1738 = vadd.f32 %v1656, %v1735
          %v1739 = vxor.u32 %v1738, 2147483648
          %v1740 = vmul.f32 %v1739, 1.442695
          %v1741 = vpow.pop %v1740
          %v1742 = vadd.f32 %v1741, 1.0
          %v1743 = vrcp.pop %v1742
          %v1744 = vmul.f32 1.0, %v1743
          %1746 = vrot.lane.b32.xlu0 %v1735, 64
          %v1747 = vpop.permute.xlu0 %1746
          %v1749 = vmul.f32 %v1744, %v1747
          %1751 = vrot.lane.b32.xlu0 %v1749, 64
          %v1752 = vpop.permute.xlu0 %1751
          %v1754 = vadd.f32 %v1656, %v1752
          %v1755 = vtanh.pop %v1754
          %v1756 = vsub.f32 1.0, %v1744
          %1758 = vrot.lane.b32.xlu0 %v1755, 96
          %v1759 = vpop.permute.xlu0 %1758
          %v1761 = vmul.f32 %v1756, %v1759
          %1762 = vrot.lane.b32.xlu0 %v1569, 32
          %v1763 = vpop.permute.xlu0 %1762
          %v1765 = vmul.f32 %v1744, %v1763
          %v1766 = vadd.f32 %v1761, %v1765
          %s1767 = scalar_lea.vmem %s5, 8
          %v1768 = vld [vmem:[%s1767] sm:$0xff]
          %v1769 = vld [vmem:[%s23] sm:$0xff]
          %v1770 = vld [vmem:[%s23 + $0x8] sm:$0xff]
          %v1771 = vld [vmem:[%s23 + $0x10] sm:$0xff]
          %v1772 = vld [vmem:[%s23 + $0x18] sm:$0xff]
          %v1773 = vld [vmem:[%s25] sm:$0xff]
          %v1774 = vld [vmem:[%s25 + $0x8] sm:$0xff]
          %v1775 = vld [vmem:[%s25 + $0x10] sm:$0xff]
          %v1776 = vld [vmem:[%s25 + $0x18] sm:$0xff]
          %v1777 = vld [vmem:[%s27] sm:$0x1]
          %v1778 = vld [vmem:[%s29] sm:$0x1]
          %v1780 = vlaneseq
          %v1781 = vshrl.u32 %v1780, 7
          %v1782 = vsub.s32 0, %v1781
          %v1783 = vrot.slane %v1777, %v1782
          %1786 = vrot.lane.b32.xlu0 %v1766, 96
          %v1787 = vpop.permute.xlu0 %1786
          %v1788 = vsel %vm1504, %v1787, 0
          %1790 = vmatprep.subr.mxu0 0.0
          %1791 = vmatpush1.msra.mxu0 0.0
          %1792 = vmatprep.subr.mxu0 0.0
          %1793 = vmatpush1.msra.mxu0 0.0
          %1794 = vmatprep.subr.mxu0 0.0
          %1795 = vmatpush1.msra.mxu0 0.0
          %1796 = vmatprep.subr.mxu0 0.0
          %1797 = vmatpush1.msra.mxu0 0.0
          %1798 = vmatprep.subr.mxu0 0.0
          %1799 = vmatpush1.msra.mxu0 0.0
          %1800 = vmatprep.subr.mxu0 0.0
          %1801 = vmatpush1.msra.mxu0 0.0
          %1802 = vmatprep.subr.mxu0 0.0
          %1803 = vmatpush1.msra.mxu0 0.0
          %1804 = vmatprep.subr.mxu0 0.0
          %1805 = vmatpush1.msra.mxu0 0.0
          %1806 = vmatprep.subr.mxu0 0.0
          %1807 = vmatpush1.msra.mxu0 0.0
          %1808 = vmatprep.subr.mxu0 0.0
          %1809 = vmatpush1.msra.mxu0 0.0
          %1810 = vmatprep.subr.mxu0 0.0
          %1811 = vmatpush1.msra.mxu0 0.0
          %1812 = vmatprep.subr.mxu0 0.0
          %1813 = vmatpush1.msra.mxu0 0.0
          %1814 = vmatprep.subr.mxu0 0.0
          %1815 = vmatpush1.msra.mxu0 %v1772
          %1816 = vmatprep.subr.mxu0 0.0
          %1817 = vmatpush1.msra.mxu0 %v1771
          %1818 = vmatprep.subr.mxu0 0.0
          %1819 = vmatpush1.msra.mxu0 %v1770
          %1820 = vmatprep.subr.mxu0 0.0
          %1821 = vmatpush1.msra.mxu0 %v1769
          %1822 = vmatprep.subr.mxu0 0.0
          %1823 = vmatpush2.msra.mxu0 0.0
          %1824 = vmatprep.subr.mxu0 0.0
          %1825 = vmatpush2.msra.mxu0 0.0
          %1826 = vmatprep.subr.mxu0 0.0
          %1827 = vmatpush2.msra.mxu0 0.0
          %1828 = vmatprep.subr.mxu0 0.0
          %1829 = vmatpush2.msra.mxu0 0.0
          %1830 = vmatprep.subr.mxu0 0.0
          %1831 = vmatpush2.msra.mxu0 0.0
          %1832 = vmatprep.subr.mxu0 0.0
          %1833 = vmatpush2.msra.mxu0 0.0
          %1834 = vmatprep.subr.mxu0 0.0
          %1835 = vmatpush2.msra.mxu0 0.0
          %1836 = vmatprep.subr.mxu0 0.0
          %1837 = vmatpush2.msra.mxu0 0.0
          %1838 = vmatprep.subr.mxu0 0.0
          %1839 = vmatpush2.msra.mxu0 0.0
          %1840 = vmatprep.subr.mxu0 0.0
          %1841 = vmatpush2.msra.mxu0 0.0
          %1842 = vmatprep.subr.mxu0 0.0
          %1843 = vmatpush2.msra.mxu0 0.0
          %1844 = vmatprep.subr.mxu0 0.0
          %1845 = vmatpush2.msra.mxu0 0.0
          %1846 = vmatprep.subr.mxu0 0.0
          %1847 = vmatpush2.msra.mxu0 0.0
          %1848 = vmatprep.subr.mxu0 0.0
          %1849 = vmatpush2.msra.mxu0 0.0
          %1850 = vmatprep.subr.mxu0 0.0
          %1851 = vmatpush2.msra.mxu0 0.0
          %1852 = vmatprep.subr.mxu0 0.0
          %1853 = vmatpush2.msra.mxu0 0.0
          %1854 = vmatprep.mubr.f32.mxu0 0.0
          %1855 = vmatmul.mubr.f32.gmra.mxu0 %v1788
          %v1856 = vpop.f32.mrf.mxu0
          %v1857 = vadd.f32 %v1783, %v1856
          %v1858 = vpop.f32.mrf.mxu0
          %1859 = vdwg.mxu0
          %v1861 = vlaneseq
          %v1862 = vshrl.u32 %v1861, 7
          %v1863 = vsub.s32 0, %v1862
          %v1864 = vrot.slane %v1778, %v1863
          %v1867 = vsel %vm1504, %v1768, 0
          %1869 = vmatprep.subr.mxu0 0.0
          %1870 = vmatpush1.msra.mxu0 0.0
          %1871 = vmatprep.subr.mxu0 0.0
          %1872 = vmatpush1.msra.mxu0 0.0
          %1873 = vmatprep.subr.mxu0 0.0
          %1874 = vmatpush1.msra.mxu0 0.0
          %1875 = vmatprep.subr.mxu0 0.0
          %1876 = vmatpush1.msra.mxu0 0.0
          %1877 = vmatprep.subr.mxu0 0.0
          %1878 = vmatpush1.msra.mxu0 0.0
          %1879 = vmatprep.subr.mxu0 0.0
          %1880 = vmatpush1.msra.mxu0 0.0
          %1881 = vmatprep.subr.mxu0 0.0
          %1882 = vmatpush1.msra.mxu0 0.0
          %1883 = vmatprep.subr.mxu0 0.0
          %1884 = vmatpush1.msra.mxu0 0.0
          %1885 = vmatprep.subr.mxu0 0.0
          %1886 = vmatpush1.msra.mxu0 0.0
          %1887 = vmatprep.subr.mxu0 0.0
          %1888 = vmatpush1.msra.mxu0 0.0
          %1889 = vmatprep.subr.mxu0 0.0
          %1890 = vmatpush1.msra.mxu0 0.0
          %1891 = vmatprep.subr.mxu0 0.0
          %1892 = vmatpush1.msra.mxu0 0.0
          %1893 = vmatprep.subr.mxu0 0.0
          %1894 = vmatpush1.msra.mxu0 %v1776
          %1895 = vmatprep.subr.mxu0 0.0
          %1896 = vmatpush1.msra.mxu0 %v1775
          %1897 = vmatprep.subr.mxu0 0.0
          %1898 = vmatpush1.msra.mxu0 %v1774
          %1899 = vmatprep.subr.mxu0 0.0
          %1900 = vmatpush1.msra.mxu0 %v1773
          %1901 = vmatprep.subr.mxu0 0.0
          %1902 = vmatpush2.msra.mxu0 0.0
          %1903 = vmatprep.subr.mxu0 0.0
          %1904 = vmatpush2.msra.mxu0 0.0
          %1905 = vmatprep.subr.mxu0 0.0
          %1906 = vmatpush2.msra.mxu0 0.0
          %1907 = vmatprep.subr.mxu0 0.0
          %1908 = vmatpush2.msra.mxu0 0.0
          %1909 = vmatprep.subr.mxu0 0.0
          %1910 = vmatpush2.msra.mxu0 0.0
          %1911 = vmatprep.subr.mxu0 0.0
          %1912 = vmatpush2.msra.mxu0 0.0
          %1913 = vmatprep.subr.mxu0 0.0
          %1914 = vmatpush2.msra.mxu0 0.0
          %1915 = vmatprep.subr.mxu0 0.0
          %1916 = vmatpush2.msra.mxu0 0.0
          %1917 = vmatprep.subr.mxu0 0.0
          %1918 = vmatpush2.msra.mxu0 0.0
          %1919 = vmatprep.subr.mxu0 0.0
          %1920 = vmatpush2.msra.mxu0 0.0
          %1921 = vmatprep.subr.mxu0 0.0
          %1922 = vmatpush2.msra.mxu0 0.0
          %1923 = vmatprep.subr.mxu0 0.0
          %1924 = vmatpush2.msra.mxu0 0.0
          %1925 = vmatprep.subr.mxu0 0.0
          %1926 = vmatpush2.msra.mxu0 0.0
          %1927 = vmatprep.subr.mxu0 0.0
          %1928 = vmatpush2.msra.mxu0 0.0
          %1929 = vmatprep.subr.mxu0 0.0
          %1930 = vmatpush2.msra.mxu0 0.0
          %1931 = vmatprep.subr.mxu0 0.0
          %1932 = vmatpush2.msra.mxu0 0.0
          %1933 = vmatprep.mubr.f32.mxu0 0.0
          %1934 = vmatmul.mubr.f32.gmra.mxu0 %v1867
          %v1935 = vpop.f32.mrf.mxu0
          %v1936 = vadd.f32 %v1864, %v1935
          %v1937 = vpop.f32.mrf.mxu0
          %1938 = vdwg.mxu0
          %v1939 = vadd.f32 %v1857, %v1936
          %v1940 = vxor.u32 %v1939, 2147483648
          %v1941 = vmul.f32 %v1940, 1.442695
          %v1942 = vpow.pop %v1941
          %v1943 = vadd.f32 %v1942, 1.0
          %v1944 = vrcp.pop %v1943
          %v1945 = vmul.f32 1.0, %v1944
          %1947 = vrot.lane.b32.xlu0 %v1936, 64
          %v1948 = vpop.permute.xlu0 %1947
          %v1950 = vmul.f32 %v1945, %v1948
          %1952 = vrot.lane.b32.xlu0 %v1950, 64
          %v1953 = vpop.permute.xlu0 %1952
          %v1955 = vadd.f32 %v1857, %v1953
          %v1956 = vtanh.pop %v1955
          %v1957 = vsub.f32 1.0, %v1945
          %1959 = vrot.lane.b32.xlu0 %v1956, 96
          %v1960 = vpop.permute.xlu0 %1959
          %v1962 = vmul.f32 %v1957, %v1960
          %1963 = vrot.lane.b32.xlu0 %v1768, 32
          %v1964 = vpop.permute.xlu0 %1963
          %v1966 = vmul.f32 %v1945, %v1964
          %v1967 = vadd.f32 %v1962, %v1966
          %1969 = vst.msk [vmem:[#allocation18] sm:$0xff] %vm1504, %v1787
          %1971 = vrot.lane.b32.xlu0 %v1967, 96
          %v1972 = vpop.permute.xlu0 %1971
          %s1974 = scalar_lea.vmem [#allocation18], 8
          %1975 = vst.msk [vmem:[%s1974] sm:$0xff] %vm1504, %v1972
          %v1976 = vld [vmem:[%s33] sm:$0x1]
          %v1978 = vlaneseq
          %v1979 = vshrl.u32 %v1978, 7
          %v1980 = vsub.s32 0, %v1979
          %v1981 = vrot.slane %v1976, %v1980
          %1982 = vrot.lane.b32.xlu0 %v1981, 32
          %v1983 = vpop.permute.xlu0 %1982
          %v1985 = vmul.f32 %v1967, %v1983
          %1987 = vrot.lane.b32.xlu0 %v1985, 96
          %v1988 = vpop.permute.xlu0 %1987
          %v1990 = vsel %vm1504, %v1988, 0.0
          %1991 = vadd.xlane.f32.xlu0 %v1990
          %v1992 = vpop.xlane.xlu0 %1991
          %v1994 = vlaneseq
          %v1995 = vshrl.u32 %v1994, 7
          %v1996 = vsub.s32 0, %v1995
          %v1997 = vrot.slane %v1992, %v1996
          %v1998 = vlaneseq
          %v1999 = vshrl.u32 %v1998, 7
          %v2000 = vsub.s32 1, %v1999
          %v2001 = vrot.slane %v1992, %v2000
          %v2002 = vlaneseq
          %v2003 = vshrl.u32 %v2002, 7
          %v2004 = vsub.s32 2, %v2003
          %v2005 = vrot.slane %v1992, %v2004
          %v2006 = vlaneseq
          %v2007 = vshrl.u32 %v2006, 7
          %v2008 = vsub.s32 3, %v2007
          %v2009 = vrot.slane %v1992, %v2008
          %v2010 = vlaneseq
          %v2011 = vshrl.u32 %v2010, 7
          %v2012 = vsub.s32 4, %v2011
          %v2013 = vrot.slane %v1992, %v2012
          %v2014 = vlaneseq
          %v2015 = vshrl.u32 %v2014, 7
          %v2016 = vsub.s32 5, %v2015
          %v2017 = vrot.slane %v1992, %v2016
          %v2018 = vlaneseq
          %v2019 = vshrl.u32 %v2018, 7
          %v2020 = vsub.s32 6, %v2019
          %v2021 = vrot.slane %v1992, %v2020
          %v2022 = vlaneseq
          %v2023 = vshrl.u32 %v2022, 7
          %v2024 = vsub.s32 7, %v2023
          %v2025 = vrot.slane %v1992, %v2024
          %v2034 = vadd.f32 %v1507, %v1997
          %v2035 = vadd.f32 %v1510, %v2001
          %v2036 = vadd.f32 %v1513, %v2005
          %v2037 = vadd.f32 %v1516, %v2009
          %v2038 = vadd.f32 %v1519, %v2013
          %v2039 = vadd.f32 %v1522, %v2017
          %v2040 = vadd.f32 %v1525, %v2021
          %v2041 = vadd.f32 %v1528, %v2025
          %v2043 = vlaneseq
          %v2044 = vshrl.u32 %v2043, 7
          %v2045 = vsub.s32 0, %v2044
          %v2046 = vrot.slane %v1550, %v2045
          %2048 = vbcast.lane.b32.xlu0 %v2046, 256
          %v2049 = vpop.permute.xlu0 %2048
          %v2050 = vlaneseq
          %v2051 = vshrl.u32 %v2050, 7
          %v2052 = vsub.s32 1, %v2051
          %v2053 = vrot.slane %v1550, %v2052
          %2055 = vbcast.lane.b32.xlu0 %v2053, 256
          %v2056 = vpop.permute.xlu0 %2055
          %v2057 = vlaneseq
          %v2058 = vshrl.u32 %v2057, 7
          %v2059 = vsub.s32 2, %v2058
          %v2060 = vrot.slane %v1550, %v2059
          %2062 = vbcast.lane.b32.xlu0 %v2060, 256
          %v2063 = vpop.permute.xlu0 %2062
          %v2064 = vlaneseq
          %v2065 = vshrl.u32 %v2064, 7
          %v2066 = vsub.s32 3, %v2065
          %v2067 = vrot.slane %v1550, %v2066
          %2069 = vbcast.lane.b32.xlu0 %v2067, 256
          %v2070 = vpop.permute.xlu0 %2069
          %v2071 = vlaneseq
          %v2072 = vshrl.u32 %v2071, 7
          %v2073 = vsub.s32 4, %v2072
          %v2074 = vrot.slane %v1550, %v2073
          %2076 = vbcast.lane.b32.xlu0 %v2074, 256
          %v2077 = vpop.permute.xlu0 %2076
          %v2078 = vlaneseq
          %v2079 = vshrl.u32 %v2078, 7
          %v2080 = vsub.s32 5, %v2079
          %v2081 = vrot.slane %v1550, %v2080
          %2083 = vbcast.lane.b32.xlu0 %v2081, 256
          %v2084 = vpop.permute.xlu0 %2083
          %v2085 = vlaneseq
          %v2086 = vshrl.u32 %v2085, 7
          %v2087 = vsub.s32 6, %v2086
          %v2088 = vrot.slane %v1550, %v2087
          %2090 = vbcast.lane.b32.xlu0 %v2088, 256
          %v2091 = vpop.permute.xlu0 %2090
          %v2092 = vlaneseq
          %v2093 = vshrl.u32 %v2092, 7
          %v2094 = vsub.s32 7, %v2093
          %v2095 = vrot.slane %v1550, %v2094
          %2097 = vbcast.lane.b32.xlu0 %v2095, 256
          %v2098 = vpop.permute.xlu0 %2097
          %v2107 = vadd.f32 %v2034, %v2049
          %v2108 = vadd.f32 %v2035, %v2056
          %v2109 = vadd.f32 %v2036, %v2063
          %v2110 = vadd.f32 %v2037, %v2070
          %v2111 = vadd.f32 %v2038, %v2077
          %v2112 = vadd.f32 %v2039, %v2084
          %v2113 = vadd.f32 %v2040, %v2091
          %v2114 = vadd.f32 %v2041, %v2098
          %v2115 = vtanh.pop %v2107
          %v2116 = vtanh.pop %v2108
          %v2117 = vtanh.pop %v2109
          %v2118 = vtanh.pop %v2110
          %v2119 = vtanh.pop %v2111
          %v2120 = vtanh.pop %v2112
          %v2121 = vtanh.pop %v2113
          %v2122 = vtanh.pop %v2114
          %2131 = vset.pattern.permute.xlu0 0
          %2132 = vperm.xlu0 %2131, %v2115
          %v2133 = vpop.permute.xlu0 %2132
          %2134 = vset.pattern.permute.xlu0 0
          %2135 = vperm.xlu0 %2134, %v2116
          %v2136 = vpop.permute.xlu0 %2135
          %2137 = vset.pattern.permute.xlu0 0
          %2138 = vperm.xlu0 %2137, %v2117
          %v2139 = vpop.permute.xlu0 %2138
          %2140 = vset.pattern.permute.xlu0 0
          %2141 = vperm.xlu0 %2140, %v2118
          %v2142 = vpop.permute.xlu0 %2141
          %2143 = vset.pattern.permute.xlu0 0
          %2144 = vperm.xlu0 %2143, %v2119
          %v2145 = vpop.permute.xlu0 %2144
          %2146 = vset.pattern.permute.xlu0 0
          %2147 = vperm.xlu0 %2146, %v2120
          %v2148 = vpop.permute.xlu0 %2147
          %2149 = vset.pattern.permute.xlu0 0
          %2150 = vperm.xlu0 %2149, %v2121
          %v2151 = vpop.permute.xlu0 %2150
          %2152 = vset.pattern.permute.xlu0 0
          %2153 = vperm.xlu0 %2152, %v2122
          %v2154 = vpop.permute.xlu0 %2153
          %v2155 = vlaneseq
          %v2156 = vand.u32 %v2155, 127
          %v2157 = vlaneseq
          %v2158 = vshrl.u32 %v2157, 7
          %v2159 = vsub.s32 %v2156, %v2158
          %v2160 = vrot.slane %v2133, %v2159
          %v2161 = vlaneseq
          %v2162 = vshrl.u32 %v2161, 7
          %v2163 = vsub.s32 %v2156, %v2162
          %v2164 = vrot.slane %v2136, %v2163
          %v2165 = vlaneseq
          %v2166 = vshrl.u32 %v2165, 7
          %v2167 = vsub.s32 %v2156, %v2166
          %v2168 = vrot.slane %v2139, %v2167
          %v2169 = vlaneseq
          %v2170 = vshrl.u32 %v2169, 7
          %v2171 = vsub.s32 %v2156, %v2170
          %v2172 = vrot.slane %v2142, %v2171
          %v2173 = vlaneseq
          %v2174 = vshrl.u32 %v2173, 7
          %v2175 = vsub.s32 %v2156, %v2174
          %v2176 = vrot.slane %v2145, %v2175
          %v2177 = vlaneseq
          %v2178 = vshrl.u32 %v2177, 7
          %v2179 = vsub.s32 %v2156, %v2178
          %v2180 = vrot.slane %v2148, %v2179
          %v2181 = vlaneseq
          %v2182 = vshrl.u32 %v2181, 7
          %v2183 = vsub.s32 %v2156, %v2182
          %v2184 = vrot.slane %v2151, %v2183
          %v2185 = vlaneseq
          %v2186 = vshrl.u32 %v2185, 7
          %v2187 = vsub.s32 %v2156, %v2186
          %v2188 = vrot.slane %v2154, %v2187
          %vm2189 = vcmask 1041409
          %v2190 = vsel %vm2189, %v2164, %v2160
          %vm2191 = vcmask 1042434
          %v2192 = vsel %vm2191, %v2168, %v2190
          %vm2193 = vcmask 1043459
          %v2194 = vsel %vm2193, %v2172, %v2192
          %vm2195 = vcmask 1044484
          %v2196 = vsel %vm2195, %v2176, %v2194
          %vm2197 = vcmask 1045509
          %v2198 = vsel %vm2197, %v2180, %v2196
          %vm2199 = vcmask 1046534
          %v2200 = vsel %vm2199, %v2184, %v2198
          %vm2201 = vcmask 1047559
          %v2202 = vsel %vm2201, %v2188, %v2200
          %vm2204 = vcmask 64512
          %v2205 = vsel %vm2204, %v2202, -inf
          %2206 = vmax.xlane.f32.xlu0 %v2205
          %v2207 = vpop.xlane.xlu0 %2206
          %v2209 = vlaneseq
          %v2210 = vshrl.u32 %v2209, 7
          %v2211 = vsub.s32 0, %v2210
          %v2212 = vrot.slane %v2207, %v2211
          %v2213 = vlaneseq
          %v2214 = vshrl.u32 %v2213, 7
          %v2215 = vsub.s32 1, %v2214
          %v2216 = vrot.slane %v2207, %v2215
          %v2217 = vlaneseq
          %v2218 = vshrl.u32 %v2217, 7
          %v2219 = vsub.s32 2, %v2218
          %v2220 = vrot.slane %v2207, %v2219
          %v2221 = vlaneseq
          %v2222 = vshrl.u32 %v2221, 7
          %v2223 = vsub.s32 3, %v2222
          %v2224 = vrot.slane %v2207, %v2223
          %v2225 = vlaneseq
          %v2226 = vshrl.u32 %v2225, 7
          %v2227 = vsub.s32 4, %v2226
          %v2228 = vrot.slane %v2207, %v2227
          %v2229 = vlaneseq
          %v2230 = vshrl.u32 %v2229, 7
          %v2231 = vsub.s32 5, %v2230
          %v2232 = vrot.slane %v2207, %v2231
          %v2233 = vlaneseq
          %v2234 = vshrl.u32 %v2233, 7
          %v2235 = vsub.s32 6, %v2234
          %v2236 = vrot.slane %v2207, %v2235
          %v2237 = vlaneseq
          %v2238 = vshrl.u32 %v2237, 7
          %v2239 = vsub.s32 7, %v2238
          %v2240 = vrot.slane %v2207, %v2239
          %v2249 = vsub.f32 %v2115, %v2212
          %v2250 = vsub.f32 %v2116, %v2216
          %v2251 = vsub.f32 %v2117, %v2220
          %v2252 = vsub.f32 %v2118, %v2224
          %v2253 = vsub.f32 %v2119, %v2228
          %v2254 = vsub.f32 %v2120, %v2232
          %v2255 = vsub.f32 %v2121, %v2236
          %v2256 = vsub.f32 %v2122, %v2240
          %v2257 = vmul.f32 %v2249, 1.442695
          %v2258 = vpow.pop %v2257
          %v2259 = vmul.f32 %v2250, 1.442695
          %v2260 = vpow.pop %v2259
          %v2261 = vmul.f32 %v2251, 1.442695
          %v2262 = vpow.pop %v2261
          %v2263 = vmul.f32 %v2252, 1.442695
          %v2264 = vpow.pop %v2263
          %v2265 = vmul.f32 %v2253, 1.442695
          %v2266 = vpow.pop %v2265
          %v2267 = vmul.f32 %v2254, 1.442695
          %v2268 = vpow.pop %v2267
          %v2269 = vmul.f32 %v2255, 1.442695
          %v2270 = vpow.pop %v2269
          %v2271 = vmul.f32 %v2256, 1.442695
          %v2272 = vpow.pop %v2271
          %2281 = vset.pattern.permute.xlu0 0
          %2282 = vperm.xlu0 %2281, %v2258
          %v2283 = vpop.permute.xlu0 %2282
          %2284 = vset.pattern.permute.xlu0 0
          %2285 = vperm.xlu0 %2284, %v2260
          %v2286 = vpop.permute.xlu0 %2285
          %2287 = vset.pattern.permute.xlu0 0
          %2288 = vperm.xlu0 %2287, %v2262
          %v2289 = vpop.permute.xlu0 %2288
          %2290 = vset.pattern.permute.xlu0 0
          %2291 = vperm.xlu0 %2290, %v2264
          %v2292 = vpop.permute.xlu0 %2291
          %2293 = vset.pattern.permute.xlu0 0
          %2294 = vperm.xlu0 %2293, %v2266
          %v2295 = vpop.permute.xlu0 %2294
          %2296 = vset.pattern.permute.xlu0 0
          %2297 = vperm.xlu0 %2296, %v2268
          %v2298 = vpop.permute.xlu0 %2297
          %2299 = vset.pattern.permute.xlu0 0
          %2300 = vperm.xlu0 %2299, %v2270
          %v2301 = vpop.permute.xlu0 %2300
          %2302 = vset.pattern.permute.xlu0 0
          %2303 = vperm.xlu0 %2302, %v2272
          %v2304 = vpop.permute.xlu0 %2303
          %v2305 = vlaneseq
          %v2306 = vshrl.u32 %v2305, 7
          %v2307 = vsub.s32 %v2156, %v2306
          %v2308 = vrot.slane %v2283, %v2307
          %v2309 = vlaneseq
          %v2310 = vshrl.u32 %v2309, 7
          %v2311 = vsub.s32 %v2156, %v2310
          %v2312 = vrot.slane %v2286, %v2311
          %v2313 = vlaneseq
          %v2314 = vshrl.u32 %v2313, 7
          %v2315 = vsub.s32 %v2156, %v2314
          %v2316 = vrot.slane %v2289, %v2315
          %v2317 = vlaneseq
          %v2318 = vshrl.u32 %v2317, 7
          %v2319 = vsub.s32 %v2156, %v2318
          %v2320 = vrot.slane %v2292, %v2319
          %v2321 = vlaneseq
          %v2322 = vshrl.u32 %v2321, 7
          %v2323 = vsub.s32 %v2156, %v2322
          %v2324 = vrot.slane %v2295, %v2323
          %v2325 = vlaneseq
          %v2326 = vshrl.u32 %v2325, 7
          %v2327 = vsub.s32 %v2156, %v2326
          %v2328 = vrot.slane %v2298, %v2327
          %v2329 = vlaneseq
          %v2330 = vshrl.u32 %v2329, 7
          %v2331 = vsub.s32 %v2156, %v2330
          %v2332 = vrot.slane %v2301, %v2331
          %v2333 = vlaneseq
          %v2334 = vshrl.u32 %v2333, 7
          %v2335 = vsub.s32 %v2156, %v2334
          %v2336 = vrot.slane %v2304, %v2335
          %v2337 = vsel %vm2189, %v2312, %v2308
          %v2338 = vsel %vm2191, %v2316, %v2337
          %v2339 = vsel %vm2193, %v2320, %v2338
          %v2340 = vsel %vm2195, %v2324, %v2339
          %v2341 = vsel %vm2197, %v2328, %v2340
          %v2342 = vsel %vm2199, %v2332, %v2341
          %v2343 = vsel %vm2201, %v2336, %v2342
          %v2345 = vsel %vm2204, %v2343, 0.0
          %2346 = vadd.xlane.f32.xlu0 %v2345
          %v2347 = vpop.xlane.xlu0 %2346
          %v2349 = vlaneseq
          %v2350 = vshrl.u32 %v2349, 7
          %v2351 = vsub.s32 0, %v2350
          %v2352 = vrot.slane %v2347, %v2351
          %v2353 = vlaneseq
          %v2354 = vshrl.u32 %v2353, 7
          %v2355 = vsub.s32 1, %v2354
          %v2356 = vrot.slane %v2347, %v2355
          %v2357 = vlaneseq
          %v2358 = vshrl.u32 %v2357, 7
          %v2359 = vsub.s32 2, %v2358
          %v2360 = vrot.slane %v2347, %v2359
          %v2361 = vlaneseq
          %v2362 = vshrl.u32 %v2361, 7
          %v2363 = vsub.s32 3, %v2362
          %v2364 = vrot.slane %v2347, %v2363
          %v2365 = vlaneseq
          %v2366 = vshrl.u32 %v2365, 7
          %v2367 = vsub.s32 4, %v2366
          %v2368 = vrot.slane %v2347, %v2367
          %v2369 = vlaneseq
          %v2370 = vshrl.u32 %v2369, 7
          %v2371 = vsub.s32 5, %v2370
          %v2372 = vrot.slane %v2347, %v2371
          %v2373 = vlaneseq
          %v2374 = vshrl.u32 %v2373, 7
          %v2375 = vsub.s32 6, %v2374
          %v2376 = vrot.slane %v2347, %v2375
          %v2377 = vlaneseq
          %v2378 = vshrl.u32 %v2377, 7
          %v2379 = vsub.s32 7, %v2378
          %v2380 = vrot.slane %v2347, %v2379
          %v2389 = vrcp.pop %v2352
          %v2390 = vmul.f32 %v2258, %v2389
          %v2391 = vrcp.pop %v2356
          %v2392 = vmul.f32 %v2260, %v2391
          %v2393 = vrcp.pop %v2360
          %v2394 = vmul.f32 %v2262, %v2393
          %v2395 = vrcp.pop %v2364
          %v2396 = vmul.f32 %v2264, %v2395
          %v2397 = vrcp.pop %v2368
          %v2398 = vmul.f32 %v2266, %v2397
          %v2399 = vrcp.pop %v2372
          %v2400 = vmul.f32 %v2268, %v2399
          %v2401 = vrcp.pop %v2376
          %v2402 = vmul.f32 %v2270, %v2401
          %v2403 = vrcp.pop %v2380
          %v2404 = vmul.f32 %v2272, %v2403
          %2413 = vset.pattern.permute.xlu0 0
          %2414 = vperm.xlu0 %2413, %v2390
          %v2415 = vpop.permute.xlu0 %2414
          %2416 = vset.pattern.permute.xlu0 0
          %2417 = vperm.xlu0 %2416, %v2392
          %v2418 = vpop.permute.xlu0 %2417
          %2419 = vset.pattern.permute.xlu0 0
          %2420 = vperm.xlu0 %2419, %v2394
          %v2421 = vpop.permute.xlu0 %2420
          %2422 = vset.pattern.permute.xlu0 0
          %2423 = vperm.xlu0 %2422, %v2396
          %v2424 = vpop.permute.xlu0 %2423
          %2425 = vset.pattern.permute.xlu0 0
          %2426 = vperm.xlu0 %2425, %v2398
          %v2427 = vpop.permute.xlu0 %2426
          %2428 = vset.pattern.permute.xlu0 0
          %2429 = vperm.xlu0 %2428, %v2400
          %v2430 = vpop.permute.xlu0 %2429
          %2431 = vset.pattern.permute.xlu0 0
          %2432 = vperm.xlu0 %2431, %v2402
          %v2433 = vpop.permute.xlu0 %2432
          %2434 = vset.pattern.permute.xlu0 0
          %2435 = vperm.xlu0 %2434, %v2404
          %v2436 = vpop.permute.xlu0 %2435
          %v2437 = vlaneseq
          %v2438 = vshrl.u32 %v2437, 7
          %v2439 = vsub.s32 %v2156, %v2438
          %v2440 = vrot.slane %v2415, %v2439
          %v2441 = vlaneseq
          %v2442 = vshrl.u32 %v2441, 7
          %v2443 = vsub.s32 %v2156, %v2442
          %v2444 = vrot.slane %v2418, %v2443
          %v2445 = vlaneseq
          %v2446 = vshrl.u32 %v2445, 7
          %v2447 = vsub.s32 %v2156, %v2446
          %v2448 = vrot.slane %v2421, %v2447
          %v2449 = vlaneseq
          %v2450 = vshrl.u32 %v2449, 7
          %v2451 = vsub.s32 %v2156, %v2450
          %v2452 = vrot.slane %v2424, %v2451
          %v2453 = vlaneseq
          %v2454 = vshrl.u32 %v2453, 7
          %v2455 = vsub.s32 %v2156, %v2454
          %v2456 = vrot.slane %v2427, %v2455
          %v2457 = vlaneseq
          %v2458 = vshrl.u32 %v2457, 7
          %v2459 = vsub.s32 %v2156, %v2458
          %v2460 = vrot.slane %v2430, %v2459
          %v2461 = vlaneseq
          %v2462 = vshrl.u32 %v2461, 7
          %v2463 = vsub.s32 %v2156, %v2462
          %v2464 = vrot.slane %v2433, %v2463
          %v2465 = vlaneseq
          %v2466 = vshrl.u32 %v2465, 7
          %v2467 = vsub.s32 %v2156, %v2466
          %v2468 = vrot.slane %v2436, %v2467
          %v2469 = vsel %vm2189, %v2444, %v2440
          %v2470 = vsel %vm2191, %v2448, %v2469
          %v2471 = vsel %vm2193, %v2452, %v2470
          %v2472 = vsel %vm2195, %v2456, %v2471
          %v2473 = vsel %vm2197, %v2460, %v2472
          %v2474 = vsel %vm2199, %v2464, %v2473
          %v2475 = vsel %vm2201, %v2468, %v2474
          %2477 = vst.msk [vmem:[#allocation20] sm:$0xff] %vm2204, %v2475
          %v2479 = vlaneseq
          %v2480 = vshrl.u32 %v2479, 7
          %v2481 = vsub.s32 0, %v2480
          %v2482 = vrot.slane %v1488, %v2481
          %2484 = vbcast.lane.b32.xlu0 %v2482, 256
          %v2485 = vpop.permute.xlu0 %2484
          %v2486 = vlaneseq
          %v2487 = vshrl.u32 %v2486, 7
          %v2488 = vsub.s32 1, %v2487
          %v2489 = vrot.slane %v1488, %v2488
          %2491 = vbcast.lane.b32.xlu0 %v2489, 256
          %v2492 = vpop.permute.xlu0 %2491
          %v2493 = vlaneseq
          %v2494 = vshrl.u32 %v2493, 7
          %v2495 = vsub.s32 2, %v2494
          %v2496 = vrot.slane %v1488, %v2495
          %2498 = vbcast.lane.b32.xlu0 %v2496, 256
          %v2499 = vpop.permute.xlu0 %2498
          %v2500 = vlaneseq
          %v2501 = vshrl.u32 %v2500, 7
          %v2502 = vsub.s32 3, %v2501
          %v2503 = vrot.slane %v1488, %v2502
          %2505 = vbcast.lane.b32.xlu0 %v2503, 256
          %v2506 = vpop.permute.xlu0 %2505
          %v2507 = vlaneseq
          %v2508 = vshrl.u32 %v2507, 7
          %v2509 = vsub.s32 4, %v2508
          %v2510 = vrot.slane %v1488, %v2509
          %2512 = vbcast.lane.b32.xlu0 %v2510, 256
          %v2513 = vpop.permute.xlu0 %2512
          %v2514 = vlaneseq
          %v2515 = vshrl.u32 %v2514, 7
          %v2516 = vsub.s32 5, %v2515
          %v2517 = vrot.slane %v1488, %v2516
          %2519 = vbcast.lane.b32.xlu0 %v2517, 256
          %v2520 = vpop.permute.xlu0 %2519
          %v2521 = vlaneseq
          %v2522 = vshrl.u32 %v2521, 7
          %v2523 = vsub.s32 6, %v2522
          %v2524 = vrot.slane %v1488, %v2523
          %2526 = vbcast.lane.b32.xlu0 %v2524, 256
          %v2527 = vpop.permute.xlu0 %2526
          %v2528 = vlaneseq
          %v2529 = vshrl.u32 %v2528, 7
          %v2530 = vsub.s32 7, %v2529
          %v2531 = vrot.slane %v1488, %v2530
          %2533 = vbcast.lane.b32.xlu0 %v2531, 256
          %v2534 = vpop.permute.xlu0 %2533
          %v2543 = vmin.f32 %v2390, %v2485
          %v2544 = vmin.f32 %v2392, %v2492
          %v2545 = vmin.f32 %v2394, %v2499
          %v2546 = vmin.f32 %v2396, %v2506
          %v2547 = vmin.f32 %v2398, %v2513
          %v2548 = vmin.f32 %v2400, %v2520
          %v2549 = vmin.f32 %v2402, %v2527
          %v2550 = vmin.f32 %v2404, %v2534
          %2559 = vset.pattern.permute.xlu0 0
          %2560 = vperm.xlu0 %2559, %v2543
          %v2561 = vpop.permute.xlu0 %2560
          %2562 = vset.pattern.permute.xlu0 0
          %2563 = vperm.xlu0 %2562, %v2544
          %v2564 = vpop.permute.xlu0 %2563
          %2565 = vset.pattern.permute.xlu0 0
          %2566 = vperm.xlu0 %2565, %v2545
          %v2567 = vpop.permute.xlu0 %2566
          %2568 = vset.pattern.permute.xlu0 0
          %2569 = vperm.xlu0 %2568, %v2546
          %v2570 = vpop.permute.xlu0 %2569
          %2571 = vset.pattern.permute.xlu0 0
          %2572 = vperm.xlu0 %2571, %v2547
          %v2573 = vpop.permute.xlu0 %2572
          %2574 = vset.pattern.permute.xlu0 0
          %2575 = vperm.xlu0 %2574, %v2548
          %v2576 = vpop.permute.xlu0 %2575
          %2577 = vset.pattern.permute.xlu0 0
          %2578 = vperm.xlu0 %2577, %v2549
          %v2579 = vpop.permute.xlu0 %2578
          %2580 = vset.pattern.permute.xlu0 0
          %2581 = vperm.xlu0 %2580, %v2550
          %v2582 = vpop.permute.xlu0 %2581
          %v2583 = vlaneseq
          %v2584 = vshrl.u32 %v2583, 7
          %v2585 = vsub.s32 %v2156, %v2584
          %v2586 = vrot.slane %v2561, %v2585
          %v2587 = vlaneseq
          %v2588 = vshrl.u32 %v2587, 7
          %v2589 = vsub.s32 %v2156, %v2588
          %v2590 = vrot.slane %v2564, %v2589
          %v2591 = vlaneseq
          %v2592 = vshrl.u32 %v2591, 7
          %v2593 = vsub.s32 %v2156, %v2592
          %v2594 = vrot.slane %v2567, %v2593
          %v2595 = vlaneseq
          %v2596 = vshrl.u32 %v2595, 7
          %v2597 = vsub.s32 %v2156, %v2596
          %v2598 = vrot.slane %v2570, %v2597
          %v2599 = vlaneseq
          %v2600 = vshrl.u32 %v2599, 7
          %v2601 = vsub.s32 %v2156, %v2600
          %v2602 = vrot.slane %v2573, %v2601
          %v2603 = vlaneseq
          %v2604 = vshrl.u32 %v2603, 7
          %v2605 = vsub.s32 %v2156, %v2604
          %v2606 = vrot.slane %v2576, %v2605
          %v2607 = vlaneseq
          %v2608 = vshrl.u32 %v2607, 7
          %v2609 = vsub.s32 %v2156, %v2608
          %v2610 = vrot.slane %v2579, %v2609
          %v2611 = vlaneseq
          %v2612 = vshrl.u32 %v2611, 7
          %v2613 = vsub.s32 %v2156, %v2612
          %v2614 = vrot.slane %v2582, %v2613
          %v2615 = vsel %vm2189, %v2590, %v2586
          %v2616 = vsel %vm2191, %v2594, %v2615
          %v2617 = vsel %vm2193, %v2598, %v2616
          %v2618 = vsel %vm2195, %v2602, %v2617
          %v2619 = vsel %vm2197, %v2606, %v2618
          %v2620 = vsel %vm2199, %v2610, %v2619
          %v2621 = vsel %vm2201, %v2614, %v2620
          %v2623 = vsel %vm2204, %v2621, 0.0
          %2624 = vadd.xlane.f32.xlu0 %v2623
          %v2625 = vpop.xlane.xlu0 %2624
          %v2626 = vrot.slane %v2625, 4
          %v2627 = vadd.f32 %v2625, %v2626
          %v2628 = vrot.slane %v2627, 2
          %v2629 = vadd.f32 %v2627, %v2628
          %v2630 = vrot.slane %v2629, 1
          %v2631 = vadd.f32 %v2629, %v2630
          %vm2632 = vcmask 0
          %2633 = vst.msk [vmem:[#allocation24] sm:$0x1] %vm2632, %v2631
          %v2634 = vadd.f32 %v1488, %v2475
          %2635 = vst.msk [vmem:[#allocation23] sm:$0xff] %vm2204, %v2634
          %v2636 = vsel %vm2204, %v2440, 0
          %2638 = vmatprep.subr.mxu0 0.0
          %2639 = vmatpush1.msra.mxu0 0.0
          %2640 = vmatprep.subr.mxu0 0.0
          %2641 = vmatpush1.msra.mxu0 0.0
          %2642 = vmatprep.subr.mxu0 0.0
          %2643 = vmatpush1.msra.mxu0 0.0
          %2644 = vmatprep.subr.mxu0 0.0
          %2645 = vmatpush1.msra.mxu0 0.0
          %2646 = vmatprep.subr.mxu0 0.0
          %2647 = vmatpush1.msra.mxu0 0.0
          %2648 = vmatprep.subr.mxu0 0.0
          %2649 = vmatpush1.msra.mxu0 0.0
          %2650 = vmatprep.subr.mxu0 0.0
          %2651 = vmatpush1.msra.mxu0 0.0
          %2652 = vmatprep.subr.mxu0 0.0
          %2653 = vmatpush1.msra.mxu0 0.0
          %2654 = vmatprep.subr.mxu0 0.0
          %2655 = vmatpush1.msra.mxu0 0.0
          %2656 = vmatprep.subr.mxu0 0.0
          %2657 = vmatpush1.msra.mxu0 0.0
          %2658 = vmatprep.subr.mxu0 0.0
          %2659 = vmatpush1.msra.mxu0 0.0
          %2660 = vmatprep.subr.mxu0 0.0
          %2661 = vmatpush1.msra.mxu0 0.0
          %2662 = vmatprep.subr.mxu0 0.0
          %2663 = vmatpush1.msra.mxu0 0.0
          %2664 = vmatprep.subr.mxu0 0.0
          %2665 = vmatpush1.msra.mxu0 0.0
          %2666 = vmatprep.subr.mxu0 0.0
          %2667 = vmatpush1.msra.mxu0 0.0
          %2668 = vmatprep.subr.mxu0 0.0
          %2669 = vmatpush1.msra.mxu0 %v1480
          %2670 = vmatprep.subr.mxu0 0.0
          %2671 = vmatpush2.msra.mxu0 0.0
          %2672 = vmatprep.subr.mxu0 0.0
          %2673 = vmatpush2.msra.mxu0 0.0
          %2674 = vmatprep.subr.mxu0 0.0
          %2675 = vmatpush2.msra.mxu0 0.0
          %2676 = vmatprep.subr.mxu0 0.0
          %2677 = vmatpush2.msra.mxu0 0.0
          %2678 = vmatprep.subr.mxu0 0.0
          %2679 = vmatpush2.msra.mxu0 0.0
          %2680 = vmatprep.subr.mxu0 0.0
          %2681 = vmatpush2.msra.mxu0 0.0
          %2682 = vmatprep.subr.mxu0 0.0
          %2683 = vmatpush2.msra.mxu0 0.0
          %2684 = vmatprep.subr.mxu0 0.0
          %2685 = vmatpush2.msra.mxu0 0.0
          %2686 = vmatprep.subr.mxu0 0.0
          %2687 = vmatpush2.msra.mxu0 0.0
          %2688 = vmatprep.subr.mxu0 0.0
          %2689 = vmatpush2.msra.mxu0 0.0
          %2690 = vmatprep.subr.mxu0 0.0
          %2691 = vmatpush2.msra.mxu0 0.0
          %2692 = vmatprep.subr.mxu0 0.0
          %2693 = vmatpush2.msra.mxu0 0.0
          %2694 = vmatprep.subr.mxu0 0.0
          %2695 = vmatpush2.msra.mxu0 0.0
          %2696 = vmatprep.subr.mxu0 0.0
          %2697 = vmatpush2.msra.mxu0 0.0
          %2698 = vmatprep.subr.mxu0 0.0
          %2699 = vmatpush2.msra.mxu0 0.0
          %2700 = vmatprep.subr.mxu0 0.0
          %2701 = vmatpush2.msra.mxu0 0.0
          %2702 = vmatprep.mubr.f32.mxu0 0.0
          %2703 = vmatmul.mubr.f32.gmra.mxu0 %v2636
          %v2704 = vpop.f32.mrf.mxu0
          %v2705 = vadd.f32 0.0, %v2704
          %v2706 = vpop.f32.mrf.mxu0
          %2707 = vdwg.mxu0
          %v2708 = vsel %vm2204, %v2444, 0
          %2710 = vmatprep.subr.mxu0 0.0
          %2711 = vmatpush1.msra.mxu0 0.0
          %2712 = vmatprep.subr.mxu0 0.0
          %2713 = vmatpush1.msra.mxu0 0.0
          %2714 = vmatprep.subr.mxu0 0.0
          %2715 = vmatpush1.msra.mxu0 0.0
          %2716 = vmatprep.subr.mxu0 0.0
          %2717 = vmatpush1.msra.mxu0 0.0
          %2718 = vmatprep.subr.mxu0 0.0
          %2719 = vmatpush1.msra.mxu0 0.0
          %2720 = vmatprep.subr.mxu0 0.0
          %2721 = vmatpush1.msra.mxu0 0.0
          %2722 = vmatprep.subr.mxu0 0.0
          %2723 = vmatpush1.msra.mxu0 0.0
          %2724 = vmatprep.subr.mxu0 0.0
          %2725 = vmatpush1.msra.mxu0 0.0
          %2726 = vmatprep.subr.mxu0 0.0
          %2727 = vmatpush1.msra.mxu0 0.0
          %2728 = vmatprep.subr.mxu0 0.0
          %2729 = vmatpush1.msra.mxu0 0.0
          %2730 = vmatprep.subr.mxu0 0.0
          %2731 = vmatpush1.msra.mxu0 0.0
          %2732 = vmatprep.subr.mxu0 0.0
          %2733 = vmatpush1.msra.mxu0 0.0
          %2734 = vmatprep.subr.mxu0 0.0
          %2735 = vmatpush1.msra.mxu0 0.0
          %2736 = vmatprep.subr.mxu0 0.0
          %2737 = vmatpush1.msra.mxu0 0.0
          %2738 = vmatprep.subr.mxu0 0.0
          %2739 = vmatpush1.msra.mxu0 0.0
          %2740 = vmatprep.subr.mxu0 0.0
          %2741 = vmatpush1.msra.mxu0 %v1481
          %2742 = vmatprep.subr.mxu0 0.0
          %2743 = vmatpush2.msra.mxu0 0.0
          %2744 = vmatprep.subr.mxu0 0.0
          %2745 = vmatpush2.msra.mxu0 0.0
          %2746 = vmatprep.subr.mxu0 0.0
          %2747 = vmatpush2.msra.mxu0 0.0
          %2748 = vmatprep.subr.mxu0 0.0
          %2749 = vmatpush2.msra.mxu0 0.0
          %2750 = vmatprep.subr.mxu0 0.0
          %2751 = vmatpush2.msra.mxu0 0.0
          %2752 = vmatprep.subr.mxu0 0.0
          %2753 = vmatpush2.msra.mxu0 0.0
          %2754 = vmatprep.subr.mxu0 0.0
          %2755 = vmatpush2.msra.mxu0 0.0
          %2756 = vmatprep.subr.mxu0 0.0
          %2757 = vmatpush2.msra.mxu0 0.0
          %2758 = vmatprep.subr.mxu0 0.0
          %2759 = vmatpush2.msra.mxu0 0.0
          %2760 = vmatprep.subr.mxu0 0.0
          %2761 = vmatpush2.msra.mxu0 0.0
          %2762 = vmatprep.subr.mxu0 0.0
          %2763 = vmatpush2.msra.mxu0 0.0
          %2764 = vmatprep.subr.mxu0 0.0
          %2765 = vmatpush2.msra.mxu0 0.0
          %2766 = vmatprep.subr.mxu0 0.0
          %2767 = vmatpush2.msra.mxu0 0.0
          %2768 = vmatprep.subr.mxu0 0.0
          %2769 = vmatpush2.msra.mxu0 0.0
          %2770 = vmatprep.subr.mxu0 0.0
          %2771 = vmatpush2.msra.mxu0 0.0
          %2772 = vmatprep.subr.mxu0 0.0
          %2773 = vmatpush2.msra.mxu0 0.0
          %2774 = vmatprep.mubr.f32.mxu0 0.0
          %2775 = vmatmul.mubr.f32.gmra.mxu0 %v2708
          %v2776 = vpop.f32.mrf.mxu0
          %v2777 = vadd.f32 0.0, %v2776
          %v2778 = vpop.f32.mrf.mxu0
          %2779 = vdwg.mxu0
          %v2780 = vsel %vm2204, %v2448, 0
          %2782 = vmatprep.subr.mxu0 0.0
          %2783 = vmatpush1.msra.mxu0 0.0
          %2784 = vmatprep.subr.mxu0 0.0
          %2785 = vmatpush1.msra.mxu0 0.0
          %2786 = vmatprep.subr.mxu0 0.0
          %2787 = vmatpush1.msra.mxu0 0.0
          %2788 = vmatprep.subr.mxu0 0.0
          %2789 = vmatpush1.msra.mxu0 0.0
          %2790 = vmatprep.subr.mxu0 0.0
          %2791 = vmatpush1.msra.mxu0 0.0
          %2792 = vmatprep.subr.mxu0 0.0
          %2793 = vmatpush1.msra.mxu0 0.0
          %2794 = vmatprep.subr.mxu0 0.0
          %2795 = vmatpush1.msra.mxu0 0.0
          %2796 = vmatprep.subr.mxu0 0.0
          %2797 = vmatpush1.msra.mxu0 0.0
          %2798 = vmatprep.subr.mxu0 0.0
          %2799 = vmatpush1.msra.mxu0 0.0
          %2800 = vmatprep.subr.mxu0 0.0
          %2801 = vmatpush1.msra.mxu0 0.0
          %2802 = vmatprep.subr.mxu0 0.0
          %2803 = vmatpush1.msra.mxu0 0.0
          %2804 = vmatprep.subr.mxu0 0.0
          %2805 = vmatpush1.msra.mxu0 0.0
          %2806 = vmatprep.subr.mxu0 0.0
          %2807 = vmatpush1.msra.mxu0 0.0
          %2808 = vmatprep.subr.mxu0 0.0
          %2809 = vmatpush1.msra.mxu0 0.0
          %2810 = vmatprep.subr.mxu0 0.0
          %2811 = vmatpush1.msra.mxu0 0.0
          %2812 = vmatprep.subr.mxu0 0.0
          %2813 = vmatpush1.msra.mxu0 %v1482
          %2814 = vmatprep.subr.mxu0 0.0
          %2815 = vmatpush2.msra.mxu0 0.0
          %2816 = vmatprep.subr.mxu0 0.0
          %2817 = vmatpush2.msra.mxu0 0.0
          %2818 = vmatprep.subr.mxu0 0.0
          %2819 = vmatpush2.msra.mxu0 0.0
          %2820 = vmatprep.subr.mxu0 0.0
          %2821 = vmatpush2.msra.mxu0 0.0
          %2822 = vmatprep.subr.mxu0 0.0
          %2823 = vmatpush2.msra.mxu0 0.0
          %2824 = vmatprep.subr.mxu0 0.0
          %2825 = vmatpush2.msra.mxu0 0.0
          %2826 = vmatprep.subr.mxu0 0.0
          %2827 = vmatpush2.msra.mxu0 0.0
          %2828 = vmatprep.subr.mxu0 0.0
          %2829 = vmatpush2.msra.mxu0 0.0
          %2830 = vmatprep.subr.mxu0 0.0
          %2831 = vmatpush2.msra.mxu0 0.0
          %2832 = vmatprep.subr.mxu0 0.0
          %2833 = vmatpush2.msra.mxu0 0.0
          %2834 = vmatprep.subr.mxu0 0.0
          %2835 = vmatpush2.msra.mxu0 0.0
          %2836 = vmatprep.subr.mxu0 0.0
          %2837 = vmatpush2.msra.mxu0 0.0
          %2838 = vmatprep.subr.mxu0 0.0
          %2839 = vmatpush2.msra.mxu0 0.0
          %2840 = vmatprep.subr.mxu0 0.0
          %2841 = vmatpush2.msra.mxu0 0.0
          %2842 = vmatprep.subr.mxu0 0.0
          %2843 = vmatpush2.msra.mxu0 0.0
          %2844 = vmatprep.subr.mxu0 0.0
          %2845 = vmatpush2.msra.mxu0 0.0
          %2846 = vmatprep.mubr.f32.mxu0 0.0
          %2847 = vmatmul.mubr.f32.gmra.mxu0 %v2780
          %v2848 = vpop.f32.mrf.mxu0
          %v2849 = vadd.f32 0.0, %v2848
          %v2850 = vpop.f32.mrf.mxu0
          %2851 = vdwg.mxu0
          %v2852 = vsel %vm2204, %v2452, 0
          %2854 = vmatprep.subr.mxu0 0.0
          %2855 = vmatpush1.msra.mxu0 0.0
          %2856 = vmatprep.subr.mxu0 0.0
          %2857 = vmatpush1.msra.mxu0 0.0
          %2858 = vmatprep.subr.mxu0 0.0
          %2859 = vmatpush1.msra.mxu0 0.0
          %2860 = vmatprep.subr.mxu0 0.0
          %2861 = vmatpush1.msra.mxu0 0.0
          %2862 = vmatprep.subr.mxu0 0.0
          %2863 = vmatpush1.msra.mxu0 0.0
          %2864 = vmatprep.subr.mxu0 0.0
          %2865 = vmatpush1.msra.mxu0 0.0
          %2866 = vmatprep.subr.mxu0 0.0
          %2867 = vmatpush1.msra.mxu0 0.0
          %2868 = vmatprep.subr.mxu0 0.0
          %2869 = vmatpush1.msra.mxu0 0.0
          %2870 = vmatprep.subr.mxu0 0.0
          %2871 = vmatpush1.msra.mxu0 0.0
          %2872 = vmatprep.subr.mxu0 0.0
          %2873 = vmatpush1.msra.mxu0 0.0
          %2874 = vmatprep.subr.mxu0 0.0
          %2875 = vmatpush1.msra.mxu0 0.0
          %2876 = vmatprep.subr.mxu0 0.0
          %2877 = vmatpush1.msra.mxu0 0.0
          %2878 = vmatprep.subr.mxu0 0.0
          %2879 = vmatpush1.msra.mxu0 0.0
          %2880 = vmatprep.subr.mxu0 0.0
          %2881 = vmatpush1.msra.mxu0 0.0
          %2882 = vmatprep.subr.mxu0 0.0
          %2883 = vmatpush1.msra.mxu0 0.0
          %2884 = vmatprep.subr.mxu0 0.0
          %2885 = vmatpush1.msra.mxu0 %v1483
          %2886 = vmatprep.subr.mxu0 0.0
          %2887 = vmatpush2.msra.mxu0 0.0
          %2888 = vmatprep.subr.mxu0 0.0
          %2889 = vmatpush2.msra.mxu0 0.0
          %2890 = vmatprep.subr.mxu0 0.0
          %2891 = vmatpush2.msra.mxu0 0.0
          %2892 = vmatprep.subr.mxu0 0.0
          %2893 = vmatpush2.msra.mxu0 0.0
          %2894 = vmatprep.subr.mxu0 0.0
          %2895 = vmatpush2.msra.mxu0 0.0
          %2896 = vmatprep.subr.mxu0 0.0
          %2897 = vmatpush2.msra.mxu0 0.0
          %2898 = vmatprep.subr.mxu0 0.0
          %2899 = vmatpush2.msra.mxu0 0.0
          %2900 = vmatprep.subr.mxu0 0.0
          %2901 = vmatpush2.msra.mxu0 0.0
          %2902 = vmatprep.subr.mxu0 0.0
          %2903 = vmatpush2.msra.mxu0 0.0
          %2904 = vmatprep.subr.mxu0 0.0
          %2905 = vmatpush2.msra.mxu0 0.0
          %2906 = vmatprep.subr.mxu0 0.0
          %2907 = vmatpush2.msra.mxu0 0.0
          %2908 = vmatprep.subr.mxu0 0.0
          %2909 = vmatpush2.msra.mxu0 0.0
          %2910 = vmatprep.subr.mxu0 0.0
          %2911 = vmatpush2.msra.mxu0 0.0
          %2912 = vmatprep.subr.mxu0 0.0
          %2913 = vmatpush2.msra.mxu0 0.0
          %2914 = vmatprep.subr.mxu0 0.0
          %2915 = vmatpush2.msra.mxu0 0.0
          %2916 = vmatprep.subr.mxu0 0.0
          %2917 = vmatpush2.msra.mxu0 0.0
          %2918 = vmatprep.mubr.f32.mxu0 0.0
          %2919 = vmatmul.mubr.f32.gmra.mxu0 %v2852
          %v2920 = vpop.f32.mrf.mxu0
          %v2921 = vadd.f32 0.0, %v2920
          %v2922 = vpop.f32.mrf.mxu0
          %2923 = vdwg.mxu0
          %v2924 = vsel %vm2204, %v2456, 0
          %2926 = vmatprep.subr.mxu0 0.0
          %2927 = vmatpush1.msra.mxu0 0.0
          %2928 = vmatprep.subr.mxu0 0.0
          %2929 = vmatpush1.msra.mxu0 0.0
          %2930 = vmatprep.subr.mxu0 0.0
          %2931 = vmatpush1.msra.mxu0 0.0
          %2932 = vmatprep.subr.mxu0 0.0
          %2933 = vmatpush1.msra.mxu0 0.0
          %2934 = vmatprep.subr.mxu0 0.0
          %2935 = vmatpush1.msra.mxu0 0.0
          %2936 = vmatprep.subr.mxu0 0.0
          %2937 = vmatpush1.msra.mxu0 0.0
          %2938 = vmatprep.subr.mxu0 0.0
          %2939 = vmatpush1.msra.mxu0 0.0
          %2940 = vmatprep.subr.mxu0 0.0
          %2941 = vmatpush1.msra.mxu0 0.0
          %2942 = vmatprep.subr.mxu0 0.0
          %2943 = vmatpush1.msra.mxu0 0.0
          %2944 = vmatprep.subr.mxu0 0.0
          %2945 = vmatpush1.msra.mxu0 0.0
          %2946 = vmatprep.subr.mxu0 0.0
          %2947 = vmatpush1.msra.mxu0 0.0
          %2948 = vmatprep.subr.mxu0 0.0
          %2949 = vmatpush1.msra.mxu0 0.0
          %2950 = vmatprep.subr.mxu0 0.0
          %2951 = vmatpush1.msra.mxu0 0.0
          %2952 = vmatprep.subr.mxu0 0.0
          %2953 = vmatpush1.msra.mxu0 0.0
          %2954 = vmatprep.subr.mxu0 0.0
          %2955 = vmatpush1.msra.mxu0 0.0
          %2956 = vmatprep.subr.mxu0 0.0
          %2957 = vmatpush1.msra.mxu0 %v1484
          %2958 = vmatprep.subr.mxu0 0.0
          %2959 = vmatpush2.msra.mxu0 0.0
          %2960 = vmatprep.subr.mxu0 0.0
          %2961 = vmatpush2.msra.mxu0 0.0
          %2962 = vmatprep.subr.mxu0 0.0
          %2963 = vmatpush2.msra.mxu0 0.0
          %2964 = vmatprep.subr.mxu0 0.0
          %2965 = vmatpush2.msra.mxu0 0.0
          %2966 = vmatprep.subr.mxu0 0.0
          %2967 = vmatpush2.msra.mxu0 0.0
          %2968 = vmatprep.subr.mxu0 0.0
          %2969 = vmatpush2.msra.mxu0 0.0
          %2970 = vmatprep.subr.mxu0 0.0
          %2971 = vmatpush2.msra.mxu0 0.0
          %2972 = vmatprep.subr.mxu0 0.0
          %2973 = vmatpush2.msra.mxu0 0.0
          %2974 = vmatprep.subr.mxu0 0.0
          %2975 = vmatpush2.msra.mxu0 0.0
          %2976 = vmatprep.subr.mxu0 0.0
          %2977 = vmatpush2.msra.mxu0 0.0
          %2978 = vmatprep.subr.mxu0 0.0
          %2979 = vmatpush2.msra.mxu0 0.0
          %2980 = vmatprep.subr.mxu0 0.0
          %2981 = vmatpush2.msra.mxu0 0.0
          %2982 = vmatprep.subr.mxu0 0.0
          %2983 = vmatpush2.msra.mxu0 0.0
          %2984 = vmatprep.subr.mxu0 0.0
          %2985 = vmatpush2.msra.mxu0 0.0
          %2986 = vmatprep.subr.mxu0 0.0
          %2987 = vmatpush2.msra.mxu0 0.0
          %2988 = vmatprep.subr.mxu0 0.0
          %2989 = vmatpush2.msra.mxu0 0.0
          %2990 = vmatprep.mubr.f32.mxu0 0.0
          %2991 = vmatmul.mubr.f32.gmra.mxu0 %v2924
          %v2992 = vpop.f32.mrf.mxu0
          %v2993 = vadd.f32 0.0, %v2992
          %v2994 = vpop.f32.mrf.mxu0
          %2995 = vdwg.mxu0
          %v2996 = vsel %vm2204, %v2460, 0
          %2998 = vmatprep.subr.mxu0 0.0
          %2999 = vmatpush1.msra.mxu0 0.0
          %3000 = vmatprep.subr.mxu0 0.0
          %3001 = vmatpush1.msra.mxu0 0.0
          %3002 = vmatprep.subr.mxu0 0.0
          %3003 = vmatpush1.msra.mxu0 0.0
          %3004 = vmatprep.subr.mxu0 0.0
          %3005 = vmatpush1.msra.mxu0 0.0
          %3006 = vmatprep.subr.mxu0 0.0
          %3007 = vmatpush1.msra.mxu0 0.0
          %3008 = vmatprep.subr.mxu0 0.0
          %3009 = vmatpush1.msra.mxu0 0.0
          %3010 = vmatprep.subr.mxu0 0.0
          %3011 = vmatpush1.msra.mxu0 0.0
          %3012 = vmatprep.subr.mxu0 0.0
          %3013 = vmatpush1.msra.mxu0 0.0
          %3014 = vmatprep.subr.mxu0 0.0
          %3015 = vmatpush1.msra.mxu0 0.0
          %3016 = vmatprep.subr.mxu0 0.0
          %3017 = vmatpush1.msra.mxu0 0.0
          %3018 = vmatprep.subr.mxu0 0.0
          %3019 = vmatpush1.msra.mxu0 0.0
          %3020 = vmatprep.subr.mxu0 0.0
          %3021 = vmatpush1.msra.mxu0 0.0
          %3022 = vmatprep.subr.mxu0 0.0
          %3023 = vmatpush1.msra.mxu0 0.0
          %3024 = vmatprep.subr.mxu0 0.0
          %3025 = vmatpush1.msra.mxu0 0.0
          %3026 = vmatprep.subr.mxu0 0.0
          %3027 = vmatpush1.msra.mxu0 0.0
          %3028 = vmatprep.subr.mxu0 0.0
          %3029 = vmatpush1.msra.mxu0 %v1485
          %3030 = vmatprep.subr.mxu0 0.0
          %3031 = vmatpush2.msra.mxu0 0.0
          %3032 = vmatprep.subr.mxu0 0.0
          %3033 = vmatpush2.msra.mxu0 0.0
          %3034 = vmatprep.subr.mxu0 0.0
          %3035 = vmatpush2.msra.mxu0 0.0
          %3036 = vmatprep.subr.mxu0 0.0
          %3037 = vmatpush2.msra.mxu0 0.0
          %3038 = vmatprep.subr.mxu0 0.0
          %3039 = vmatpush2.msra.mxu0 0.0
          %3040 = vmatprep.subr.mxu0 0.0
          %3041 = vmatpush2.msra.mxu0 0.0
          %3042 = vmatprep.subr.mxu0 0.0
          %3043 = vmatpush2.msra.mxu0 0.0
          %3044 = vmatprep.subr.mxu0 0.0
          %3045 = vmatpush2.msra.mxu0 0.0
          %3046 = vmatprep.subr.mxu0 0.0
          %3047 = vmatpush2.msra.mxu0 0.0
          %3048 = vmatprep.subr.mxu0 0.0
          %3049 = vmatpush2.msra.mxu0 0.0
          %3050 = vmatprep.subr.mxu0 0.0
          %3051 = vmatpush2.msra.mxu0 0.0
          %3052 = vmatprep.subr.mxu0 0.0
          %3053 = vmatpush2.msra.mxu0 0.0
          %3054 = vmatprep.subr.mxu0 0.0
          %3055 = vmatpush2.msra.mxu0 0.0
          %3056 = vmatprep.subr.mxu0 0.0
          %3057 = vmatpush2.msra.mxu0 0.0
          %3058 = vmatprep.subr.mxu0 0.0
          %3059 = vmatpush2.msra.mxu0 0.0
          %3060 = vmatprep.subr.mxu0 0.0
          %3061 = vmatpush2.msra.mxu0 0.0
          %3062 = vmatprep.mubr.f32.mxu0 0.0
          %3063 = vmatmul.mubr.f32.gmra.mxu0 %v2996
          %v3064 = vpop.f32.mrf.mxu0
          %v3065 = vadd.f32 0.0, %v3064
          %v3066 = vpop.f32.mrf.mxu0
          %3067 = vdwg.mxu0
          %v3068 = vsel %vm2204, %v2464, 0
          %3070 = vmatprep.subr.mxu0 0.0
          %3071 = vmatpush1.msra.mxu0 0.0
          %3072 = vmatprep.subr.mxu0 0.0
          %3073 = vmatpush1.msra.mxu0 0.0
          %3074 = vmatprep.subr.mxu0 0.0
          %3075 = vmatpush1.msra.mxu0 0.0
          %3076 = vmatprep.subr.mxu0 0.0
          %3077 = vmatpush1.msra.mxu0 0.0
          %3078 = vmatprep.subr.mxu0 0.0
          %3079 = vmatpush1.msra.mxu0 0.0
          %3080 = vmatprep.subr.mxu0 0.0
          %3081 = vmatpush1.msra.mxu0 0.0
          %3082 = vmatprep.subr.mxu0 0.0
          %3083 = vmatpush1.msra.mxu0 0.0
          %3084 = vmatprep.subr.mxu0 0.0
          %3085 = vmatpush1.msra.mxu0 0.0
          %3086 = vmatprep.subr.mxu0 0.0
          %3087 = vmatpush1.msra.mxu0 0.0
          %3088 = vmatprep.subr.mxu0 0.0
          %3089 = vmatpush1.msra.mxu0 0.0
          %3090 = vmatprep.subr.mxu0 0.0
          %3091 = vmatpush1.msra.mxu0 0.0
          %3092 = vmatprep.subr.mxu0 0.0
          %3093 = vmatpush1.msra.mxu0 0.0
          %3094 = vmatprep.subr.mxu0 0.0
          %3095 = vmatpush1.msra.mxu0 0.0
          %3096 = vmatprep.subr.mxu0 0.0
          %3097 = vmatpush1.msra.mxu0 0.0
          %3098 = vmatprep.subr.mxu0 0.0
          %3099 = vmatpush1.msra.mxu0 0.0
          %3100 = vmatprep.subr.mxu0 0.0
          %3101 = vmatpush1.msra.mxu0 %v1486
          %3102 = vmatprep.subr.mxu0 0.0
          %3103 = vmatpush2.msra.mxu0 0.0
          %3104 = vmatprep.subr.mxu0 0.0
          %3105 = vmatpush2.msra.mxu0 0.0
          %3106 = vmatprep.subr.mxu0 0.0
          %3107 = vmatpush2.msra.mxu0 0.0
          %3108 = vmatprep.subr.mxu0 0.0
          %3109 = vmatpush2.msra.mxu0 0.0
          %3110 = vmatprep.subr.mxu0 0.0
          %3111 = vmatpush2.msra.mxu0 0.0
          %3112 = vmatprep.subr.mxu0 0.0
          %3113 = vmatpush2.msra.mxu0 0.0
          %3114 = vmatprep.subr.mxu0 0.0
          %3115 = vmatpush2.msra.mxu0 0.0
          %3116 = vmatprep.subr.mxu0 0.0
          %3117 = vmatpush2.msra.mxu0 0.0
          %3118 = vmatprep.subr.mxu0 0.0
          %3119 = vmatpush2.msra.mxu0 0.0
          %3120 = vmatprep.subr.mxu0 0.0
          %3121 = vmatpush2.msra.mxu0 0.0
          %3122 = vmatprep.subr.mxu0 0.0
          %3123 = vmatpush2.msra.mxu0 0.0
          %3124 = vmatprep.subr.mxu0 0.0
          %3125 = vmatpush2.msra.mxu0 0.0
          %3126 = vmatprep.subr.mxu0 0.0
          %3127 = vmatpush2.msra.mxu0 0.0
          %3128 = vmatprep.subr.mxu0 0.0
          %3129 = vmatpush2.msra.mxu0 0.0
          %3130 = vmatprep.subr.mxu0 0.0
          %3131 = vmatpush2.msra.mxu0 0.0
          %3132 = vmatprep.subr.mxu0 0.0
          %3133 = vmatpush2.msra.mxu0 0.0
          %3134 = vmatprep.mubr.f32.mxu0 0.0
          %3135 = vmatmul.mubr.f32.gmra.mxu0 %v3068
          %v3136 = vpop.f32.mrf.mxu0
          %v3137 = vadd.f32 0.0, %v3136
          %v3138 = vpop.f32.mrf.mxu0
          %3139 = vdwg.mxu0
          %v3140 = vsel %vm2204, %v2468, 0
          %3142 = vmatprep.subr.mxu0 0.0
          %3143 = vmatpush1.msra.mxu0 0.0
          %3144 = vmatprep.subr.mxu0 0.0
          %3145 = vmatpush1.msra.mxu0 0.0
          %3146 = vmatprep.subr.mxu0 0.0
          %3147 = vmatpush1.msra.mxu0 0.0
          %3148 = vmatprep.subr.mxu0 0.0
          %3149 = vmatpush1.msra.mxu0 0.0
          %3150 = vmatprep.subr.mxu0 0.0
          %3151 = vmatpush1.msra.mxu0 0.0
          %3152 = vmatprep.subr.mxu0 0.0
          %3153 = vmatpush1.msra.mxu0 0.0
          %3154 = vmatprep.subr.mxu0 0.0
          %3155 = vmatpush1.msra.mxu0 0.0
          %3156 = vmatprep.subr.mxu0 0.0
          %3157 = vmatpush1.msra.mxu0 0.0
          %3158 = vmatprep.subr.mxu0 0.0
          %3159 = vmatpush1.msra.mxu0 0.0
          %3160 = vmatprep.subr.mxu0 0.0
          %3161 = vmatpush1.msra.mxu0 0.0
          %3162 = vmatprep.subr.mxu0 0.0
          %3163 = vmatpush1.msra.mxu0 0.0
          %3164 = vmatprep.subr.mxu0 0.0
          %3165 = vmatpush1.msra.mxu0 0.0
          %3166 = vmatprep.subr.mxu0 0.0
          %3167 = vmatpush1.msra.mxu0 0.0
          %3168 = vmatprep.subr.mxu0 0.0
          %3169 = vmatpush1.msra.mxu0 0.0
          %3170 = vmatprep.subr.mxu0 0.0
          %3171 = vmatpush1.msra.mxu0 0.0
          %3172 = vmatprep.subr.mxu0 0.0
          %3173 = vmatpush1.msra.mxu0 %v1487
          %3174 = vmatprep.subr.mxu0 0.0
          %3175 = vmatpush2.msra.mxu0 0.0
          %3176 = vmatprep.subr.mxu0 0.0
          %3177 = vmatpush2.msra.mxu0 0.0
          %3178 = vmatprep.subr.mxu0 0.0
          %3179 = vmatpush2.msra.mxu0 0.0
          %3180 = vmatprep.subr.mxu0 0.0
          %3181 = vmatpush2.msra.mxu0 0.0
          %3182 = vmatprep.subr.mxu0 0.0
          %3183 = vmatpush2.msra.mxu0 0.0
          %3184 = vmatprep.subr.mxu0 0.0
          %3185 = vmatpush2.msra.mxu0 0.0
          %3186 = vmatprep.subr.mxu0 0.0
          %3187 = vmatpush2.msra.mxu0 0.0
          %3188 = vmatprep.subr.mxu0 0.0
          %3189 = vmatpush2.msra.mxu0 0.0
          %3190 = vmatprep.subr.mxu0 0.0
          %3191 = vmatpush2.msra.mxu0 0.0
          %3192 = vmatprep.subr.mxu0 0.0
          %3193 = vmatpush2.msra.mxu0 0.0
          %3194 = vmatprep.subr.mxu0 0.0
          %3195 = vmatpush2.msra.mxu0 0.0
          %3196 = vmatprep.subr.mxu0 0.0
          %3197 = vmatpush2.msra.mxu0 0.0
          %3198 = vmatprep.subr.mxu0 0.0
          %3199 = vmatpush2.msra.mxu0 0.0
          %3200 = vmatprep.subr.mxu0 0.0
          %3201 = vmatpush2.msra.mxu0 0.0
          %3202 = vmatprep.subr.mxu0 0.0
          %3203 = vmatpush2.msra.mxu0 0.0
          %3204 = vmatprep.subr.mxu0 0.0
          %3205 = vmatpush2.msra.mxu0 0.0
          %3206 = vmatprep.mubr.f32.mxu0 0.0
          %3207 = vmatmul.mubr.f32.gmra.mxu0 %v3140
          %v3208 = vpop.f32.mrf.mxu0
          %v3209 = vadd.f32 0.0, %v3208
          %v3210 = vpop.f32.mrf.mxu0
          %3211 = vdwg.mxu0
          %v3212 = vld [vmem:[%s39] sm:$0xff]
          %v3213 = vld [vmem:[%s39 + $0x8] sm:$0xff]
          %v3214 = vld [vmem:[%s39 + $0x10] sm:$0xff]
          %v3215 = vld [vmem:[%s39 + $0x18] sm:$0xff]
          %v3216 = vld [vmem:[%s41] sm:$0xff]
          %v3217 = vld [vmem:[%s41 + $0x8] sm:$0xff]
          %v3218 = vld [vmem:[%s41 + $0x10] sm:$0xff]
          %v3219 = vld [vmem:[%s41 + $0x18] sm:$0xff]
          %v3228 = vrot.slane %v2777, 7
          %v3229 = vsel %vm2189, %v3228, %v2705
          %v3230 = vrot.slane %v2849, 6
          %v3231 = vsel %vm2191, %v3230, %v3229
          %v3232 = vrot.slane %v2921, 5
          %v3233 = vsel %vm2193, %v3232, %v3231
          %v3234 = vrot.slane %v2993, 4
          %v3235 = vsel %vm2195, %v3234, %v3233
          %v3236 = vrot.slane %v3065, 3
          %v3237 = vsel %vm2197, %v3236, %v3235
          %v3238 = vrot.slane %v3137, 2
          %v3239 = vsel %vm2199, %v3238, %v3237
          %v3240 = vrot.slane %v3209, 1
          %v3241 = vsel %vm2201, %v3240, %v3239
          %v3242 = vsel %vm1504, %v3241, 0
          %3244 = vmatprep.subr.mxu0 0.0
          %3245 = vmatpush1.msra.mxu0 0.0
          %3246 = vmatprep.subr.mxu0 0.0
          %3247 = vmatpush1.msra.mxu0 0.0
          %3248 = vmatprep.subr.mxu0 0.0
          %3249 = vmatpush1.msra.mxu0 0.0
          %3250 = vmatprep.subr.mxu0 0.0
          %3251 = vmatpush1.msra.mxu0 0.0
          %3252 = vmatprep.subr.mxu0 0.0
          %3253 = vmatpush1.msra.mxu0 0.0
          %3254 = vmatprep.subr.mxu0 0.0
          %3255 = vmatpush1.msra.mxu0 0.0
          %3256 = vmatprep.subr.mxu0 0.0
          %3257 = vmatpush1.msra.mxu0 0.0
          %3258 = vmatprep.subr.mxu0 0.0
          %3259 = vmatpush1.msra.mxu0 0.0
          %3260 = vmatprep.subr.mxu0 0.0
          %3261 = vmatpush1.msra.mxu0 0.0
          %3262 = vmatprep.subr.mxu0 0.0
          %3263 = vmatpush1.msra.mxu0 0.0
          %3264 = vmatprep.subr.mxu0 0.0
          %3265 = vmatpush1.msra.mxu0 0.0
          %3266 = vmatprep.subr.mxu0 0.0
          %3267 = vmatpush1.msra.mxu0 0.0
          %3268 = vmatprep.subr.mxu0 0.0
          %3269 = vmatpush1.msra.mxu0 %v3219
          %3270 = vmatprep.subr.mxu0 0.0
          %3271 = vmatpush1.msra.mxu0 %v3218
          %3272 = vmatprep.subr.mxu0 0.0
          %3273 = vmatpush1.msra.mxu0 %v3217
          %3274 = vmatprep.subr.mxu0 0.0
          %3275 = vmatpush1.msra.mxu0 %v3216
          %3276 = vmatprep.subr.mxu0 0.0
          %3277 = vmatpush2.msra.mxu0 0.0
          %3278 = vmatprep.subr.mxu0 0.0
          %3279 = vmatpush2.msra.mxu0 0.0
          %3280 = vmatprep.subr.mxu0 0.0
          %3281 = vmatpush2.msra.mxu0 0.0
          %3282 = vmatprep.subr.mxu0 0.0
          %3283 = vmatpush2.msra.mxu0 0.0
          %3284 = vmatprep.subr.mxu0 0.0
          %3285 = vmatpush2.msra.mxu0 0.0
          %3286 = vmatprep.subr.mxu0 0.0
          %3287 = vmatpush2.msra.mxu0 0.0
          %3288 = vmatprep.subr.mxu0 0.0
          %3289 = vmatpush2.msra.mxu0 0.0
          %3290 = vmatprep.subr.mxu0 0.0
          %3291 = vmatpush2.msra.mxu0 0.0
          %3292 = vmatprep.subr.mxu0 0.0
          %3293 = vmatpush2.msra.mxu0 0.0
          %3294 = vmatprep.subr.mxu0 0.0
          %3295 = vmatpush2.msra.mxu0 0.0
          %3296 = vmatprep.subr.mxu0 0.0
          %3297 = vmatpush2.msra.mxu0 0.0
          %3298 = vmatprep.subr.mxu0 0.0
          %3299 = vmatpush2.msra.mxu0 0.0
          %3300 = vmatprep.subr.mxu0 0.0
          %3301 = vmatpush2.msra.mxu0 0.0
          %3302 = vmatprep.subr.mxu0 0.0
          %3303 = vmatpush2.msra.mxu0 0.0
          %3304 = vmatprep.subr.mxu0 0.0
          %3305 = vmatpush2.msra.mxu0 0.0
          %3306 = vmatprep.subr.mxu0 0.0
          %3307 = vmatpush2.msra.mxu0 0.0
          %3308 = vmatprep.mubr.f32.mxu0 0.0
          %3309 = vmatmul.mubr.f32.gmra.mxu0 %v3242
          %v3310 = vpop.f32.mrf.mxu0
          %v3311 = vadd.f32 0.0, %v3310
          %v3312 = vpop.f32.mrf.mxu0
          %3313 = vdwg.mxu0
          %v3314 = vsel %vm1504, %v1972, 0
          %3316 = vmatprep.subr.mxu0 0.0
          %3317 = vmatpush1.msra.mxu0 0.0
          %3318 = vmatprep.subr.mxu0 0.0
          %3319 = vmatpush1.msra.mxu0 0.0
          %3320 = vmatprep.subr.mxu0 0.0
          %3321 = vmatpush1.msra.mxu0 0.0
          %3322 = vmatprep.subr.mxu0 0.0
          %3323 = vmatpush1.msra.mxu0 0.0
          %3324 = vmatprep.subr.mxu0 0.0
          %3325 = vmatpush1.msra.mxu0 0.0
          %3326 = vmatprep.subr.mxu0 0.0
          %3327 = vmatpush1.msra.mxu0 0.0
          %3328 = vmatprep.subr.mxu0 0.0
          %3329 = vmatpush1.msra.mxu0 0.0
          %3330 = vmatprep.subr.mxu0 0.0
          %3331 = vmatpush1.msra.mxu0 0.0
          %3332 = vmatprep.subr.mxu0 0.0
          %3333 = vmatpush1.msra.mxu0 0.0
          %3334 = vmatprep.subr.mxu0 0.0
          %3335 = vmatpush1.msra.mxu0 0.0
          %3336 = vmatprep.subr.mxu0 0.0
          %3337 = vmatpush1.msra.mxu0 0.0
          %3338 = vmatprep.subr.mxu0 0.0
          %3339 = vmatpush1.msra.mxu0 0.0
          %3340 = vmatprep.subr.mxu0 0.0
          %3341 = vmatpush1.msra.mxu0 %v3215
          %3342 = vmatprep.subr.mxu0 0.0
          %3343 = vmatpush1.msra.mxu0 %v3214
          %3344 = vmatprep.subr.mxu0 0.0
          %3345 = vmatpush1.msra.mxu0 %v3213
          %3346 = vmatprep.subr.mxu0 0.0
          %3347 = vmatpush1.msra.mxu0 %v3212
          %3348 = vmatprep.subr.mxu0 0.0
          %3349 = vmatpush2.msra.mxu0 0.0
          %3350 = vmatprep.subr.mxu0 0.0
          %3351 = vmatpush2.msra.mxu0 0.0
          %3352 = vmatprep.subr.mxu0 0.0
          %3353 = vmatpush2.msra.mxu0 0.0
          %3354 = vmatprep.subr.mxu0 0.0
          %3355 = vmatpush2.msra.mxu0 0.0
          %3356 = vmatprep.subr.mxu0 0.0
          %3357 = vmatpush2.msra.mxu0 0.0
          %3358 = vmatprep.subr.mxu0 0.0
          %3359 = vmatpush2.msra.mxu0 0.0
          %3360 = vmatprep.subr.mxu0 0.0
          %3361 = vmatpush2.msra.mxu0 0.0
          %3362 = vmatprep.subr.mxu0 0.0
          %3363 = vmatpush2.msra.mxu0 0.0
          %3364 = vmatprep.subr.mxu0 0.0
          %3365 = vmatpush2.msra.mxu0 0.0
          %3366 = vmatprep.subr.mxu0 0.0
          %3367 = vmatpush2.msra.mxu0 0.0
          %3368 = vmatprep.subr.mxu0 0.0
          %3369 = vmatpush2.msra.mxu0 0.0
          %3370 = vmatprep.subr.mxu0 0.0
          %3371 = vmatpush2.msra.mxu0 0.0
          %3372 = vmatprep.subr.mxu0 0.0
          %3373 = vmatpush2.msra.mxu0 0.0
          %3374 = vmatprep.subr.mxu0 0.0
          %3375 = vmatpush2.msra.mxu0 0.0
          %3376 = vmatprep.subr.mxu0 0.0
          %3377 = vmatpush2.msra.mxu0 0.0
          %3378 = vmatprep.subr.mxu0 0.0
          %3379 = vmatpush2.msra.mxu0 0.0
          %3380 = vmatprep.mubr.f32.mxu0 0.0
          %3381 = vmatmul.mubr.f32.gmra.mxu0 %v3314
          %v3382 = vpop.f32.mrf.mxu0
          %v3383 = vadd.f32 %v3311, %v3382
          %v3384 = vpop.f32.mrf.mxu0
          %3385 = vdwg.mxu0
          %v3386 = vld [vmem:[%s43] sm:$0x1]
          %v3388 = vlaneseq
          %v3389 = vshrl.u32 %v3388, 7
          %v3390 = vsub.s32 0, %v3389
          %v3391 = vrot.slane %v3386, %v3390
          %v3393 = vadd.f32 %v3383, %v3391
          %v3394 = vtanh.pop %v3393
          %vm3395 = vcmask 523264
          %3396 = vst.msk [vmem:[#allocation3] sm:$0xff] %vm3395, %v3394
          %v3397 = vld [vmem:[%s49] sm:$0x1]
          %v3399 = vlaneseq
          %v3400 = vshrl.u32 %v3399, 7
          %v3401 = vsub.s32 0, %v3400
          %v3402 = vrot.slane %v3397, %v3401
          %v3404 = vmul.f32 %v2705, %v3402
          %v3405 = vmul.f32 %v2777, %v3402
          %v3406 = vmul.f32 %v2849, %v3402
          %v3407 = vmul.f32 %v2921, %v3402
          %v3408 = vmul.f32 %v2993, %v3402
          %v3409 = vmul.f32 %v3065, %v3402
          %v3410 = vmul.f32 %v3137, %v3402
          %v3411 = vmul.f32 %v3209, %v3402
          %v3420 = vrot.slane %v3405, 7
          %v3421 = vsel %vm2189, %v3420, %v3404
          %v3422 = vrot.slane %v3406, 6
          %v3423 = vsel %vm2191, %v3422, %v3421
          %v3424 = vrot.slane %v3407, 5
          %v3425 = vsel %vm2193, %v3424, %v3423
          %v3426 = vrot.slane %v3408, 4
          %v3427 = vsel %vm2195, %v3426, %v3425
          %v3428 = vrot.slane %v3409, 3
          %v3429 = vsel %vm2197, %v3428, %v3427
          %v3430 = vrot.slane %v3410, 2
          %v3431 = vsel %vm2199, %v3430, %v3429
          %v3432 = vrot.slane %v3411, 1
          %v3433 = vsel %vm2201, %v3432, %v3431
          %v3435 = vsel %vm1504, %v3433, 0.0
          %3436 = vadd.xlane.f32.xlu0 %v3435
          %v3437 = vpop.xlane.xlu0 %3436
          %v3438 = vld [vmem:[%s51] sm:$0x1]
          %v3440 = vlaneseq
          %v3441 = vshrl.u32 %v3440, 7
          %v3442 = vsub.s32 0, %v3441
          %v3443 = vrot.slane %v3438, %v3442
          %3444 = vrot.lane.b32.xlu0 %v3443, 32
          %v3445 = vpop.permute.xlu0 %3444
          %v3447 = vmul.f32 %v1967, %v3445
          %3449 = vrot.lane.b32.xlu0 %v3447, 96
          %v3450 = vpop.permute.xlu0 %3449
          %v3452 = vsel %vm1504, %v3450, 0.0
          %3453 = vadd.xlane.f32.xlu0 %v3452
          %v3454 = vpop.xlane.xlu0 %3453
          %v3455 = vadd.f32 %v3437, %v3454
          %v3456 = vld [vmem:[%s53] sm:$0x1]
          %v3458 = vlaneseq
          %v3459 = vshrl.u32 %v3458, 7
          %v3460 = vsub.s32 0, %v3459
          %v3461 = vrot.slane %v3456, %v3460
          %v3463 = vmul.f32 %v1568, %v3461
          %v3464 = vsel %vm1504, %v3463, 0.0
          %3465 = vadd.xlane.f32.xlu0 %v3464
          %v3466 = vpop.xlane.xlu0 %3465
          %v3467 = vadd.f32 %v3455, %v3466
          %v3468 = vld [vmem:[#allocation14] sm:$0x1]
          %v3470 = vlaneseq
          %v3471 = vshrl.u32 %v3470, 7
          %v3472 = vsub.s32 0, %v3471
          %v3473 = vrot.slane %v3468, %v3472
          %v3475 = vadd.f32 %v3467, %v3473
          %v3476 = vxor.u32 %v3475, 2147483648
          %v3477 = vmul.f32 %v3476, 1.442695
          %v3478 = vpow.pop %v3477
          %v3479 = vadd.f32 %v3478, 1.0
          %v3480 = vrcp.pop %v3479
          %v3481 = vmul.f32 1.0, %v3480
          %vm3482 = vcmask 7168
          %3483 = vst.msk [vmem:[#allocation4] sm:$0xff] %vm3482, %v3481
          %3484 = vst.msk [vmem:[#allocation5] sm:$0xff] %vm3482, -inf
          %3485 = vst.msk [vmem:[#allocation6] sm:$0xff] %vm3482, 0.0
        $region147: #{tpu_custom_call.1} parent=138 // pred_fallthru
          _
        // Predicated region
        $region388: #{tpu_custom_call.1} parent=138 // pred_check
          %p3486 = pneg %p1076
        $region389: #{tpu_custom_call.1} parent=138 // pred_check_branch
          %3488 = sbr.rel (%p3486) target = $region391
        $region390: #{tpu_custom_call.1} parent=138 // pred_region
          %v3489 = vld [vmem:[#allocation3] sm:$0xff]
          %v3490 = vpack.c.bf16 %v3489, %v3489
          %v3491 = vld [vmem:[%s969] sm:$0xff]
          %v3492 = vld [vmem:[%s969 + $0x8] sm:$0xff]
          %v3493 = vld [vmem:[%s969 + $0x10] sm:$0xff]
          %v3494 = vld [vmem:[%s969 + $0x18] sm:$0xff]
          %v3495 = vld [vmem:[%s969 + $0x20] sm:$0xff]
          %v3496 = vld [vmem:[%s969 + $0x28] sm:$0xff]
          %v3497 = vld [vmem:[%s969 + $0x30] sm:$0xff]
          %v3498 = vld [vmem:[%s969 + $0x38] sm:$0xff]
          %v3499 = vld [vmem:[%s969 + $0x40] sm:$0xff]
          %v3500 = vld [vmem:[%s969 + $0x48] sm:$0xff]
          %v3501 = vld [vmem:[%s969 + $0x50] sm:$0xff]
          %v3502 = vld [vmem:[%s969 + $0x58] sm:$0xff]
          %v3503 = vld [vmem:[%s969 + $0x60] sm:$0xff]
          %v3504 = vld [vmem:[%s969 + $0x68] sm:$0xff]
          %v3505 = vld [vmem:[%s969 + $0x70] sm:$0xff]
          %v3506 = vld [vmem:[%s969 + $0x78] sm:$0xff]
          %v3507 = vld [vmem:[%s1066] sm:$0xf]
          %v3509 = vlaneseq
          %v3510 = vshrl.u32 %v3509, 7
          %v3511 = vsub.s32 0, %v3510
          %v3512 = vrot.slane %v3507, %v3511
          %v3513 = vlaneseq
          %v3514 = vshrl.u32 %v3513, 7
          %v3515 = vsub.s32 1, %v3514
          %v3516 = vrot.slane %v3507, %v3515
          %v3517 = vlaneseq
          %v3518 = vshrl.u32 %v3517, 7
          %v3519 = vsub.s32 2, %v3518
          %v3520 = vrot.slane %v3507, %v3519
          %v3521 = vlaneseq
          %v3522 = vshrl.u32 %v3521, 7
          %v3523 = vsub.s32 3, %v3522
          %v3524 = vrot.slane %v3507, %v3523
          %v3545 = vunpack.c.l.b16 %v3491
          %v3546 = vunpack.c.h.b16 %v3491
          %v3547 = vunpack.c.l.b16 %v3492
          %v3548 = vunpack.c.h.b16 %v3492
          %v3549 = vunpack.c.l.b16 %v3493
          %v3550 = vunpack.c.h.b16 %v3493
          %v3551 = vunpack.c.l.b16 %v3494
          %v3552 = vunpack.c.h.b16 %v3494
          %v3553 = vunpack.c.l.b16 %v3495
          %v3554 = vunpack.c.h.b16 %v3495
          %v3555 = vunpack.c.l.b16 %v3496
          %v3556 = vunpack.c.h.b16 %v3496
          %v3557 = vunpack.c.l.b16 %v3497
          %v3558 = vunpack.c.h.b16 %v3497
          %v3559 = vunpack.c.l.b16 %v3498
          %v3560 = vunpack.c.h.b16 %v3498
          %v3561 = vunpack.c.l.b16 %v3499
          %v3562 = vunpack.c.h.b16 %v3499
          %v3563 = vunpack.c.l.b16 %v3500
          %v3564 = vunpack.c.h.b16 %v3500
          %v3565 = vunpack.c.l.b16 %v3501
          %v3566 = vunpack.c.h.b16 %v3501
          %v3567 = vunpack.c.l.b16 %v3502
          %v3568 = vunpack.c.h.b16 %v3502
          %v3569 = vunpack.c.l.b16 %v3503
          %v3570 = vunpack.c.h.b16 %v3503
          %v3571 = vunpack.c.l.b16 %v3504
          %v3572 = vunpack.c.h.b16 %v3504
          %v3573 = vunpack.c.l.b16 %v3505
          %v3574 = vunpack.c.h.b16 %v3505
          %v3575 = vunpack.c.l.b16 %v3506
          %v3576 = vunpack.c.h.b16 %v3506
          %v3577 = vpack.c.b16 %v3549, %v3545
          %v3578 = vpack.c.b16 %v3550, %v3546
          %v3579 = vpack.c.b16 %v3551, %v3547
          %v3580 = vpack.c.b16 %v3552, %v3548
          %v3581 = vpack.c.b16 %v3557, %v3553
          %v3582 = vpack.c.b16 %v3558, %v3554
          %v3583 = vpack.c.b16 %v3559, %v3555
          %v3584 = vpack.c.b16 %v3560, %v3556
          %v3585 = vpack.c.b16 %v3565, %v3561
          %v3586 = vpack.c.b16 %v3566, %v3562
          %v3587 = vpack.c.b16 %v3567, %v3563
          %v3588 = vpack.c.b16 %v3568, %v3564
          %v3589 = vpack.c.b16 %v3573, %v3569
          %v3590 = vpack.c.b16 %v3574, %v3570
          %v3591 = vpack.c.b16 %v3575, %v3571
          %v3592 = vpack.c.b16 %v3576, %v3572
          %vm3609 = vcmask 523264
          %v3611 = vsel %vm3609, %v3490, 0
          %3613 = vmatprep.subr.bf16.mxu0 0
          %3614 = vmatpush1.bf16.msra.mxu0 0
          %3615 = vmatprep.subr.bf16.mxu0 0
          %3616 = vmatpush1.bf16.msra.mxu0 0
          %3617 = vmatprep.subr.bf16.mxu0 0
          %3618 = vmatpush1.bf16.msra.mxu0 0
          %3619 = vmatprep.subr.bf16.mxu0 0
          %3620 = vmatpush1.bf16.msra.mxu0 0
          %3621 = vmatprep.subr.bf16.mxu0 %v3590
          %3622 = vmatpush1.bf16.msra.mxu0 %v3589
          %3623 = vmatprep.subr.bf16.mxu0 %v3586
          %3624 = vmatpush1.bf16.msra.mxu0 %v3585
          %3625 = vmatprep.subr.bf16.mxu0 %v3582
          %3626 = vmatpush1.bf16.msra.mxu0 %v3581
          %3627 = vmatprep.subr.bf16.mxu0 %v3578
          %3628 = vmatpush1.bf16.msra.mxu0 %v3577
          %3629 = vmatprep.subr.bf16.mxu0 0
          %3630 = vmatpush2.bf16.msra.mxu0 0
          %3631 = vmatprep.subr.bf16.mxu0 0
          %3632 = vmatpush2.bf16.msra.mxu0 0
          %3633 = vmatprep.subr.bf16.mxu0 0
          %3634 = vmatpush2.bf16.msra.mxu0 0
          %3635 = vmatprep.subr.bf16.mxu0 0
          %3636 = vmatpush2.bf16.msra.mxu0 0
          %3637 = vmatprep.subr.bf16.mxu0 0
          %3638 = vmatpush2.bf16.msra.mxu0 0
          %3639 = vmatprep.subr.bf16.mxu0 0
          %3640 = vmatpush2.bf16.msra.mxu0 0
          %3641 = vmatprep.subr.bf16.mxu0 0
          %3642 = vmatpush2.bf16.msra.mxu0 0
          %3643 = vmatprep.subr.bf16.mxu0 0
          %3644 = vmatpush2.bf16.msra.mxu0 0
          %3645 = vmatprep.mubr.bf16.mxu0 0
          %3646 = vmatmul.mubr.bf16.gmra.mxu0 %v3611
          %v3647 = vpop.f32.mrf.mxu0
          %v3648 = vadd.f32 %v3512, %v3647
          %v3649 = vpop.f32.mrf.mxu0
          %v3650 = vadd.f32 %v3516, %v3649
          %v3651 = vpop.f32.mrf.mxu0
          %v3652 = vpop.f32.mrf.mxu0
          %3653 = vdwg.mxu0
          %3654 = vmatprep.subr.bf16.mxu0 0
          %3655 = vmatpush1.bf16.msra.mxu0 0
          %3656 = vmatprep.subr.bf16.mxu0 0
          %3657 = vmatpush1.bf16.msra.mxu0 0
          %3658 = vmatprep.subr.bf16.mxu0 0
          %3659 = vmatpush1.bf16.msra.mxu0 0
          %3660 = vmatprep.subr.bf16.mxu0 0
          %3661 = vmatpush1.bf16.msra.mxu0 0
          %3662 = vmatprep.subr.bf16.mxu0 %v3592
          %3663 = vmatpush1.bf16.msra.mxu0 %v3591
          %3664 = vmatprep.subr.bf16.mxu0 %v3588
          %3665 = vmatpush1.bf16.msra.mxu0 %v3587
          %3666 = vmatprep.subr.bf16.mxu0 %v3584
          %3667 = vmatpush1.bf16.msra.mxu0 %v3583
          %3668 = vmatprep.subr.bf16.mxu0 %v3580
          %3669 = vmatpush1.bf16.msra.mxu0 %v3579
          %3670 = vmatprep.subr.bf16.mxu0 0
          %3671 = vmatpush2.bf16.msra.mxu0 0
          %3672 = vmatprep.subr.bf16.mxu0 0
          %3673 = vmatpush2.bf16.msra.mxu0 0
          %3674 = vmatprep.subr.bf16.mxu0 0
          %3675 = vmatpush2.bf16.msra.mxu0 0
          %3676 = vmatprep.subr.bf16.mxu0 0
          %3677 = vmatpush2.bf16.msra.mxu0 0
          %3678 = vmatprep.subr.bf16.mxu0 0
          %3679 = vmatpush2.bf16.msra.mxu0 0
          %3680 = vmatprep.subr.bf16.mxu0 0
          %3681 = vmatpush2.bf16.msra.mxu0 0
          %3682 = vmatprep.subr.bf16.mxu0 0
          %3683 = vmatpush2.bf16.msra.mxu0 0
          %3684 = vmatprep.subr.bf16.mxu0 0
          %3685 = vmatpush2.bf16.msra.mxu0 0
          %3686 = vmatprep.mubr.bf16.mxu0 0
          %3687 = vmatmul.mubr.bf16.gmra.mxu0 %v3611
          %v3688 = vpop.f32.mrf.mxu0
          %v3689 = vadd.f32 %v3520, %v3688
          %v3690 = vpop.f32.mrf.mxu0
          %v3691 = vadd.f32 %v3524, %v3690
          %v3692 = vpop.f32.mrf.mxu0
          %v3693 = vpop.f32.mrf.mxu0
          %3694 = vdwg.mxu0
          %s3695 = smul.u32 %s108, 4
          %s3696 = smul.addr %s3695, 8
          %s3697 = scalar_lea.vmem [#allocation7], %s3696
          %3698 = vst [vmem:[%s3697] sm:$0xff] %v3648
          %3699 = vst [vmem:[%s3697 + $0x8] sm:$0xff] %v3650
          %3700 = vst [vmem:[%s3697 + $0x10] sm:$0xff] %v3689
          %3701 = vst [vmem:[%s3697 + $0x18] sm:$0xff] %v3691
          %v3702 = vld [vmem:[#allocation5] sm:$0xff]
          %v3703 = vmax.f32 %v3648, %v3650
          %v3704 = vmax.f32 %v3689, %v3691
          %v3705 = vmax.f32 %v3703, %v3704
          %3706 = vmax.xlane.f32.xlu0 %v3705
          %v3707 = vpop.xlane.xlu0 %3706
          %v3708 = vmax.f32 %v3702, %v3707
          %v3709 = vld [vmem:[#allocation6] sm:$0xff]
          %v3710 = vsub.f32 %v3702, %v3708
          %v3711 = vmul.f32 %v3710, 1.442695
          %v3712 = vpow.pop %v3711
          %v3713 = vmul.f32 %v3709, %v3712
          %3715 = vset.pattern.permute.xlu0 0
          %3716 = vperm.xlu0 %3715, %v3708
          %v3717 = vpop.permute.xlu0 %3716
          %v3719 = vsub.f32 %v3648, %v3717
          %v3720 = vsub.f32 %v3650, %v3717
          %v3721 = vsub.f32 %v3689, %v3717
          %v3722 = vsub.f32 %v3691, %v3717
          %v3723 = vmul.f32 %v3719, 1.442695
          %v3724 = vpow.pop %v3723
          %v3725 = vmul.f32 %v3720, 1.442695
          %v3726 = vpow.pop %v3725
          %v3727 = vmul.f32 %v3721, 1.442695
          %v3728 = vpow.pop %v3727
          %v3729 = vmul.f32 %v3722, 1.442695
          %v3730 = vpow.pop %v3729
          %v3731 = vadd.f32 %v3724, %v3726
          %v3732 = vadd.f32 %v3731, %v3728
          %v3733 = vadd.f32 %v3732, %v3730
          %3734 = vadd.xlane.f32.xlu0 %v3733
          %v3735 = vpop.xlane.xlu0 %3734
          %v3736 = vadd.f32 %v3713, %v3735
          %vm3737 = vcmask 7168
          %3738 = vst.msk [vmem:[#allocation6] sm:$0xff] %vm3737, %v3736
          %3739 = vst.msk [vmem:[#allocation5] sm:$0xff] %vm3737, %v3708
        $region391: #{tpu_custom_call.1} parent=138 // pred_fallthru
          _
        %p3740 = scmp.eq.s32.totalorder %s107, 1
        // Predicated region
        $region392: #{tpu_custom_call.1} parent=138 // pred_check
          %p3741 = pneg %p3740
        $region393: #{tpu_custom_call.1} parent=138 // pred_check_branch
          %3743 = sbr.rel (%p3741) target = $region395
        $region394: #{tpu_custom_call.1} parent=138 // pred_region
          %s3744 = smul.u32 %s108, 4
          %s3745 = smul.addr %s3744, 8
          %s3746 = scalar_lea.vmem [#allocation7], %s3745
          %v3747 = vld [vmem:[%s3746] sm:$0xff]
          %v3748 = vld [vmem:[%s3746 + $0x8] sm:$0xff]
          %v3749 = vld [vmem:[%s3746 + $0x10] sm:$0xff]
          %v3750 = vld [vmem:[%s3746 + $0x18] sm:$0xff]
          %v3751 = vld [vmem:[#allocation6] sm:$0xff]
          %v3752 = vrcp.pop %v3751
          %v3753 = vmul.f32 1.0, %v3752
          %v3754 = vld [vmem:[#allocation5] sm:$0xff]
          %3756 = vset.pattern.permute.xlu0 0
          %3757 = vperm.xlu0 %3756, %v3754
          %v3758 = vpop.permute.xlu0 %3757
          %v3760 = vsub.f32 %v3747, %v3758
          %v3761 = vsub.f32 %v3748, %v3758
          %v3762 = vsub.f32 %v3749, %v3758
          %v3763 = vsub.f32 %v3750, %v3758
          %v3764 = vmul.f32 %v3760, 1.442695
          %v3765 = vpow.pop %v3764
          %v3766 = vmul.f32 %v3761, 1.442695
          %v3767 = vpow.pop %v3766
          %v3768 = vmul.f32 %v3762, 1.442695
          %v3769 = vpow.pop %v3768
          %v3770 = vmul.f32 %v3763, 1.442695
          %v3771 = vpow.pop %v3770
          %3773 = vset.pattern.permute.xlu0 0
          %3774 = vperm.xlu0 %3773, %v3753
          %v3775 = vpop.permute.xlu0 %3774
          %v3777 = vmul.f32 %v3765, %v3775
          %v3778 = vmul.f32 %v3767, %v3775
          %v3779 = vmul.f32 %v3769, %v3775
          %v3780 = vmul.f32 %v3771, %v3775
          %v3781 = vld [vmem:[#allocation4] sm:$0xff]
          %s3782 = sld [smem:[#allocation11 + %s108]]
          %p3783 = scmp.gt.s32.totalorder %s3782, 0
          // Predicated region
          $region396: #{tpu_custom_call.1} parent=394 // pred_check
            %p3784 = pneg %p3783
          $region397: #{tpu_custom_call.1} parent=394 // pred_check_branch
            %3786 = sbr.rel (%p3784) target = $region399
          $region398: #{tpu_custom_call.1} parent=394 // pred_region
            %v3787 = vld [vmem:[#allocation20] sm:$0xff]
            %v3788 = vlaneseq
            %v3789 = vand.u32 %v3788, 127
            %v3790 = vadd.s32 %v3789, 128
            %v3791 = vadd.s32 %v3789, 256
            %v3792 = vadd.s32 %v3789, 384
            %s3793 = smul.u32 %s108, 512
            %v3794 = vstv %s3793
            %v3795 = vadd.s32 %v3789, %v3794
            %v3796 = vadd.s32 %v3790, %v3794
            %v3797 = vadd.s32 %v3791, %v3794
            %v3798 = vadd.s32 %v3792, %v3794
            %v3799 = vld [vmem:[%s9] sm:$0xff]
            %v3800 = vlaneseq
            %v3801 = vshrl.u32 %v3800, 7
            %v3802 = vsub.s32 0, %v3801
            %v3803 = vrot.slane %v3799, %v3802
            %3805 = vbcast.lane.b32.xlu0 %v3803, 256
            %v3806 = vpop.permute.xlu0 %3805
            %v3807 = vlaneseq
            %v3808 = vshrl.u32 %v3807, 7
            %v3809 = vsub.s32 1, %v3808
            %v3810 = vrot.slane %v3799, %v3809
            %3812 = vbcast.lane.b32.xlu0 %v3810, 256
            %v3813 = vpop.permute.xlu0 %3812
            %v3814 = vlaneseq
            %v3815 = vshrl.u32 %v3814, 7
            %v3816 = vsub.s32 2, %v3815
            %v3817 = vrot.slane %v3799, %v3816
            %3819 = vbcast.lane.b32.xlu0 %v3817, 256
            %v3820 = vpop.permute.xlu0 %3819
            %v3821 = vlaneseq
            %v3822 = vshrl.u32 %v3821, 7
            %v3823 = vsub.s32 3, %v3822
            %v3824 = vrot.slane %v3799, %v3823
            %3826 = vbcast.lane.b32.xlu0 %v3824, 256
            %v3827 = vpop.permute.xlu0 %3826
            %v3828 = vlaneseq
            %v3829 = vshrl.u32 %v3828, 7
            %v3830 = vsub.s32 4, %v3829
            %v3831 = vrot.slane %v3799, %v3830
            %3833 = vbcast.lane.b32.xlu0 %v3831, 256
            %v3834 = vpop.permute.xlu0 %3833
            %v3835 = vlaneseq
            %v3836 = vshrl.u32 %v3835, 7
            %v3837 = vsub.s32 5, %v3836
            %v3838 = vrot.slane %v3799, %v3837
            %3840 = vbcast.lane.b32.xlu0 %v3838, 256
            %v3841 = vpop.permute.xlu0 %3840
            %v3842 = vlaneseq
            %v3843 = vshrl.u32 %v3842, 7
            %v3844 = vsub.s32 6, %v3843
            %v3845 = vrot.slane %v3799, %v3844
            %3847 = vbcast.lane.b32.xlu0 %v3845, 256
            %v3848 = vpop.permute.xlu0 %3847
            %v3849 = vlaneseq
            %v3850 = vshrl.u32 %v3849, 7
            %v3851 = vsub.s32 7, %v3850
            %v3852 = vrot.slane %v3799, %v3851
            %3854 = vbcast.lane.b32.xlu0 %v3852, 256
            %v3855 = vpop.permute.xlu0 %3854
            %vm3856 = vcmp.eq.s32.totalorder %v3806, %v3795
            %vm3857 = vcmp.eq.s32.totalorder %v3806, %v3796
            %vm3858 = vcmp.eq.s32.totalorder %v3806, %v3797
            %vm3859 = vcmp.eq.s32.totalorder %v3806, %v3798
            %vm3860 = vcmp.eq.s32.totalorder %v3813, %v3795
            %vm3861 = vcmp.eq.s32.totalorder %v3813, %v3796
            %vm3862 = vcmp.eq.s32.totalorder %v3813, %v3797
            %vm3863 = vcmp.eq.s32.totalorder %v3813, %v3798
            %vm3864 = vcmp.eq.s32.totalorder %v3820, %v3795
            %vm3865 = vcmp.eq.s32.totalorder %v3820, %v3796
            %vm3866 = vcmp.eq.s32.totalorder %v3820, %v3797
            %vm3867 = vcmp.eq.s32.totalorder %v3820, %v3798
            %vm3868 = vcmp.eq.s32.totalorder %v3827, %v3795
            %vm3869 = vcmp.eq.s32.totalorder %v3827, %v3796
            %vm3870 = vcmp.eq.s32.totalorder %v3827, %v3797
            %vm3871 = vcmp.eq.s32.totalorder %v3827, %v3798
            %vm3872 = vcmp.eq.s32.totalorder %v3834, %v3795
            %vm3873 = vcmp.eq.s32.totalorder %v3834, %v3796
            %vm3874 = vcmp.eq.s32.totalorder %v3834, %v3797
            %vm3875 = vcmp.eq.s32.totalorder %v3834, %v3798
            %vm3876 = vcmp.eq.s32.totalorder %v3841, %v3795
            %vm3877 = vcmp.eq.s32.totalorder %v3841, %v3796
            %vm3878 = vcmp.eq.s32.totalorder %v3841, %v3797
            %vm3879 = vcmp.eq.s32.totalorder %v3841, %v3798
            %vm3880 = vcmp.eq.s32.totalorder %v3848, %v3795
            %vm3881 = vcmp.eq.s32.totalorder %v3848, %v3796
            %vm3882 = vcmp.eq.s32.totalorder %v3848, %v3797
            %vm3883 = vcmp.eq.s32.totalorder %v3848, %v3798
            %vm3884 = vcmp.eq.s32.totalorder %v3855, %v3795
            %vm3885 = vcmp.eq.s32.totalorder %v3855, %v3796
            %vm3886 = vcmp.eq.s32.totalorder %v3855, %v3797
            %vm3887 = vcmp.eq.s32.totalorder %v3855, %v3798
            %v3888 = vsel %vm3856, 1, 0
            %v3889 = vsel %vm3857, 1, 0
            %v3890 = vsel %vm3858, 1, 0
            %v3891 = vsel %vm3859, 1, 0
            %v3892 = vsel %vm3860, 1, 0
            %v3893 = vsel %vm3861, 1, 0
            %v3894 = vsel %vm3862, 1, 0
            %v3895 = vsel %vm3863, 1, 0
            %v3896 = vsel %vm3864, 1, 0
            %v3897 = vsel %vm3865, 1, 0
            %v3898 = vsel %vm3866, 1, 0
            %v3899 = vsel %vm3867, 1, 0
            %v3900 = vsel %vm3868, 1, 0
            %v3901 = vsel %vm3869, 1, 0
            %v3902 = vsel %vm3870, 1, 0
            %v3903 = vsel %vm3871, 1, 0
            %v3904 = vsel %vm3872, 1, 0
            %v3905 = vsel %vm3873, 1, 0
            %v3906 = vsel %vm3874, 1, 0
            %v3907 = vsel %vm3875, 1, 0
            %v3908 = vsel %vm3876, 1, 0
            %v3909 = vsel %vm3877, 1, 0
            %v3910 = vsel %vm3878, 1, 0
            %v3911 = vsel %vm3879, 1, 0
            %v3912 = vsel %vm3880, 1, 0
            %v3913 = vsel %vm3881, 1, 0
            %v3914 = vsel %vm3882, 1, 0
            %v3915 = vsel %vm3883, 1, 0
            %v3916 = vsel %vm3884, 1, 0
            %v3917 = vsel %vm3885, 1, 0
            %v3918 = vsel %vm3886, 1, 0
            %v3919 = vsel %vm3887, 1, 0
            %v3920 = vcvt.s32.f32 %v3888
            %v3921 = vcvt.s32.f32 %v3889
            %v3922 = vcvt.s32.f32 %v3890
            %v3923 = vcvt.s32.f32 %v3891
            %v3924 = vcvt.s32.f32 %v3892
            %v3925 = vcvt.s32.f32 %v3893
            %v3926 = vcvt.s32.f32 %v3894
            %v3927 = vcvt.s32.f32 %v3895
            %v3928 = vcvt.s32.f32 %v3896
            %v3929 = vcvt.s32.f32 %v3897
            %v3930 = vcvt.s32.f32 %v3898
            %v3931 = vcvt.s32.f32 %v3899
            %v3932 = vcvt.s32.f32 %v3900
            %v3933 = vcvt.s32.f32 %v3901
            %v3934 = vcvt.s32.f32 %v3902
            %v3935 = vcvt.s32.f32 %v3903
            %v3936 = vcvt.s32.f32 %v3904
            %v3937 = vcvt.s32.f32 %v3905
            %v3938 = vcvt.s32.f32 %v3906
            %v3939 = vcvt.s32.f32 %v3907
            %v3940 = vcvt.s32.f32 %v3908
            %v3941 = vcvt.s32.f32 %v3909
            %v3942 = vcvt.s32.f32 %v3910
            %v3943 = vcvt.s32.f32 %v3911
            %v3944 = vcvt.s32.f32 %v3912
            %v3945 = vcvt.s32.f32 %v3913
            %v3946 = vcvt.s32.f32 %v3914
            %v3947 = vcvt.s32.f32 %v3915
            %v3948 = vcvt.s32.f32 %v3916
            %v3949 = vcvt.s32.f32 %v3917
            %v3950 = vcvt.s32.f32 %v3918
            %v3951 = vcvt.s32.f32 %v3919
            %v3953 = vcombine.high %v3787, %v3787
            %v3955 = vunpack.c.l.s4 1966171168
            %v3956 = vunpack.c.0.s8 %v3955
            %v3957 = vlaneseq
            %v3958 = vshrl.u32 %v3957, 7
            %v3959 = vsub.s32 %v3956, %v3958
            %v3960 = vrot.slane %v3787, %v3959
            %v3962 = vunpack.c.l.s4 1966171168
            %v3963 = vunpack.c.0.s8 %v3962
            %v3964 = vlaneseq
            %v3965 = vshrl.u32 %v3964, 7
            %v3966 = vsub.s32 %v3963, %v3965
            %v3967 = vrot.slane %v3953, %v3966
            %v3968 = vcombine.high %v3960, %v3960
            %v3969 = vcombine.high %v3967, %v3967
            %v3971 = vunpack.c.l.s4 1966171168
            %v3972 = vunpack.c.0.s8 %v3971
            %v3973 = vlaneseq
            %v3974 = vshrl.u32 %v3973, 7
            %v3975 = vsub.s32 %v3972, %v3974
            %v3976 = vrot.slane %v3960, %v3975
            %v3978 = vunpack.c.l.s4 1966171168
            %v3979 = vunpack.c.0.s8 %v3978
            %v3980 = vlaneseq
            %v3981 = vshrl.u32 %v3980, 7
            %v3982 = vsub.s32 %v3979, %v3981
            %v3983 = vrot.slane %v3967, %v3982
            %v3985 = vunpack.c.l.s4 1966171168
            %v3986 = vunpack.c.0.s8 %v3985
            %v3987 = vlaneseq
            %v3988 = vshrl.u32 %v3987, 7
            %v3989 = vsub.s32 %v3986, %v3988
            %v3990 = vrot.slane %v3968, %v3989
            %v3992 = vunpack.c.l.s4 1966171168
            %v3993 = vunpack.c.0.s8 %v3992
            %v3994 = vlaneseq
            %v3995 = vshrl.u32 %v3994, 7
            %v3996 = vsub.s32 %v3993, %v3995
            %v3997 = vrot.slane %v3969, %v3996
            %v3998 = vcombine.high %v3976, %v3976
            %v3999 = vcombine.high %v3983, %v3983
            %v4000 = vcombine.high %v3990, %v3990
            %v4001 = vcombine.high %v3997, %v3997
            %vm4002 = vcmask 64512
            %v4003 = vsel %vm4002, %v3976, 0
            %4005 = vmatprep.subr.mxu0 0.0
            %4006 = vmatpush1.msra.mxu0 0.0
            %4007 = vmatprep.subr.mxu0 0.0
            %4008 = vmatpush1.msra.mxu0 0.0
            %4009 = vmatprep.subr.mxu0 0.0
            %4010 = vmatpush1.msra.mxu0 0.0
            %4011 = vmatprep.subr.mxu0 0.0
            %4012 = vmatpush1.msra.mxu0 0.0
            %4013 = vmatprep.subr.mxu0 0.0
            %4014 = vmatpush1.msra.mxu0 0.0
            %4015 = vmatprep.subr.mxu0 0.0
            %4016 = vmatpush1.msra.mxu0 0.0
            %4017 = vmatprep.subr.mxu0 0.0
            %4018 = vmatpush1.msra.mxu0 0.0
            %4019 = vmatprep.subr.mxu0 0.0
            %4020 = vmatpush1.msra.mxu0 0.0
            %4021 = vmatprep.subr.mxu0 0.0
            %4022 = vmatpush1.msra.mxu0 0.0
            %4023 = vmatprep.subr.mxu0 0.0
            %4024 = vmatpush1.msra.mxu0 0.0
            %4025 = vmatprep.subr.mxu0 0.0
            %4026 = vmatpush1.msra.mxu0 0.0
            %4027 = vmatprep.subr.mxu0 0.0
            %4028 = vmatpush1.msra.mxu0 0.0
            %4029 = vmatprep.subr.mxu0 0.0
            %4030 = vmatpush1.msra.mxu0 0.0
            %4031 = vmatprep.subr.mxu0 0.0
            %4032 = vmatpush1.msra.mxu0 0.0
            %4033 = vmatprep.subr.mxu0 0.0
            %4034 = vmatpush1.msra.mxu0 0.0
            %4035 = vmatprep.subr.mxu0 %v3921
            %4036 = vmatpush1.msra.mxu0 %v3920
            %4037 = vmatprep.subr.mxu0 0.0
            %4038 = vmatpush2.msra.mxu0 0.0
            %4039 = vmatprep.subr.mxu0 0.0
            %4040 = vmatpush2.msra.mxu0 0.0
            %4041 = vmatprep.subr.mxu0 0.0
            %4042 = vmatpush2.msra.mxu0 0.0
            %4043 = vmatprep.subr.mxu0 0.0
            %4044 = vmatpush2.msra.mxu0 0.0
            %4045 = vmatprep.subr.mxu0 0.0
            %4046 = vmatpush2.msra.mxu0 0.0
            %4047 = vmatprep.subr.mxu0 0.0
            %4048 = vmatpush2.msra.mxu0 0.0
            %4049 = vmatprep.subr.mxu0 0.0
            %4050 = vmatpush2.msra.mxu0 0.0
            %4051 = vmatprep.subr.mxu0 0.0
            %4052 = vmatpush2.msra.mxu0 0.0
            %4053 = vmatprep.subr.mxu0 0.0
            %4054 = vmatpush2.msra.mxu0 0.0
            %4055 = vmatprep.subr.mxu0 0.0
            %4056 = vmatpush2.msra.mxu0 0.0
            %4057 = vmatprep.subr.mxu0 0.0
            %4058 = vmatpush2.msra.mxu0 0.0
            %4059 = vmatprep.subr.mxu0 0.0
            %4060 = vmatpush2.msra.mxu0 0.0
            %4061 = vmatprep.subr.mxu0 0.0
            %4062 = vmatpush2.msra.mxu0 0.0
            %4063 = vmatprep.subr.mxu0 0.0
            %4064 = vmatpush2.msra.mxu0 0.0
            %4065 = vmatprep.subr.mxu0 0.0
            %4066 = vmatpush2.msra.mxu0 0.0
            %4067 = vmatprep.subr.mxu0 0.0
            %4068 = vmatpush2.msra.mxu0 0.0
            %4069 = vmatprep.mubr.f32.mxu0 0.0
            %4070 = vmatmul.mubr.f32.gmra.mxu0 %v4003
            %v4071 = vpop.f32.mrf.mxu0
            %v4072 = vadd.f32 0.0, %v4071
            %v4073 = vpop.f32.mrf.mxu0
            %v4074 = vadd.f32 0.0, %v4073
            %4075 = vdwg.mxu0
            %4076 = vmatprep.subr.mxu0 0.0
            %4077 = vmatpush1.msra.mxu0 0.0
            %4078 = vmatprep.subr.mxu0 0.0
            %4079 = vmatpush1.msra.mxu0 0.0
            %4080 = vmatprep.subr.mxu0 0.0
            %4081 = vmatpush1.msra.mxu0 0.0
            %4082 = vmatprep.subr.mxu0 0.0
            %4083 = vmatpush1.msra.mxu0 0.0
            %4084 = vmatprep.subr.mxu0 0.0
            %4085 = vmatpush1.msra.mxu0 0.0
            %4086 = vmatprep.subr.mxu0 0.0
            %4087 = vmatpush1.msra.mxu0 0.0
            %4088 = vmatprep.subr.mxu0 0.0
            %4089 = vmatpush1.msra.mxu0 0.0
            %4090 = vmatprep.subr.mxu0 0.0
            %4091 = vmatpush1.msra.mxu0 0.0
            %4092 = vmatprep.subr.mxu0 0.0
            %4093 = vmatpush1.msra.mxu0 0.0
            %4094 = vmatprep.subr.mxu0 0.0
            %4095 = vmatpush1.msra.mxu0 0.0
            %4096 = vmatprep.subr.mxu0 0.0
            %4097 = vmatpush1.msra.mxu0 0.0
            %4098 = vmatprep.subr.mxu0 0.0
            %4099 = vmatpush1.msra.mxu0 0.0
            %4100 = vmatprep.subr.mxu0 0.0
            %4101 = vmatpush1.msra.mxu0 0.0
            %4102 = vmatprep.subr.mxu0 0.0
            %4103 = vmatpush1.msra.mxu0 0.0
            %4104 = vmatprep.subr.mxu0 0.0
            %4105 = vmatpush1.msra.mxu0 0.0
            %4106 = vmatprep.subr.mxu0 %v3923
            %4107 = vmatpush1.msra.mxu0 %v3922
            %4108 = vmatprep.subr.mxu0 0.0
            %4109 = vmatpush2.msra.mxu0 0.0
            %4110 = vmatprep.subr.mxu0 0.0
            %4111 = vmatpush2.msra.mxu0 0.0
            %4112 = vmatprep.subr.mxu0 0.0
            %4113 = vmatpush2.msra.mxu0 0.0
            %4114 = vmatprep.subr.mxu0 0.0
            %4115 = vmatpush2.msra.mxu0 0.0
            %4116 = vmatprep.subr.mxu0 0.0
            %4117 = vmatpush2.msra.mxu0 0.0
            %4118 = vmatprep.subr.mxu0 0.0
            %4119 = vmatpush2.msra.mxu0 0.0
            %4120 = vmatprep.subr.mxu0 0.0
            %4121 = vmatpush2.msra.mxu0 0.0
            %4122 = vmatprep.subr.mxu0 0.0
            %4123 = vmatpush2.msra.mxu0 0.0
            %4124 = vmatprep.subr.mxu0 0.0
            %4125 = vmatpush2.msra.mxu0 0.0
            %4126 = vmatprep.subr.mxu0 0.0
            %4127 = vmatpush2.msra.mxu0 0.0
            %4128 = vmatprep.subr.mxu0 0.0
            %4129 = vmatpush2.msra.mxu0 0.0
            %4130 = vmatprep.subr.mxu0 0.0
            %4131 = vmatpush2.msra.mxu0 0.0
            %4132 = vmatprep.subr.mxu0 0.0
            %4133 = vmatpush2.msra.mxu0 0.0
            %4134 = vmatprep.subr.mxu0 0.0
            %4135 = vmatpush2.msra.mxu0 0.0
            %4136 = vmatprep.subr.mxu0 0.0
            %4137 = vmatpush2.msra.mxu0 0.0
            %4138 = vmatprep.subr.mxu0 0.0
            %4139 = vmatpush2.msra.mxu0 0.0
            %4140 = vmatprep.mubr.f32.mxu0 0.0
            %4141 = vmatmul.mubr.f32.gmra.mxu0 %v4003
            %v4142 = vpop.f32.mrf.mxu0
            %v4143 = vadd.f32 0.0, %v4142
            %v4144 = vpop.f32.mrf.mxu0
            %v4145 = vadd.f32 0.0, %v4144
            %4146 = vdwg.mxu0
            %v4147 = vsel %vm4002, %v3990, 0
            %4149 = vmatprep.subr.mxu0 0.0
            %4150 = vmatpush1.msra.mxu0 0.0
            %4151 = vmatprep.subr.mxu0 0.0
            %4152 = vmatpush1.msra.mxu0 0.0
            %4153 = vmatprep.subr.mxu0 0.0
            %4154 = vmatpush1.msra.mxu0 0.0
            %4155 = vmatprep.subr.mxu0 0.0
            %4156 = vmatpush1.msra.mxu0 0.0
            %4157 = vmatprep.subr.mxu0 0.0
            %4158 = vmatpush1.msra.mxu0 0.0
            %4159 = vmatprep.subr.mxu0 0.0
            %4160 = vmatpush1.msra.mxu0 0.0
            %4161 = vmatprep.subr.mxu0 0.0
            %4162 = vmatpush1.msra.mxu0 0.0
            %4163 = vmatprep.subr.mxu0 0.0
            %4164 = vmatpush1.msra.mxu0 0.0
            %4165 = vmatprep.subr.mxu0 0.0
            %4166 = vmatpush1.msra.mxu0 0.0
            %4167 = vmatprep.subr.mxu0 0.0
            %4168 = vmatpush1.msra.mxu0 0.0
            %4169 = vmatprep.subr.mxu0 0.0
            %4170 = vmatpush1.msra.mxu0 0.0
            %4171 = vmatprep.subr.mxu0 0.0
            %4172 = vmatpush1.msra.mxu0 0.0
            %4173 = vmatprep.subr.mxu0 0.0
            %4174 = vmatpush1.msra.mxu0 0.0
            %4175 = vmatprep.subr.mxu0 0.0
            %4176 = vmatpush1.msra.mxu0 0.0
            %4177 = vmatprep.subr.mxu0 0.0
            %4178 = vmatpush1.msra.mxu0 0.0
            %4179 = vmatprep.subr.mxu0 %v3925
            %4180 = vmatpush1.msra.mxu0 %v3924
            %4181 = vmatprep.subr.mxu0 0.0
            %4182 = vmatpush2.msra.mxu0 0.0
            %4183 = vmatprep.subr.mxu0 0.0
            %4184 = vmatpush2.msra.mxu0 0.0
            %4185 = vmatprep.subr.mxu0 0.0
            %4186 = vmatpush2.msra.mxu0 0.0
            %4187 = vmatprep.subr.mxu0 0.0
            %4188 = vmatpush2.msra.mxu0 0.0
            %4189 = vmatprep.subr.mxu0 0.0
            %4190 = vmatpush2.msra.mxu0 0.0
            %4191 = vmatprep.subr.mxu0 0.0
            %4192 = vmatpush2.msra.mxu0 0.0
            %4193 = vmatprep.subr.mxu0 0.0
            %4194 = vmatpush2.msra.mxu0 0.0
            %4195 = vmatprep.subr.mxu0 0.0
            %4196 = vmatpush2.msra.mxu0 0.0
            %4197 = vmatprep.subr.mxu0 0.0
            %4198 = vmatpush2.msra.mxu0 0.0
            %4199 = vmatprep.subr.mxu0 0.0
            %4200 = vmatpush2.msra.mxu0 0.0
            %4201 = vmatprep.subr.mxu0 0.0
            %4202 = vmatpush2.msra.mxu0 0.0
            %4203 = vmatprep.subr.mxu0 0.0
            %4204 = vmatpush2.msra.mxu0 0.0
            %4205 = vmatprep.subr.mxu0 0.0
            %4206 = vmatpush2.msra.mxu0 0.0
            %4207 = vmatprep.subr.mxu0 0.0
            %4208 = vmatpush2.msra.mxu0 0.0
            %4209 = vmatprep.subr.mxu0 0.0
            %4210 = vmatpush2.msra.mxu0 0.0
            %4211 = vmatprep.subr.mxu0 0.0
            %4212 = vmatpush2.msra.mxu0 0.0
            %4213 = vmatprep.mubr.f32.mxu0 0.0
            %4214 = vmatmul.mubr.f32.gmra.mxu0 %v4147
            %v4215 = vpop.f32.mrf.mxu0
            %v4216 = vadd.f32 0.0, %v4215
            %v4217 = vpop.f32.mrf.mxu0
            %v4218 = vadd.f32 0.0, %v4217
            %4219 = vdwg.mxu0
            %4220 = vmatprep.subr.mxu0 0.0
            %4221 = vmatpush1.msra.mxu0 0.0
            %4222 = vmatprep.subr.mxu0 0.0
            %4223 = vmatpush1.msra.mxu0 0.0
            %4224 = vmatprep.subr.mxu0 0.0
            %4225 = vmatpush1.msra.mxu0 0.0
            %4226 = vmatprep.subr.mxu0 0.0
            %4227 = vmatpush1.msra.mxu0 0.0
            %4228 = vmatprep.subr.mxu0 0.0
            %4229 = vmatpush1.msra.mxu0 0.0
            %4230 = vmatprep.subr.mxu0 0.0
            %4231 = vmatpush1.msra.mxu0 0.0
            %4232 = vmatprep.subr.mxu0 0.0
            %4233 = vmatpush1.msra.mxu0 0.0
            %4234 = vmatprep.subr.mxu0 0.0
            %4235 = vmatpush1.msra.mxu0 0.0
            %4236 = vmatprep.subr.mxu0 0.0
            %4237 = vmatpush1.msra.mxu0 0.0
            %4238 = vmatprep.subr.mxu0 0.0
            %4239 = vmatpush1.msra.mxu0 0.0
            %4240 = vmatprep.subr.mxu0 0.0
            %4241 = vmatpush1.msra.mxu0 0.0
            %4242 = vmatprep.subr.mxu0 0.0
            %4243 = vmatpush1.msra.mxu0 0.0
            %4244 = vmatprep.subr.mxu0 0.0
            %4245 = vmatpush1.msra.mxu0 0.0
            %4246 = vmatprep.subr.mxu0 0.0
            %4247 = vmatpush1.msra.mxu0 0.0
            %4248 = vmatprep.subr.mxu0 0.0
            %4249 = vmatpush1.msra.mxu0 0.0
            %4250 = vmatprep.subr.mxu0 %v3927
            %4251 = vmatpush1.msra.mxu0 %v3926
            %4252 = vmatprep.subr.mxu0 0.0
            %4253 = vmatpush2.msra.mxu0 0.0
            %4254 = vmatprep.subr.mxu0 0.0
            %4255 = vmatpush2.msra.mxu0 0.0
            %4256 = vmatprep.subr.mxu0 0.0
            %4257 = vmatpush2.msra.mxu0 0.0
            %4258 = vmatprep.subr.mxu0 0.0
            %4259 = vmatpush2.msra.mxu0 0.0
            %4260 = vmatprep.subr.mxu0 0.0
            %4261 = vmatpush2.msra.mxu0 0.0
            %4262 = vmatprep.subr.mxu0 0.0
            %4263 = vmatpush2.msra.mxu0 0.0
            %4264 = vmatprep.subr.mxu0 0.0
            %4265 = vmatpush2.msra.mxu0 0.0
            %4266 = vmatprep.subr.mxu0 0.0
            %4267 = vmatpush2.msra.mxu0 0.0
            %4268 = vmatprep.subr.mxu0 0.0
            %4269 = vmatpush2.msra.mxu0 0.0
            %4270 = vmatprep.subr.mxu0 0.0
            %4271 = vmatpush2.msra.mxu0 0.0
            %4272 = vmatprep.subr.mxu0 0.0
            %4273 = vmatpush2.msra.mxu0 0.0
            %4274 = vmatprep.subr.mxu0 0.0
            %4275 = vmatpush2.msra.mxu0 0.0
            %4276 = vmatprep.subr.mxu0 0.0
            %4277 = vmatpush2.msra.mxu0 0.0
            %4278 = vmatprep.subr.mxu0 0.0
            %4279 = vmatpush2.msra.mxu0 0.0
            %4280 = vmatprep.subr.mxu0 0.0
            %4281 = vmatpush2.msra.mxu0 0.0
            %4282 = vmatprep.subr.mxu0 0.0
            %4283 = vmatpush2.msra.mxu0 0.0
            %4284 = vmatprep.mubr.f32.mxu0 0.0
            %4285 = vmatmul.mubr.f32.gmra.mxu0 %v4147
            %v4286 = vpop.f32.mrf.mxu0
            %v4287 = vadd.f32 0.0, %v4286
            %v4288 = vpop.f32.mrf.mxu0
            %v4289 = vadd.f32 0.0, %v4288
            %4290 = vdwg.mxu0
            %v4291 = vsel %vm4002, %v3998, 0
            %4293 = vmatprep.subr.mxu0 0.0
            %4294 = vmatpush1.msra.mxu0 0.0
            %4295 = vmatprep.subr.mxu0 0.0
            %4296 = vmatpush1.msra.mxu0 0.0
            %4297 = vmatprep.subr.mxu0 0.0
            %4298 = vmatpush1.msra.mxu0 0.0
            %4299 = vmatprep.subr.mxu0 0.0
            %4300 = vmatpush1.msra.mxu0 0.0
            %4301 = vmatprep.subr.mxu0 0.0
            %4302 = vmatpush1.msra.mxu0 0.0
            %4303 = vmatprep.subr.mxu0 0.0
            %4304 = vmatpush1.msra.mxu0 0.0
            %4305 = vmatprep.subr.mxu0 0.0
            %4306 = vmatpush1.msra.mxu0 0.0
            %4307 = vmatprep.subr.mxu0 0.0
            %4308 = vmatpush1.msra.mxu0 0.0
            %4309 = vmatprep.subr.mxu0 0.0
            %4310 = vmatpush1.msra.mxu0 0.0
            %4311 = vmatprep.subr.mxu0 0.0
            %4312 = vmatpush1.msra.mxu0 0.0
            %4313 = vmatprep.subr.mxu0 0.0
            %4314 = vmatpush1.msra.mxu0 0.0
            %4315 = vmatprep.subr.mxu0 0.0
            %4316 = vmatpush1.msra.mxu0 0.0
            %4317 = vmatprep.subr.mxu0 0.0
            %4318 = vmatpush1.msra.mxu0 0.0
            %4319 = vmatprep.subr.mxu0 0.0
            %4320 = vmatpush1.msra.mxu0 0.0
            %4321 = vmatprep.subr.mxu0 0.0
            %4322 = vmatpush1.msra.mxu0 0.0
            %4323 = vmatprep.subr.mxu0 %v3929
            %4324 = vmatpush1.msra.mxu0 %v3928
            %4325 = vmatprep.subr.mxu0 0.0
            %4326 = vmatpush2.msra.mxu0 0.0
            %4327 = vmatprep.subr.mxu0 0.0
            %4328 = vmatpush2.msra.mxu0 0.0
            %4329 = vmatprep.subr.mxu0 0.0
            %4330 = vmatpush2.msra.mxu0 0.0
            %4331 = vmatprep.subr.mxu0 0.0
            %4332 = vmatpush2.msra.mxu0 0.0
            %4333 = vmatprep.subr.mxu0 0.0
            %4334 = vmatpush2.msra.mxu0 0.0
            %4335 = vmatprep.subr.mxu0 0.0
            %4336 = vmatpush2.msra.mxu0 0.0
            %4337 = vmatprep.subr.mxu0 0.0
            %4338 = vmatpush2.msra.mxu0 0.0
            %4339 = vmatprep.subr.mxu0 0.0
            %4340 = vmatpush2.msra.mxu0 0.0
            %4341 = vmatprep.subr.mxu0 0.0
            %4342 = vmatpush2.msra.mxu0 0.0
            %4343 = vmatprep.subr.mxu0 0.0
            %4344 = vmatpush2.msra.mxu0 0.0
            %4345 = vmatprep.subr.mxu0 0.0
            %4346 = vmatpush2.msra.mxu0 0.0
            %4347 = vmatprep.subr.mxu0 0.0
            %4348 = vmatpush2.msra.mxu0 0.0
            %4349 = vmatprep.subr.mxu0 0.0
            %4350 = vmatpush2.msra.mxu0 0.0
            %4351 = vmatprep.subr.mxu0 0.0
            %4352 = vmatpush2.msra.mxu0 0.0
            %4353 = vmatprep.subr.mxu0 0.0
            %4354 = vmatpush2.msra.mxu0 0.0
            %4355 = vmatprep.subr.mxu0 0.0
            %4356 = vmatpush2.msra.mxu0 0.0
            %4357 = vmatprep.mubr.f32.mxu0 0.0
            %4358 = vmatmul.mubr.f32.gmra.mxu0 %v4291
            %v4359 = vpop.f32.mrf.mxu0
            %v4360 = vadd.f32 0.0, %v4359
            %v4361 = vpop.f32.mrf.mxu0
            %v4362 = vadd.f32 0.0, %v4361
            %4363 = vdwg.mxu0
            %4364 = vmatprep.subr.mxu0 0.0
            %4365 = vmatpush1.msra.mxu0 0.0
            %4366 = vmatprep.subr.mxu0 0.0
            %4367 = vmatpush1.msra.mxu0 0.0
            %4368 = vmatprep.subr.mxu0 0.0
            %4369 = vmatpush1.msra.mxu0 0.0
            %4370 = vmatprep.subr.mxu0 0.0
            %4371 = vmatpush1.msra.mxu0 0.0
            %4372 = vmatprep.subr.mxu0 0.0
            %4373 = vmatpush1.msra.mxu0 0.0
            %4374 = vmatprep.subr.mxu0 0.0
            %4375 = vmatpush1.msra.mxu0 0.0
            %4376 = vmatprep.subr.mxu0 0.0
            %4377 = vmatpush1.msra.mxu0 0.0
            %4378 = vmatprep.subr.mxu0 0.0
            %4379 = vmatpush1.msra.mxu0 0.0
            %4380 = vmatprep.subr.mxu0 0.0
            %4381 = vmatpush1.msra.mxu0 0.0
            %4382 = vmatprep.subr.mxu0 0.0
            %4383 = vmatpush1.msra.mxu0 0.0
            %4384 = vmatprep.subr.mxu0 0.0
            %4385 = vmatpush1.msra.mxu0 0.0
            %4386 = vmatprep.subr.mxu0 0.0
            %4387 = vmatpush1.msra.mxu0 0.0
            %4388 = vmatprep.subr.mxu0 0.0
            %4389 = vmatpush1.msra.mxu0 0.0
            %4390 = vmatprep.subr.mxu0 0.0
            %4391 = vmatpush1.msra.mxu0 0.0
            %4392 = vmatprep.subr.mxu0 0.0
            %4393 = vmatpush1.msra.mxu0 0.0
            %4394 = vmatprep.subr.mxu0 %v3931
            %4395 = vmatpush1.msra.mxu0 %v3930
            %4396 = vmatprep.subr.mxu0 0.0
            %4397 = vmatpush2.msra.mxu0 0.0
            %4398 = vmatprep.subr.mxu0 0.0
            %4399 = vmatpush2.msra.mxu0 0.0
            %4400 = vmatprep.subr.mxu0 0.0
            %4401 = vmatpush2.msra.mxu0 0.0
            %4402 = vmatprep.subr.mxu0 0.0
            %4403 = vmatpush2.msra.mxu0 0.0
            %4404 = vmatprep.subr.mxu0 0.0
            %4405 = vmatpush2.msra.mxu0 0.0
            %4406 = vmatprep.subr.mxu0 0.0
            %4407 = vmatpush2.msra.mxu0 0.0
            %4408 = vmatprep.subr.mxu0 0.0
            %4409 = vmatpush2.msra.mxu0 0.0
            %4410 = vmatprep.subr.mxu0 0.0
            %4411 = vmatpush2.msra.mxu0 0.0
            %4412 = vmatprep.subr.mxu0 0.0
            %4413 = vmatpush2.msra.mxu0 0.0
            %4414 = vmatprep.subr.mxu0 0.0
            %4415 = vmatpush2.msra.mxu0 0.0
            %4416 = vmatprep.subr.mxu0 0.0
            %4417 = vmatpush2.msra.mxu0 0.0
            %4418 = vmatprep.subr.mxu0 0.0
            %4419 = vmatpush2.msra.mxu0 0.0
            %4420 = vmatprep.subr.mxu0 0.0
            %4421 = vmatpush2.msra.mxu0 0.0
            %4422 = vmatprep.subr.mxu0 0.0
            %4423 = vmatpush2.msra.mxu0 0.0
            %4424 = vmatprep.subr.mxu0 0.0
            %4425 = vmatpush2.msra.mxu0 0.0
            %4426 = vmatprep.subr.mxu0 0.0
            %4427 = vmatpush2.msra.mxu0 0.0
            %4428 = vmatprep.mubr.f32.mxu0 0.0
            %4429 = vmatmul.mubr.f32.gmra.mxu0 %v4291
            %v4430 = vpop.f32.mrf.mxu0
            %v4431 = vadd.f32 0.0, %v4430
            %v4432 = vpop.f32.mrf.mxu0
            %v4433 = vadd.f32 0.0, %v4432
            %4434 = vdwg.mxu0
            %v4435 = vsel %vm4002, %v4000, 0
            %4437 = vmatprep.subr.mxu0 0.0
            %4438 = vmatpush1.msra.mxu0 0.0
            %4439 = vmatprep.subr.mxu0 0.0
            %4440 = vmatpush1.msra.mxu0 0.0
            %4441 = vmatprep.subr.mxu0 0.0
            %4442 = vmatpush1.msra.mxu0 0.0
            %4443 = vmatprep.subr.mxu0 0.0
            %4444 = vmatpush1.msra.mxu0 0.0
            %4445 = vmatprep.subr.mxu0 0.0
            %4446 = vmatpush1.msra.mxu0 0.0
            %4447 = vmatprep.subr.mxu0 0.0
            %4448 = vmatpush1.msra.mxu0 0.0
            %4449 = vmatprep.subr.mxu0 0.0
            %4450 = vmatpush1.msra.mxu0 0.0
            %4451 = vmatprep.subr.mxu0 0.0
            %4452 = vmatpush1.msra.mxu0 0.0
            %4453 = vmatprep.subr.mxu0 0.0
            %4454 = vmatpush1.msra.mxu0 0.0
            %4455 = vmatprep.subr.mxu0 0.0
            %4456 = vmatpush1.msra.mxu0 0.0
            %4457 = vmatprep.subr.mxu0 0.0
            %4458 = vmatpush1.msra.mxu0 0.0
            %4459 = vmatprep.subr.mxu0 0.0
            %4460 = vmatpush1.msra.mxu0 0.0
            %4461 = vmatprep.subr.mxu0 0.0
            %4462 = vmatpush1.msra.mxu0 0.0
            %4463 = vmatprep.subr.mxu0 0.0
            %4464 = vmatpush1.msra.mxu0 0.0
            %4465 = vmatprep.subr.mxu0 0.0
            %4466 = vmatpush1.msra.mxu0 0.0
            %4467 = vmatprep.subr.mxu0 %v3933
            %4468 = vmatpush1.msra.mxu0 %v3932
            %4469 = vmatprep.subr.mxu0 0.0
            %4470 = vmatpush2.msra.mxu0 0.0
            %4471 = vmatprep.subr.mxu0 0.0
            %4472 = vmatpush2.msra.mxu0 0.0
            %4473 = vmatprep.subr.mxu0 0.0
            %4474 = vmatpush2.msra.mxu0 0.0
            %4475 = vmatprep.subr.mxu0 0.0
            %4476 = vmatpush2.msra.mxu0 0.0
            %4477 = vmatprep.subr.mxu0 0.0
            %4478 = vmatpush2.msra.mxu0 0.0
            %4479 = vmatprep.subr.mxu0 0.0
            %4480 = vmatpush2.msra.mxu0 0.0
            %4481 = vmatprep.subr.mxu0 0.0
            %4482 = vmatpush2.msra.mxu0 0.0
            %4483 = vmatprep.subr.mxu0 0.0
            %4484 = vmatpush2.msra.mxu0 0.0
            %4485 = vmatprep.subr.mxu0 0.0
            %4486 = vmatpush2.msra.mxu0 0.0
            %4487 = vmatprep.subr.mxu0 0.0
            %4488 = vmatpush2.msra.mxu0 0.0
            %4489 = vmatprep.subr.mxu0 0.0
            %4490 = vmatpush2.msra.mxu0 0.0
            %4491 = vmatprep.subr.mxu0 0.0
            %4492 = vmatpush2.msra.mxu0 0.0
            %4493 = vmatprep.subr.mxu0 0.0
            %4494 = vmatpush2.msra.mxu0 0.0
            %4495 = vmatprep.subr.mxu0 0.0
            %4496 = vmatpush2.msra.mxu0 0.0
            %4497 = vmatprep.subr.mxu0 0.0
            %4498 = vmatpush2.msra.mxu0 0.0
            %4499 = vmatprep.subr.mxu0 0.0
            %4500 = vmatpush2.msra.mxu0 0.0
            %4501 = vmatprep.mubr.f32.mxu0 0.0
            %4502 = vmatmul.mubr.f32.gmra.mxu0 %v4435
            %v4503 = vpop.f32.mrf.mxu0
            %v4504 = vadd.f32 0.0, %v4503
            %v4505 = vpop.f32.mrf.mxu0
            %v4506 = vadd.f32 0.0, %v4505
            %4507 = vdwg.mxu0
            %4508 = vmatprep.subr.mxu0 0.0
            %4509 = vmatpush1.msra.mxu0 0.0
            %4510 = vmatprep.subr.mxu0 0.0
            %4511 = vmatpush1.msra.mxu0 0.0
            %4512 = vmatprep.subr.mxu0 0.0
            %4513 = vmatpush1.msra.mxu0 0.0
            %4514 = vmatprep.subr.mxu0 0.0
            %4515 = vmatpush1.msra.mxu0 0.0
            %4516 = vmatprep.subr.mxu0 0.0
            %4517 = vmatpush1.msra.mxu0 0.0
            %4518 = vmatprep.subr.mxu0 0.0
            %4519 = vmatpush1.msra.mxu0 0.0
            %4520 = vmatprep.subr.mxu0 0.0
            %4521 = vmatpush1.msra.mxu0 0.0
            %4522 = vmatprep.subr.mxu0 0.0
            %4523 = vmatpush1.msra.mxu0 0.0
            %4524 = vmatprep.subr.mxu0 0.0
            %4525 = vmatpush1.msra.mxu0 0.0
            %4526 = vmatprep.subr.mxu0 0.0
            %4527 = vmatpush1.msra.mxu0 0.0
            %4528 = vmatprep.subr.mxu0 0.0
            %4529 = vmatpush1.msra.mxu0 0.0
            %4530 = vmatprep.subr.mxu0 0.0
            %4531 = vmatpush1.msra.mxu0 0.0
            %4532 = vmatprep.subr.mxu0 0.0
            %4533 = vmatpush1.msra.mxu0 0.0
            %4534 = vmatprep.subr.mxu0 0.0
            %4535 = vmatpush1.msra.mxu0 0.0
            %4536 = vmatprep.subr.mxu0 0.0
            %4537 = vmatpush1.msra.mxu0 0.0
            %4538 = vmatprep.subr.mxu0 %v3935
            %4539 = vmatpush1.msra.mxu0 %v3934
            %4540 = vmatprep.subr.mxu0 0.0
            %4541 = vmatpush2.msra.mxu0 0.0
            %4542 = vmatprep.subr.mxu0 0.0
            %4543 = vmatpush2.msra.mxu0 0.0
            %4544 = vmatprep.subr.mxu0 0.0
            %4545 = vmatpush2.msra.mxu0 0.0
            %4546 = vmatprep.subr.mxu0 0.0
            %4547 = vmatpush2.msra.mxu0 0.0
            %4548 = vmatprep.subr.mxu0 0.0
            %4549 = vmatpush2.msra.mxu0 0.0
            %4550 = vmatprep.subr.mxu0 0.0
            %4551 = vmatpush2.msra.mxu0 0.0
            %4552 = vmatprep.subr.mxu0 0.0
            %4553 = vmatpush2.msra.mxu0 0.0
            %4554 = vmatprep.subr.mxu0 0.0
            %4555 = vmatpush2.msra.mxu0 0.0
            %4556 = vmatprep.subr.mxu0 0.0
            %4557 = vmatpush2.msra.mxu0 0.0
            %4558 = vmatprep.subr.mxu0 0.0
            %4559 = vmatpush2.msra.mxu0 0.0
            %4560 = vmatprep.subr.mxu0 0.0
            %4561 = vmatpush2.msra.mxu0 0.0
            %4562 = vmatprep.subr.mxu0 0.0
            %4563 = vmatpush2.msra.mxu0 0.0
            %4564 = vmatprep.subr.mxu0 0.0
            %4565 = vmatpush2.msra.mxu0 0.0
            %4566 = vmatprep.subr.mxu0 0.0
            %4567 = vmatpush2.msra.mxu0 0.0
            %4568 = vmatprep.subr.mxu0 0.0
            %4569 = vmatpush2.msra.mxu0 0.0
            %4570 = vmatprep.subr.mxu0 0.0
            %4571 = vmatpush2.msra.mxu0 0.0
            %4572 = vmatprep.mubr.f32.mxu0 0.0
            %4573 = vmatmul.mubr.f32.gmra.mxu0 %v4435
            %v4574 = vpop.f32.mrf.mxu0
            %v4575 = vadd.f32 0.0, %v4574
            %v4576 = vpop.f32.mrf.mxu0
            %v4577 = vadd.f32 0.0, %v4576
            %4578 = vdwg.mxu0
            %v4579 = vsel %vm4002, %v3983, 0
            %4581 = vmatprep.subr.mxu0 0.0
            %4582 = vmatpush1.msra.mxu0 0.0
            %4583 = vmatprep.subr.mxu0 0.0
            %4584 = vmatpush1.msra.mxu0 0.0
            %4585 = vmatprep.subr.mxu0 0.0
            %4586 = vmatpush1.msra.mxu0 0.0
            %4587 = vmatprep.subr.mxu0 0.0
            %4588 = vmatpush1.msra.mxu0 0.0
            %4589 = vmatprep.subr.mxu0 0.0
            %4590 = vmatpush1.msra.mxu0 0.0
            %4591 = vmatprep.subr.mxu0 0.0
            %4592 = vmatpush1.msra.mxu0 0.0
            %4593 = vmatprep.subr.mxu0 0.0
            %4594 = vmatpush1.msra.mxu0 0.0
            %4595 = vmatprep.subr.mxu0 0.0
            %4596 = vmatpush1.msra.mxu0 0.0
            %4597 = vmatprep.subr.mxu0 0.0
            %4598 = vmatpush1.msra.mxu0 0.0
            %4599 = vmatprep.subr.mxu0 0.0
            %4600 = vmatpush1.msra.mxu0 0.0
            %4601 = vmatprep.subr.mxu0 0.0
            %4602 = vmatpush1.msra.mxu0 0.0
            %4603 = vmatprep.subr.mxu0 0.0
            %4604 = vmatpush1.msra.mxu0 0.0
            %4605 = vmatprep.subr.mxu0 0.0
            %4606 = vmatpush1.msra.mxu0 0.0
            %4607 = vmatprep.subr.mxu0 0.0
            %4608 = vmatpush1.msra.mxu0 0.0
            %4609 = vmatprep.subr.mxu0 0.0
            %4610 = vmatpush1.msra.mxu0 0.0
            %4611 = vmatprep.subr.mxu0 %v3937
            %4612 = vmatpush1.msra.mxu0 %v3936
            %4613 = vmatprep.subr.mxu0 0.0
            %4614 = vmatpush2.msra.mxu0 0.0
            %4615 = vmatprep.subr.mxu0 0.0
            %4616 = vmatpush2.msra.mxu0 0.0
            %4617 = vmatprep.subr.mxu0 0.0
            %4618 = vmatpush2.msra.mxu0 0.0
            %4619 = vmatprep.subr.mxu0 0.0
            %4620 = vmatpush2.msra.mxu0 0.0
            %4621 = vmatprep.subr.mxu0 0.0
            %4622 = vmatpush2.msra.mxu0 0.0
            %4623 = vmatprep.subr.mxu0 0.0
            %4624 = vmatpush2.msra.mxu0 0.0
            %4625 = vmatprep.subr.mxu0 0.0
            %4626 = vmatpush2.msra.mxu0 0.0
            %4627 = vmatprep.subr.mxu0 0.0
            %4628 = vmatpush2.msra.mxu0 0.0
            %4629 = vmatprep.subr.mxu0 0.0
            %4630 = vmatpush2.msra.mxu0 0.0
            %4631 = vmatprep.subr.mxu0 0.0
            %4632 = vmatpush2.msra.mxu0 0.0
            %4633 = vmatprep.subr.mxu0 0.0
            %4634 = vmatpush2.msra.mxu0 0.0
            %4635 = vmatprep.subr.mxu0 0.0
            %4636 = vmatpush2.msra.mxu0 0.0
            %4637 = vmatprep.subr.mxu0 0.0
            %4638 = vmatpush2.msra.mxu0 0.0
            %4639 = vmatprep.subr.mxu0 0.0
            %4640 = vmatpush2.msra.mxu0 0.0
            %4641 = vmatprep.subr.mxu0 0.0
            %4642 = vmatpush2.msra.mxu0 0.0
            %4643 = vmatprep.subr.mxu0 0.0
            %4644 = vmatpush2.msra.mxu0 0.0
            %4645 = vmatprep.mubr.f32.mxu0 0.0
            %4646 = vmatmul.mubr.f32.gmra.mxu0 %v4579
            %v4647 = vpop.f32.mrf.mxu0
            %v4648 = vadd.f32 0.0, %v4647
            %v4649 = vpop.f32.mrf.mxu0
            %v4650 = vadd.f32 0.0, %v4649
            %4651 = vdwg.mxu0
            %4652 = vmatprep.subr.mxu0 0.0
            %4653 = vmatpush1.msra.mxu0 0.0
            %4654 = vmatprep.subr.mxu0 0.0
            %4655 = vmatpush1.msra.mxu0 0.0
            %4656 = vmatprep.subr.mxu0 0.0
            %4657 = vmatpush1.msra.mxu0 0.0
            %4658 = vmatprep.subr.mxu0 0.0
            %4659 = vmatpush1.msra.mxu0 0.0
            %4660 = vmatprep.subr.mxu0 0.0
            %4661 = vmatpush1.msra.mxu0 0.0
            %4662 = vmatprep.subr.mxu0 0.0
            %4663 = vmatpush1.msra.mxu0 0.0
            %4664 = vmatprep.subr.mxu0 0.0
            %4665 = vmatpush1.msra.mxu0 0.0
            %4666 = vmatprep.subr.mxu0 0.0
            %4667 = vmatpush1.msra.mxu0 0.0
            %4668 = vmatprep.subr.mxu0 0.0
            %4669 = vmatpush1.msra.mxu0 0.0
            %4670 = vmatprep.subr.mxu0 0.0
            %4671 = vmatpush1.msra.mxu0 0.0
            %4672 = vmatprep.subr.mxu0 0.0
            %4673 = vmatpush1.msra.mxu0 0.0
            %4674 = vmatprep.subr.mxu0 0.0
            %4675 = vmatpush1.msra.mxu0 0.0
            %4676 = vmatprep.subr.mxu0 0.0
            %4677 = vmatpush1.msra.mxu0 0.0
            %4678 = vmatprep.subr.mxu0 0.0
            %4679 = vmatpush1.msra.mxu0 0.0
            %4680 = vmatprep.subr.mxu0 0.0
            %4681 = vmatpush1.msra.mxu0 0.0
            %4682 = vmatprep.subr.mxu0 %v3939
            %4683 = vmatpush1.msra.mxu0 %v3938
            %4684 = vmatprep.subr.mxu0 0.0
            %4685 = vmatpush2.msra.mxu0 0.0
            %4686 = vmatprep.subr.mxu0 0.0
            %4687 = vmatpush2.msra.mxu0 0.0
            %4688 = vmatprep.subr.mxu0 0.0
            %4689 = vmatpush2.msra.mxu0 0.0
            %4690 = vmatprep.subr.mxu0 0.0
            %4691 = vmatpush2.msra.mxu0 0.0
            %4692 = vmatprep.subr.mxu0 0.0
            %4693 = vmatpush2.msra.mxu0 0.0
            %4694 = vmatprep.subr.mxu0 0.0
            %4695 = vmatpush2.msra.mxu0 0.0
            %4696 = vmatprep.subr.mxu0 0.0
            %4697 = vmatpush2.msra.mxu0 0.0
            %4698 = vmatprep.subr.mxu0 0.0
            %4699 = vmatpush2.msra.mxu0 0.0
            %4700 = vmatprep.subr.mxu0 0.0
            %4701 = vmatpush2.msra.mxu0 0.0
            %4702 = vmatprep.subr.mxu0 0.0
            %4703 = vmatpush2.msra.mxu0 0.0
            %4704 = vmatprep.subr.mxu0 0.0
            %4705 = vmatpush2.msra.mxu0 0.0
            %4706 = vmatprep.subr.mxu0 0.0
            %4707 = vmatpush2.msra.mxu0 0.0
            %4708 = vmatprep.subr.mxu0 0.0
            %4709 = vmatpush2.msra.mxu0 0.0
            %4710 = vmatprep.subr.mxu0 0.0
            %4711 = vmatpush2.msra.mxu0 0.0
            %4712 = vmatprep.subr.mxu0 0.0
            %4713 = vmatpush2.msra.mxu0 0.0
            %4714 = vmatprep.subr.mxu0 0.0
            %4715 = vmatpush2.msra.mxu0 0.0
            %4716 = vmatprep.mubr.f32.mxu0 0.0
            %4717 = vmatmul.mubr.f32.gmra.mxu0 %v4579
            %v4718 = vpop.f32.mrf.mxu0
            %v4719 = vadd.f32 0.0, %v4718
            %v4720 = vpop.f32.mrf.mxu0
            %v4721 = vadd.f32 0.0, %v4720
            %4722 = vdwg.mxu0
            %v4723 = vsel %vm4002, %v3997, 0
            %4725 = vmatprep.subr.mxu0 0.0
            %4726 = vmatpush1.msra.mxu0 0.0
            %4727 = vmatprep.subr.mxu0 0.0
            %4728 = vmatpush1.msra.mxu0 0.0
            %4729 = vmatprep.subr.mxu0 0.0
            %4730 = vmatpush1.msra.mxu0 0.0
            %4731 = vmatprep.subr.mxu0 0.0
            %4732 = vmatpush1.msra.mxu0 0.0
            %4733 = vmatprep.subr.mxu0 0.0
            %4734 = vmatpush1.msra.mxu0 0.0
            %4735 = vmatprep.subr.mxu0 0.0
            %4736 = vmatpush1.msra.mxu0 0.0
            %4737 = vmatprep.subr.mxu0 0.0
            %4738 = vmatpush1.msra.mxu0 0.0
            %4739 = vmatprep.subr.mxu0 0.0
            %4740 = vmatpush1.msra.mxu0 0.0
            %4741 = vmatprep.subr.mxu0 0.0
            %4742 = vmatpush1.msra.mxu0 0.0
            %4743 = vmatprep.subr.mxu0 0.0
            %4744 = vmatpush1.msra.mxu0 0.0
            %4745 = vmatprep.subr.mxu0 0.0
            %4746 = vmatpush1.msra.mxu0 0.0
            %4747 = vmatprep.subr.mxu0 0.0
            %4748 = vmatpush1.msra.mxu0 0.0
            %4749 = vmatprep.subr.mxu0 0.0
            %4750 = vmatpush1.msra.mxu0 0.0
            %4751 = vmatprep.subr.mxu0 0.0
            %4752 = vmatpush1.msra.mxu0 0.0
            %4753 = vmatprep.subr.mxu0 0.0
            %4754 = vmatpush1.msra.mxu0 0.0
            %4755 = vmatprep.subr.mxu0 %v3941
            %4756 = vmatpush1.msra.mxu0 %v3940
            %4757 = vmatprep.subr.mxu0 0.0
            %4758 = vmatpush2.msra.mxu0 0.0
            %4759 = vmatprep.subr.mxu0 0.0
            %4760 = vmatpush2.msra.mxu0 0.0
            %4761 = vmatprep.subr.mxu0 0.0
            %4762 = vmatpush2.msra.mxu0 0.0
            %4763 = vmatprep.subr.mxu0 0.0
            %4764 = vmatpush2.msra.mxu0 0.0
            %4765 = vmatprep.subr.mxu0 0.0
            %4766 = vmatpush2.msra.mxu0 0.0
            %4767 = vmatprep.subr.mxu0 0.0
            %4768 = vmatpush2.msra.mxu0 0.0
            %4769 = vmatprep.subr.mxu0 0.0
            %4770 = vmatpush2.msra.mxu0 0.0
            %4771 = vmatprep.subr.mxu0 0.0
            %4772 = vmatpush2.msra.mxu0 0.0
            %4773 = vmatprep.subr.mxu0 0.0
            %4774 = vmatpush2.msra.mxu0 0.0
            %4775 = vmatprep.subr.mxu0 0.0
            %4776 = vmatpush2.msra.mxu0 0.0
            %4777 = vmatprep.subr.mxu0 0.0
            %4778 = vmatpush2.msra.mxu0 0.0
            %4779 = vmatprep.subr.mxu0 0.0
            %4780 = vmatpush2.msra.mxu0 0.0
            %4781 = vmatprep.subr.mxu0 0.0
            %4782 = vmatpush2.msra.mxu0 0.0
            %4783 = vmatprep.subr.mxu0 0.0
            %4784 = vmatpush2.msra.mxu0 0.0
            %4785 = vmatprep.subr.mxu0 0.0
            %4786 = vmatpush2.msra.mxu0 0.0
            %4787 = vmatprep.subr.mxu0 0.0
            %4788 = vmatpush2.msra.mxu0 0.0
            %4789 = vmatprep.mubr.f32.mxu0 0.0
            %4790 = vmatmul.mubr.f32.gmra.mxu0 %v4723
            %v4791 = vpop.f32.mrf.mxu0
            %v4792 = vadd.f32 0.0, %v4791
            %v4793 = vpop.f32.mrf.mxu0
            %v4794 = vadd.f32 0.0, %v4793
            %4795 = vdwg.mxu0
            %4796 = vmatprep.subr.mxu0 0.0
            %4797 = vmatpush1.msra.mxu0 0.0
            %4798 = vmatprep.subr.mxu0 0.0
            %4799 = vmatpush1.msra.mxu0 0.0
            %4800 = vmatprep.subr.mxu0 0.0
            %4801 = vmatpush1.msra.mxu0 0.0
            %4802 = vmatprep.subr.mxu0 0.0
            %4803 = vmatpush1.msra.mxu0 0.0
            %4804 = vmatprep.subr.mxu0 0.0
            %4805 = vmatpush1.msra.mxu0 0.0
            %4806 = vmatprep.subr.mxu0 0.0
            %4807 = vmatpush1.msra.mxu0 0.0
            %4808 = vmatprep.subr.mxu0 0.0
            %4809 = vmatpush1.msra.mxu0 0.0
            %4810 = vmatprep.subr.mxu0 0.0
            %4811 = vmatpush1.msra.mxu0 0.0
            %4812 = vmatprep.subr.mxu0 0.0
            %4813 = vmatpush1.msra.mxu0 0.0
            %4814 = vmatprep.subr.mxu0 0.0
            %4815 = vmatpush1.msra.mxu0 0.0
            %4816 = vmatprep.subr.mxu0 0.0
            %4817 = vmatpush1.msra.mxu0 0.0
            %4818 = vmatprep.subr.mxu0 0.0
            %4819 = vmatpush1.msra.mxu0 0.0
            %4820 = vmatprep.subr.mxu0 0.0
            %4821 = vmatpush1.msra.mxu0 0.0
            %4822 = vmatprep.subr.mxu0 0.0
            %4823 = vmatpush1.msra.mxu0 0.0
            %4824 = vmatprep.subr.mxu0 0.0
            %4825 = vmatpush1.msra.mxu0 0.0
            %4826 = vmatprep.subr.mxu0 %v3943
            %4827 = vmatpush1.msra.mxu0 %v3942
            %4828 = vmatprep.subr.mxu0 0.0
            %4829 = vmatpush2.msra.mxu0 0.0
            %4830 = vmatprep.subr.mxu0 0.0
            %4831 = vmatpush2.msra.mxu0 0.0
            %4832 = vmatprep.subr.mxu0 0.0
            %4833 = vmatpush2.msra.mxu0 0.0
            %4834 = vmatprep.subr.mxu0 0.0
            %4835 = vmatpush2.msra.mxu0 0.0
            %4836 = vmatprep.subr.mxu0 0.0
            %4837 = vmatpush2.msra.mxu0 0.0
            %4838 = vmatprep.subr.mxu0 0.0
            %4839 = vmatpush2.msra.mxu0 0.0
            %4840 = vmatprep.subr.mxu0 0.0
            %4841 = vmatpush2.msra.mxu0 0.0
            %4842 = vmatprep.subr.mxu0 0.0
            %4843 = vmatpush2.msra.mxu0 0.0
            %4844 = vmatprep.subr.mxu0 0.0
            %4845 = vmatpush2.msra.mxu0 0.0
            %4846 = vmatprep.subr.mxu0 0.0
            %4847 = vmatpush2.msra.mxu0 0.0
            %4848 = vmatprep.subr.mxu0 0.0
            %4849 = vmatpush2.msra.mxu0 0.0
            %4850 = vmatprep.subr.mxu0 0.0
            %4851 = vmatpush2.msra.mxu0 0.0
            %4852 = vmatprep.subr.mxu0 0.0
            %4853 = vmatpush2.msra.mxu0 0.0
            %4854 = vmatprep.subr.mxu0 0.0
            %4855 = vmatpush2.msra.mxu0 0.0
            %4856 = vmatprep.subr.mxu0 0.0
            %4857 = vmatpush2.msra.mxu0 0.0
            %4858 = vmatprep.subr.mxu0 0.0
            %4859 = vmatpush2.msra.mxu0 0.0
            %4860 = vmatprep.mubr.f32.mxu0 0.0
            %4861 = vmatmul.mubr.f32.gmra.mxu0 %v4723
            %v4862 = vpop.f32.mrf.mxu0
            %v4863 = vadd.f32 0.0, %v4862
            %v4864 = vpop.f32.mrf.mxu0
            %v4865 = vadd.f32 0.0, %v4864
            %4866 = vdwg.mxu0
            %v4867 = vsel %vm4002, %v3999, 0
            %4869 = vmatprep.subr.mxu0 0.0
            %4870 = vmatpush1.msra.mxu0 0.0
            %4871 = vmatprep.subr.mxu0 0.0
            %4872 = vmatpush1.msra.mxu0 0.0
            %4873 = vmatprep.subr.mxu0 0.0
            %4874 = vmatpush1.msra.mxu0 0.0
            %4875 = vmatprep.subr.mxu0 0.0
            %4876 = vmatpush1.msra.mxu0 0.0
            %4877 = vmatprep.subr.mxu0 0.0
            %4878 = vmatpush1.msra.mxu0 0.0
            %4879 = vmatprep.subr.mxu0 0.0
            %4880 = vmatpush1.msra.mxu0 0.0
            %4881 = vmatprep.subr.mxu0 0.0
            %4882 = vmatpush1.msra.mxu0 0.0
            %4883 = vmatprep.subr.mxu0 0.0
            %4884 = vmatpush1.msra.mxu0 0.0
            %4885 = vmatprep.subr.mxu0 0.0
            %4886 = vmatpush1.msra.mxu0 0.0
            %4887 = vmatprep.subr.mxu0 0.0
            %4888 = vmatpush1.msra.mxu0 0.0
            %4889 = vmatprep.subr.mxu0 0.0
            %4890 = vmatpush1.msra.mxu0 0.0
            %4891 = vmatprep.subr.mxu0 0.0
            %4892 = vmatpush1.msra.mxu0 0.0
            %4893 = vmatprep.subr.mxu0 0.0
            %4894 = vmatpush1.msra.mxu0 0.0
            %4895 = vmatprep.subr.mxu0 0.0
            %4896 = vmatpush1.msra.mxu0 0.0
            %4897 = vmatprep.subr.mxu0 0.0
            %4898 = vmatpush1.msra.mxu0 0.0
            %4899 = vmatprep.subr.mxu0 %v3945
            %4900 = vmatpush1.msra.mxu0 %v3944
            %4901 = vmatprep.subr.mxu0 0.0
            %4902 = vmatpush2.msra.mxu0 0.0
            %4903 = vmatprep.subr.mxu0 0.0
            %4904 = vmatpush2.msra.mxu0 0.0
            %4905 = vmatprep.subr.mxu0 0.0
            %4906 = vmatpush2.msra.mxu0 0.0
            %4907 = vmatprep.subr.mxu0 0.0
            %4908 = vmatpush2.msra.mxu0 0.0
            %4909 = vmatprep.subr.mxu0 0.0
            %4910 = vmatpush2.msra.mxu0 0.0
            %4911 = vmatprep.subr.mxu0 0.0
            %4912 = vmatpush2.msra.mxu0 0.0
            %4913 = vmatprep.subr.mxu0 0.0
            %4914 = vmatpush2.msra.mxu0 0.0
            %4915 = vmatprep.subr.mxu0 0.0
            %4916 = vmatpush2.msra.mxu0 0.0
            %4917 = vmatprep.subr.mxu0 0.0
            %4918 = vmatpush2.msra.mxu0 0.0
            %4919 = vmatprep.subr.mxu0 0.0
            %4920 = vmatpush2.msra.mxu0 0.0
            %4921 = vmatprep.subr.mxu0 0.0
            %4922 = vmatpush2.msra.mxu0 0.0
            %4923 = vmatprep.subr.mxu0 0.0
            %4924 = vmatpush2.msra.mxu0 0.0
            %4925 = vmatprep.subr.mxu0 0.0
            %4926 = vmatpush2.msra.mxu0 0.0
            %4927 = vmatprep.subr.mxu0 0.0
            %4928 = vmatpush2.msra.mxu0 0.0
            %4929 = vmatprep.subr.mxu0 0.0
            %4930 = vmatpush2.msra.mxu0 0.0
            %4931 = vmatprep.subr.mxu0 0.0
            %4932 = vmatpush2.msra.mxu0 0.0
            %4933 = vmatprep.mubr.f32.mxu0 0.0
            %4934 = vmatmul.mubr.f32.gmra.mxu0 %v4867
            %v4935 = vpop.f32.mrf.mxu0
            %v4936 = vadd.f32 0.0, %v4935
            %v4937 = vpop.f32.mrf.mxu0
            %v4938 = vadd.f32 0.0, %v4937
            %4939 = vdwg.mxu0
            %4940 = vmatprep.subr.mxu0 0.0
            %4941 = vmatpush1.msra.mxu0 0.0
            %4942 = vmatprep.subr.mxu0 0.0
            %4943 = vmatpush1.msra.mxu0 0.0
            %4944 = vmatprep.subr.mxu0 0.0
            %4945 = vmatpush1.msra.mxu0 0.0
            %4946 = vmatprep.subr.mxu0 0.0
            %4947 = vmatpush1.msra.mxu0 0.0
            %4948 = vmatprep.subr.mxu0 0.0
            %4949 = vmatpush1.msra.mxu0 0.0
            %4950 = vmatprep.subr.mxu0 0.0
            %4951 = vmatpush1.msra.mxu0 0.0
            %4952 = vmatprep.subr.mxu0 0.0
            %4953 = vmatpush1.msra.mxu0 0.0
            %4954 = vmatprep.subr.mxu0 0.0
            %4955 = vmatpush1.msra.mxu0 0.0
            %4956 = vmatprep.subr.mxu0 0.0
            %4957 = vmatpush1.msra.mxu0 0.0
            %4958 = vmatprep.subr.mxu0 0.0
            %4959 = vmatpush1.msra.mxu0 0.0
            %4960 = vmatprep.subr.mxu0 0.0
            %4961 = vmatpush1.msra.mxu0 0.0
            %4962 = vmatprep.subr.mxu0 0.0
            %4963 = vmatpush1.msra.mxu0 0.0
            %4964 = vmatprep.subr.mxu0 0.0
            %4965 = vmatpush1.msra.mxu0 0.0
            %4966 = vmatprep.subr.mxu0 0.0
            %4967 = vmatpush1.msra.mxu0 0.0
            %4968 = vmatprep.subr.mxu0 0.0
            %4969 = vmatpush1.msra.mxu0 0.0
            %4970 = vmatprep.subr.mxu0 %v3947
            %4971 = vmatpush1.msra.mxu0 %v3946
            %4972 = vmatprep.subr.mxu0 0.0
            %4973 = vmatpush2.msra.mxu0 0.0
            %4974 = vmatprep.subr.mxu0 0.0
            %4975 = vmatpush2.msra.mxu0 0.0
            %4976 = vmatprep.subr.mxu0 0.0
            %4977 = vmatpush2.msra.mxu0 0.0
            %4978 = vmatprep.subr.mxu0 0.0
            %4979 = vmatpush2.msra.mxu0 0.0
            %4980 = vmatprep.subr.mxu0 0.0
            %4981 = vmatpush2.msra.mxu0 0.0
            %4982 = vmatprep.subr.mxu0 0.0
            %4983 = vmatpush2.msra.mxu0 0.0
            %4984 = vmatprep.subr.mxu0 0.0
            %4985 = vmatpush2.msra.mxu0 0.0
            %4986 = vmatprep.subr.mxu0 0.0
            %4987 = vmatpush2.msra.mxu0 0.0
            %4988 = vmatprep.subr.mxu0 0.0
            %4989 = vmatpush2.msra.mxu0 0.0
            %4990 = vmatprep.subr.mxu0 0.0
            %4991 = vmatpush2.msra.mxu0 0.0
            %4992 = vmatprep.subr.mxu0 0.0
            %4993 = vmatpush2.msra.mxu0 0.0
            %4994 = vmatprep.subr.mxu0 0.0
            %4995 = vmatpush2.msra.mxu0 0.0
            %4996 = vmatprep.subr.mxu0 0.0
            %4997 = vmatpush2.msra.mxu0 0.0
            %4998 = vmatprep.subr.mxu0 0.0
            %4999 = vmatpush2.msra.mxu0 0.0
            %5000 = vmatprep.subr.mxu0 0.0
            %5001 = vmatpush2.msra.mxu0 0.0
            %5002 = vmatprep.subr.mxu0 0.0
            %5003 = vmatpush2.msra.mxu0 0.0
            %5004 = vmatprep.mubr.f32.mxu0 0.0
            %5005 = vmatmul.mubr.f32.gmra.mxu0 %v4867
            %v5006 = vpop.f32.mrf.mxu0
            %v5007 = vadd.f32 0.0, %v5006
            %v5008 = vpop.f32.mrf.mxu0
            %v5009 = vadd.f32 0.0, %v5008
            %5010 = vdwg.mxu0
            %v5011 = vsel %vm4002, %v4001, 0
            %5013 = vmatprep.subr.mxu0 0.0
            %5014 = vmatpush1.msra.mxu0 0.0
            %5015 = vmatprep.subr.mxu0 0.0
            %5016 = vmatpush1.msra.mxu0 0.0
            %5017 = vmatprep.subr.mxu0 0.0
            %5018 = vmatpush1.msra.mxu0 0.0
            %5019 = vmatprep.subr.mxu0 0.0
            %5020 = vmatpush1.msra.mxu0 0.0
            %5021 = vmatprep.subr.mxu0 0.0
            %5022 = vmatpush1.msra.mxu0 0.0
            %5023 = vmatprep.subr.mxu0 0.0
            %5024 = vmatpush1.msra.mxu0 0.0
            %5025 = vmatprep.subr.mxu0 0.0
            %5026 = vmatpush1.msra.mxu0 0.0
            %5027 = vmatprep.subr.mxu0 0.0
            %5028 = vmatpush1.msra.mxu0 0.0
            %5029 = vmatprep.subr.mxu0 0.0
            %5030 = vmatpush1.msra.mxu0 0.0
            %5031 = vmatprep.subr.mxu0 0.0
            %5032 = vmatpush1.msra.mxu0 0.0
            %5033 = vmatprep.subr.mxu0 0.0
            %5034 = vmatpush1.msra.mxu0 0.0
            %5035 = vmatprep.subr.mxu0 0.0
            %5036 = vmatpush1.msra.mxu0 0.0
            %5037 = vmatprep.subr.mxu0 0.0
            %5038 = vmatpush1.msra.mxu0 0.0
            %5039 = vmatprep.subr.mxu0 0.0
            %5040 = vmatpush1.msra.mxu0 0.0
            %5041 = vmatprep.subr.mxu0 0.0
            %5042 = vmatpush1.msra.mxu0 0.0
            %5043 = vmatprep.subr.mxu0 %v3949
            %5044 = vmatpush1.msra.mxu0 %v3948
            %5045 = vmatprep.subr.mxu0 0.0
            %5046 = vmatpush2.msra.mxu0 0.0
            %5047 = vmatprep.subr.mxu0 0.0
            %5048 = vmatpush2.msra.mxu0 0.0
            %5049 = vmatprep.subr.mxu0 0.0
            %5050 = vmatpush2.msra.mxu0 0.0
            %5051 = vmatprep.subr.mxu0 0.0
            %5052 = vmatpush2.msra.mxu0 0.0
            %5053 = vmatprep.subr.mxu0 0.0
            %5054 = vmatpush2.msra.mxu0 0.0
            %5055 = vmatprep.subr.mxu0 0.0
            %5056 = vmatpush2.msra.mxu0 0.0
            %5057 = vmatprep.subr.mxu0 0.0
            %5058 = vmatpush2.msra.mxu0 0.0
            %5059 = vmatprep.subr.mxu0 0.0
            %5060 = vmatpush2.msra.mxu0 0.0
            %5061 = vmatprep.subr.mxu0 0.0
            %5062 = vmatpush2.msra.mxu0 0.0
            %5063 = vmatprep.subr.mxu0 0.0
            %5064 = vmatpush2.msra.mxu0 0.0
            %5065 = vmatprep.subr.mxu0 0.0
            %5066 = vmatpush2.msra.mxu0 0.0
            %5067 = vmatprep.subr.mxu0 0.0
            %5068 = vmatpush2.msra.mxu0 0.0
            %5069 = vmatprep.subr.mxu0 0.0
            %5070 = vmatpush2.msra.mxu0 0.0
            %5071 = vmatprep.subr.mxu0 0.0
            %5072 = vmatpush2.msra.mxu0 0.0
            %5073 = vmatprep.subr.mxu0 0.0
            %5074 = vmatpush2.msra.mxu0 0.0
            %5075 = vmatprep.subr.mxu0 0.0
            %5076 = vmatpush2.msra.mxu0 0.0
            %5077 = vmatprep.mubr.f32.mxu0 0.0
            %5078 = vmatmul.mubr.f32.gmra.mxu0 %v5011
            %v5079 = vpop.f32.mrf.mxu0
            %v5080 = vadd.f32 0.0, %v5079
            %v5081 = vpop.f32.mrf.mxu0
            %v5082 = vadd.f32 0.0, %v5081
            %5083 = vdwg.mxu0
            %5084 = vmatprep.subr.mxu0 0.0
            %5085 = vmatpush1.msra.mxu0 0.0
            %5086 = vmatprep.subr.mxu0 0.0
            %5087 = vmatpush1.msra.mxu0 0.0
            %5088 = vmatprep.subr.mxu0 0.0
            %5089 = vmatpush1.msra.mxu0 0.0
            %5090 = vmatprep.subr.mxu0 0.0
            %5091 = vmatpush1.msra.mxu0 0.0
            %5092 = vmatprep.subr.mxu0 0.0
            %5093 = vmatpush1.msra.mxu0 0.0
            %5094 = vmatprep.subr.mxu0 0.0
            %5095 = vmatpush1.msra.mxu0 0.0
            %5096 = vmatprep.subr.mxu0 0.0
            %5097 = vmatpush1.msra.mxu0 0.0
            %5098 = vmatprep.subr.mxu0 0.0
            %5099 = vmatpush1.msra.mxu0 0.0
            %5100 = vmatprep.subr.mxu0 0.0
            %5101 = vmatpush1.msra.mxu0 0.0
            %5102 = vmatprep.subr.mxu0 0.0
            %5103 = vmatpush1.msra.mxu0 0.0
            %5104 = vmatprep.subr.mxu0 0.0
            %5105 = vmatpush1.msra.mxu0 0.0
            %5106 = vmatprep.subr.mxu0 0.0
            %5107 = vmatpush1.msra.mxu0 0.0
            %5108 = vmatprep.subr.mxu0 0.0
            %5109 = vmatpush1.msra.mxu0 0.0
            %5110 = vmatprep.subr.mxu0 0.0
            %5111 = vmatpush1.msra.mxu0 0.0
            %5112 = vmatprep.subr.mxu0 0.0
            %5113 = vmatpush1.msra.mxu0 0.0
            %5114 = vmatprep.subr.mxu0 %v3951
            %5115 = vmatpush1.msra.mxu0 %v3950
            %5116 = vmatprep.subr.mxu0 0.0
            %5117 = vmatpush2.msra.mxu0 0.0
            %5118 = vmatprep.subr.mxu0 0.0
            %5119 = vmatpush2.msra.mxu0 0.0
            %5120 = vmatprep.subr.mxu0 0.0
            %5121 = vmatpush2.msra.mxu0 0.0
            %5122 = vmatprep.subr.mxu0 0.0
            %5123 = vmatpush2.msra.mxu0 0.0
            %5124 = vmatprep.subr.mxu0 0.0
            %5125 = vmatpush2.msra.mxu0 0.0
            %5126 = vmatprep.subr.mxu0 0.0
            %5127 = vmatpush2.msra.mxu0 0.0
            %5128 = vmatprep.subr.mxu0 0.0
            %5129 = vmatpush2.msra.mxu0 0.0
            %5130 = vmatprep.subr.mxu0 0.0
            %5131 = vmatpush2.msra.mxu0 0.0
            %5132 = vmatprep.subr.mxu0 0.0
            %5133 = vmatpush2.msra.mxu0 0.0
            %5134 = vmatprep.subr.mxu0 0.0
            %5135 = vmatpush2.msra.mxu0 0.0
            %5136 = vmatprep.subr.mxu0 0.0
            %5137 = vmatpush2.msra.mxu0 0.0
            %5138 = vmatprep.subr.mxu0 0.0
            %5139 = vmatpush2.msra.mxu0 0.0
            %5140 = vmatprep.subr.mxu0 0.0
            %5141 = vmatpush2.msra.mxu0 0.0
            %5142 = vmatprep.subr.mxu0 0.0
            %5143 = vmatpush2.msra.mxu0 0.0
            %5144 = vmatprep.subr.mxu0 0.0
            %5145 = vmatpush2.msra.mxu0 0.0
            %5146 = vmatprep.subr.mxu0 0.0
            %5147 = vmatpush2.msra.mxu0 0.0
            %5148 = vmatprep.mubr.f32.mxu0 0.0
            %5149 = vmatmul.mubr.f32.gmra.mxu0 %v5011
            %v5150 = vpop.f32.mrf.mxu0
            %v5151 = vadd.f32 0.0, %v5150
            %v5152 = vpop.f32.mrf.mxu0
            %v5153 = vadd.f32 0.0, %v5152
            %5154 = vdwg.mxu0
            %v5187 = vrot.slane %v4216, 7
            %vm5188 = vcmask 1041409
            %v5189 = vsel %vm5188, %v5187, %v4072
            %v5190 = vrot.slane %v4360, 6
            %vm5191 = vcmask 1042434
            %v5192 = vsel %vm5191, %v5190, %v5189
            %v5193 = vrot.slane %v4504, 5
            %vm5194 = vcmask 1043459
            %v5195 = vsel %vm5194, %v5193, %v5192
            %v5196 = vrot.slane %v4648, 4
            %vm5197 = vcmask 1044484
            %v5198 = vsel %vm5197, %v5196, %v5195
            %v5199 = vrot.slane %v4792, 3
            %vm5200 = vcmask 1045509
            %v5201 = vsel %vm5200, %v5199, %v5198
            %v5202 = vrot.slane %v4936, 2
            %vm5203 = vcmask 1046534
            %v5204 = vsel %vm5203, %v5202, %v5201
            %v5205 = vrot.slane %v5080, 1
            %vm5206 = vcmask 1047559
            %v5207 = vsel %vm5206, %v5205, %v5204
            %v5208 = vrot.slane %v4218, 7
            %v5209 = vsel %vm5188, %v5208, %v4074
            %v5210 = vrot.slane %v4362, 6
            %v5211 = vsel %vm5191, %v5210, %v5209
            %v5212 = vrot.slane %v4506, 5
            %v5213 = vsel %vm5194, %v5212, %v5211
            %v5214 = vrot.slane %v4650, 4
            %v5215 = vsel %vm5197, %v5214, %v5213
            %v5216 = vrot.slane %v4794, 3
            %v5217 = vsel %vm5200, %v5216, %v5215
            %v5218 = vrot.slane %v4938, 2
            %v5219 = vsel %vm5203, %v5218, %v5217
            %v5220 = vrot.slane %v5082, 1
            %v5221 = vsel %vm5206, %v5220, %v5219
            %v5222 = vrot.slane %v4287, 7
            %v5223 = vsel %vm5188, %v5222, %v4143
            %v5224 = vrot.slane %v4431, 6
            %v5225 = vsel %vm5191, %v5224, %v5223
            %v5226 = vrot.slane %v4575, 5
            %v5227 = vsel %vm5194, %v5226, %v5225
            %v5228 = vrot.slane %v4719, 4
            %v5229 = vsel %vm5197, %v5228, %v5227
            %v5230 = vrot.slane %v4863, 3
            %v5231 = vsel %vm5200, %v5230, %v5229
            %v5232 = vrot.slane %v5007, 2
            %v5233 = vsel %vm5203, %v5232, %v5231
            %v5234 = vrot.slane %v5151, 1
            %v5235 = vsel %vm5206, %v5234, %v5233
            %v5236 = vrot.slane %v4289, 7
            %v5237 = vsel %vm5188, %v5236, %v4145
            %v5238 = vrot.slane %v4433, 6
            %v5239 = vsel %vm5191, %v5238, %v5237
            %v5240 = vrot.slane %v4577, 5
            %v5241 = vsel %vm5194, %v5240, %v5239
            %v5242 = vrot.slane %v4721, 4
            %v5243 = vsel %vm5197, %v5242, %v5241
            %v5244 = vrot.slane %v4865, 3
            %v5245 = vsel %vm5200, %v5244, %v5243
            %v5246 = vrot.slane %v5009, 2
            %v5247 = vsel %vm5203, %v5246, %v5245
            %v5248 = vrot.slane %v5153, 1
            %v5249 = vsel %vm5206, %v5248, %v5247
            %5254 = vst [vmem:[%s1051] sm:$0xff] %v5207
            %5255 = vst [vmem:[%s1051 + $0x8] sm:$0xff] %v5221
            %5256 = vst [vmem:[%s1051 + $0x10] sm:$0xff] %v5235
            %5257 = vst [vmem:[%s1051 + $0x18] sm:$0xff] %v5249
            %5259 = vset.pattern.permute.xlu0 0
            %5260 = vperm.xlu0 %5259, %v3781
            %v5261 = vpop.permute.xlu0 %5260
            %v5263 = vmul.f32 %v3777, %v5261
            %v5264 = vmul.f32 %v3778, %v5261
            %v5265 = vmul.f32 %v3779, %v5261
            %v5266 = vmul.f32 %v3780, %v5261
            %v5267 = vsub.f32 1.0, %v3781
            %5269 = vset.pattern.permute.xlu0 0
            %5270 = vperm.xlu0 %5269, %v5267
            %v5271 = vpop.permute.xlu0 %5270
            %v5272 = vrot.slane %v5271, 1
            %v5273 = vrot.slane %v5271, 2
            %v5274 = vrot.slane %v5271, 3
            %v5275 = vrot.slane %v5271, 4
            %v5276 = vrot.slane %v5271, 5
            %v5277 = vrot.slane %v5271, 6
            %v5278 = vrot.slane %v5271, 7
            %v5287 = vmul.f32 %v4072, %v5271
            %v5288 = vmul.f32 %v4074, %v5271
            %v5289 = vmul.f32 %v4143, %v5271
            %v5290 = vmul.f32 %v4145, %v5271
            %v5291 = vmul.f32 %v4216, %v5272
            %v5292 = vmul.f32 %v4218, %v5272
            %v5293 = vmul.f32 %v4287, %v5272
            %v5294 = vmul.f32 %v4289, %v5272
            %v5295 = vmul.f32 %v4360, %v5273
            %v5296 = vmul.f32 %v4362, %v5273
            %v5297 = vmul.f32 %v4431, %v5273
            %v5298 = vmul.f32 %v4433, %v5273
            %v5299 = vmul.f32 %v4504, %v5274
            %v5300 = vmul.f32 %v4506, %v5274
            %v5301 = vmul.f32 %v4575, %v5274
            %v5302 = vmul.f32 %v4577, %v5274
            %v5303 = vmul.f32 %v4648, %v5275
            %v5304 = vmul.f32 %v4650, %v5275
            %v5305 = vmul.f32 %v4719, %v5275
            %v5306 = vmul.f32 %v4721, %v5275
            %v5307 = vmul.f32 %v4792, %v5276
            %v5308 = vmul.f32 %v4794, %v5276
            %v5309 = vmul.f32 %v4863, %v5276
            %v5310 = vmul.f32 %v4865, %v5276
            %v5311 = vmul.f32 %v4936, %v5277
            %v5312 = vmul.f32 %v4938, %v5277
            %v5313 = vmul.f32 %v5007, %v5277
            %v5314 = vmul.f32 %v5009, %v5277
            %v5315 = vmul.f32 %v5080, %v5278
            %v5316 = vmul.f32 %v5082, %v5278
            %v5317 = vmul.f32 %v5151, %v5278
            %v5318 = vmul.f32 %v5153, %v5278
            %v5351 = vrot.slane %v5291, 7
            %v5352 = vsel %vm5188, %v5351, %v5287
            %v5353 = vrot.slane %v5295, 6
            %v5354 = vsel %vm5191, %v5353, %v5352
            %v5355 = vrot.slane %v5299, 5
            %v5356 = vsel %vm5194, %v5355, %v5354
            %v5357 = vrot.slane %v5303, 4
            %v5358 = vsel %vm5197, %v5357, %v5356
            %v5359 = vrot.slane %v5307, 3
            %v5360 = vsel %vm5200, %v5359, %v5358
            %v5361 = vrot.slane %v5311, 2
            %v5362 = vsel %vm5203, %v5361, %v5360
            %v5363 = vrot.slane %v5315, 1
            %v5364 = vsel %vm5206, %v5363, %v5362
            %v5365 = vrot.slane %v5292, 7
            %v5366 = vsel %vm5188, %v5365, %v5288
            %v5367 = vrot.slane %v5296, 6
            %v5368 = vsel %vm5191, %v5367, %v5366
            %v5369 = vrot.slane %v5300, 5
            %v5370 = vsel %vm5194, %v5369, %v5368
            %v5371 = vrot.slane %v5304, 4
            %v5372 = vsel %vm5197, %v5371, %v5370
            %v5373 = vrot.slane %v5308, 3
            %v5374 = vsel %vm5200, %v5373, %v5372
            %v5375 = vrot.slane %v5312, 2
            %v5376 = vsel %vm5203, %v5375, %v5374
            %v5377 = vrot.slane %v5316, 1
            %v5378 = vsel %vm5206, %v5377, %v5376
            %v5379 = vrot.slane %v5293, 7
            %v5380 = vsel %vm5188, %v5379, %v5289
            %v5381 = vrot.slane %v5297, 6
            %v5382 = vsel %vm5191, %v5381, %v5380
            %v5383 = vrot.slane %v5301, 5
            %v5384 = vsel %vm5194, %v5383, %v5382
            %v5385 = vrot.slane %v5305, 4
            %v5386 = vsel %vm5197, %v5385, %v5384
            %v5387 = vrot.slane %v5309, 3
            %v5388 = vsel %vm5200, %v5387, %v5386
            %v5389 = vrot.slane %v5313, 2
            %v5390 = vsel %vm5203, %v5389, %v5388
            %v5391 = vrot.slane %v5317, 1
            %v5392 = vsel %vm5206, %v5391, %v5390
            %v5393 = vrot.slane %v5294, 7
            %v5394 = vsel %vm5188, %v5393, %v5290
            %v5395 = vrot.slane %v5298, 6
            %v5396 = vsel %vm5191, %v5395, %v5394
            %v5397 = vrot.slane %v5302, 5
            %v5398 = vsel %vm5194, %v5397, %v5396
            %v5399 = vrot.slane %v5306, 4
            %v5400 = vsel %vm5197, %v5399, %v5398
            %v5401 = vrot.slane %v5310, 3
            %v5402 = vsel %vm5200, %v5401, %v5400
            %v5403 = vrot.slane %v5314, 2
            %v5404 = vsel %vm5203, %v5403, %v5402
            %v5405 = vrot.slane %v5318, 1
            %v5406 = vsel %vm5206, %v5405, %v5404
            %v5411 = vadd.f32 %v5263, %v5364
            %v5412 = vadd.f32 %v5264, %v5378
            %v5413 = vadd.f32 %v5265, %v5392
            %v5414 = vadd.f32 %v5266, %v5406
            %5415 = vst [vmem:[%s1040] sm:$0xff] %v5411
            %5416 = vst [vmem:[%s1040 + $0x8] sm:$0xff] %v5412
            %5417 = vst [vmem:[%s1040 + $0x10] sm:$0xff] %v5413
            %5418 = vst [vmem:[%s1040 + $0x18] sm:$0xff] %v5414
          $region399: #{tpu_custom_call.1} parent=394 // pred_fallthru
            _
          %s5419 = sld [smem:[#allocation11 + %s108]]
          %p5420 = scmp.eq.s32.totalorder %s5419, 0
          // Predicated region
          $region400: #{tpu_custom_call.1} parent=394 // pred_check
            %p5421 = pneg %p5420
          $region401: #{tpu_custom_call.1} parent=394 // pred_check_branch
            %5423 = sbr.rel (%p5421) target = $region403
          $region402: #{tpu_custom_call.1} parent=394 // pred_region
            %5424 = vst [vmem:[%s1051] sm:$0xff] 0.0
            %5425 = vst [vmem:[%s1051 + $0x8] sm:$0xff] 0.0
            %5426 = vst [vmem:[%s1051 + $0x10] sm:$0xff] 0.0
            %5427 = vst [vmem:[%s1051 + $0x18] sm:$0xff] 0.0
            %5429 = vset.pattern.permute.xlu0 0
            %5430 = vperm.xlu0 %5429, %v3781
            %v5431 = vpop.permute.xlu0 %5430
            %v5433 = vmul.f32 %v3777, %v5431
            %v5434 = vmul.f32 %v3778, %v5431
            %v5435 = vmul.f32 %v3779, %v5431
            %v5436 = vmul.f32 %v3780, %v5431
            %5437 = vst [vmem:[%s1040] sm:$0xff] %v5433
            %5438 = vst [vmem:[%s1040 + $0x8] sm:$0xff] %v5434
            %5439 = vst [vmem:[%s1040 + $0x10] sm:$0xff] %v5435
            %5440 = vst [vmem:[%s1040 + $0x18] sm:$0xff] %v5436
          $region403: #{tpu_custom_call.1} parent=394 // pred_fallthru
            _
        $region395: #{tpu_custom_call.1} parent=138 // pred_fallthru
          _
        %s5441 = sand.u32 %s672, 1
        %s5442 = scalar_lea.sflag [#allocation17], %s5441
        %s5443 = sand.u32 %s672, 1
        %s5444 = smul.addr %s5443, 32
        %s5445 = scalar_lea.vmem [#allocation16], %s5444
        %s5446 = sand.u32 %s103, 1
        %s5447 = scalar_lea.sflag [#allocation22], %s5446
        %s5448 = sand.u32 %s742, 1
        %s5449 = smul.addr %s5448, 32
        %s5450 = scalar_lea.vmem [#allocation21], %s5449
        // Predicated region
        $region404: #{tpu_custom_call.1} parent=138 // pred_check
          %p5451 = pneg %p682
        $region405: #{tpu_custom_call.1} parent=138 // pred_check_branch
          %5453 = sbr.rel (%p5451) target = $region407
        $region406: #{tpu_custom_call.1} parent=138 // pred_region
          %s5454 = smul.u32 %s108, %s107
          %s5455 = smul.u32 4, %s5454
          %s5457 = ssub.s32 512, 512
          %5458 = vsyncadd %s5442, %s5457
          %s5459 = smul.addr %s5455, 128
          %s5460 = scalar_lea.hbm %s57, %s5459
          %s5462 = sshll.u32 %s5445, 4
          %s5463 = int_to_ptr.vmem [resolvable:$true] %s5462
          %5465 = dma.vmem_to_hbm [thread:$0]  %s5463, 512, %s5460, %s5442
        $region407: #{tpu_custom_call.1} parent=138 // pred_fallthru
          _
        // Predicated region
        $region408: #{tpu_custom_call.1} parent=138 // pred_check
          %p5466 = pneg %p703
        $region409: #{tpu_custom_call.1} parent=138 // pred_check_branch
          %5468 = sbr.rel (%p5466) target = $region411
        $region410: #{tpu_custom_call.1} parent=138 // pred_region
          %s5470 = ssub.s32 256, 256
          %5471 = vsyncadd [#allocation19], %s5470
          %s5472 = sshll.u32 [#allocation18], 4
          %s5473 = int_to_ptr.vmem [resolvable:$true] %s5472
          %5478 = dma.vmem_to_hbm [thread:$0]  %s5473, 256, %s59, [#allocation19], 128, 128, 8
        $region411: #{tpu_custom_call.1} parent=138 // pred_fallthru
          _
        // Predicated region
        $region412: #{tpu_custom_call.1} parent=138 // pred_check
          %p5479 = pneg %p724
        $region413: #{tpu_custom_call.1} parent=138 // pred_check_branch
          %5481 = sbr.rel (%p5479) target = $region415
        $region414: #{tpu_custom_call.1} parent=138 // pred_region
          %s5483 = ssub.s32 128, 128
          %5484 = vsyncadd [#allocation19], %s5483
          %s5486 = sshll.u32 [#allocation20], 4
          %s5487 = int_to_ptr.vmem [resolvable:$true] %s5486
          %5489 = dma.vmem_to_hbm [thread:$0]  %s5487, 128, %s61, [#allocation19]
        $region415: #{tpu_custom_call.1} parent=138 // pred_fallthru
          _
        // Predicated region
        $region416: #{tpu_custom_call.1} parent=138 // pred_check
          %p5490 = pneg %p752
        $region417: #{tpu_custom_call.1} parent=138 // pred_check_branch
          %5492 = sbr.rel (%p5490) target = $region419
        $region418: #{tpu_custom_call.1} parent=138 // pred_region
          %s5493 = smul.u32 %s108, %s107
          %s5494 = smul.u32 4, %s5493
          %s5496 = ssub.s32 512, 512
          %5497 = vsyncadd %s5447, %s5496
          %s5498 = smul.addr %s5494, 128
          %s5499 = scalar_lea.hbm %s63, %s5498
          %s5501 = sshll.u32 %s5450, 4
          %s5502 = int_to_ptr.vmem [resolvable:$true] %s5501
          %5504 = dma.vmem_to_hbm [thread:$0]  %s5502, 512, %s5499, %s5447
        $region419: #{tpu_custom_call.1} parent=138 // pred_fallthru
          _
        // Predicated region
        $region420: #{tpu_custom_call.1} parent=138 // pred_check
          %p5505 = pneg %p773
        $region421: #{tpu_custom_call.1} parent=138 // pred_check_branch
          %5507 = sbr.rel (%p5505) target = $region423
        $region422: #{tpu_custom_call.1} parent=138 // pred_region
          %s5509 = ssub.s32 128, 128
          %5510 = vsyncadd [#allocation22], %s5509
          %s5512 = sshll.u32 [#allocation23], 4
          %s5513 = int_to_ptr.vmem [resolvable:$true] %s5512
          %5515 = dma.vmem_to_hbm [thread:$0]  %s5513, 128, %s65, [#allocation22]
        $region423: #{tpu_custom_call.1} parent=138 // pred_fallthru
          _
        // Predicated region
        $region424: #{tpu_custom_call.1} parent=138 // pred_check
          %p5516 = pneg %p794
        $region425: #{tpu_custom_call.1} parent=138 // pred_check_branch
          %5518 = sbr.rel (%p5516) target = $region427
        $region426: #{tpu_custom_call.1} parent=138 // pred_region
          %s5520 = ssub.s32 16, 16
          %5521 = vsyncadd [#allocation25], %s5520
          %s5523 = sshll.u32 [#allocation24], 4
          %s5524 = int_to_ptr.vmem [resolvable:$true] %s5523
          %5526 = dma.vmem_to_hbm [thread:$0]  %s5524, 16, %s67, [#allocation25]
        $region427: #{tpu_custom_call.1} parent=138 // pred_fallthru
          _
        // Predicated region
        $region428: #{tpu_custom_call.1} parent=138 // pred_check
          %p5527 = pneg %p703
        $region429: #{tpu_custom_call.1} parent=138 // pred_check_branch
          %5529 = sbr.rel (%p5527) target = $region431
        $region430: #{tpu_custom_call.1} parent=138 // pred_region
          %5530 = dma.done [#allocation19], 256
        $region431: #{tpu_custom_call.1} parent=138 // pred_fallthru
          _
        // Predicated region
        $region432: #{tpu_custom_call.1} parent=138 // pred_check
          %p5531 = pneg %p724
        $region433: #{tpu_custom_call.1} parent=138 // pred_check_branch
          %5533 = sbr.rel (%p5531) target = $region435
        $region434: #{tpu_custom_call.1} parent=138 // pred_region
          %5534 = dma.done [#allocation19], 128
        $region435: #{tpu_custom_call.1} parent=138 // pred_fallthru
          _
        // Predicated region
        $region436: #{tpu_custom_call.1} parent=138 // pred_check
          %p5535 = pneg %p773
        $region437: #{tpu_custom_call.1} parent=138 // pred_check_branch
          %5537 = sbr.rel (%p5535) target = $region439
        $region438: #{tpu_custom_call.1} parent=138 // pred_region
          %5538 = dma.done [#allocation22], 128
        $region439: #{tpu_custom_call.1} parent=138 // pred_fallthru
          _
        // Predicated region
        $region440: #{tpu_custom_call.1} parent=138 // pred_check
          %p5539 = pneg %p794
        $region441: #{tpu_custom_call.1} parent=138 // pred_check_branch
          %5541 = sbr.rel (%p5539) target = $region443
        $region442: #{tpu_custom_call.1} parent=138 // pred_region
          %5542 = dma.done [#allocation25], 16
        $region443: #{tpu_custom_call.1} parent=138 // pred_fallthru
          _
      $region139: #{tpu_custom_call.1} parent=5 // pred_fallthru
        _
      %p5543 = scmp.le.s32.totalorder 2, %s98
      // Predicated region
      $region444: #{tpu_custom_call.1} parent=5 // pred_check
        %p5544 = pneg %p5543
      $region445: #{tpu_custom_call.1} parent=5 // pred_check_branch
        %5546 = sbr.rel (%p5544) target = $region447
      $region446: #{tpu_custom_call.1} parent=5 // pred_region
        %s5547 = ssub.s32 %s98, 2
        // Predicated region
        $region448: #{tpu_custom_call.1} parent=446 // pred_check
          %p5548 = pneg %p688
        $region449: #{tpu_custom_call.1} parent=446 // pred_check_branch
          %5550 = sbr.rel (%p5548) target = $region451
        $region450: #{tpu_custom_call.1} parent=446 // pred_region
          %s5551 = sand.u32 %s673, 1
          %s5552 = scalar_lea.sflag [#allocation17], %s5551
          %s5553 = sand.u32 %s673, 1
          %s5554 = smul.addr %s5553, 32
          %s5555 = scalar_lea.vmem [#allocation16], %s5554
          %5556 = dma.done %s5552, 512
        $region451: #{tpu_custom_call.1} parent=446 // pred_fallthru
          _
        // Predicated region
        $region452: #{tpu_custom_call.1} parent=446 // pred_check
          %p5557 = pneg %p758
        $region453: #{tpu_custom_call.1} parent=446 // pred_check_branch
          %5559 = sbr.rel (%p5557) target = $region455
        $region454: #{tpu_custom_call.1} parent=446 // pred_region
          %s5560 = sand.u32 %s104, 1
          %s5561 = scalar_lea.sflag [#allocation22], %s5560
          %s5562 = sand.u32 %s743, 1
          %s5563 = smul.addr %s5562, 32
          %s5564 = scalar_lea.vmem [#allocation21], %s5563
          %5565 = dma.done %s5561, 512
        $region455: #{tpu_custom_call.1} parent=446 // pred_fallthru
          _
      $region447: #{tpu_custom_call.1} parent=5 // pred_fallthru
        _
    $region6: #{tpu_custom_call.1} parent=1 // loop_footer
      %s102 = sadd.s32 1, %s98
    $region7: #{tpu_custom_call.1} parent=1 // loop_footer_branch
      %97 = sbr.rel target = $region3
    $region8: #{tpu_custom_call.1} parent=1 // loop_exit
      _
    %5566 = vsyncpa [#allocation17], 1
    %s5567 = scalar_lea.sflag [#allocation17], 1
    %5568 = vsyncpa %s5567, 1
    %5569 = vsyncpa [#allocation19], 1
    %5570 = vsyncpa [#allocation22], 1
    %s5571 = scalar_lea.sflag [#allocation22], 1
    %5572 = vsyncpa %s5571, 1
    %5573 = vsyncpa [#allocation25], 1
  %5574 = vsyncmov [#allocation8]
  %s5575 = vpop.sfrf %5574
  %p5576 = scmp.eq.s32.totalorder %s5575, 0
  %p5577 = pneg %p5576
  %5579 = shalt.err (%p5577)
  %s5580 = scalar_lea.sflag [#allocation8], 1
  %5581 = vsyncmov %s5580
  %s5582 = vpop.sfrf %5581
  %p5583 = scmp.eq.s32.totalorder %s5582, 0
  %p5584 = pneg %p5583
  %5586 = shalt.err (%p5584)
  %s5587 = scalar_lea.sflag [#allocation8], 2
  %5588 = vsyncmov %s5587
  %s5589 = vpop.sfrf %5588
  %p5590 = scmp.eq.s32.totalorder %s5589, 0
  %p5591 = pneg %p5590
  %5593 = shalt.err (%p5591)
  %s5594 = scalar_lea.sflag [#allocation8], 3
  %5595 = vsyncmov %s5594
  %s5596 = vpop.sfrf %5595
  %p5597 = scmp.eq.s32.totalorder %s5596, 0
  %p5598 = pneg %p5597
  %5600 = shalt.err (%p5598)
  %s5601 = scalar_lea.sflag [#allocation8], 4
  %5602 = vsyncmov %s5601
  %s5603 = vpop.sfrf %5602
  %p5604 = scmp.eq.s32.totalorder %s5603, 0
  %p5605 = pneg %p5604
  %5607 = shalt.err (%p5605)
  %s5608 = scalar_lea.sflag [#allocation8], 5
  %5609 = vsyncmov %s5608
  %s5610 = vpop.sfrf %5609
  %p5611 = scmp.eq.s32.totalorder %s5610, 0
  %p5612 = pneg %p5611
  %5614 = shalt.err (%p5612)
  %s5615 = scalar_lea.sflag [#allocation8], 6
  %5616 = vsyncmov %s5615
  %s5617 = vpop.sfrf %5616
  %p5618 = scmp.eq.s32.totalorder %s5617, 0
  %p5619 = pneg %p5618
  %5621 = shalt.err (%p5619)
  %s5622 = scalar_lea.sflag [#allocation8], 7
  %5623 = vsyncmov %s5622
  %s5624 = vpop.sfrf %5623
  %p5625 = scmp.eq.s32.totalorder %s5624, 0
  %p5626 = pneg %p5625
  %5628 = shalt.err (%p5626)

</llo_original>
